<compile_context>
chip_gen: v5e
topology: v5e:2x2
jax: 0.10.0
libtpu: 0.0.40
codegen_flags: <defaults>
</compile_context>

<pallas_src>
import functools

import numpy as np
import jax
import jax.numpy as jnp
from jax.experimental import pallas as pl
from jax.experimental.pallas import tpu as pltpu


LEAKY_SLOPE = 0.01  # nn.LeakyReLU() default


def _round_up(x, m):
    return (x + m - 1) // m * m


def _vmem_cap_bytes():
    try:
        cap = int(pltpu.get_tpu_info().vmem_capacity_bytes)
        if cap > 0:
            return cap
    except Exception:
        pass
    return 64 * 1024 * 1024  # conservative default (v7x per-TC VMEM)


def _compiler_params(dimension_semantics, est_vmem_bytes):
    kwargs = dict(dimension_semantics=dimension_semantics)
    if est_vmem_bytes > 12 * 1024 * 1024:
        cap = _vmem_cap_bytes() - (16 << 20)          # leave compiler headroom
        kwargs["vmem_limit_bytes"] = int(max(min(est_vmem_bytes + (4 << 20), cap),
                                             16 << 20))
    return pltpu.CompilerParams(**kwargs)


# ---------------------------------------------------------------------------
# Generic conv-as-matmul kernel (conv1 / conv2 and the large-input fallback):
# one (TM, K) x (K, Cout) tile, fused bias / LeakyReLU / residual / round->int.
# ---------------------------------------------------------------------------
def _conv_mm_kernel(a_ref, b_ref, bias_ref, *rest, slope, round_int, has_res):
    if has_res:
        res_ref, o_ref = rest
    else:
        (o_ref,) = rest

    acc = jnp.dot(a_ref[...], b_ref[...], preferred_element_type=jnp.float32)
    acc = acc + bias_ref[...]                      # (1, Cout) broadcasts over rows
    if slope is not None:                          # LeakyReLU
        acc = jnp.where(acc >= 0.0, acc, slope * acc)
    if has_res:                                    # ResBlock skip connection
        acc = acc + res_ref[...]
    if round_int:                                  # x.round().int()
        o_ref[...] = jnp.round(acc).astype(jnp.int32)
    else:
        o_ref[...] = acc.astype(o_ref.dtype)


def conv2d_pallas(x_nhwc, weight, bias, *, stride=1, padding=0,
                  leaky_slope=None, residual=None, round_int=False,
                  use_bf16=True, out_dtype=jnp.float32):
    """weight: PyTorch layout (Cout, Cin, KH, KW); bias: (Cout,)."""
    N, H, W, Cin = x_nhwc.shape
    Cout, Cin_w, KH, KW = weight.shape
    assert Cin == Cin_w

    if padding:
        x_nhwc = jnp.pad(
            x_nhwc, ((0, 0), (padding, padding), (padding, padding), (0, 0)))
        H += 2 * padding
        W += 2 * padding

    Ho = (H - KH) // stride + 1
    Wo = (W - KW) // stride + 1

    # im2col patch extraction (pure XLA data-movement glue).
    patches = []
    for kh in range(KH):
        for kw in range(KW):
            patches.append(
                x_nhwc[:, kh:kh + stride * Ho:stride, kw:kw + stride * Wo:stride, :])
    A = jnp.concatenate(patches, axis=-1).reshape(N * Ho * Wo, KH * KW * Cin)

    # (Cout, Cin, KH, KW) -> (KH, KW, Cin, Cout) -> (K, Cout)
    Wmat = jnp.transpose(weight, (2, 3, 1, 0)).reshape(KH * KW * Cin, Cout)

    M, K = A.shape

    # Lane-dense padding: K and Cout rounded up to multiples of 128 (exact,
    # padded output columns sliced off).
    K_pad = _round_up(K, 128)
    Cout_pad = _round_up(Cout, 128)
    if K_pad != K:
        A = jnp.pad(A, ((0, 0), (0, K_pad - K)))
        Wmat = jnp.pad(Wmat, ((0, K_pad - K), (0, 0)))
    if Cout_pad != Cout:
        Wmat = jnp.pad(Wmat, ((0, 0), (0, Cout_pad - Cout)))
    bias2d = jnp.pad(bias, (0, Cout_pad - Cout)).reshape(1, Cout_pad).astype(jnp.float32)

    # bf16 matmul operands, f32 accumulation (MXU-native).
    mm_dtype = jnp.bfloat16 if use_bf16 else jnp.float32
    A = A.astype(mm_dtype)
    Wmat = Wmat.astype(mm_dtype)

    # TM: single block for tiny M; otherwise ~M/2 rounded to 16 (low padding,
    # >= 2 blocks for v7x megacore), capped at 512.
    if M <= 128:
        TM = _round_up(max(M, 16), 16)
    else:
        TM = min(512, _round_up((M + 1) // 2, 16))
    M_pad = _round_up(M, TM)
    if M_pad != M:
        A = jnp.pad(A, ((0, M_pad - M), (0, 0)))

    inputs = [A, Wmat, bias2d]
    in_specs = [
        pl.BlockSpec((TM, K_pad), lambda i: (i, 0)),        # streamed activations
        pl.BlockSpec((K_pad, Cout_pad), lambda i: (0, 0)),  # weight, resident
        pl.BlockSpec((1, Cout_pad), lambda i: (0, 0)),      # bias, resident
    ]

    has_res = residual is not None
    if has_res:
        R = residual.reshape(N * Ho * Wo, Cout).astype(jnp.float32)
        if Cout_pad != Cout:
            R = jnp.pad(R, ((0, 0), (0, Cout_pad - Cout)))
        if M_pad != M:
            R = jnp.pad(R, ((0, M_pad - M), (0, 0)))
        inputs.append(R)
        in_specs.append(pl.BlockSpec((TM, Cout_pad), lambda i: (i, 0)))

    final_dtype = jnp.int32 if round_int else out_dtype
    kernel = functools.partial(_conv_mm_kernel, slope=leaky_slope,
                               round_int=round_int, has_res=has_res)

    itemsize = 2 if use_bf16 else 4
    est_vmem = 2 * (TM * K_pad * itemsize
                    + K_pad * Cout_pad * itemsize
                    + TM * Cout_pad * 4)
    if has_res:
        est_vmem += 2 * TM * Cout_pad * 4

    out = pl.pallas_call(
        kernel,
        out_shape=jax.ShapeDtypeStruct((M_pad, Cout_pad), final_dtype),
        grid_spec=pltpu.PrefetchScalarGridSpec(
            num_scalar_prefetch=0,
            grid=(M_pad // TM,),
            in_specs=in_specs,
            out_specs=pl.BlockSpec((TM, Cout_pad), lambda i: (i, 0)),
        ),
        compiler_params=_compiler_params(("parallel",), est_vmem),
    )(*inputs)

    return out[:M, :Cout].reshape(N, Ho, Wo, Cout)


# ---------------------------------------------------------------------------
# Fused tail: res1 -> res2 -> res3 -> conv3 -> round().int() in ONE kernel,
# gridded over the batch dimension.
#
# Each 3x3 pad-1 conv: one wide dot  x @ Wpacked (C, 9C)  -> store into a
# zero-bordered VMEM scratch -> sum 9 shifted, boundary-masked column slices.
# conv3 (5x5 stride 2): gather-then-matmul with a tiny 0/1 gather matrix P.
# ---------------------------------------------------------------------------
def _tail_kernel(x_ref, mask_ref, rw_ref, rb_ref, p_ref, w3_ref, b3_ref,
                 o_ref, y_ref, *, shifts):
    mi_pad, c = x_ref.shape
    mop, cp = o_ref.shape
    nt3 = w3_ref.shape[0]
    n_res = rw_ref.shape[0] // 2
    pad = (y_ref.shape[0] - mi_pad) // 2

    # Zero the scratch; borders must be zero, central region is overwritten by
    # every conv (cheap, and safe under megacore partitioning of the grid).
    y_ref[...] = jnp.zeros_like(y_ref)

    def conv3x3(z, idx):
        # One wide MXU dot: (mi_pad, C) x (C, 9C) with f32 accumulation.
        y = jnp.dot(z.astype(rw_ref.dtype), rw_ref[idx],
                    preferred_element_type=jnp.float32)
        y_ref[pad:pad + mi_pad, :] = y
        acc = jnp.zeros((mi_pad, c), jnp.float32)
        for t, s in enumerate(shifts):            # 9 shifted/masked adds (VPU)
            tap = y_ref[pad + s:pad + s + mi_pad, t * c:(t + 1) * c]
            msk = mask_ref[t * mi_pad:(t + 1) * mi_pad, :]
            acc = acc + tap * msk
        return acc + rb_ref[idx]                   # bias (1, C)

    x = x_ref[...].astype(jnp.float32)             # f32 residual stream
    for r in range(n_res):
        h = conv3x3(x, 2 * r)
        h = jnp.where(h >= 0.0, h, LEAKY_SLOPE * h)      # LeakyReLU
        x = conv3x3(h, 2 * r + 1) + x                    # residual add

    # conv3: gather only the rows the stride-2 5x5 conv needs, then matmul.
    g = jnp.dot(p_ref[...], x, preferred_element_type=jnp.float32)  # (nt3*mop, C)
    acc3 = jnp.zeros((mop, cp), jnp.float32)
    for t in range(nt3):
        acc3 = acc3 + jnp.dot(g[t * mop:(t + 1) * mop, :], w3_ref[t],
                              preferred_element_type=jnp.float32)
    acc3 = acc3 + b3_ref[...]
    o_ref[...] = jnp.round(acc3).astype(jnp.int32)


def _tail_vmem_estimate(H, W, C, Cout3, K3):
    Mi = H * W
    Mi_pad = _round_up(max(Mi, 8), 8)
    PAD = _round_up(W + 1, 8)
    Ho = (H - K3) // 2 + 1
    Wo = (W - K3) // 2 + 1
    Mop = _round_up(max(Ho * Wo, 8), 8)
    Cp = _round_up(Cout3, 128)
    nt3 = K3 * K3
    lane = 128
    per_block = Mi_pad * C * 4 + Mop * Cp * 4                 # x block + out block
    invariant = (9 * Mi_pad * lane * 4                        # boundary masks
                 + 6 * C * 9 * C * 2                          # packed res weights
                 + 6 * 8 * C * 4                              # res biases
                 + nt3 * Mop * max(Mi_pad, lane) * 4          # conv3 gather matrix
                 + nt3 * C * Cp * 4                           # conv3 weights
                 + 8 * Cp * 4)                                # conv3 bias
    scratch = (Mi_pad + 2 * PAD) * 9 * C * 4
    temps = 3 * Mi_pad * 9 * C * 4
    return 2 * (per_block + invariant) + scratch + temps


def _fused_tail(x_nhwc, res_params, w3, b3):
    N, H, W, C = x_nhwc.shape
    Mi = H * W
    Mi_pad = _round_up(max(Mi, 8), 8)
    PAD = _round_up(W + 1, 8)

    x3 = x_nhwc.reshape(N, Mi, C).astype(jnp.float32)
    if Mi_pad != Mi:
        x3 = jnp.pad(x3, ((0, 0), (0, Mi_pad - Mi), (0, 0)))

    # Row shifts and boundary masks for the 3x3 pad-1 convs (per image).
    mask_np = np.zeros((9, Mi_pad, 1), np.float32)
    shifts = []
    for kh in range(3):
        for kw in range(3):
            dh, dw = kh - 1, kw - 1
            shifts.append(dh * W + dw)
            for i in range(H):
                for j in range(W):
                    if 0 <= i + dh < H and 0 <= j + dw < W:
                        mask_np[kh * 3 + kw, i * W + j, 0] = 1.0
    mask = jnp.asarray(mask_np.reshape(9 * Mi_pad, 1))

    # Pack the six 3x3 conv weights tap-major along columns: (6, C, 9C) bf16.
    rw_list, rb_list = [], []
    for p in res_params:
        for wk, bk in (("w1", "b1"), ("w2", "b2")):
            wt = jnp.transpose(p[wk], (2, 3, 1, 0)).reshape(9, C, C)   # (t, Cin, Cout)
            rw_list.append(jnp.transpose(wt, (1, 0, 2)).reshape(C, 9 * C))
            rb_list.append(p[bk].reshape(1, C))
    rw = jnp.stack(rw_list).astype(jnp.bfloat16)                       # (6, C, 9C)
    rb = jnp.stack(rb_list).astype(jnp.float32)                        # (6, 1, C)

    # conv3 (5x5, stride 2, valid): gather matrix + tap-major weights (f32).
    Cout, Cin3, K3, _ = w3.shape
    Ho = (H - K3) // 2 + 1
    Wo = (W - K3) // 2 + 1
    Mo = Ho * Wo
    Mop = _round_up(max(Mo, 8), 8)
    Cp = _round_up(Cout, 128)
    nt3 = K3 * K3

    p_np = np.zeros((nt3 * Mop, Mi_pad), np.float32)
    for a in range(K3):
        for b in range(K3):
            t = a * K3 + b
            for oi in range(Ho):
                for oj in range(Wo):
                    q = oi * Wo + oj
                    m = (2 * oi + a) * W + (2 * oj + b)
                    p_np[t * Mop + q, m] = 1.0
    Pm = jnp.asarray(p_np)

    w3m = jnp.transpose(w3, (2, 3, 1, 0)).reshape(nt3, Cin3, Cout)
    w3m = jnp.pad(w3m, ((0, 0), (0, 0), (0, Cp - Cout))).astype(jnp.float32)
    b3m = jnp.pad(b3, (0, Cp - Cout)).reshape(1, Cp).astype(jnp.float32)

    kernel = functools.partial(_tail_kernel, shifts=tuple(shifts))
    est = _tail_vmem_estimate(H, W, C, Cout, K3)

    out = pl.pallas_call(
        kernel,
        out_shape=jax.ShapeDtypeStruct((N, Mop, Cp), jnp.int32),
        grid_spec=pltpu.PrefetchScalarGridSpec(
            num_scalar_prefetch=0,
            grid=(N,),
            in_specs=[
                pl.BlockSpec((None, Mi_pad, C), lambda b: (b, 0, 0)),   # per-image x
                pl.BlockSpec((9 * Mi_pad, 1), lambda b: (0, 0)),        # masks
                pl.BlockSpec((6, C, 9 * C), lambda b: (0, 0, 0)),       # res weights
                pl.BlockSpec((6, 1, C), lambda b: (0, 0, 0)),           # res biases
                pl.BlockSpec((nt3 * Mop, Mi_pad), lambda b: (0, 0)),    # conv3 gather
                pl.BlockSpec((nt3, C, Cp), lambda b: (0, 0, 0)),        # conv3 weights
                pl.BlockSpec((1, Cp), lambda b: (0, 0)),                # conv3 bias
            ],
            out_specs=pl.BlockSpec((None, Mop, Cp), lambda b: (b, 0, 0)),
            scratch_shapes=[
                pltpu.VMEM((Mi_pad + 2 * PAD, 9 * C), jnp.float32),     # shift buffer
            ],
        ),
        compiler_params=_compiler_params(("parallel",), est),
    )(x3, mask, rw, rb, Pm, w3m, b3m)

    return out[:, :Mo, :Cout].reshape(N, Ho, Wo, Cout)


# ---------------------------------------------------------------------------
# Module-level forward pass
# ---------------------------------------------------------------------------
def res_block_unfused(x, p):
    h = conv2d_pallas(x, p["w1"], p["b1"], stride=1, padding=1,
                      leaky_slope=LEAKY_SLOPE, out_dtype=jnp.bfloat16)
    return conv2d_pallas(h, p["w2"], p["b2"], stride=1, padding=1, residual=x)


def encoder_forward(x_nchw, params):
    x = jnp.transpose(x_nchw, (0, 2, 3, 1))                   # NCHW -> NHWC
    # conv1 output in bf16: the next layer casts its patch matrix to bf16 anyway.
    x = conv2d_pallas(x, params["conv1_w"], params["conv1_b"],
                      stride=2, leaky_slope=LEAKY_SLOPE, out_dtype=jnp.bfloat16)
    x = conv2d_pallas(x, params["conv2_w"], params["conv2_b"],
                      stride=2, leaky_slope=LEAKY_SLOPE)

    res_params = [params["res1"], params["res2"], params["res3"]]
    N, H, W, C = x.shape
    K3 = params["conv3_w"].shape[2]
    cap = _vmem_cap_bytes()
    if (H >= K3 and W >= K3 and
            _tail_vmem_estimate(H, W, C, params["conv3_w"].shape[0], K3)
            <= 0.5 * cap):
        # Fused tail: 3 ResBlocks + conv3 + round().int() in one pallas_call.
        x = _fused_tail(x, res_params, params["conv3_w"], params["conv3_b"])
    else:
        # Large-activation fallback: per-conv im2col path (conv3 in f32).
        for rp in res_params:
            x = res_block_unfused(x, rp)
        x = conv2d_pallas(x, params["conv3_w"], params["conv3_b"],
                          stride=2, round_int=True, use_bf16=False)
    return jnp.transpose(x, (0, 3, 1, 2))                     # NHWC -> NCHW


# ---------------------------------------------------------------------------
# Pure-JAX reference (f32) for a loose correctness check
# ---------------------------------------------------------------------------
def _conv_ref(x, w, b, stride, padding):
    out = jax.lax.conv_general_dilated(
        x, w, window_strides=(stride, stride),
        padding=((padding, padding), (padding, padding)),
        dimension_numbers=("NCHW", "OIHW", "NCHW"),
        precision=jax.lax.Precision.HIGHEST)
    return out + b.reshape(1, -1, 1, 1)


def encoder_reference(x, params):
    leaky = lambda v: jnp.where(v >= 0, v, LEAKY_SLOPE * v)
    x = leaky(_conv_ref(x, params["conv1_w"], params["conv1_b"], 2, 0))
    x = leaky(_conv_ref(x, params["conv2_w"], params["conv2_b"], 2, 0))
    for name in ("res1", "res2", "res3"):
        p = params[name]
        h = leaky(_conv_ref(x, p["w1"], p["b1"], 1, 1))
        x = _conv_ref(h, p["w2"], p["b2"], 1, 1) + x
    x = _conv_ref(x, params["conv3_w"], params["conv3_b"], 2, 0)
    return jnp.round(x).astype(jnp.int32)


# ---------------------------------------------------------------------------
# Deterministic parameter init (shapes from Encoder.__init__)
# ---------------------------------------------------------------------------
def init_conv(key, cout, cin, k):
    kw, kb = jax.random.split(key)
    fan_in = cin * k * k
    w = jax.random.normal(kw, (cout, cin, k, k), jnp.float32) / jnp.sqrt(fan_in)
    b = jax.random.normal(kb, (cout,), jnp.float32) * 0.01
    return w, b


if __name__ == "__main__":
    key = jax.random.PRNGKey(0)
    keys = jax.random.split(key, 10)

    params = {}
    params["conv1_w"], params["conv1_b"] = init_conv(keys[0], 64, 3, 5)
    params["conv2_w"], params["conv2_b"] = init_conv(keys[1], 128, 64, 5)
    for idx, name in enumerate(["res1", "res2", "res3"]):
        w1, b1 = init_conv(keys[2 + 2 * idx], 128, 128, 3)
        w2, b2 = init_conv(keys[3 + 2 * idx], 128, 128, 3)
        params[name] = {"w1": w1, "b1": b1, "w2": w2, "b2": b2}
    params["conv3_w"], params["conv3_b"] = init_conv(keys[8], 96, 128, 5)

    # 32x32 input: conv1 -> 14x14, conv2 -> 5x5, res x3 -> 5x5, conv3 -> 1x1
    x = jax.random.normal(keys[9], (2, 3, 32, 32), jnp.float32)

    out = jax.jit(encoder_forward)(x, params)
    out = np.asarray(jax.block_until_ready(out))

    assert out.shape == (2, 96, 1, 1), out.shape
    assert out.dtype == np.int32, out.dtype

    # Loose correctness check vs the f32 reference: bf16 matmul operands can
    # legitimately flip round() by +/-1 for values very close to x.5, so allow
    # |diff| <= 1 and require a large exact-match fraction.
    ref = np.asarray(jax.block_until_ready(encoder_reference(x, params)))
    diff = np.abs(out.astype(np.int64) - ref.astype(np.int64))
    assert diff.max() <= 1, ("max |diff| vs reference", int(diff.max()))
    assert (diff == 0).mean() >= 0.6, ("exact-match fraction", float((diff == 0).mean()))

    print("KERNEL_OK")
</pallas_src>

<mosaic_0001>
module attributes {stable_mosaic.version = 11 : i64} {
  func.func @_conv_mm_kernel(%arg0: i32, %arg1: memref<208x128xbf16, #tpu.memory_space<vmem>>, %arg2: memref<128x128xbf16, #tpu.memory_space<vmem>>, %arg3: memref<1x128xf32, #tpu.memory_space<vmem>>, %arg4: memref<208x128xbf16, #tpu.memory_space<vmem>>) attributes {dimension_semantics = [#tpu.dimension_semantics<parallel>], iteration_bounds = array<i64: 2>, scalar_prefetch = 0 : i64, scratch_operands = 0 : i64, tpu.core_type = #tpu.core_type<tc>, window_params = [{transform_indices = @transform_0, window_bounds = array<i64: 208, 128>}, {pipeline_mode = #tpu.pipeline_mode<synchronous>, transform_indices = @transform_1, window_bounds = array<i64: 128, 128>}, {pipeline_mode = #tpu.pipeline_mode<synchronous>, transform_indices = @transform_2, window_bounds = array<i64: 1, 128>}, {transform_indices = @transform_3, window_bounds = array<i64: 208, 128>}]} {
    %c0 = arith.constant 0 : index
    %c0_0 = arith.constant 0 : index
    %0 = vector.load %arg1[%c0, %c0_0] : memref<208x128xbf16, #tpu.memory_space<vmem>>, vector<208x128xbf16>
    %c0_1 = arith.constant 0 : index
    %c0_2 = arith.constant 0 : index
    %1 = vector.load %arg2[%c0_1, %c0_2] : memref<128x128xbf16, #tpu.memory_space<vmem>>, vector<128x128xbf16>
    %cst = arith.constant dense<0.000000e+00> : vector<208x128xf32>
    %2 = tpu.matmul %0, %1, %cst {dimension_numbers = #tpu.dot_dimension_numbers<[1], [0], [0], [1], [0, 0, 1, 1], [], []>} : vector<208x128xbf16>, vector<128x128xbf16>, vector<208x128xf32> -> vector<208x128xf32>
    %c0_3 = arith.constant 0 : index
    %c0_4 = arith.constant 0 : index
    %3 = vector.load %arg3[%c0_3, %c0_4] : memref<1x128xf32, #tpu.memory_space<vmem>>, vector<1x128xf32>
    %4 = vector.broadcast %3 : vector<1x128xf32> to vector<208x128xf32>
    %5 = arith.addf %2, %4 : vector<208x128xf32>
    %cst_5 = arith.constant 0.000000e+00 : f32
    %6 = vector.broadcast %cst_5 : f32 to vector<208x128xf32>
    %7 = arith.cmpf oge, %5, %6 : vector<208x128xf32>
    %cst_6 = arith.constant 0.00999999977 : f32
    %8 = vector.broadcast %cst_6 : f32 to vector<208x128xf32>
    %9 = arith.mulf %8, %5 : vector<208x128xf32>
    %10 = arith.select %7, %5, %9 : vector<208x128xi1>, vector<208x128xf32>
    %11 = arith.truncf %10 : vector<208x128xf32> to vector<208x128xbf16>
    %c0_7 = arith.constant 0 : index
    %c0_8 = arith.constant 0 : index
    %12 = vector.load %arg4[%c0_7, %c0_8] : memref<208x128xbf16, #tpu.memory_space<vmem>>, vector<208x128xbf16>
    tpu.vector_store %arg4[%c0_7, %c0_8], %11 {strides = array<i32>} : memref<208x128xbf16, #tpu.memory_space<vmem>>, vector<208x128xbf16>,
    return
  }
  func.func @transform_0(%arg0: i32) -> (i32, i32) {
    %c0_i32 = arith.constant 0 : i32
    %c0_i32_0 = arith.constant 0 : i32
    return %arg0, %c0_i32 : i32, i32
  }
  func.func @transform_1(%arg0: i32) -> (i32, i32) {
    %c0_i32 = arith.constant 0 : i32
    %c0_i32_0 = arith.constant 0 : i32
    %c0_i32_1 = arith.constant 0 : i32
    return %c0_i32, %c0_i32_0 : i32, i32
  }
  func.func @transform_2(%arg0: i32) -> (i32, i32) {
    %c0_i32 = arith.constant 0 : i32
    %c0_i32_0 = arith.constant 0 : i32
    %c0_i32_1 = arith.constant 0 : i32
    return %c0_i32, %c0_i32_0 : i32, i32
  }
  func.func @transform_3(%arg0: i32) -> (i32, i32) {
    %c0_i32 = arith.constant 0 : i32
    %c0_i32_0 = arith.constant 0 : i32
    return %arg0, %c0_i32 : i32, i32
  }
}

module attributes {stable_mosaic.version = 11 : i64} {
  func.func @_conv_mm_kernel(%arg0: i32, %arg1: memref<64x1664xbf16, #tpu.memory_space<vmem>>, %arg2: memref<1664x128xbf16, #tpu.memory_space<vmem>>, %arg3: memref<1x128xf32, #tpu.memory_space<vmem>>, %arg4: memref<64x128xf32, #tpu.memory_space<vmem>>) attributes {dimension_semantics = [#tpu.dimension_semantics<parallel>], iteration_bounds = array<i64: 1>, scalar_prefetch = 0 : i64, scratch_operands = 0 : i64, tpu.core_type = #tpu.core_type<tc>, window_params = [{transform_indices = @transform_0, window_bounds = array<i64: 64, 1664>}, {pipeline_mode = #tpu.pipeline_mode<synchronous>, transform_indices = @transform_1, window_bounds = array<i64: 1664, 128>}, {pipeline_mode = #tpu.pipeline_mode<synchronous>, transform_indices = @transform_2, window_bounds = array<i64: 1, 128>}, {transform_indices = @transform_3, window_bounds = array<i64: 64, 128>}]} {
    %c0 = arith.constant 0 : index
    %c0_0 = arith.constant 0 : index
    %0 = vector.load %arg1[%c0, %c0_0] : memref<64x1664xbf16, #tpu.memory_space<vmem>>, vector<64x1664xbf16>
    %c0_1 = arith.constant 0 : index
    %c0_2 = arith.constant 0 : index
    %1 = vector.load %arg2[%c0_1, %c0_2] : memref<1664x128xbf16, #tpu.memory_space<vmem>>, vector<1664x128xbf16>
    %cst = arith.constant dense<0.000000e+00> : vector<64x128xf32>
    %2 = tpu.matmul %0, %1, %cst {dimension_numbers = #tpu.dot_dimension_numbers<[1], [0], [0], [1], [0, 0, 1, 1], [], []>} : vector<64x1664xbf16>, vector<1664x128xbf16>, vector<64x128xf32> -> vector<64x128xf32>
    %c0_3 = arith.constant 0 : index
    %c0_4 = arith.constant 0 : index
    %3 = vector.load %arg3[%c0_3, %c0_4] : memref<1x128xf32, #tpu.memory_space<vmem>>, vector<1x128xf32>
    %4 = vector.broadcast %3 : vector<1x128xf32> to vector<64x128xf32>
    %5 = arith.addf %2, %4 : vector<64x128xf32>
    %cst_5 = arith.constant 0.000000e+00 : f32
    %6 = vector.broadcast %cst_5 : f32 to vector<64x128xf32>
    %7 = arith.cmpf oge, %5, %6 : vector<64x128xf32>
    %cst_6 = arith.constant 0.00999999977 : f32
    %8 = vector.broadcast %cst_6 : f32 to vector<64x128xf32>
    %9 = arith.mulf %8, %5 : vector<64x128xf32>
    %10 = arith.select %7, %5, %9 : vector<64x128xi1>, vector<64x128xf32>
    %c0_7 = arith.constant 0 : index
    %c0_8 = arith.constant 0 : index
    %11 = vector.load %arg4[%c0_7, %c0_8] : memref<64x128xf32, #tpu.memory_space<vmem>>, vector<64x128xf32>
    tpu.vector_store %arg4[%c0_7, %c0_8], %10 {strides = array<i32>} : memref<64x128xf32, #tpu.memory_space<vmem>>, vector<64x128xf32>,
    return
  }
  func.func @transform_0(%arg0: i32) -> (i32, i32) {
    %c0_i32 = arith.constant 0 : i32
    %c0_i32_0 = arith.constant 0 : i32
    return %arg0, %c0_i32 : i32, i32
  }
  func.func @transform_1(%arg0: i32) -> (i32, i32) {
    %c0_i32 = arith.constant 0 : i32
    %c0_i32_0 = arith.constant 0 : i32
    %c0_i32_1 = arith.constant 0 : i32
    return %c0_i32, %c0_i32_0 : i32, i32
  }
  func.func @transform_2(%arg0: i32) -> (i32, i32) {
    %c0_i32 = arith.constant 0 : i32
    %c0_i32_0 = arith.constant 0 : i32
    %c0_i32_1 = arith.constant 0 : i32
    return %c0_i32, %c0_i32_0 : i32, i32
  }
  func.func @transform_3(%arg0: i32) -> (i32, i32) {
    %c0_i32 = arith.constant 0 : i32
    %c0_i32_0 = arith.constant 0 : i32
    return %arg0, %c0_i32 : i32, i32
  }
}

module attributes {stable_mosaic.version = 11 : i64} {
  func.func @_tail_kernel(%arg0: i32, %arg1: memref<1x32x128xf32, #tpu.memory_space<vmem>>, %arg2: memref<288x1xf32, #tpu.memory_space<vmem>>, %arg3: memref<6x128x1152xbf16, #tpu.memory_space<vmem>>, %arg4: memref<6x1x128xf32, #tpu.memory_space<vmem>>, %arg5: memref<200x32xf32, #tpu.memory_space<vmem>>, %arg6: memref<25x128x128xf32, #tpu.memory_space<vmem>>, %arg7: memref<1x128xf32, #tpu.memory_space<vmem>>, %arg8: memref<1x8x128xi32, #tpu.memory_space<vmem>>, %arg9: memref<48x1152xf32, #tpu.memory_space<vmem>>) attributes {dimension_semantics = [#tpu.dimension_semantics<parallel>], iteration_bounds = array<i64: 2>, scalar_prefetch = 0 : i64, scratch_operands = 1 : i64, tpu.core_type = #tpu.core_type<tc>, window_params = [{transform_indices = @transform_0, window_bounds = array<i64: 1, 32, 128>}, {pipeline_mode = #tpu.pipeline_mode<synchronous>, transform_indices = @transform_1, window_bounds = array<i64: 288, 1>}, {pipeline_mode = #tpu.pipeline_mode<synchronous>, transform_indices = @transform_2, window_bounds = array<i64: 6, 128, 1152>}, {pipeline_mode = #tpu.pipeline_mode<synchronous>, transform_indices = @transform_3, window_bounds = array<i64: 6, 1, 128>}, {pipeline_mode = #tpu.pipeline_mode<synchronous>, transform_indices = @transform_4, window_bounds = array<i64: 200, 32>}, {pipeline_mode = #tpu.pipeline_mode<synchronous>, transform_indices = @transform_5, window_bounds = array<i64: 25, 128, 128>}, {pipeline_mode = #tpu.pipeline_mode<synchronous>, transform_indices = @transform_6, window_bounds = array<i64: 1, 128>}, {transform_indices = @transform_7, window_bounds = array<i64: 1, 8, 128>}]} {
    %cst = arith.constant 0.000000e+00 : f32
    %0 = vector.broadcast %cst : f32 to vector<48x1152xf32>
    %c0 = arith.constant 0 : index
    %c0_0 = arith.constant 0 : index
    %1 = vector.load %arg9[%c0, %c0_0] : memref<48x1152xf32, #tpu.memory_space<vmem>>, vector<48x1152xf32>
    tpu.vector_store %arg9[%c0, %c0_0], %0 {strides = array<i32>} : memref<48x1152xf32, #tpu.memory_space<vmem>>, vector<48x1152xf32>,
    %c0_1 = arith.constant 0 : index
    %c0_2 = arith.constant 0 : index
    %c0_3 = arith.constant 0 : index
    %2 = vector.load %arg1[%c0_1, %c0_2, %c0_3] : memref<1x32x128xf32, #tpu.memory_space<vmem>>, vector<1x32x128xf32>
    %3 = vector.shape_cast %2 : vector<1x32x128xf32> to vector<32x128xf32>
    %4 = arith.truncf %3 : vector<32x128xf32> to vector<32x128xbf16>
    %c0_4 = arith.constant 0 : index
    %c0_5 = arith.constant 0 : index
    %c0_6 = arith.constant 0 : index
    %5 = vector.load %arg3[%c0_4, %c0_5, %c0_6] : memref<6x128x1152xbf16, #tpu.memory_space<vmem>>, vector<1x128x1152xbf16>
    %6 = vector.shape_cast %5 : vector<1x128x1152xbf16> to vector<128x1152xbf16>
    %cst_7 = arith.constant dense<0.000000e+00> : vector<32x1152xf32>
    %7 = tpu.matmul %4, %6, %cst_7 {dimension_numbers = #tpu.dot_dimension_numbers<[1], [0], [0], [1], [0, 0, 1, 1], [], []>} : vector<32x128xbf16>, vector<128x1152xbf16>, vector<32x1152xf32> -> vector<32x1152xf32>
    %c8 = arith.constant 8 : index
    %c0_8 = arith.constant 0 : index
    %8 = vector.load %arg9[%c8, %c0_8] : memref<48x1152xf32, #tpu.memory_space<vmem>>, vector<32x1152xf32>
    tpu.vector_store %arg9[%c8, %c0_8], %7 {strides = array<i32>} : memref<48x1152xf32, #tpu.memory_space<vmem>>, vector<32x1152xf32>,
    %cst_9 = arith.constant 0.000000e+00 : f32
    %9 = vector.broadcast %cst_9 : f32 to vector<32x128xf32>
    %c2 = arith.constant 2 : index
    %c0_10 = arith.constant 0 : index
    %10 = vector.load %arg9[%c2, %c0_10] : memref<48x1152xf32, #tpu.memory_space<vmem>>, vector<32x128xf32>
    %c0_11 = arith.constant 0 : index
    %c0_12 = arith.constant 0 : index
    %11 = vector.load %arg2[%c0_11, %c0_12] : memref<288x1xf32, #tpu.memory_space<vmem>>, vector<32x1xf32>
    %12 = vector.broadcast %11 : vector<32x1xf32> to vector<32x128xf32>
    %13 = arith.mulf %10, %12 : vector<32x128xf32>
    %14 = arith.addf %9, %13 : vector<32x128xf32>
    %c3 = arith.constant 3 : index
    %c128 = arith.constant 128 : index
    %15 = vector.load %arg9[%c3, %c128] : memref<48x1152xf32, #tpu.memory_space<vmem>>, vector<32x128xf32>
    %c32 = arith.constant 32 : index
    %c0_13 = arith.constant 0 : index
    %16 = vector.load %arg2[%c32, %c0_13] : memref<288x1xf32, #tpu.memory_space<vmem>>, vector<32x1xf32>
    %17 = vector.broadcast %16 : vector<32x1xf32> to vector<32x128xf32>
    %18 = arith.mulf %15, %17 : vector<32x128xf32>
    %19 = arith.addf %14, %18 : vector<32x128xf32>
    %c4 = arith.constant 4 : index
    %c256 = arith.constant 256 : index
    %20 = vector.load %arg9[%c4, %c256] : memref<48x1152xf32, #tpu.memory_space<vmem>>, vector<32x128xf32>
    %c64 = arith.constant 64 : index
    %c0_14 = arith.constant 0 : index
    %21 = vector.load %arg2[%c64, %c0_14] : memref<288x1xf32, #tpu.memory_space<vmem>>, vector<32x1xf32>
    %22 = vector.broadcast %21 : vector<32x1xf32> to vector<32x128xf32>
    %23 = arith.mulf %20, %22 : vector<32x128xf32>
    %24 = arith.addf %19, %23 : vector<32x128xf32>
    %c7 = arith.constant 7 : index
    %c384 = arith.constant 384 : index
    %25 = vector.load %arg9[%c7, %c384] : memref<48x1152xf32, #tpu.memory_space<vmem>>, vector<32x128xf32>
    %c96 = arith.constant 96 : index
    %c0_15 = arith.constant 0 : index
    %26 = vector.load %arg2[%c96, %c0_15] : memref<288x1xf32, #tpu.memory_space<vmem>>, vector<32x1xf32>
    %27 = vector.broadcast %26 : vector<32x1xf32> to vector<32x128xf32>
    %28 = arith.mulf %25, %27 : vector<32x128xf32>
    %29 = arith.addf %24, %28 : vector<32x128xf32>
    %c8_16 = arith.constant 8 : index
    %c512 = arith.constant 512 : index
    %30 = vector.load %arg9[%c8_16, %c512] : memref<48x1152xf32, #tpu.memory_space<vmem>>, vector<32x128xf32>
    %c128_17 = arith.constant 128 : index
    %c0_18 = arith.constant 0 : index
    %31 = vector.load %arg2[%c128_17, %c0_18] : memref<288x1xf32, #tpu.memory_space<vmem>>, vector<32x1xf32>
    %32 = vector.broadcast %31 : vector<32x1xf32> to vector<32x128xf32>
    %33 = arith.mulf %30, %32 : vector<32x128xf32>
    %34 = arith.addf %29, %33 : vector<32x128xf32>
    %c9 = arith.constant 9 : index
    %c640 = arith.constant 640 : index
    %35 = vector.load %arg9[%c9, %c640] : memref<48x1152xf32, #tpu.memory_space<vmem>>, vector<32x128xf32>
    %c160 = arith.constant 160 : index
    %c0_19 = arith.constant 0 : index
    %36 = vector.load %arg2[%c160, %c0_19] : memref<288x1xf32, #tpu.memory_space<vmem>>, vector<32x1xf32>
    %37 = vector.broadcast %36 : vector<32x1xf32> to vector<32x128xf32>
    %38 = arith.mulf %35, %37 : vector<32x128xf32>
    %39 = arith.addf %34, %38 : vector<32x128xf32>
    %c12 = arith.constant 12 : index
    %c768 = arith.constant 768 : index
    %40 = vector.load %arg9[%c12, %c768] : memref<48x1152xf32, #tpu.memory_space<vmem>>, vector<32x128xf32>
    %c192 = arith.constant 192 : index
    %c0_20 = arith.constant 0 : index
    %41 = vector.load %arg2[%c192, %c0_20] : memref<288x1xf32, #tpu.memory_space<vmem>>, vector<32x1xf32>
    %42 = vector.broadcast %41 : vector<32x1xf32> to vector<32x128xf32>
    %43 = arith.mulf %40, %42 : vector<32x128xf32>
    %44 = arith.addf %39, %43 : vector<32x128xf32>
    %c13 = arith.constant 13 : index
    %c896 = arith.constant 896 : index
    %45 = vector.load %arg9[%c13, %c896] : memref<48x1152xf32, #tpu.memory_space<vmem>>, vector<32x128xf32>
    %c224 = arith.constant 224 : index
    %c0_21 = arith.constant 0 : index
    %46 = vector.load %arg2[%c224, %c0_21] : memref<288x1xf32, #tpu.memory_space<vmem>>, vector<32x1xf32>
    %47 = vector.broadcast %46 : vector<32x1xf32> to vector<32x128xf32>
    %48 = arith.mulf %45, %47 : vector<32x128xf32>
    %49 = arith.addf %44, %48 : vector<32x128xf32>
    %c14 = arith.constant 14 : index
    %c1024 = arith.constant 1024 : index
    %50 = vector.load %arg9[%c14, %c1024] : memref<48x1152xf32, #tpu.memory_space<vmem>>, vector<32x128xf32>
    %c256_22 = arith.constant 256 : index
    %c0_23 = arith.constant 0 : index
    %51 = vector.load %arg2[%c256_22, %c0_23] : memref<288x1xf32, #tpu.memory_space<vmem>>, vector<32x1xf32>
    %52 = vector.broadcast %51 : vector<32x1xf32> to vector<32x128xf32>
    %53 = arith.mulf %50, %52 : vector<32x128xf32>
    %54 = arith.addf %49, %53 : vector<32x128xf32>
    %c0_24 = arith.constant 0 : index
    %c0_25 = arith.constant 0 : index
    %c0_26 = arith.constant 0 : index
    %55 = vector.load %arg4[%c0_24, %c0_25, %c0_26] : memref<6x1x128xf32, #tpu.memory_space<vmem>>, vector<1x1x128xf32>
    %56 = vector.shape_cast %55 : vector<1x1x128xf32> to vector<1x128xf32>
    %57 = vector.broadcast %56 : vector<1x128xf32> to vector<32x128xf32>
    %58 = arith.addf %54, %57 : vector<32x128xf32>
    %cst_27 = arith.constant 0.000000e+00 : f32
    %59 = vector.broadcast %cst_27 : f32 to vector<32x128xf32>
    %60 = arith.cmpf oge, %58, %59 : vector<32x128xf32>
    %cst_28 = arith.constant 0.00999999977 : f32
    %61 = vector.broadcast %cst_28 : f32 to vector<32x128xf32>
    %62 = arith.mulf %61, %58 : vector<32x128xf32>
    %63 = arith.select %60, %58, %62 : vector<32x128xi1>, vector<32x128xf32>
    %64 = arith.truncf %63 : vector<32x128xf32> to vector<32x128xbf16>
    %c1 = arith.constant 1 : index
    %c0_29 = arith.constant 0 : index
    %c0_30 = arith.constant 0 : index
    %65 = vector.load %arg3[%c1, %c0_29, %c0_30] : memref<6x128x1152xbf16, #tpu.memory_space<vmem>>, vector<1x128x1152xbf16>
    %66 = vector.shape_cast %65 : vector<1x128x1152xbf16> to vector<128x1152xbf16>
    %cst_31 = arith.constant dense<0.000000e+00> : vector<32x1152xf32>
    %67 = tpu.matmul %64, %66, %cst_31 {dimension_numbers = #tpu.dot_dimension_numbers<[1], [0], [0], [1], [0, 0, 1, 1], [], []>} : vector<32x128xbf16>, vector<128x1152xbf16>, vector<32x1152xf32> -> vector<32x1152xf32>
    %c8_32 = arith.constant 8 : index
    %c0_33 = arith.constant 0 : index
    %68 = vector.load %arg9[%c8_32, %c0_33] : memref<48x1152xf32, #tpu.memory_space<vmem>>, vector<32x1152xf32>
    tpu.vector_store %arg9[%c8_32, %c0_33], %67 {strides = array<i32>} : memref<48x1152xf32, #tpu.memory_space<vmem>>, vector<32x1152xf32>,
    %cst_34 = arith.constant 0.000000e+00 : f32
    %69 = vector.broadcast %cst_34 : f32 to vector<32x128xf32>
    %c2_35 = arith.constant 2 : index
    %c0_36 = arith.constant 0 : index
    %70 = vector.load %arg9[%c2_35, %c0_36] : memref<48x1152xf32, #tpu.memory_space<vmem>>, vector<32x128xf32>
    %c0_37 = arith.constant 0 : index
    %c0_38 = arith.constant 0 : index
    %71 = vector.load %arg2[%c0_37, %c0_38] : memref<288x1xf32, #tpu.memory_space<vmem>>, vector<32x1xf32>
    %72 = vector.broadcast %71 : vector<32x1xf32> to vector<32x128xf32>
    %73 = arith.mulf %70, %72 : vector<32x128xf32>
    %74 = arith.addf %69, %73 : vector<32x128xf32>
    %c3_39 = arith.constant 3 : index
    %c128_40 = arith.constant 128 : index
    %75 = vector.load %arg9[%c3_39, %c128_40] : memref<48x1152xf32, #tpu.memory_space<vmem>>, vector<32x128xf32>
    %c32_41 = arith.constant 32 : index
    %c0_42 = arith.constant 0 : index
    %76 = vector.load %arg2[%c32_41, %c0_42] : memref<288x1xf32, #tpu.memory_space<vmem>>, vector<32x1xf32>
    %77 = vector.broadcast %76 : vector<32x1xf32> to vector<32x128xf32>
    %78 = arith.mulf %75, %77 : vector<32x128xf32>
    %79 = arith.addf %74, %78 : vector<32x128xf32>
    %c4_43 = arith.constant 4 : index
    %c256_44 = arith.constant 256 : index
    %80 = vector.load %arg9[%c4_43, %c256_44] : memref<48x1152xf32, #tpu.memory_space<vmem>>, vector<32x128xf32>
    %c64_45 = arith.constant 64 : index
    %c0_46 = arith.constant 0 : index
    %81 = vector.load %arg2[%c64_45, %c0_46] : memref<288x1xf32, #tpu.memory_space<vmem>>, vector<32x1xf32>
    %82 = vector.broadcast %81 : vector<32x1xf32> to vector<32x128xf32>
    %83 = arith.mulf %80, %82 : vector<32x128xf32>
    %84 = arith.addf %79, %83 : vector<32x128xf32>
    %c7_47 = arith.constant 7 : index
    %c384_48 = arith.constant 384 : index
    %85 = vector.load %arg9[%c7_47, %c384_48] : memref<48x1152xf32, #tpu.memory_space<vmem>>, vector<32x128xf32>
    %c96_49 = arith.constant 96 : index
    %c0_50 = arith.constant 0 : index
    %86 = vector.load %arg2[%c96_49, %c0_50] : memref<288x1xf32, #tpu.memory_space<vmem>>, vector<32x1xf32>
    %87 = vector.broadcast %86 : vector<32x1xf32> to vector<32x128xf32>
    %88 = arith.mulf %85, %87 : vector<32x128xf32>
    %89 = arith.addf %84, %88 : vector<32x128xf32>
    %c8_51 = arith.constant 8 : index
    %c512_52 = arith.constant 512 : index
    %90 = vector.load %arg9[%c8_51, %c512_52] : memref<48x1152xf32, #tpu.memory_space<vmem>>, vector<32x128xf32>
    %c128_53 = arith.constant 128 : index
    %c0_54 = arith.constant 0 : index
    %91 = vector.load %arg2[%c128_53, %c0_54] : memref<288x1xf32, #tpu.memory_space<vmem>>, vector<32x1xf32>
    %92 = vector.broadcast %91 : vector<32x1xf32> to vector<32x128xf32>
    %93 = arith.mulf %90, %92 : vector<32x128xf32>
    %94 = arith.addf %89, %93 : vector<32x128xf32>
    %c9_55 = arith.constant 9 : index
    %c640_56 = arith.constant 640 : index
    %95 = vector.load %arg9[%c9_55, %c640_56] : memref<48x1152xf32, #tpu.memory_space<vmem>>, vector<32x128xf32>
    %c160_57 = arith.constant 160 : index
    %c0_58 = arith.constant 0 : index
    %96 = vector.load %arg2[%c160_57, %c0_58] : memref<288x1xf32, #tpu.memory_space<vmem>>, vector<32x1xf32>
    %97 = vector.broadcast %96 : vector<32x1xf32> to vector<32x128xf32>
    %98 = arith.mulf %95, %97 : vector<32x128xf32>
    %99 = arith.addf %94, %98 : vector<32x128xf32>
    %c12_59 = arith.constant 12 : index
    %c768_60 = arith.constant 768 : index
    %100 = vector.load %arg9[%c12_59, %c768_60] : memref<48x1152xf32, #tpu.memory_space<vmem>>, vector<32x128xf32>
    %c192_61 = arith.constant 192 : index
    %c0_62 = arith.constant 0 : index
    %101 = vector.load %arg2[%c192_61, %c0_62] : memref<288x1xf32, #tpu.memory_space<vmem>>, vector<32x1xf32>
    %102 = vector.broadcast %101 : vector<32x1xf32> to vector<32x128xf32>
    %103 = arith.mulf %100, %102 : vector<32x128xf32>
    %104 = arith.addf %99, %103 : vector<32x128xf32>
    %c13_63 = arith.constant 13 : index
    %c896_64 = arith.constant 896 : index
    %105 = vector.load %arg9[%c13_63, %c896_64] : memref<48x1152xf32, #tpu.memory_space<vmem>>, vector<32x128xf32>
    %c224_65 = arith.constant 224 : index
    %c0_66 = arith.constant 0 : index
    %106 = vector.load %arg2[%c224_65, %c0_66] : memref<288x1xf32, #tpu.memory_space<vmem>>, vector<32x1xf32>
    %107 = vector.broadcast %106 : vector<32x1xf32> to vector<32x128xf32>
    %108 = arith.mulf %105, %107 : vector<32x128xf32>
    %109 = arith.addf %104, %108 : vector<32x128xf32>
    %c14_67 = arith.constant 14 : index
    %c1024_68 = arith.constant 1024 : index
    %110 = vector.load %arg9[%c14_67, %c1024_68] : memref<48x1152xf32, #tpu.memory_space<vmem>>, vector<32x128xf32>
    %c256_69 = arith.constant 256 : index
    %c0_70 = arith.constant 0 : index
    %111 = vector.load %arg2[%c256_69, %c0_70] : memref<288x1xf32, #tpu.memory_space<vmem>>, vector<32x1xf32>
    %112 = vector.broadcast %111 : vector<32x1xf32> to vector<32x128xf32>
    %113 = arith.mulf %110, %112 : vector<32x128xf32>
    %114 = arith.addf %109, %113 : vector<32x128xf32>
    %c1_71 = arith.constant 1 : index
    %c0_72 = arith.constant 0 : index
    %c0_73 = arith.constant 0 : index
    %115 = vector.load %arg4[%c1_71, %c0_72, %c0_73] : memref<6x1x128xf32, #tpu.memory_space<vmem>>, vector<1x1x128xf32>
    %116 = vector.shape_cast %115 : vector<1x1x128xf32> to vector<1x128xf32>
    %117 = vector.broadcast %116 : vector<1x128xf32> to vector<32x128xf32>
    %118 = arith.addf %114, %117 : vector<32x128xf32>
    %119 = arith.addf %118, %3 : vector<32x128xf32>
    %120 = arith.truncf %119 : vector<32x128xf32> to vector<32x128xbf16>
    %c2_74 = arith.constant 2 : index
    %c0_75 = arith.constant 0 : index
    %c0_76 = arith.constant 0 : index
    %121 = vector.load %arg3[%c2_74, %c0_75, %c0_76] : memref<6x128x1152xbf16, #tpu.memory_space<vmem>>, vector<1x128x1152xbf16>
    %122 = vector.shape_cast %121 : vector<1x128x1152xbf16> to vector<128x1152xbf16>
    %cst_77 = arith.constant dense<0.000000e+00> : vector<32x1152xf32>
    %123 = tpu.matmul %120, %122, %cst_77 {dimension_numbers = #tpu.dot_dimension_numbers<[1], [0], [0], [1], [0, 0, 1, 1], [], []>} : vector<32x128xbf16>, vector<128x1152xbf16>, vector<32x1152xf32> -> vector<32x1152xf32>
    %c8_78 = arith.constant 8 : index
    %c0_79 = arith.constant 0 : index
    %124 = vector.load %arg9[%c8_78, %c0_79] : memref<48x1152xf32, #tpu.memory_space<vmem>>, vector<32x1152xf32>
    tpu.vector_store %arg9[%c8_78, %c0_79], %123 {strides = array<i32>} : memref<48x1152xf32, #tpu.memory_space<vmem>>, vector<32x1152xf32>,
    %cst_80 = arith.constant 0.000000e+00 : f32
    %125 = vector.broadcast %cst_80 : f32 to vector<32x128xf32>
    %c2_81 = arith.constant 2 : index
    %c0_82 = arith.constant 0 : index
    %126 = vector.load %arg9[%c2_81, %c0_82] : memref<48x1152xf32, #tpu.memory_space<vmem>>, vector<32x128xf32>
    %c0_83 = arith.constant 0 : index
    %c0_84 = arith.constant 0 : index
    %127 = vector.load %arg2[%c0_83, %c0_84] : memref<288x1xf32, #tpu.memory_space<vmem>>, vector<32x1xf32>
    %128 = vector.broadcast %127 : vector<32x1xf32> to vector<32x128xf32>
    %129 = arith.mulf %126, %128 : vector<32x128xf32>
    %130 = arith.addf %125, %129 : vector<32x128xf32>
    %c3_85 = arith.constant 3 : index
    %c128_86 = arith.constant 128 : index
    %131 = vector.load %arg9[%c3_85, %c128_86] : memref<48x1152xf32, #tpu.memory_space<vmem>>, vector<32x128xf32>
    %c32_87 = arith.constant 32 : index
    %c0_88 = arith.constant 0 : index
    %132 = vector.load %arg2[%c32_87, %c0_88] : memref<288x1xf32, #tpu.memory_space<vmem>>, vector<32x1xf32>
    %133 = vector.broadcast %132 : vector<32x1xf32> to vector<32x128xf32>
    %134 = arith.mulf %131, %133 : vector<32x128xf32>
    %135 = arith.addf %130, %134 : vector<32x128xf32>
    %c4_89 = arith.constant 4 : index
    %c256_90 = arith.constant 256 : index
    %136 = vector.load %arg9[%c4_89, %c256_90] : memref<48x1152xf32, #tpu.memory_space<vmem>>, vector<32x128xf32>
    %c64_91 = arith.constant 64 : index
    %c0_92 = arith.constant 0 : index
    %137 = vector.load %arg2[%c64_91, %c0_92] : memref<288x1xf32, #tpu.memory_space<vmem>>, vector<32x1xf32>
    %138 = vector.broadcast %137 : vector<32x1xf32> to vector<32x128xf32>
    %139 = arith.mulf %136, %138 : vector<32x128xf32>
    %140 = arith.addf %135, %139 : vector<32x128xf32>
    %c7_93 = arith.constant 7 : index
    %c384_94 = arith.constant 384 : index
    %141 = vector.load %arg9[%c7_93, %c384_94] : memref<48x1152xf32, #tpu.memory_space<vmem>>, vector<32x128xf32>
    %c96_95 = arith.constant 96 : index
    %c0_96 = arith.constant 0 : index
    %142 = vector.load %arg2[%c96_95, %c0_96] : memref<288x1xf32, #tpu.memory_space<vmem>>, vector<32x1xf32>
    %143 = vector.broadcast %142 : vector<32x1xf32> to vector<32x128xf32>
    %144 = arith.mulf %141, %143 : vector<32x128xf32>
    %145 = arith.addf %140, %144 : vector<32x128xf32>
    %c8_97 = arith.constant 8 : index
    %c512_98 = arith.constant 512 : index
    %146 = vector.load %arg9[%c8_97, %c512_98] : memref<48x1152xf32, #tpu.memory_space<vmem>>, vector<32x128xf32>
    %c128_99 = arith.constant 128 : index
    %c0_100 = arith.constant 0 : index
    %147 = vector.load %arg2[%c128_99, %c0_100] : memref<288x1xf32, #tpu.memory_space<vmem>>, vector<32x1xf32>
    %148 = vector.broadcast %147 : vector<32x1xf32> to vector<32x128xf32>
    %149 = arith.mulf %146, %148 : vector<32x128xf32>
    %150 = arith.addf %145, %149 : vector<32x128xf32>
    %c9_101 = arith.constant 9 : index
    %c640_102 = arith.constant 640 : index
    %151 = vector.load %arg9[%c9_101, %c640_102] : memref<48x1152xf32, #tpu.memory_space<vmem>>, vector<32x128xf32>
    %c160_103 = arith.constant 160 : index
    %c0_104 = arith.constant 0 : index
    %152 = vector.load %arg2[%c160_103, %c0_104] : memref<288x1xf32, #tpu.memory_space<vmem>>, vector<32x1xf32>
    %153 = vector.broadcast %152 : vector<32x1xf32> to vector<32x128xf32>
    %154 = arith.mulf %151, %153 : vector<32x128xf32>
    %155 = arith.addf %150, %154 : vector<32x128xf32>
    %c12_105 = arith.constant 12 : index
    %c768_106 = arith.constant 768 : index
    %156 = vector.load %arg9[%c12_105, %c768_106] : memref<48x1152xf32, #tpu.memory_space<vmem>>, vector<32x128xf32>
    %c192_107 = arith.constant 192 : index
    %c0_108 = arith.constant 0 : index
    %157 = vector.load %arg2[%c192_107, %c0_108] : memref<288x1xf32, #tpu.memory_space<vmem>>, vector<32x1xf32>
    %158 = vector.broadcast %157 : vector<32x1xf32> to vector<32x128xf32>
    %159 = arith.mulf %156, %158 : vector<32x128xf32>
    %160 = arith.addf %155, %159 : vector<32x128xf32>
    %c13_109 = arith.constant 13 : index
    %c896_110 = arith.constant 896 : index
    %161 = vector.load %arg9[%c13_109, %c896_110] : memref<48x1152xf32, #tpu.memory_space<vmem>>, vector<32x128xf32>
    %c224_111 = arith.constant 224 : index
    %c0_112 = arith.constant 0 : index
    %162 = vector.load %arg2[%c224_111, %c0_112] : memref<288x1xf32, #tpu.memory_space<vmem>>, vector<32x1xf32>
    %163 = vector.broadcast %162 : vector<32x1xf32> to vector<32x128xf32>
    %164 = arith.mulf %161, %163 : vector<32x128xf32>
    %165 = arith.addf %160, %164 : vector<32x128xf32>
    %c14_113 = arith.constant 14 : index
    %c1024_114 = arith.constant 1024 : index
    %166 = vector.load %arg9[%c14_113, %c1024_114] : memref<48x1152xf32, #tpu.memory_space<vmem>>, vector<32x128xf32>
    %c256_115 = arith.constant 256 : index
    %c0_116 = arith.constant 0 : index
    %167 = vector.load %arg2[%c256_115, %c0_116] : memref<288x1xf32, #tpu.memory_space<vmem>>, vector<32x1xf32>
    %168 = vector.broadcast %167 : vector<32x1xf32> to vector<32x128xf32>
    %169 = arith.mulf %166, %168 : vector<32x128xf32>
    %170 = arith.addf %165, %169 : vector<32x128xf32>
    %c2_117 = arith.constant 2 : index
    %c0_118 = arith.constant 0 : index
    %c0_119 = arith.constant 0 : index
    %171 = vector.load %arg4[%c2_117, %c0_118, %c0_119] : memref<6x1x128xf32, #tpu.memory_space<vmem>>, vector<1x1x128xf32>
    %172 = vector.shape_cast %171 : vector<1x1x128xf32> to vector<1x128xf32>
    %173 = vector.broadcast %172 : vector<1x128xf32> to vector<32x128xf32>
    %174 = arith.addf %170, %173 : vector<32x128xf32>
    %cst_120 = arith.constant 0.000000e+00 : f32
    %175 = vector.broadcast %cst_120 : f32 to vector<32x128xf32>
    %176 = arith.cmpf oge, %174, %175 : vector<32x128xf32>
    %cst_121 = arith.constant 0.00999999977 : f32
    %177 = vector.broadcast %cst_121 : f32 to vector<32x128xf32>
    %178 = arith.mulf %177, %174 : vector<32x128xf32>
    %179 = arith.select %176, %174, %178 : vector<32x128xi1>, vector<32x128xf32>
    %180 = arith.truncf %179 : vector<32x128xf32> to vector<32x128xbf16>
    %c3_122 = arith.constant 3 : index
    %c0_123 = arith.constant 0 : index
    %c0_124 = arith.constant 0 : index
    %181 = vector.load %arg3[%c3_122, %c0_123, %c0_124] : memref<6x128x1152xbf16, #tpu.memory_space<vmem>>, vector<1x128x1152xbf16>
    %182 = vector.shape_cast %181 : vector<1x128x1152xbf16> to vector<128x1152xbf16>
    %cst_125 = arith.constant dense<0.000000e+00> : vector<32x1152xf32>
    %183 = tpu.matmul %180, %182, %cst_125 {dimension_numbers = #tpu.dot_dimension_numbers<[1], [0], [0], [1], [0, 0, 1, 1], [], []>} : vector<32x128xbf16>, vector<128x1152xbf16>, vector<32x1152xf32> -> vector<32x1152xf32>
    %c8_126 = arith.constant 8 : index
    %c0_127 = arith.constant 0 : index
    %184 = vector.load %arg9[%c8_126, %c0_127] : memref<48x1152xf32, #tpu.memory_space<vmem>>, vector<32x1152xf32>
    tpu.vector_store %arg9[%c8_126, %c0_127], %183 {strides = array<i32>} : memref<48x1152xf32, #tpu.memory_space<vmem>>, vector<32x1152xf32>,
    %cst_128 = arith.constant 0.000000e+00 : f32
    %185 = vector.broadcast %cst_128 : f32 to vector<32x128xf32>
    %c2_129 = arith.constant 2 : index
    %c0_130 = arith.constant 0 : index
    %186 = vector.load %arg9[%c2_129, %c0_130] : memref<48x1152xf32, #tpu.memory_space<vmem>>, vector<32x128xf32>
    %c0_131 = arith.constant 0 : index
    %c0_132 = arith.constant 0 : index
    %187 = vector.load %arg2[%c0_131, %c0_132] : memref<288x1xf32, #tpu.memory_space<vmem>>, vector<32x1xf32>
    %188 = vector.broadcast %187 : vector<32x1xf32> to vector<32x128xf32>
    %189 = arith.mulf %186, %188 : vector<32x128xf32>
    %190 = arith.addf %185, %189 : vector<32x128xf32>
    %c3_133 = arith.constant 3 : index
    %c128_134 = arith.constant 128 : index
    %191 = vector.load %arg9[%c3_133, %c128_134] : memref<48x1152xf32, #tpu.memory_space<vmem>>, vector<32x128xf32>
    %c32_135 = arith.constant 32 : index
    %c0_136 = arith.constant 0 : index
    %192 = vector.load %arg2[%c32_135, %c0_136] : memref<288x1xf32, #tpu.memory_space<vmem>>, vector<32x1xf32>
    %193 = vector.broadcast %192 : vector<32x1xf32> to vector<32x128xf32>
    %194 = arith.mulf %191, %193 : vector<32x128xf32>
    %195 = arith.addf %190, %194 : vector<32x128xf32>
    %c4_137 = arith.constant 4 : index
    %c256_138 = arith.constant 256 : index
    %196 = vector.load %arg9[%c4_137, %c256_138] : memref<48x1152xf32, #tpu.memory_space<vmem>>, vector<32x128xf32>
    %c64_139 = arith.constant 64 : index
    %c0_140 = arith.constant 0 : index
    %197 = vector.load %arg2[%c64_139, %c0_140] : memref<288x1xf32, #tpu.memory_space<vmem>>, vector<32x1xf32>
    %198 = vector.broadcast %197 : vector<32x1xf32> to vector<32x128xf32>
    %199 = arith.mulf %196, %198 : vector<32x128xf32>
    %200 = arith.addf %195, %199 : vector<32x128xf32>
    %c7_141 = arith.constant 7 : index
    %c384_142 = arith.constant 384 : index
    %201 = vector.load %arg9[%c7_141, %c384_142] : memref<48x1152xf32, #tpu.memory_space<vmem>>, vector<32x128xf32>
    %c96_143 = arith.constant 96 : index
    %c0_144 = arith.constant 0 : index
    %202 = vector.load %arg2[%c96_143, %c0_144] : memref<288x1xf32, #tpu.memory_space<vmem>>, vector<32x1xf32>
    %203 = vector.broadcast %202 : vector<32x1xf32> to vector<32x128xf32>
    %204 = arith.mulf %201, %203 : vector<32x128xf32>
    %205 = arith.addf %200, %204 : vector<32x128xf32>
    %c8_145 = arith.constant 8 : index
    %c512_146 = arith.constant 512 : index
    %206 = vector.load %arg9[%c8_145, %c512_146] : memref<48x1152xf32, #tpu.memory_space<vmem>>, vector<32x128xf32>
    %c128_147 = arith.constant 128 : index
    %c0_148 = arith.constant 0 : index
    %207 = vector.load %arg2[%c128_147, %c0_148] : memref<288x1xf32, #tpu.memory_space<vmem>>, vector<32x1xf32>
    %208 = vector.broadcast %207 : vector<32x1xf32> to vector<32x128xf32>
    %209 = arith.mulf %206, %208 : vector<32x128xf32>
    %210 = arith.addf %205, %209 : vector<32x128xf32>
    %c9_149 = arith.constant 9 : index
    %c640_150 = arith.constant 640 : index
    %211 = vector.load %arg9[%c9_149, %c640_150] : memref<48x1152xf32, #tpu.memory_space<vmem>>, vector<32x128xf32>
    %c160_151 = arith.constant 160 : index
    %c0_152 = arith.constant 0 : index
    %212 = vector.load %arg2[%c160_151, %c0_152] : memref<288x1xf32, #tpu.memory_space<vmem>>, vector<32x1xf32>
    %213 = vector.broadcast %212 : vector<32x1xf32> to vector<32x128xf32>
    %214 = arith.mulf %211, %213 : vector<32x128xf32>
    %215 = arith.addf %210, %214 : vector<32x128xf32>
    %c12_153 = arith.constant 12 : index
    %c768_154 = arith.constant 768 : index
    %216 = vector.load %arg9[%c12_153, %c768_154] : memref<48x1152xf32, #tpu.memory_space<vmem>>, vector<32x128xf32>
    %c192_155 = arith.constant 192 : index
    %c0_156 = arith.constant 0 : index
    %217 = vector.load %arg2[%c192_155, %c0_156] : memref<288x1xf32, #tpu.memory_space<vmem>>, vector<32x1xf32>
    %218 = vector.broadcast %217 : vector<32x1xf32> to vector<32x128xf32>
    %219 = arith.mulf %216, %218 : vector<32x128xf32>
    %220 = arith.addf %215, %219 : vector<32x128xf32>
    %c13_157 = arith.constant 13 : index
    %c896_158 = arith.constant 896 : index
    %221 = vector.load %arg9[%c13_157, %c896_158] : memref<48x1152xf32, #tpu.memory_space<vmem>>, vector<32x128xf32>
    %c224_159 = arith.constant 224 : index
    %c0_160 = arith.constant 0 : index
    %222 = vector.load %arg2[%c224_159, %c0_160] : memref<288x1xf32, #tpu.memory_space<vmem>>, vector<32x1xf32>
    %223 = vector.broadcast %222 : vector<32x1xf32> to vector<32x128xf32>
    %224 = arith.mulf %221, %223 : vector<32x128xf32>
    %225 = arith.addf %220, %224 : vector<32x128xf32>
    %c14_161 = arith.constant 14 : index
    %c1024_162 = arith.constant 1024 : index
    %226 = vector.load %arg9[%c14_161, %c1024_162] : memref<48x1152xf32, #tpu.memory_space<vmem>>, vector<32x128xf32>
    %c256_163 = arith.constant 256 : index
    %c0_164 = arith.constant 0 : index
    %227 = vector.load %arg2[%c256_163, %c0_164] : memref<288x1xf32, #tpu.memory_space<vmem>>, vector<32x1xf32>
    %228 = vector.broadcast %227 : vector<32x1xf32> to vector<32x128xf32>
    %229 = arith.mulf %226, %228 : vector<32x128xf32>
    %230 = arith.addf %225, %229 : vector<32x128xf32>
    %c3_165 = arith.constant 3 : index
    %c0_166 = arith.constant 0 : index
    %c0_167 = arith.constant 0 : index
    %231 = vector.load %arg4[%c3_165, %c0_166, %c0_167] : memref<6x1x128xf32, #tpu.memory_space<vmem>>, vector<1x1x128xf32>
    %232 = vector.shape_cast %231 : vector<1x1x128xf32> to vector<1x128xf32>
    %233 = vector.broadcast %232 : vector<1x128xf32> to vector<32x128xf32>
    %234 = arith.addf %230, %233 : vector<32x128xf32>
    %235 = arith.addf %234, %119 : vector<32x128xf32>
    %236 = arith.truncf %235 : vector<32x128xf32> to vector<32x128xbf16>
    %c4_168 = arith.constant 4 : index
    %c0_169 = arith.constant 0 : index
    %c0_170 = arith.constant 0 : index
    %237 = vector.load %arg3[%c4_168, %c0_169, %c0_170] : memref<6x128x1152xbf16, #tpu.memory_space<vmem>>, vector<1x128x1152xbf16>
    %238 = vector.shape_cast %237 : vector<1x128x1152xbf16> to vector<128x1152xbf16>
    %cst_171 = arith.constant dense<0.000000e+00> : vector<32x1152xf32>
    %239 = tpu.matmul %236, %238, %cst_171 {dimension_numbers = #tpu.dot_dimension_numbers<[1], [0], [0], [1], [0, 0, 1, 1], [], []>} : vector<32x128xbf16>, vector<128x1152xbf16>, vector<32x1152xf32> -> vector<32x1152xf32>
    %c8_172 = arith.constant 8 : index
    %c0_173 = arith.constant 0 : index
    %240 = vector.load %arg9[%c8_172, %c0_173] : memref<48x1152xf32, #tpu.memory_space<vmem>>, vector<32x1152xf32>
    tpu.vector_store %arg9[%c8_172, %c0_173], %239 {strides = array<i32>} : memref<48x1152xf32, #tpu.memory_space<vmem>>, vector<32x1152xf32>,
    %cst_174 = arith.constant 0.000000e+00 : f32
    %241 = vector.broadcast %cst_174 : f32 to vector<32x128xf32>
    %c2_175 = arith.constant 2 : index
    %c0_176 = arith.constant 0 : index
    %242 = vector.load %arg9[%c2_175, %c0_176] : memref<48x1152xf32, #tpu.memory_space<vmem>>, vector<32x128xf32>
    %c0_177 = arith.constant 0 : index
    %c0_178 = arith.constant 0 : index
    %243 = vector.load %arg2[%c0_177, %c0_178] : memref<288x1xf32, #tpu.memory_space<vmem>>, vector<32x1xf32>
    %244 = vector.broadcast %243 : vector<32x1xf32> to vector<32x128xf32>
    %245 = arith.mulf %242, %244 : vector<32x128xf32>
    %246 = arith.addf %241, %245 : vector<32x128xf32>
    %c3_179 = arith.constant 3 : index
    %c128_180 = arith.constant 128 : index
    %247 = vector.load %arg9[%c3_179, %c128_180] : memref<48x1152xf32, #tpu.memory_space<vmem>>, vector<32x128xf32>
    %c32_181 = arith.constant 32 : index
    %c0_182 = arith.constant 0 : index
    %248 = vector.load %arg2[%c32_181, %c0_182] : memref<288x1xf32, #tpu.memory_space<vmem>>, vector<32x1xf32>
    %249 = vector.broadcast %248 : vector<32x1xf32> to vector<32x128xf32>
    %250 = arith.mulf %247, %249 : vector<32x128xf32>
    %251 = arith.addf %246, %250 : vector<32x128xf32>
    %c4_183 = arith.constant 4 : index
    %c256_184 = arith.constant 256 : index
    %252 = vector.load %arg9[%c4_183, %c256_184] : memref<48x1152xf32, #tpu.memory_space<vmem>>, vector<32x128xf32>
    %c64_185 = arith.constant 64 : index
    %c0_186 = arith.constant 0 : index
    %253 = vector.load %arg2[%c64_185, %c0_186] : memref<288x1xf32, #tpu.memory_space<vmem>>, vector<32x1xf32>
    %254 = vector.broadcast %253 : vector<32x1xf32> to vector<32x128xf32>
    %255 = arith.mulf %252, %254 : vector<32x128xf32>
    %256 = arith.addf %251, %255 : vector<32x128xf32>
    %c7_187 = arith.constant 7 : index
    %c384_188 = arith.constant 384 : index
    %257 = vector.load %arg9[%c7_187, %c384_188] : memref<48x1152xf32, #tpu.memory_space<vmem>>, vector<32x128xf32>
    %c96_189 = arith.constant 96 : index
    %c0_190 = arith.constant 0 : index
    %258 = vector.load %arg2[%c96_189, %c0_190] : memref<288x1xf32, #tpu.memory_space<vmem>>, vector<32x1xf32>
    %259 = vector.broadcast %258 : vector<32x1xf32> to vector<32x128xf32>
    %260 = arith.mulf %257, %259 : vector<32x128xf32>
    %261 = arith.addf %256, %260 : vector<32x128xf32>
    %c8_191 = arith.constant 8 : index
    %c512_192 = arith.constant 512 : index
    %262 = vector.load %arg9[%c8_191, %c512_192] : memref<48x1152xf32, #tpu.memory_space<vmem>>, vector<32x128xf32>
    %c128_193 = arith.constant 128 : index
    %c0_194 = arith.constant 0 : index
    %263 = vector.load %arg2[%c128_193, %c0_194] : memref<288x1xf32, #tpu.memory_space<vmem>>, vector<32x1xf32>
    %264 = vector.broadcast %263 : vector<32x1xf32> to vector<32x128xf32>
    %265 = arith.mulf %262, %264 : vector<32x128xf32>
    %266 = arith.addf %261, %265 : vector<32x128xf32>
    %c9_195 = arith.constant 9 : index
    %c640_196 = arith.constant 640 : index
    %267 = vector.load %arg9[%c9_195, %c640_196] : memref<48x1152xf32, #tpu.memory_space<vmem>>, vector<32x128xf32>
    %c160_197 = arith.constant 160 : index
    %c0_198 = arith.constant 0 : index
    %268 = vector.load %arg2[%c160_197, %c0_198] : memref<288x1xf32, #tpu.memory_space<vmem>>, vector<32x1xf32>
    %269 = vector.broadcast %268 : vector<32x1xf32> to vector<32x128xf32>
    %270 = arith.mulf %267, %269 : vector<32x128xf32>
    %271 = arith.addf %266, %270 : vector<32x128xf32>
    %c12_199 = arith.constant 12 : index
    %c768_200 = arith.constant 768 : index
    %272 = vector.load %arg9[%c12_199, %c768_200] : memref<48x1152xf32, #tpu.memory_space<vmem>>, vector<32x128xf32>
    %c192_201 = arith.constant 192 : index
    %c0_202 = arith.constant 0 : index
    %273 = vector.load %arg2[%c192_201, %c0_202] : memref<288x1xf32, #tpu.memory_space<vmem>>, vector<32x1xf32>
    %274 = vector.broadcast %273 : vector<32x1xf32> to vector<32x128xf32>
    %275 = arith.mulf %272, %274 : vector<32x128xf32>
    %276 = arith.addf %271, %275 : vector<32x128xf32>
    %c13_203 = arith.constant 13 : index
    %c896_204 = arith.constant 896 : index
    %277 = vector.load %arg9[%c13_203, %c896_204] : memref<48x1152xf32, #tpu.memory_space<vmem>>, vector<32x128xf32>
    %c224_205 = arith.constant 224 : index
    %c0_206 = arith.constant 0 : index
    %278 = vector.load %arg2[%c224_205, %c0_206] : memref<288x1xf32, #tpu.memory_space<vmem>>, vector<32x1xf32>
    %279 = vector.broadcast %278 : vector<32x1xf32> to vector<32x128xf32>
    %280 = arith.mulf %277, %279 : vector<32x128xf32>
    %281 = arith.addf %276, %280 : vector<32x128xf32>
    %c14_207 = arith.constant 14 : index
    %c1024_208 = arith.constant 1024 : index
    %282 = vector.load %arg9[%c14_207, %c1024_208] : memref<48x1152xf32, #tpu.memory_space<vmem>>, vector<32x128xf32>
    %c256_209 = arith.constant 256 : index
    %c0_210 = arith.constant 0 : index
    %283 = vector.load %arg2[%c256_209, %c0_210] : memref<288x1xf32, #tpu.memory_space<vmem>>, vector<32x1xf32>
    %284 = vector.broadcast %283 : vector<32x1xf32> to vector<32x128xf32>
    %285 = arith.mulf %282, %284 : vector<32x128xf32>
    %286 = arith.addf %281, %285 : vector<32x128xf32>
    %c4_211 = arith.constant 4 : index
    %c0_212 = arith.constant 0 : index
    %c0_213 = arith.constant 0 : index
    %287 = vector.load %arg4[%c4_211, %c0_212, %c0_213] : memref<6x1x128xf32, #tpu.memory_space<vmem>>, vector<1x1x128xf32>
    %288 = vector.shape_cast %287 : vector<1x1x128xf32> to vector<1x128xf32>
    %289 = vector.broadcast %288 : vector<1x128xf32> to vector<32x128xf32>
    %290 = arith.addf %286, %289 : vector<32x128xf32>
    %cst_214 = arith.constant 0.000000e+00 : f32
    %291 = vector.broadcast %cst_214 : f32 to vector<32x128xf32>
    %292 = arith.cmpf oge, %290, %291 : vector<32x128xf32>
    %cst_215 = arith.constant 0.00999999977 : f32
    %293 = vector.broadcast %cst_215 : f32 to vector<32x128xf32>
    %294 = arith.mulf %293, %290 : vector<32x128xf32>
    %295 = arith.select %292, %290, %294 : vector<32x128xi1>, vector<32x128xf32>
    %296 = arith.truncf %295 : vector<32x128xf32> to vector<32x128xbf16>
    %c5 = arith.constant 5 : index
    %c0_216 = arith.constant 0 : index
    %c0_217 = arith.constant 0 : index
    %297 = vector.load %arg3[%c5, %c0_216, %c0_217] : memref<6x128x1152xbf16, #tpu.memory_space<vmem>>, vector<1x128x1152xbf16>
    %298 = vector.shape_cast %297 : vector<1x128x1152xbf16> to vector<128x1152xbf16>
    %cst_218 = arith.constant dense<0.000000e+00> : vector<32x1152xf32>
    %299 = tpu.matmul %296, %298, %cst_218 {dimension_numbers = #tpu.dot_dimension_numbers<[1], [0], [0], [1], [0, 0, 1, 1], [], []>} : vector<32x128xbf16>, vector<128x1152xbf16>, vector<32x1152xf32> -> vector<32x1152xf32>
    %c8_219 = arith.constant 8 : index
    %c0_220 = arith.constant 0 : index
    %300 = vector.load %arg9[%c8_219, %c0_220] : memref<48x1152xf32, #tpu.memory_space<vmem>>, vector<32x1152xf32>
    tpu.vector_store %arg9[%c8_219, %c0_220], %299 {strides = array<i32>} : memref<48x1152xf32, #tpu.memory_space<vmem>>, vector<32x1152xf32>,
    %cst_221 = arith.constant 0.000000e+00 : f32
    %301 = vector.broadcast %cst_221 : f32 to vector<32x128xf32>
    %c2_222 = arith.constant 2 : index
    %c0_223 = arith.constant 0 : index
    %302 = vector.load %arg9[%c2_222, %c0_223] : memref<48x1152xf32, #tpu.memory_space<vmem>>, vector<32x128xf32>
    %c0_224 = arith.constant 0 : index
    %c0_225 = arith.constant 0 : index
    %303 = vector.load %arg2[%c0_224, %c0_225] : memref<288x1xf32, #tpu.memory_space<vmem>>, vector<32x1xf32>
    %304 = vector.broadcast %303 : vector<32x1xf32> to vector<32x128xf32>
    %305 = arith.mulf %302, %304 : vector<32x128xf32>
    %306 = arith.addf %301, %305 : vector<32x128xf32>
    %c3_226 = arith.constant 3 : index
    %c128_227 = arith.constant 128 : index
    %307 = vector.load %arg9[%c3_226, %c128_227] : memref<48x1152xf32, #tpu.memory_space<vmem>>, vector<32x128xf32>
    %c32_228 = arith.constant 32 : index
    %c0_229 = arith.constant 0 : index
    %308 = vector.load %arg2[%c32_228, %c0_229] : memref<288x1xf32, #tpu.memory_space<vmem>>, vector<32x1xf32>
    %309 = vector.broadcast %308 : vector<32x1xf32> to vector<32x128xf32>
    %310 = arith.mulf %307, %309 : vector<32x128xf32>
    %311 = arith.addf %306, %310 : vector<32x128xf32>
    %c4_230 = arith.constant 4 : index
    %c256_231 = arith.constant 256 : index
    %312 = vector.load %arg9[%c4_230, %c256_231] : memref<48x1152xf32, #tpu.memory_space<vmem>>, vector<32x128xf32>
    %c64_232 = arith.constant 64 : index
    %c0_233 = arith.constant 0 : index
    %313 = vector.load %arg2[%c64_232, %c0_233] : memref<288x1xf32, #tpu.memory_space<vmem>>, vector<32x1xf32>
    %314 = vector.broadcast %313 : vector<32x1xf32> to vector<32x128xf32>
    %315 = arith.mulf %312, %314 : vector<32x128xf32>
    %316 = arith.addf %311, %315 : vector<32x128xf32>
    %c7_234 = arith.constant 7 : index
    %c384_235 = arith.constant 384 : index
    %317 = vector.load %arg9[%c7_234, %c384_235] : memref<48x1152xf32, #tpu.memory_space<vmem>>, vector<32x128xf32>
    %c96_236 = arith.constant 96 : index
    %c0_237 = arith.constant 0 : index
    %318 = vector.load %arg2[%c96_236, %c0_237] : memref<288x1xf32, #tpu.memory_space<vmem>>, vector<32x1xf32>
    %319 = vector.broadcast %318 : vector<32x1xf32> to vector<32x128xf32>
    %320 = arith.mulf %317, %319 : vector<32x128xf32>
    %321 = arith.addf %316, %320 : vector<32x128xf32>
    %c8_238 = arith.constant 8 : index
    %c512_239 = arith.constant 512 : index
    %322 = vector.load %arg9[%c8_238, %c512_239] : memref<48x1152xf32, #tpu.memory_space<vmem>>, vector<32x128xf32>
    %c128_240 = arith.constant 128 : index
    %c0_241 = arith.constant 0 : index
    %323 = vector.load %arg2[%c128_240, %c0_241] : memref<288x1xf32, #tpu.memory_space<vmem>>, vector<32x1xf32>
    %324 = vector.broadcast %323 : vector<32x1xf32> to vector<32x128xf32>
    %325 = arith.mulf %322, %324 : vector<32x128xf32>
    %326 = arith.addf %321, %325 : vector<32x128xf32>
    %c9_242 = arith.constant 9 : index
    %c640_243 = arith.constant 640 : index
    %327 = vector.load %arg9[%c9_242, %c640_243] : memref<48x1152xf32, #tpu.memory_space<vmem>>, vector<32x128xf32>
    %c160_244 = arith.constant 160 : index
    %c0_245 = arith.constant 0 : index
    %328 = vector.load %arg2[%c160_244, %c0_245] : memref<288x1xf32, #tpu.memory_space<vmem>>, vector<32x1xf32>
    %329 = vector.broadcast %328 : vector<32x1xf32> to vector<32x128xf32>
    %330 = arith.mulf %327, %329 : vector<32x128xf32>
    %331 = arith.addf %326, %330 : vector<32x128xf32>
    %c12_246 = arith.constant 12 : index
    %c768_247 = arith.constant 768 : index
    %332 = vector.load %arg9[%c12_246, %c768_247] : memref<48x1152xf32, #tpu.memory_space<vmem>>, vector<32x128xf32>
    %c192_248 = arith.constant 192 : index
    %c0_249 = arith.constant 0 : index
    %333 = vector.load %arg2[%c192_248, %c0_249] : memref<288x1xf32, #tpu.memory_space<vmem>>, vector<32x1xf32>
    %334 = vector.broadcast %333 : vector<32x1xf32> to vector<32x128xf32>
    %335 = arith.mulf %332, %334 : vector<32x128xf32>
    %336 = arith.addf %331, %335 : vector<32x128xf32>
    %c13_250 = arith.constant 13 : index
    %c896_251 = arith.constant 896 : index
    %337 = vector.load %arg9[%c13_250, %c896_251] : memref<48x1152xf32, #tpu.memory_space<vmem>>, vector<32x128xf32>
    %c224_252 = arith.constant 224 : index
    %c0_253 = arith.constant 0 : index
    %338 = vector.load %arg2[%c224_252, %c0_253] : memref<288x1xf32, #tpu.memory_space<vmem>>, vector<32x1xf32>
    %339 = vector.broadcast %338 : vector<32x1xf32> to vector<32x128xf32>
    %340 = arith.mulf %337, %339 : vector<32x128xf32>
    %341 = arith.addf %336, %340 : vector<32x128xf32>
    %c14_254 = arith.constant 14 : index
    %c1024_255 = arith.constant 1024 : index
    %342 = vector.load %arg9[%c14_254, %c1024_255] : memref<48x1152xf32, #tpu.memory_space<vmem>>, vector<32x128xf32>
    %c256_256 = arith.constant 256 : index
    %c0_257 = arith.constant 0 : index
    %343 = vector.load %arg2[%c256_256, %c0_257] : memref<288x1xf32, #tpu.memory_space<vmem>>, vector<32x1xf32>
    %344 = vector.broadcast %343 : vector<32x1xf32> to vector<32x128xf32>
    %345 = arith.mulf %342, %344 : vector<32x128xf32>
    %346 = arith.addf %341, %345 : vector<32x128xf32>
    %c5_258 = arith.constant 5 : index
    %c0_259 = arith.constant 0 : index
    %c0_260 = arith.constant 0 : index
    %347 = vector.load %arg4[%c5_258, %c0_259, %c0_260] : memref<6x1x128xf32, #tpu.memory_space<vmem>>, vector<1x1x128xf32>
    %348 = vector.shape_cast %347 : vector<1x1x128xf32> to vector<1x128xf32>
    %349 = vector.broadcast %348 : vector<1x128xf32> to vector<32x128xf32>
    %350 = arith.addf %346, %349 : vector<32x128xf32>
    %351 = arith.addf %350, %235 : vector<32x128xf32>
    %c0_261 = arith.constant 0 : index
    %c0_262 = arith.constant 0 : index
    %352 = vector.load %arg5[%c0_261, %c0_262] : memref<200x32xf32, #tpu.memory_space<vmem>>, vector<200x32xf32>
    %cst_263 = arith.constant dense<0.000000e+00> : vector<200x128xf32>
    %353 = tpu.matmul %352, %351, %cst_263 {dimension_numbers = #tpu.dot_dimension_numbers<[1], [0], [0], [1], [0, 0, 1, 1], [], []>} : vector<200x32xf32>, vector<32x128xf32>, vector<200x128xf32> -> vector<200x128xf32>
    %cst_264 = arith.constant 0.000000e+00 : f32
    %354 = vector.broadcast %cst_264 : f32 to vector<8x128xf32>
    %355 = vector.extract_strided_slice %353 {offsets = [0, 0], sizes = [8, 128], strides = [1, 1]} : vector<200x128xf32> to vector<8x128xf32>
    %c0_265 = arith.constant 0 : index
    %c0_266 = arith.constant 0 : index
    %c0_267 = arith.constant 0 : index
    %356 = vector.load %arg6[%c0_265, %c0_266, %c0_267] : memref<25x128x128xf32, #tpu.memory_space<vmem>>, vector<1x128x128xf32>
    %357 = vector.shape_cast %356 : vector<1x128x128xf32> to vector<128x128xf32>
    %cst_268 = arith.constant dense<0.000000e+00> : vector<8x128xf32>
    %358 = tpu.matmul %355, %357, %cst_268 {dimension_numbers = #tpu.dot_dimension_numbers<[1], [0], [0], [1], [0, 0, 1, 1], [], []>} : vector<8x128xf32>, vector<128x128xf32>, vector<8x128xf32> -> vector<8x128xf32>
    %359 = arith.addf %354, %358 : vector<8x128xf32>
    %360 = vector.extract_strided_slice %353 {offsets = [8, 0], sizes = [8, 128], strides = [1, 1]} : vector<200x128xf32> to vector<8x128xf32>
    %c1_269 = arith.constant 1 : index
    %c0_270 = arith.constant 0 : index
    %c0_271 = arith.constant 0 : index
    %361 = vector.load %arg6[%c1_269, %c0_270, %c0_271] : memref<25x128x128xf32, #tpu.memory_space<vmem>>, vector<1x128x128xf32>
    %362 = vector.shape_cast %361 : vector<1x128x128xf32> to vector<128x128xf32>
    %cst_272 = arith.constant dense<0.000000e+00> : vector<8x128xf32>
    %363 = tpu.matmul %360, %362, %cst_272 {dimension_numbers = #tpu.dot_dimension_numbers<[1], [0], [0], [1], [0, 0, 1, 1], [], []>} : vector<8x128xf32>, vector<128x128xf32>, vector<8x128xf32> -> vector<8x128xf32>
    %364 = arith.addf %359, %363 : vector<8x128xf32>
    %365 = vector.extract_strided_slice %353 {offsets = [16, 0], sizes = [8, 128], strides = [1, 1]} : vector<200x128xf32> to vector<8x128xf32>
    %c2_273 = arith.constant 2 : index
    %c0_274 = arith.constant 0 : index
    %c0_275 = arith.constant 0 : index
    %366 = vector.load %arg6[%c2_273, %c0_274, %c0_275] : memref<25x128x128xf32, #tpu.memory_space<vmem>>, vector<1x128x128xf32>
    %367 = vector.shape_cast %366 : vector<1x128x128xf32> to vector<128x128xf32>
    %cst_276 = arith.constant dense<0.000000e+00> : vector<8x128xf32>
    %368 = tpu.matmul %365, %367, %cst_276 {dimension_numbers = #tpu.dot_dimension_numbers<[1], [0], [0], [1], [0, 0, 1, 1], [], []>} : vector<8x128xf32>, vector<128x128xf32>, vector<8x128xf32> -> vector<8x128xf32>
    %369 = arith.addf %364, %368 : vector<8x128xf32>
    %370 = vector.extract_strided_slice %353 {offsets = [24, 0], sizes = [8, 128], strides = [1, 1]} : vector<200x128xf32> to vector<8x128xf32>
    %c3_277 = arith.constant 3 : index
    %c0_278 = arith.constant 0 : index
    %c0_279 = arith.constant 0 : index
    %371 = vector.load %arg6[%c3_277, %c0_278, %c0_279] : memref<25x128x128xf32, #tpu.memory_space<vmem>>, vector<1x128x128xf32>
    %372 = vector.shape_cast %371 : vector<1x128x128xf32> to vector<128x128xf32>
    %cst_280 = arith.constant dense<0.000000e+00> : vector<8x128xf32>
    %373 = tpu.matmul %370, %372, %cst_280 {dimension_numbers = #tpu.dot_dimension_numbers<[1], [0], [0], [1], [0, 0, 1, 1], [], []>} : vector<8x128xf32>, vector<128x128xf32>, vector<8x128xf32> -> vector<8x128xf32>
    %374 = arith.addf %369, %373 : vector<8x128xf32>
    %375 = vector.extract_strided_slice %353 {offsets = [32, 0], sizes = [8, 128], strides = [1, 1]} : vector<200x128xf32> to vector<8x128xf32>
    %c4_281 = arith.constant 4 : index
    %c0_282 = arith.constant 0 : index
    %c0_283 = arith.constant 0 : index
    %376 = vector.load %arg6[%c4_281, %c0_282, %c0_283] : memref<25x128x128xf32, #tpu.memory_space<vmem>>, vector<1x128x128xf32>
    %377 = vector.shape_cast %376 : vector<1x128x128xf32> to vector<128x128xf32>
    %cst_284 = arith.constant dense<0.000000e+00> : vector<8x128xf32>
    %378 = tpu.matmul %375, %377, %cst_284 {dimension_numbers = #tpu.dot_dimension_numbers<[1], [0], [0], [1], [0, 0, 1, 1], [], []>} : vector<8x128xf32>, vector<128x128xf32>, vector<8x128xf32> -> vector<8x128xf32>
    %379 = arith.addf %374, %378 : vector<8x128xf32>
    %380 = vector.extract_strided_slice %353 {offsets = [40, 0], sizes = [8, 128], strides = [1, 1]} : vector<200x128xf32> to vector<8x128xf32>
    %c5_285 = arith.constant 5 : index
    %c0_286 = arith.constant 0 : index
    %c0_287 = arith.constant 0 : index
    %381 = vector.load %arg6[%c5_285, %c0_286, %c0_287] : memref<25x128x128xf32, #tpu.memory_space<vmem>>, vector<1x128x128xf32>
    %382 = vector.shape_cast %381 : vector<1x128x128xf32> to vector<128x128xf32>
    %cst_288 = arith.constant dense<0.000000e+00> : vector<8x128xf32>
    %383 = tpu.matmul %380, %382, %cst_288 {dimension_numbers = #tpu.dot_dimension_numbers<[1], [0], [0], [1], [0, 0, 1, 1], [], []>} : vector<8x128xf32>, vector<128x128xf32>, vector<8x128xf32> -> vector<8x128xf32>
    %384 = arith.addf %379, %383 : vector<8x128xf32>
    %385 = vector.extract_strided_slice %353 {offsets = [48, 0], sizes = [8, 128], strides = [1, 1]} : vector<200x128xf32> to vector<8x128xf32>
    %c6 = arith.constant 6 : index
    %c0_289 = arith.constant 0 : index
    %c0_290 = arith.constant 0 : index
    %386 = vector.load %arg6[%c6, %c0_289, %c0_290] : memref<25x128x128xf32, #tpu.memory_space<vmem>>, vector<1x128x128xf32>
    %387 = vector.shape_cast %386 : vector<1x128x128xf32> to vector<128x128xf32>
    %cst_291 = arith.constant dense<0.000000e+00> : vector<8x128xf32>
    %388 = tpu.matmul %385, %387, %cst_291 {dimension_numbers = #tpu.dot_dimension_numbers<[1], [0], [0], [1], [0, 0, 1, 1], [], []>} : vector<8x128xf32>, vector<128x128xf32>, vector<8x128xf32> -> vector<8x128xf32>
    %389 = arith.addf %384, %388 : vector<8x128xf32>
    %390 = vector.extract_strided_slice %353 {offsets = [56, 0], sizes = [8, 128], strides = [1, 1]} : vector<200x128xf32> to vector<8x128xf32>
    %c7_292 = arith.constant 7 : index
    %c0_293 = arith.constant 0 : index
    %c0_294 = arith.constant 0 : index
    %391 = vector.load %arg6[%c7_292, %c0_293, %c0_294] : memref<25x128x128xf32, #tpu.memory_space<vmem>>, vector<1x128x128xf32>
    %392 = vector.shape_cast %391 : vector<1x128x128xf32> to vector<128x128xf32>
    %cst_295 = arith.constant dense<0.000000e+00> : vector<8x128xf32>
    %393 = tpu.matmul %390, %392, %cst_295 {dimension_numbers = #tpu.dot_dimension_numbers<[1], [0], [0], [1], [0, 0, 1, 1], [], []>} : vector<8x128xf32>, vector<128x128xf32>, vector<8x128xf32> -> vector<8x128xf32>
    %394 = arith.addf %389, %393 : vector<8x128xf32>
    %395 = vector.extract_strided_slice %353 {offsets = [64, 0], sizes = [8, 128], strides = [1, 1]} : vector<200x128xf32> to vector<8x128xf32>
    %c8_296 = arith.constant 8 : index
    %c0_297 = arith.constant 0 : index
    %c0_298 = arith.constant 0 : index
    %396 = vector.load %arg6[%c8_296, %c0_297, %c0_298] : memref<25x128x128xf32, #tpu.memory_space<vmem>>, vector<1x128x128xf32>
    %397 = vector.shape_cast %396 : vector<1x128x128xf32> to vector<128x128xf32>
    %cst_299 = arith.constant dense<0.000000e+00> : vector<8x128xf32>
    %398 = tpu.matmul %395, %397, %cst_299 {dimension_numbers = #tpu.dot_dimension_numbers<[1], [0], [0], [1], [0, 0, 1, 1], [], []>} : vector<8x128xf32>, vector<128x128xf32>, vector<8x128xf32> -> vector<8x128xf32>
    %399 = arith.addf %394, %398 : vector<8x128xf32>
    %400 = vector.extract_strided_slice %353 {offsets = [72, 0], sizes = [8, 128], strides = [1, 1]} : vector<200x128xf32> to vector<8x128xf32>
    %c9_300 = arith.constant 9 : index
    %c0_301 = arith.constant 0 : index
    %c0_302 = arith.constant 0 : index
    %401 = vector.load %arg6[%c9_300, %c0_301, %c0_302] : memref<25x128x128xf32, #tpu.memory_space<vmem>>, vector<1x128x128xf32>
    %402 = vector.shape_cast %401 : vector<1x128x128xf32> to vector<128x128xf32>
    %cst_303 = arith.constant dense<0.000000e+00> : vector<8x128xf32>
    %403 = tpu.matmul %400, %402, %cst_303 {dimension_numbers = #tpu.dot_dimension_numbers<[1], [0], [0], [1], [0, 0, 1, 1], [], []>} : vector<8x128xf32>, vector<128x128xf32>, vector<8x128xf32> -> vector<8x128xf32>
    %404 = arith.addf %399, %403 : vector<8x128xf32>
    %405 = vector.extract_strided_slice %353 {offsets = [80, 0], sizes = [8, 128], strides = [1, 1]} : vector<200x128xf32> to vector<8x128xf32>
    %c10 = arith.constant 10 : index
    %c0_304 = arith.constant 0 : index
    %c0_305 = arith.constant 0 : index
    %406 = vector.load %arg6[%c10, %c0_304, %c0_305] : memref<25x128x128xf32, #tpu.memory_space<vmem>>, vector<1x128x128xf32>
    %407 = vector.shape_cast %406 : vector<1x128x128xf32> to vector<128x128xf32>
    %cst_306 = arith.constant dense<0.000000e+00> : vector<8x128xf32>
    %408 = tpu.matmul %405, %407, %cst_306 {dimension_numbers = #tpu.dot_dimension_numbers<[1], [0], [0], [1], [0, 0, 1, 1], [], []>} : vector<8x128xf32>, vector<128x128xf32>, vector<8x128xf32> -> vector<8x128xf32>
    %409 = arith.addf %404, %408 : vector<8x128xf32>
    %410 = vector.extract_strided_slice %353 {offsets = [88, 0], sizes = [8, 128], strides = [1, 1]} : vector<200x128xf32> to vector<8x128xf32>
    %c11 = arith.constant 11 : index
    %c0_307 = arith.constant 0 : index
    %c0_308 = arith.constant 0 : index
    %411 = vector.load %arg6[%c11, %c0_307, %c0_308] : memref<25x128x128xf32, #tpu.memory_space<vmem>>, vector<1x128x128xf32>
    %412 = vector.shape_cast %411 : vector<1x128x128xf32> to vector<128x128xf32>
    %cst_309 = arith.constant dense<0.000000e+00> : vector<8x128xf32>
    %413 = tpu.matmul %410, %412, %cst_309 {dimension_numbers = #tpu.dot_dimension_numbers<[1], [0], [0], [1], [0, 0, 1, 1], [], []>} : vector<8x128xf32>, vector<128x128xf32>, vector<8x128xf32> -> vector<8x128xf32>
    %414 = arith.addf %409, %413 : vector<8x128xf32>
    %415 = vector.extract_strided_slice %353 {offsets = [96, 0], sizes = [8, 128], strides = [1, 1]} : vector<200x128xf32> to vector<8x128xf32>
    %c12_310 = arith.constant 12 : index
    %c0_311 = arith.constant 0 : index
    %c0_312 = arith.constant 0 : index
    %416 = vector.load %arg6[%c12_310, %c0_311, %c0_312] : memref<25x128x128xf32, #tpu.memory_space<vmem>>, vector<1x128x128xf32>
    %417 = vector.shape_cast %416 : vector<1x128x128xf32> to vector<128x128xf32>
    %cst_313 = arith.constant dense<0.000000e+00> : vector<8x128xf32>
    %418 = tpu.matmul %415, %417, %cst_313 {dimension_numbers = #tpu.dot_dimension_numbers<[1], [0], [0], [1], [0, 0, 1, 1], [], []>} : vector<8x128xf32>, vector<128x128xf32>, vector<8x128xf32> -> vector<8x128xf32>
    %419 = arith.addf %414, %418 : vector<8x128xf32>
    %420 = vector.extract_strided_slice %353 {offsets = [104, 0], sizes = [8, 128], strides = [1, 1]} : vector<200x128xf32> to vector<8x128xf32>
    %c13_314 = arith.constant 13 : index
    %c0_315 = arith.constant 0 : index
    %c0_316 = arith.constant 0 : index
    %421 = vector.load %arg6[%c13_314, %c0_315, %c0_316] : memref<25x128x128xf32, #tpu.memory_space<vmem>>, vector<1x128x128xf32>
    %422 = vector.shape_cast %421 : vector<1x128x128xf32> to vector<128x128xf32>
    %cst_317 = arith.constant dense<0.000000e+00> : vector<8x128xf32>
    %423 = tpu.matmul %420, %422, %cst_317 {dimension_numbers = #tpu.dot_dimension_numbers<[1], [0], [0], [1], [0, 0, 1, 1], [], []>} : vector<8x128xf32>, vector<128x128xf32>, vector<8x128xf32> -> vector<8x128xf32>
    %424 = arith.addf %419, %423 : vector<8x128xf32>
    %425 = vector.extract_strided_slice %353 {offsets = [112, 0], sizes = [8, 128], strides = [1, 1]} : vector<200x128xf32> to vector<8x128xf32>
    %c14_318 = arith.constant 14 : index
    %c0_319 = arith.constant 0 : index
    %c0_320 = arith.constant 0 : index
    %426 = vector.load %arg6[%c14_318, %c0_319, %c0_320] : memref<25x128x128xf32, #tpu.memory_space<vmem>>, vector<1x128x128xf32>
    %427 = vector.shape_cast %426 : vector<1x128x128xf32> to vector<128x128xf32>
    %cst_321 = arith.constant dense<0.000000e+00> : vector<8x128xf32>
    %428 = tpu.matmul %425, %427, %cst_321 {dimension_numbers = #tpu.dot_dimension_numbers<[1], [0], [0], [1], [0, 0, 1, 1], [], []>} : vector<8x128xf32>, vector<128x128xf32>, vector<8x128xf32> -> vector<8x128xf32>
    %429 = arith.addf %424, %428 : vector<8x128xf32>
    %430 = vector.extract_strided_slice %353 {offsets = [120, 0], sizes = [8, 128], strides = [1, 1]} : vector<200x128xf32> to vector<8x128xf32>
    %c15 = arith.constant 15 : index
    %c0_322 = arith.constant 0 : index
    %c0_323 = arith.constant 0 : index
    %431 = vector.load %arg6[%c15, %c0_322, %c0_323] : memref<25x128x128xf32, #tpu.memory_space<vmem>>, vector<1x128x128xf32>
    %432 = vector.shape_cast %431 : vector<1x128x128xf32> to vector<128x128xf32>
    %cst_324 = arith.constant dense<0.000000e+00> : vector<8x128xf32>
    %433 = tpu.matmul %430, %432, %cst_324 {dimension_numbers = #tpu.dot_dimension_numbers<[1], [0], [0], [1], [0, 0, 1, 1], [], []>} : vector<8x128xf32>, vector<128x128xf32>, vector<8x128xf32> -> vector<8x128xf32>
    %434 = arith.addf %429, %433 : vector<8x128xf32>
    %435 = vector.extract_strided_slice %353 {offsets = [128, 0], sizes = [8, 128], strides = [1, 1]} : vector<200x128xf32> to vector<8x128xf32>
    %c16 = arith.constant 16 : index
    %c0_325 = arith.constant 0 : index
    %c0_326 = arith.constant 0 : index
    %436 = vector.load %arg6[%c16, %c0_325, %c0_326] : memref<25x128x128xf32, #tpu.memory_space<vmem>>, vector<1x128x128xf32>
    %437 = vector.shape_cast %436 : vector<1x128x128xf32> to vector<128x128xf32>
    %cst_327 = arith.constant dense<0.000000e+00> : vector<8x128xf32>
    %438 = tpu.matmul %435, %437, %cst_327 {dimension_numbers = #tpu.dot_dimension_numbers<[1], [0], [0], [1], [0, 0, 1, 1], [], []>} : vector<8x128xf32>, vector<128x128xf32>, vector<8x128xf32> -> vector<8x128xf32>
    %439 = arith.addf %434, %438 : vector<8x128xf32>
    %440 = vector.extract_strided_slice %353 {offsets = [136, 0], sizes = [8, 128], strides = [1, 1]} : vector<200x128xf32> to vector<8x128xf32>
    %c17 = arith.constant 17 : index
    %c0_328 = arith.constant 0 : index
    %c0_329 = arith.constant 0 : index
    %441 = vector.load %arg6[%c17, %c0_328, %c0_329] : memref<25x128x128xf32, #tpu.memory_space<vmem>>, vector<1x128x128xf32>
    %442 = vector.shape_cast %441 : vector<1x128x128xf32> to vector<128x128xf32>
    %cst_330 = arith.constant dense<0.000000e+00> : vector<8x128xf32>
    %443 = tpu.matmul %440, %442, %cst_330 {dimension_numbers = #tpu.dot_dimension_numbers<[1], [0], [0], [1], [0, 0, 1, 1], [], []>} : vector<8x128xf32>, vector<128x128xf32>, vector<8x128xf32> -> vector<8x128xf32>
    %444 = arith.addf %439, %443 : vector<8x128xf32>
    %445 = vector.extract_strided_slice %353 {offsets = [144, 0], sizes = [8, 128], strides = [1, 1]} : vector<200x128xf32> to vector<8x128xf32>
    %c18 = arith.constant 18 : index
    %c0_331 = arith.constant 0 : index
    %c0_332 = arith.constant 0 : index
    %446 = vector.load %arg6[%c18, %c0_331, %c0_332] : memref<25x128x128xf32, #tpu.memory_space<vmem>>, vector<1x128x128xf32>
    %447 = vector.shape_cast %446 : vector<1x128x128xf32> to vector<128x128xf32>
    %cst_333 = arith.constant dense<0.000000e+00> : vector<8x128xf32>
    %448 = tpu.matmul %445, %447, %cst_333 {dimension_numbers = #tpu.dot_dimension_numbers<[1], [0], [0], [1], [0, 0, 1, 1], [], []>} : vector<8x128xf32>, vector<128x128xf32>, vector<8x128xf32> -> vector<8x128xf32>
    %449 = arith.addf %444, %448 : vector<8x128xf32>
    %450 = vector.extract_strided_slice %353 {offsets = [152, 0], sizes = [8, 128], strides = [1, 1]} : vector<200x128xf32> to vector<8x128xf32>
    %c19 = arith.constant 19 : index
    %c0_334 = arith.constant 0 : index
    %c0_335 = arith.constant 0 : index
    %451 = vector.load %arg6[%c19, %c0_334, %c0_335] : memref<25x128x128xf32, #tpu.memory_space<vmem>>, vector<1x128x128xf32>
    %452 = vector.shape_cast %451 : vector<1x128x128xf32> to vector<128x128xf32>
    %cst_336 = arith.constant dense<0.000000e+00> : vector<8x128xf32>
    %453 = tpu.matmul %450, %452, %cst_336 {dimension_numbers = #tpu.dot_dimension_numbers<[1], [0], [0], [1], [0, 0, 1, 1], [], []>} : vector<8x128xf32>, vector<128x128xf32>, vector<8x128xf32> -> vector<8x128xf32>
    %454 = arith.addf %449, %453 : vector<8x128xf32>
    %455 = vector.extract_strided_slice %353 {offsets = [160, 0], sizes = [8, 128], strides = [1, 1]} : vector<200x128xf32> to vector<8x128xf32>
    %c20 = arith.constant 20 : index
    %c0_337 = arith.constant 0 : index
    %c0_338 = arith.constant 0 : index
    %456 = vector.load %arg6[%c20, %c0_337, %c0_338] : memref<25x128x128xf32, #tpu.memory_space<vmem>>, vector<1x128x128xf32>
    %457 = vector.shape_cast %456 : vector<1x128x128xf32> to vector<128x128xf32>
    %cst_339 = arith.constant dense<0.000000e+00> : vector<8x128xf32>
    %458 = tpu.matmul %455, %457, %cst_339 {dimension_numbers = #tpu.dot_dimension_numbers<[1], [0], [0], [1], [0, 0, 1, 1], [], []>} : vector<8x128xf32>, vector<128x128xf32>, vector<8x128xf32> -> vector<8x128xf32>
    %459 = arith.addf %454, %458 : vector<8x128xf32>
    %460 = vector.extract_strided_slice %353 {offsets = [168, 0], sizes = [8, 128], strides = [1, 1]} : vector<200x128xf32> to vector<8x128xf32>
    %c21 = arith.constant 21 : index
    %c0_340 = arith.constant 0 : index
    %c0_341 = arith.constant 0 : index
    %461 = vector.load %arg6[%c21, %c0_340, %c0_341] : memref<25x128x128xf32, #tpu.memory_space<vmem>>, vector<1x128x128xf32>
    %462 = vector.shape_cast %461 : vector<1x128x128xf32> to vector<128x128xf32>
    %cst_342 = arith.constant dense<0.000000e+00> : vector<8x128xf32>
    %463 = tpu.matmul %460, %462, %cst_342 {dimension_numbers = #tpu.dot_dimension_numbers<[1], [0], [0], [1], [0, 0, 1, 1], [], []>} : vector<8x128xf32>, vector<128x128xf32>, vector<8x128xf32> -> vector<8x128xf32>
    %464 = arith.addf %459, %463 : vector<8x128xf32>
    %465 = vector.extract_strided_slice %353 {offsets = [176, 0], sizes = [8, 128], strides = [1, 1]} : vector<200x128xf32> to vector<8x128xf32>
    %c22 = arith.constant 22 : index
    %c0_343 = arith.constant 0 : index
    %c0_344 = arith.constant 0 : index
    %466 = vector.load %arg6[%c22, %c0_343, %c0_344] : memref<25x128x128xf32, #tpu.memory_space<vmem>>, vector<1x128x128xf32>
    %467 = vector.shape_cast %466 : vector<1x128x128xf32> to vector<128x128xf32>
    %cst_345 = arith.constant dense<0.000000e+00> : vector<8x128xf32>
    %468 = tpu.matmul %465, %467, %cst_345 {dimension_numbers = #tpu.dot_dimension_numbers<[1], [0], [0], [1], [0, 0, 1, 1], [], []>} : vector<8x128xf32>, vector<128x128xf32>, vector<8x128xf32> -> vector<8x128xf32>
    %469 = arith.addf %464, %468 : vector<8x128xf32>
    %470 = vector.extract_strided_slice %353 {offsets = [184, 0], sizes = [8, 128], strides = [1, 1]} : vector<200x128xf32> to vector<8x128xf32>
    %c23 = arith.constant 23 : index
    %c0_346 = arith.constant 0 : index
    %c0_347 = arith.constant 0 : index
    %471 = vector.load %arg6[%c23, %c0_346, %c0_347] : memref<25x128x128xf32, #tpu.memory_space<vmem>>, vector<1x128x128xf32>
    %472 = vector.shape_cast %471 : vector<1x128x128xf32> to vector<128x128xf32>
    %cst_348 = arith.constant dense<0.000000e+00> : vector<8x128xf32>
    %473 = tpu.matmul %470, %472, %cst_348 {dimension_numbers = #tpu.dot_dimension_numbers<[1], [0], [0], [1], [0, 0, 1, 1], [], []>} : vector<8x128xf32>, vector<128x128xf32>, vector<8x128xf32> -> vector<8x128xf32>
    %474 = arith.addf %469, %473 : vector<8x128xf32>
    %475 = vector.extract_strided_slice %353 {offsets = [192, 0], sizes = [8, 128], strides = [1, 1]} : vector<200x128xf32> to vector<8x128xf32>
    %c24 = arith.constant 24 : index
    %c0_349 = arith.constant 0 : index
    %c0_350 = arith.constant 0 : index
    %476 = vector.load %arg6[%c24, %c0_349, %c0_350] : memref<25x128x128xf32, #tpu.memory_space<vmem>>, vector<1x128x128xf32>
    %477 = vector.shape_cast %476 : vector<1x128x128xf32> to vector<128x128xf32>
    %cst_351 = arith.constant dense<0.000000e+00> : vector<8x128xf32>
    %478 = tpu.matmul %475, %477, %cst_351 {dimension_numbers = #tpu.dot_dimension_numbers<[1], [0], [0], [1], [0, 0, 1, 1], [], []>} : vector<8x128xf32>, vector<128x128xf32>, vector<8x128xf32> -> vector<8x128xf32>
    %479 = arith.addf %474, %478 : vector<8x128xf32>
    %c0_352 = arith.constant 0 : index
    %c0_353 = arith.constant 0 : index
    %480 = vector.load %arg7[%c0_352, %c0_353] : memref<1x128xf32, #tpu.memory_space<vmem>>, vector<1x128xf32>
    %481 = vector.broadcast %480 : vector<1x128xf32> to vector<8x128xf32>
    %482 = arith.addf %479, %481 : vector<8x128xf32>
    %483 = math.roundeven %482 : vector<8x128xf32>
    %484 = arith.fptosi %483 : vector<8x128xf32> to vector<8x128xi32>
    %c0_354 = arith.constant 0 : index
    %c0_355 = arith.constant 0 : index
    %c0_356 = arith.constant 0 : index
    %485 = vector.load %arg8[%c0_354, %c0_355, %c0_356] : memref<1x8x128xi32, #tpu.memory_space<vmem>>, vector<1x8x128xi32>
    %486 = vector.shape_cast %485 : vector<1x8x128xi32> to vector<8x128xi32>
    %487 = vector.shape_cast %484 : vector<8x128xi32> to vector<1x8x128xi32>
    tpu.vector_store %arg8[%c0_354, %c0_355, %c0_356], %487 {strides = array<i32>} : memref<1x8x128xi32, #tpu.memory_space<vmem>>, vector<1x8x128xi32>,
    return
  }
  func.func @transform_0(%arg0: i32) -> (i32, i32, i32) {
    %c0_i32 = arith.constant 0 : i32
    %c0_i32_0 = arith.constant 0 : i32
    %c0_i32_1 = arith.constant 0 : i32
    return %arg0, %c0_i32, %c0_i32_0 : i32, i32, i32
  }
  func.func @transform_1(%arg0: i32) -> (i32, i32) {
    %c0_i32 = arith.constant 0 : i32
    %c0_i32_0 = arith.constant 0 : i32
    %c0_i32_1 = arith.constant 0 : i32
    return %c0_i32, %c0_i32_0 : i32, i32
  }
  func.func @transform_2(%arg0: i32) -> (i32, i32, i32) {
    %c0_i32 = arith.constant 0 : i32
    %c0_i32_0 = arith.constant 0 : i32
    %c0_i32_1 = arith.constant 0 : i32
    %c0_i32_2 = arith.constant 0 : i32
    return %c0_i32, %c0_i32_0, %c0_i32_1 : i32, i32, i32
  }
  func.func @transform_3(%arg0: i32) -> (i32, i32, i32) {
    %c0_i32 = arith.constant 0 : i32
    %c0_i32_0 = arith.constant 0 : i32
    %c0_i32_1 = arith.constant 0 : i32
    %c0_i32_2 = arith.constant 0 : i32
    return %c0_i32, %c0_i32_0, %c0_i32_1 : i32, i32, i32
  }
  func.func @transform_4(%arg0: i32) -> (i32, i32) {
    %c0_i32 = arith.constant 0 : i32
    %c0_i32_0 = arith.constant 0 : i32
    %c0_i32_1 = arith.constant 0 : i32
    return %c0_i32, %c0_i32_0 : i32, i32
  }
  func.func @transform_5(%arg0: i32) -> (i32, i32, i32) {
    %c0_i32 = arith.constant 0 : i32
    %c0_i32_0 = arith.constant 0 : i32
    %c0_i32_1 = arith.constant 0 : i32
    %c0_i32_2 = arith.constant 0 : i32
    return %c0_i32, %c0_i32_0, %c0_i32_1 : i32, i32, i32
  }
  func.func @transform_6(%arg0: i32) -> (i32, i32) {
    %c0_i32 = arith.constant 0 : i32
    %c0_i32_0 = arith.constant 0 : i32
    %c0_i32_1 = arith.constant 0 : i32
    return %c0_i32, %c0_i32_0 : i32, i32
  }
  func.func @transform_7(%arg0: i32) -> (i32, i32, i32) {
    %c0_i32 = arith.constant 0 : i32
    %c0_i32_0 = arith.constant 0 : i32
    %c0_i32_1 = arith.constant 0 : i32
    return %arg0, %c0_i32, %c0_i32_0 : i32, i32, i32
  }
}

</mosaic_0001>

<llo_original>
// kernel: encoder_forward.3
$region0: #{encoder_forward.3}
  #allocation0 [shape = 'u32[]', space=smem, size = 0x4, offset = 0x4, fixed_abs, tag = 'smem constant byte address 0x4 - core index']
  #allocation1 [shape = 'u32[72,128]{1,0:T(1,128)}', space=vmem, size = 0x9000, scoped, tag = 'internal scratch']
  %s0 = inlined_call_operand.vmem [shape: bf16[416,128], index: 0, kind: input, shape index: {}]
  %s1 = inlined_call_operand.vmem [shape: bf16[128,128], index: 1, kind: input, shape index: {}]
  %s2 = inlined_call_operand.vmem [shape: f32[1,128], index: 2, kind: input, shape index: {}]
  %s3 = inlined_call_operand.vmem [shape: bf16[416,128], index: 3, kind: output, shape index: {}]
  %s4 = sld [smem:[#allocation0]]
  $region45: #{encoder_forward.3} parent=0
    _
  %s6 = ssub.s32 1, %s4
  %s7 = scalar_select 0, %s6, %s4
  loop: start=0, step=1, limit=4
  $region2: #{encoder_forward.3} parent=0 // loop_pre_header
    _
  $region3: #{encoder_forward.3} parent=0 // loop_header
    %s9 = sphi 0, %s13
    %p10 = scmp.ge.s32.totalorder %s9, 4
    %s19 = sphi 0, %s21
    %s22 = sphi 0, %s19
    %s23 = sphi 0, %s22
    %s39 = sphi 0, %s23
    %s43 = sphi 0, %s43
    %s45 = sphi 0, %s43
    %s46 = sphi 0, %s45
    %s60 = sphi 0, %s46
    %s64 = sphi 0, %s64
    %s66 = sphi 0, %s64
    %s67 = sphi 0, %s66
    %s81 = sphi 0, %s67
    %s87 = sphi 0, %s89
    %s90 = sphi 0, %s87
    %s91 = sphi 0, %s90
    %s107 = sphi 0, %s91
  $region4: #{encoder_forward.3} parent=0 // loop_header_branch
    %12 = sbr.rel (%p10) target = $region8
  $region5: #{encoder_forward.3} parent=0 // loop_body
    %s14 = ssub.s32 %s9, 1
    %s15 = ssub.s32 %s9, 2
    %s16 = sadd.s32 %s9, 1
    %s17 = ssub.s32 %s9, %s16
    %p18 = scmp.eq.s32.totalorder %s17, 0
    %s20 = sadd.s32 %s19, 1
    %s21 = scalar_select %p18, %s19, %s20
    %p24 = pneg %p18
    %p25 = scmp.eq.s32.totalorder %s9, 1
    %p26 = por %p24, %p25
    %p27 = scmp.ne.s32.totalorder %s19, %s22
    %p28 = scmp.eq.s32.totalorder %s9, 0
    %p29 = por %p27, %p28
    %p30 = scmp.ne.s32.totalorder %s19, %s22
    %p31 = scmp.eq.s32.totalorder %s14, 1
    %p32 = por %p30, %p31
    %p33 = scmp.ne.s32.totalorder %s22, %s23
    %p34 = scmp.eq.s32.totalorder %s14, 0
    %p35 = por %p33, %p34
    %p36 = scmp.ne.s32.totalorder %s22, %s23
    %p37 = scmp.eq.s32.totalorder %s15, 1
    %p38 = por %p36, %p37
    %p40 = scmp.ne.s32.totalorder %s23, %s39
    %p41 = scmp.eq.s32.totalorder %s15, 0
    %p42 = por %p40, %p41
    %s44 = sadd.s32 %s43, 1
    %p47 = scmp.eq.s32.totalorder %s9, 1
    %p48 = scmp.ne.s32.totalorder %s43, %s45
    %p49 = scmp.eq.s32.totalorder %s9, 0
    %p50 = por %p48, %p49
    %p51 = scmp.ne.s32.totalorder %s43, %s45
    %p52 = scmp.eq.s32.totalorder %s14, 1
    %p53 = por %p51, %p52
    %p54 = scmp.ne.s32.totalorder %s45, %s46
    %p55 = scmp.eq.s32.totalorder %s14, 0
    %p56 = por %p54, %p55
    %p57 = scmp.ne.s32.totalorder %s45, %s46
    %p58 = scmp.eq.s32.totalorder %s15, 1
    %p59 = por %p57, %p58
    %p61 = scmp.ne.s32.totalorder %s46, %s60
    %p62 = scmp.eq.s32.totalorder %s15, 0
    %p63 = por %p61, %p62
    %s65 = sadd.s32 %s64, 1
    %p68 = scmp.eq.s32.totalorder %s9, 1
    %p69 = scmp.ne.s32.totalorder %s64, %s66
    %p70 = scmp.eq.s32.totalorder %s9, 0
    %p71 = por %p69, %p70
    %p72 = scmp.ne.s32.totalorder %s64, %s66
    %p73 = scmp.eq.s32.totalorder %s14, 1
    %p74 = por %p72, %p73
    %p75 = scmp.ne.s32.totalorder %s66, %s67
    %p76 = scmp.eq.s32.totalorder %s14, 0
    %p77 = por %p75, %p76
    %p78 = scmp.ne.s32.totalorder %s66, %s67
    %p79 = scmp.eq.s32.totalorder %s15, 1
    %p80 = por %p78, %p79
    %p82 = scmp.ne.s32.totalorder %s67, %s81
    %p83 = scmp.eq.s32.totalorder %s15, 0
    %p84 = por %p82, %p83
    %s85 = ssub.s32 %s9, %s16
    %p86 = scmp.eq.s32.totalorder %s85, 0
    %s88 = sadd.s32 %s87, 1
    %s89 = scalar_select %p86, %s87, %s88
    %p92 = pneg %p86
    %p93 = scmp.eq.s32.totalorder %s9, 1
    %p94 = por %p92, %p93
    %p95 = scmp.ne.s32.totalorder %s87, %s90
    %p96 = scmp.eq.s32.totalorder %s9, 0
    %p97 = por %p95, %p96
    %p98 = scmp.ne.s32.totalorder %s87, %s90
    %p99 = scmp.eq.s32.totalorder %s14, 1
    %p100 = por %p98, %p99
    %p101 = scmp.ne.s32.totalorder %s90, %s91
    %p102 = scmp.eq.s32.totalorder %s14, 0
    %p103 = por %p101, %p102
    %p104 = scmp.ne.s32.totalorder %s90, %s91
    %p105 = scmp.eq.s32.totalorder %s15, 1
    %p106 = por %p104, %p105
    %p108 = scmp.ne.s32.totalorder %s91, %s107
    %p109 = scmp.eq.s32.totalorder %s15, 0
    %p110 = por %p108, %p109
    %p111 = scmp.le.s32.totalorder 1, %s9
    %p112 = scmp.lt.s32.totalorder %s9, 3
    %p113 = pnand %p111, %p112
    %p114 = pneg %p113
    // Predicated region
    $region9: #{encoder_forward.3} parent=5 // pred_check
      _
    $region10: #{encoder_forward.3} parent=5 // pred_check_branch
      %116 = sbr.rel (%p113) target = $region12
    $region11: #{encoder_forward.3} parent=5 // pred_region
      %s117 = ssub.s32 %s9, 1
      // Predicated region
      $region13: #{encoder_forward.3} parent=11 // pred_check
        %p118 = pneg %p56
      $region14: #{encoder_forward.3} parent=11 // pred_check_branch
        %120 = sbr.rel (%p118) target = $region16
      $region15: #{encoder_forward.3} parent=11 // pred_region
        _
      $region16: #{encoder_forward.3} parent=11 // pred_fallthru
        _
      // Predicated region
      $region17: #{encoder_forward.3} parent=11 // pred_check
        %p121 = pneg %p77
      $region18: #{encoder_forward.3} parent=11 // pred_check_branch
        %123 = sbr.rel (%p121) target = $region20
      $region19: #{encoder_forward.3} parent=11 // pred_region
        _
      $region20: #{encoder_forward.3} parent=11 // pred_fallthru
        _
    $region12: #{encoder_forward.3} parent=5 // pred_fallthru
      _
    %p124 = scmp.lt.s32.totalorder %s9, 2
    // Predicated region
    $region21: #{encoder_forward.3} parent=5 // pred_check
      %p125 = pneg %p124
    $region22: #{encoder_forward.3} parent=5 // pred_check_branch
      %127 = sbr.rel (%p125) target = $region24
    $region23: #{encoder_forward.3} parent=5 // pred_region
      // Predicated region
      $region25: #{encoder_forward.3} parent=23 // pred_check
        %p128 = pneg %p29
      $region26: #{encoder_forward.3} parent=23 // pred_check_branch
        %130 = sbr.rel (%p128) target = $region28
      $region27: #{encoder_forward.3} parent=23 // pred_region
        %s131 = smul.u32 26, %s9
        %p132 = scmp.lt.s32.totalorder %s131, 51
        %s133 = scalar_select %p132, %s131, 51
        %s134 = smul.addr %s133, 4
        %s135 = scalar_lea.vmem %s0, %s134
        %s136 = smul.u32 26, %s9
      $region28: #{encoder_forward.3} parent=23 // pred_fallthru
        _
    $region24: #{encoder_forward.3} parent=5 // pred_fallthru
      _
    %p137 = scmp.le.s32.totalorder 1, %s9
    %p138 = scmp.lt.s32.totalorder %s9, 3
    %p139 = pnand %p137, %p138
    %p140 = pneg %p139
    // Predicated region
    $region29: #{encoder_forward.3} parent=5 // pred_check
      _
    $region30: #{encoder_forward.3} parent=5 // pred_check_branch
      %142 = sbr.rel (%p139) target = $region32
    $region31: #{encoder_forward.3} parent=5 // pred_region
      %s143 = ssub.s32 %s9, 1
      %s144 = smul.u32 26, %s14
      %p145 = scmp.lt.s32.totalorder %s144, 51
      %s146 = scalar_select %p145, %s144, 51
      %s147 = smul.addr %s146, 4
      %s148 = scalar_lea.vmem %s0, %s147
      %p149 = pneg %p35
      %p150 = pneg %p32
      %p151 = pneg %p56
      %p152 = pneg %p53
      %p153 = pneg %p77
      %p154 = pneg %p74
      %p155 = pneg %p103
      %p156 = pneg %p100
      %s157 = smul.u32 26, %s14
      %p158 = scmp.lt.s32.totalorder %s157, 51
      %s159 = scalar_select %p158, %s157, 51
      %s160 = smul.addr %s159, 4
      %s161 = scalar_lea.vmem %s3, %s160
      %s162 = smul.u32 26, %s14
      %p163 = scmp.lt.s32.totalorder %s162, 51
      %s164 = scalar_select %p163, %s162, 51
      %s165 = smul.addr %s164, 4
      %s166 = scalar_lea.vmem %s0, %s165
      %s167 = smul.u32 26, %s14
      %s168 = smul.u32 26, %s14
      %p169 = scmp.lt.s32.totalorder %s168, 51
      %s170 = scalar_select %p169, %s168, 51
      %s171 = smul.addr %s170, 4
      %s172 = scalar_lea.vmem %s3, %s171
      %s173 = smul.u32 26, %s14
      %v174 = vld [vmem:[%s166] sm:$0xf]
      %v175 = vld [vmem:[%s166 + $0x4] sm:$0xf]
      %v176 = vld [vmem:[%s166 + $0x8] sm:$0xf]
      %v177 = vld [vmem:[%s166 + $0xc] sm:$0xf]
      %v178 = vld [vmem:[%s166 + $0x10] sm:$0xf]
      %v179 = vld [vmem:[%s166 + $0x14] sm:$0xf]
      %v180 = vld [vmem:[%s166 + $0x18] sm:$0xf]
      %v181 = vld [vmem:[%s166 + $0x1c] sm:$0xf]
      %v182 = vld [vmem:[%s166 + $0x20] sm:$0xf]
      %v183 = vld [vmem:[%s166 + $0x24] sm:$0xf]
      %v184 = vld [vmem:[%s166 + $0x28] sm:$0xf]
      %v185 = vld [vmem:[%s166 + $0x2c] sm:$0xf]
      %v186 = vld [vmem:[%s166 + $0x30] sm:$0xf]
      %v187 = vld [vmem:[%s166 + $0x34] sm:$0xf]
      %v188 = vld [vmem:[%s166 + $0x38] sm:$0xf]
      %v189 = vld [vmem:[%s166 + $0x3c] sm:$0xf]
      %v190 = vld [vmem:[%s166 + $0x40] sm:$0xf]
      %v191 = vld [vmem:[%s166 + $0x44] sm:$0xf]
      %v192 = vld [vmem:[%s166 + $0x48] sm:$0xf]
      %v193 = vld [vmem:[%s166 + $0x4c] sm:$0xf]
      %v194 = vld [vmem:[%s166 + $0x50] sm:$0xf]
      %v195 = vld [vmem:[%s166 + $0x54] sm:$0xf]
      %v196 = vld [vmem:[%s166 + $0x58] sm:$0xf]
      %v197 = vld [vmem:[%s166 + $0x5c] sm:$0xf]
      %v198 = vld [vmem:[%s166 + $0x60] sm:$0xf]
      %v199 = vld [vmem:[%s166 + $0x64] sm:$0xf]
      %v200 = vld [vmem:[%s1] sm:$0xf]
      %v201 = vld [vmem:[%s1 + $0x4] sm:$0xf]
      %v202 = vld [vmem:[%s1 + $0x8] sm:$0xf]
      %v203 = vld [vmem:[%s1 + $0xc] sm:$0xf]
      %v204 = vld [vmem:[%s1 + $0x10] sm:$0xf]
      %v205 = vld [vmem:[%s1 + $0x14] sm:$0xf]
      %v206 = vld [vmem:[%s1 + $0x18] sm:$0xf]
      %v207 = vld [vmem:[%s1 + $0x1c] sm:$0xf]
      %v208 = vld [vmem:[%s1 + $0x20] sm:$0xf]
      %v209 = vld [vmem:[%s1 + $0x24] sm:$0xf]
      %v210 = vld [vmem:[%s1 + $0x28] sm:$0xf]
      %v211 = vld [vmem:[%s1 + $0x2c] sm:$0xf]
      %v212 = vld [vmem:[%s1 + $0x30] sm:$0xf]
      %v213 = vld [vmem:[%s1 + $0x34] sm:$0xf]
      %v214 = vld [vmem:[%s1 + $0x38] sm:$0xf]
      %v215 = vld [vmem:[%s1 + $0x3c] sm:$0xf]
      %v216 = vld [vmem:[%s2] sm:$0x1]
      %v218 = vperm.slane %v216, 0
      %v246 = vunpack.c.l.b16 %v174
      %v247 = vunpack.c.l.b16 %v175
      %v248 = vunpack.c.l.b16 %v176
      %v249 = vunpack.c.l.b16 %v177
      %v250 = vunpack.c.l.b16 %v178
      %v251 = vunpack.c.l.b16 %v179
      %v252 = vunpack.c.l.b16 %v180
      %v253 = vunpack.c.l.b16 %v181
      %v254 = vunpack.c.l.b16 %v182
      %v255 = vunpack.c.l.b16 %v183
      %v256 = vunpack.c.l.b16 %v184
      %v257 = vunpack.c.l.b16 %v185
      %v258 = vunpack.c.l.b16 %v186
      %v259 = vunpack.c.l.b16 %v187
      %v260 = vunpack.c.l.b16 %v188
      %v261 = vunpack.c.l.b16 %v189
      %v262 = vunpack.c.l.b16 %v190
      %v263 = vunpack.c.l.b16 %v191
      %v264 = vunpack.c.l.b16 %v192
      %v265 = vunpack.c.l.b16 %v193
      %v266 = vunpack.c.l.b16 %v194
      %v267 = vunpack.c.l.b16 %v195
      %v268 = vunpack.c.l.b16 %v196
      %v269 = vunpack.c.l.b16 %v197
      %v270 = vunpack.c.l.b16 %v198
      %v271 = vunpack.c.l.b16 %v199
      %v272 = vpack.c.b16 %v247, %v246
      %v273 = vpack.c.b16 %v249, %v248
      %v274 = vpack.c.b16 %v251, %v250
      %v275 = vpack.c.b16 %v253, %v252
      %v276 = vpack.c.b16 %v255, %v254
      %v277 = vpack.c.b16 %v257, %v256
      %v278 = vpack.c.b16 %v259, %v258
      %v279 = vpack.c.b16 %v261, %v260
      %v280 = vpack.c.b16 %v263, %v262
      %v281 = vpack.c.b16 %v265, %v264
      %v282 = vpack.c.b16 %v267, %v266
      %v283 = vpack.c.b16 %v269, %v268
      %v284 = vpack.c.b16 %v271, %v270
      %v314 = vunpack.c.l.b16 %v200
      %v315 = vunpack.c.l.b16 %v201
      %v316 = vunpack.c.l.b16 %v202
      %v317 = vunpack.c.l.b16 %v203
      %v318 = vunpack.c.l.b16 %v204
      %v319 = vunpack.c.l.b16 %v205
      %v320 = vunpack.c.l.b16 %v206
      %v321 = vunpack.c.l.b16 %v207
      %v322 = vunpack.c.l.b16 %v208
      %v323 = vunpack.c.l.b16 %v209
      %v324 = vunpack.c.l.b16 %v210
      %v325 = vunpack.c.l.b16 %v211
      %v326 = vunpack.c.l.b16 %v212
      %v327 = vunpack.c.l.b16 %v213
      %v328 = vunpack.c.l.b16 %v214
      %v329 = vunpack.c.l.b16 %v215
      %v330 = vpack.c.b16 %v315, %v314
      %v331 = vpack.c.b16 %v317, %v316
      %v332 = vpack.c.b16 %v319, %v318
      %v333 = vpack.c.b16 %v321, %v320
      %v334 = vpack.c.b16 %v323, %v322
      %v335 = vpack.c.b16 %v325, %v324
      %v336 = vpack.c.b16 %v327, %v326
      %v337 = vpack.c.b16 %v329, %v328
      %346 = vmatpush.bf16.msra.mxu0 %v337
      %347 = vmatpush.bf16.msra.mxu0 %v336
      %348 = vmatpush.bf16.msra.mxu0 %v335
      %349 = vmatpush.bf16.msra.mxu0 %v334
      %350 = vmatpush.bf16.msra.mxu0 %v333
      %351 = vmatpush.bf16.msra.mxu0 %v332
      %352 = vmatpush.bf16.msra.mxu0 %v331
      %353 = vmatpush.bf16.msra.mxu0 %v330
      %354 = vmatmul.bf16.gmra.mxu0 %v272
      %v355 = vpop.f32.mrf.mxu0
      %v356 = vadd.f32 %v218, %v355
      %v357 = vpop.f32.mrf.mxu0
      %v358 = vadd.f32 %v218, %v357
      %359 = vmatmul.bf16.gmra.mxu0 %v273
      %v360 = vpop.f32.mrf.mxu0
      %v361 = vadd.f32 %v218, %v360
      %v362 = vpop.f32.mrf.mxu0
      %v363 = vadd.f32 %v218, %v362
      %364 = vmatmul.bf16.gmra.mxu0 %v274
      %v365 = vpop.f32.mrf.mxu0
      %v366 = vadd.f32 %v218, %v365
      %v367 = vpop.f32.mrf.mxu0
      %v368 = vadd.f32 %v218, %v367
      %369 = vmatmul.bf16.gmra.mxu0 %v275
      %v370 = vpop.f32.mrf.mxu0
      %v371 = vadd.f32 %v218, %v370
      %v372 = vpop.f32.mrf.mxu0
      %v373 = vadd.f32 %v218, %v372
      %374 = vmatmul.bf16.gmra.mxu0 %v276
      %v375 = vpop.f32.mrf.mxu0
      %v376 = vadd.f32 %v218, %v375
      %v377 = vpop.f32.mrf.mxu0
      %v378 = vadd.f32 %v218, %v377
      %379 = vmatmul.bf16.gmra.mxu0 %v277
      %v380 = vpop.f32.mrf.mxu0
      %v381 = vadd.f32 %v218, %v380
      %v382 = vpop.f32.mrf.mxu0
      %v383 = vadd.f32 %v218, %v382
      %384 = vmatmul.bf16.gmra.mxu0 %v278
      %v385 = vpop.f32.mrf.mxu0
      %v386 = vadd.f32 %v218, %v385
      %v387 = vpop.f32.mrf.mxu0
      %v388 = vadd.f32 %v218, %v387
      %389 = vmatmul.bf16.gmra.mxu0 %v279
      %v390 = vpop.f32.mrf.mxu0
      %v391 = vadd.f32 %v218, %v390
      %v392 = vpop.f32.mrf.mxu0
      %v393 = vadd.f32 %v218, %v392
      %394 = vmatmul.bf16.gmra.mxu0 %v280
      %v395 = vpop.f32.mrf.mxu0
      %v396 = vadd.f32 %v218, %v395
      %v397 = vpop.f32.mrf.mxu0
      %v398 = vadd.f32 %v218, %v397
      %399 = vmatmul.bf16.gmra.mxu0 %v281
      %v400 = vpop.f32.mrf.mxu0
      %v401 = vadd.f32 %v218, %v400
      %v402 = vpop.f32.mrf.mxu0
      %v403 = vadd.f32 %v218, %v402
      %404 = vmatmul.bf16.gmra.mxu0 %v282
      %v405 = vpop.f32.mrf.mxu0
      %v406 = vadd.f32 %v218, %v405
      %v407 = vpop.f32.mrf.mxu0
      %v408 = vadd.f32 %v218, %v407
      %409 = vmatmul.bf16.gmra.mxu0 %v283
      %v410 = vpop.f32.mrf.mxu0
      %v411 = vadd.f32 %v218, %v410
      %v412 = vpop.f32.mrf.mxu0
      %v413 = vadd.f32 %v218, %v412
      %414 = vmatmul.bf16.gmra.mxu0 %v284
      %v415 = vpop.f32.mrf.mxu0
      %v416 = vadd.f32 %v218, %v415
      %v417 = vpop.f32.mrf.mxu0
      %v418 = vadd.f32 %v218, %v417
      %419 = vdwg.mxu0
      %vm420 = vcmp.ge.f32.partialorder %v356, 0.0
      %vm421 = vcmp.ge.f32.partialorder %v358, 0.0
      %vm422 = vcmp.ge.f32.partialorder %v361, 0.0
      %vm423 = vcmp.ge.f32.partialorder %v363, 0.0
      %vm424 = vcmp.ge.f32.partialorder %v366, 0.0
      %vm425 = vcmp.ge.f32.partialorder %v368, 0.0
      %vm426 = vcmp.ge.f32.partialorder %v371, 0.0
      %vm427 = vcmp.ge.f32.partialorder %v373, 0.0
      %vm428 = vcmp.ge.f32.partialorder %v376, 0.0
      %vm429 = vcmp.ge.f32.partialorder %v378, 0.0
      %vm430 = vcmp.ge.f32.partialorder %v381, 0.0
      %vm431 = vcmp.ge.f32.partialorder %v383, 0.0
      %vm432 = vcmp.ge.f32.partialorder %v386, 0.0
      %vm433 = vcmp.ge.f32.partialorder %v388, 0.0
      %vm434 = vcmp.ge.f32.partialorder %v391, 0.0
      %vm435 = vcmp.ge.f32.partialorder %v393, 0.0
      %vm436 = vcmp.ge.f32.partialorder %v396, 0.0
      %vm437 = vcmp.ge.f32.partialorder %v398, 0.0
      %vm438 = vcmp.ge.f32.partialorder %v401, 0.0
      %vm439 = vcmp.ge.f32.partialorder %v403, 0.0
      %vm440 = vcmp.ge.f32.partialorder %v406, 0.0
      %vm441 = vcmp.ge.f32.partialorder %v408, 0.0
      %vm442 = vcmp.ge.f32.partialorder %v411, 0.0
      %vm443 = vcmp.ge.f32.partialorder %v413, 0.0
      %vm444 = vcmp.ge.f32.partialorder %v416, 0.0
      %vm445 = vcmp.ge.f32.partialorder %v418, 0.0
      %v446 = vmul.f32 %v356, 0.01
      %v447 = vmul.f32 %v358, 0.01
      %v448 = vmul.f32 %v361, 0.01
      %v449 = vmul.f32 %v363, 0.01
      %v450 = vmul.f32 %v366, 0.01
      %v451 = vmul.f32 %v368, 0.01
      %v452 = vmul.f32 %v371, 0.01
      %v453 = vmul.f32 %v373, 0.01
      %v454 = vmul.f32 %v376, 0.01
      %v455 = vmul.f32 %v378, 0.01
      %v456 = vmul.f32 %v381, 0.01
      %v457 = vmul.f32 %v383, 0.01
      %v458 = vmul.f32 %v386, 0.01
      %v459 = vmul.f32 %v388, 0.01
      %v460 = vmul.f32 %v391, 0.01
      %v461 = vmul.f32 %v393, 0.01
      %v462 = vmul.f32 %v396, 0.01
      %v463 = vmul.f32 %v398, 0.01
      %v464 = vmul.f32 %v401, 0.01
      %v465 = vmul.f32 %v403, 0.01
      %v466 = vmul.f32 %v406, 0.01
      %v467 = vmul.f32 %v408, 0.01
      %v468 = vmul.f32 %v411, 0.01
      %v469 = vmul.f32 %v413, 0.01
      %v470 = vmul.f32 %v416, 0.01
      %v471 = vmul.f32 %v418, 0.01
      %v472 = vsel %vm420, %v356, %v446
      %v473 = vsel %vm421, %v358, %v447
      %v474 = vsel %vm422, %v361, %v448
      %v475 = vsel %vm423, %v363, %v449
      %v476 = vsel %vm424, %v366, %v450
      %v477 = vsel %vm425, %v368, %v451
      %v478 = vsel %vm426, %v371, %v452
      %v479 = vsel %vm427, %v373, %v453
      %v480 = vsel %vm428, %v376, %v454
      %v481 = vsel %vm429, %v378, %v455
      %v482 = vsel %vm430, %v381, %v456
      %v483 = vsel %vm431, %v383, %v457
      %v484 = vsel %vm432, %v386, %v458
      %v485 = vsel %vm433, %v388, %v459
      %v486 = vsel %vm434, %v391, %v460
      %v487 = vsel %vm435, %v393, %v461
      %v488 = vsel %vm436, %v396, %v462
      %v489 = vsel %vm437, %v398, %v463
      %v490 = vsel %vm438, %v401, %v464
      %v491 = vsel %vm439, %v403, %v465
      %v492 = vsel %vm440, %v406, %v466
      %v493 = vsel %vm441, %v408, %v467
      %v494 = vsel %vm442, %v411, %v468
      %v495 = vsel %vm443, %v413, %v469
      %v496 = vsel %vm444, %v416, %v470
      %v497 = vsel %vm445, %v418, %v471
      %v498 = vpack.c.bf16 %v472, %v472
      %v499 = vpack.c.bf16 %v473, %v473
      %v500 = vpack.c.bf16 %v474, %v474
      %v501 = vpack.c.bf16 %v475, %v475
      %v502 = vpack.c.bf16 %v476, %v476
      %v503 = vpack.c.bf16 %v477, %v477
      %v504 = vpack.c.bf16 %v478, %v478
      %v505 = vpack.c.bf16 %v479, %v479
      %v506 = vpack.c.bf16 %v480, %v480
      %v507 = vpack.c.bf16 %v481, %v481
      %v508 = vpack.c.bf16 %v482, %v482
      %v509 = vpack.c.bf16 %v483, %v483
      %v510 = vpack.c.bf16 %v484, %v484
      %v511 = vpack.c.bf16 %v485, %v485
      %v512 = vpack.c.bf16 %v486, %v486
      %v513 = vpack.c.bf16 %v487, %v487
      %v514 = vpack.c.bf16 %v488, %v488
      %v515 = vpack.c.bf16 %v489, %v489
      %v516 = vpack.c.bf16 %v490, %v490
      %v517 = vpack.c.bf16 %v491, %v491
      %v518 = vpack.c.bf16 %v492, %v492
      %v519 = vpack.c.bf16 %v493, %v493
      %v520 = vpack.c.bf16 %v494, %v494
      %v521 = vpack.c.bf16 %v495, %v495
      %v522 = vpack.c.bf16 %v496, %v496
      %v523 = vpack.c.bf16 %v497, %v497
      %524 = vst [vmem:[%s172] sm:$0xf] %v498
      %525 = vst [vmem:[%s172 + $0x4] sm:$0xf] %v499
      %526 = vst [vmem:[%s172 + $0x8] sm:$0xf] %v500
      %527 = vst [vmem:[%s172 + $0xc] sm:$0xf] %v501
      %528 = vst [vmem:[%s172 + $0x10] sm:$0xf] %v502
      %529 = vst [vmem:[%s172 + $0x14] sm:$0xf] %v503
      %530 = vst [vmem:[%s172 + $0x18] sm:$0xf] %v504
      %531 = vst [vmem:[%s172 + $0x1c] sm:$0xf] %v505
      %532 = vst [vmem:[%s172 + $0x20] sm:$0xf] %v506
      %533 = vst [vmem:[%s172 + $0x24] sm:$0xf] %v507
      %534 = vst [vmem:[%s172 + $0x28] sm:$0xf] %v508
      %535 = vst [vmem:[%s172 + $0x2c] sm:$0xf] %v509
      %536 = vst [vmem:[%s172 + $0x30] sm:$0xf] %v510
      %537 = vst [vmem:[%s172 + $0x34] sm:$0xf] %v511
      %538 = vst [vmem:[%s172 + $0x38] sm:$0xf] %v512
      %539 = vst [vmem:[%s172 + $0x3c] sm:$0xf] %v513
      %540 = vst [vmem:[%s172 + $0x40] sm:$0xf] %v514
      %541 = vst [vmem:[%s172 + $0x44] sm:$0xf] %v515
      %542 = vst [vmem:[%s172 + $0x48] sm:$0xf] %v516
      %543 = vst [vmem:[%s172 + $0x4c] sm:$0xf] %v517
      %544 = vst [vmem:[%s172 + $0x50] sm:$0xf] %v518
      %545 = vst [vmem:[%s172 + $0x54] sm:$0xf] %v519
      %546 = vst [vmem:[%s172 + $0x58] sm:$0xf] %v520
      %547 = vst [vmem:[%s172 + $0x5c] sm:$0xf] %v521
      %548 = vst [vmem:[%s172 + $0x60] sm:$0xf] %v522
      %549 = vst [vmem:[%s172 + $0x64] sm:$0xf] %v523
      %s550 = smul.u32 26, %s14
      %p551 = scmp.lt.s32.totalorder %s550, 51
      %s552 = scalar_select %p551, %s550, 51
      %s553 = smul.addr %s552, 4
      %s554 = scalar_lea.vmem %s3, %s553
      // Predicated region
      $region33: #{encoder_forward.3} parent=31 // pred_check
        %p555 = pneg %p100
      $region34: #{encoder_forward.3} parent=31 // pred_check_branch
        %557 = sbr.rel (%p555) target = $region36
      $region35: #{encoder_forward.3} parent=31 // pred_region
        %s558 = smul.u32 26, %s14
      $region36: #{encoder_forward.3} parent=31 // pred_fallthru
        _
    $region32: #{encoder_forward.3} parent=5 // pred_fallthru
      _
    %p559 = scmp.le.s32.totalorder 2, %s9
    // Predicated region
    $region37: #{encoder_forward.3} parent=5 // pred_check
      %p560 = pneg %p559
    $region38: #{encoder_forward.3} parent=5 // pred_check_branch
      %562 = sbr.rel (%p560) target = $region40
    $region39: #{encoder_forward.3} parent=5 // pred_region
      %s563 = ssub.s32 %s9, 2
      // Predicated region
      $region41: #{encoder_forward.3} parent=39 // pred_check
        %p564 = pneg %p106
      $region42: #{encoder_forward.3} parent=39 // pred_check_branch
        %566 = sbr.rel (%p564) target = $region44
      $region43: #{encoder_forward.3} parent=39 // pred_region
        %s567 = smul.u32 26, %s15
        %p568 = scmp.lt.s32.totalorder %s567, 51
        %s569 = scalar_select %p568, %s567, 51
        %s570 = smul.addr %s569, 4
        %s571 = scalar_lea.vmem %s3, %s570
      $region44: #{encoder_forward.3} parent=39 // pred_fallthru
        _
    $region40: #{encoder_forward.3} parent=5 // pred_fallthru
      _
  $region6: #{encoder_forward.3} parent=0 // loop_footer
    %s13 = sadd.s32 1, %s9
  $region7: #{encoder_forward.3} parent=0 // loop_footer_branch
    %8 = sbr.rel target = $region3
  $region8: #{encoder_forward.3} parent=0 // loop_exit
    _

// kernel: encoder_forward.4
$region0: #{encoder_forward.4}
  #allocation0 [shape = 'u32[]', space=smem, size = 0x4, offset = 0x4, fixed_abs, tag = 'smem constant byte address 0x4 - core index']
  #allocation1 [shape = 'u32[72,128]{1,0:T(1,128)}', space=vmem, size = 0x9000, scoped, tag = 'internal scratch']
  %s0 = inlined_call_operand.vmem [shape: bf16[64,1664], index: 0, kind: input, shape index: {}]
  %s1 = inlined_call_operand.vmem [shape: bf16[1664,128], index: 1, kind: input, shape index: {}]
  %s2 = inlined_call_operand.vmem [shape: f32[1,128], index: 2, kind: input, shape index: {}]
  %s3 = inlined_call_operand.vmem [shape: f32[64,128], index: 3, kind: output, shape index: {}]
  %s4 = sld [smem:[#allocation0]]
  $region22: #{encoder_forward.4} parent=0
    _
  %s6 = ssub.s32 1, %s4
  %s7 = scalar_select 0, %s6, %s4
  // Predicated region
  $region2: #{encoder_forward.4} parent=0 // pred_check
    _
  $region3: #{encoder_forward.4} parent=0 // pred_check_branch
    %9 = sbr.rel (0) target = $region5
  $region4: #{encoder_forward.4} parent=0 // pred_region
    _
  $region5: #{encoder_forward.4} parent=0 // pred_fallthru
    _
  // Predicated region
  $region6: #{encoder_forward.4} parent=0 // pred_check
    _
  $region7: #{encoder_forward.4} parent=0 // pred_check_branch
    %11 = sbr.rel (0) target = $region9
  $region8: #{encoder_forward.4} parent=0 // pred_region
    _
  $region9: #{encoder_forward.4} parent=0 // pred_fallthru
    _
  // Predicated region
  $region10: #{encoder_forward.4} parent=0 // pred_check
    _
  $region11: #{encoder_forward.4} parent=0 // pred_check_branch
    %13 = sbr.rel (0) target = $region13
  $region12: #{encoder_forward.4} parent=0 // pred_region
    _
  $region13: #{encoder_forward.4} parent=0 // pred_fallthru
    _
  %v14 = vld [vmem:[%s0] sm:$0xff]
  %v15 = vld [vmem:[%s0 + $0x8] sm:$0xff]
  %v16 = vld [vmem:[%s0 + $0x10] sm:$0xff]
  %v17 = vld [vmem:[%s0 + $0x18] sm:$0xff]
  %v18 = vld [vmem:[%s0 + $0x20] sm:$0xff]
  %v19 = vld [vmem:[%s0 + $0x28] sm:$0xff]
  %v20 = vld [vmem:[%s0 + $0x30] sm:$0xf]
  %v21 = vld [vmem:[%s0 + $0x34] sm:$0xff]
  %v22 = vld [vmem:[%s0 + $0x3c] sm:$0xff]
  %v23 = vld [vmem:[%s0 + $0x44] sm:$0xff]
  %v24 = vld [vmem:[%s0 + $0x4c] sm:$0xff]
  %v25 = vld [vmem:[%s0 + $0x54] sm:$0xff]
  %v26 = vld [vmem:[%s0 + $0x5c] sm:$0xff]
  %v27 = vld [vmem:[%s0 + $0x64] sm:$0xf]
  %v28 = vld [vmem:[%s0 + $0x68] sm:$0xff]
  %v29 = vld [vmem:[%s0 + $0x70] sm:$0xff]
  %v30 = vld [vmem:[%s0 + $0x78] sm:$0xff]
  %v31 = vld [vmem:[%s0 + $0x80] sm:$0xff]
  %v32 = vld [vmem:[%s0 + $0x88] sm:$0xff]
  %v33 = vld [vmem:[%s0 + $0x90] sm:$0xff]
  %v34 = vld [vmem:[%s0 + $0x98] sm:$0xf]
  %v35 = vld [vmem:[%s0 + $0x9c] sm:$0xff]
  %v36 = vld [vmem:[%s0 + $0xa4] sm:$0xff]
  %v37 = vld [vmem:[%s0 + $0xac] sm:$0xff]
  %v38 = vld [vmem:[%s0 + $0xb4] sm:$0xff]
  %v39 = vld [vmem:[%s0 + $0xbc] sm:$0xff]
  %v40 = vld [vmem:[%s0 + $0xc4] sm:$0xff]
  %v41 = vld [vmem:[%s0 + $0xcc] sm:$0xf]
  %v42 = vld [vmem:[%s0 + $0xd0] sm:$0xff]
  %v43 = vld [vmem:[%s0 + $0xd8] sm:$0xff]
  %v44 = vld [vmem:[%s0 + $0xe0] sm:$0xff]
  %v45 = vld [vmem:[%s0 + $0xe8] sm:$0xff]
  %v46 = vld [vmem:[%s0 + $0xf0] sm:$0xff]
  %v47 = vld [vmem:[%s0 + $0xf8] sm:$0xff]
  %v48 = vld [vmem:[%s0 + $0x100] sm:$0xf]
  %v49 = vld [vmem:[%s0 + $0x104] sm:$0xff]
  %v50 = vld [vmem:[%s0 + $0x10c] sm:$0xff]
  %v51 = vld [vmem:[%s0 + $0x114] sm:$0xff]
  %v52 = vld [vmem:[%s0 + $0x11c] sm:$0xff]
  %v53 = vld [vmem:[%s0 + $0x124] sm:$0xff]
  %v54 = vld [vmem:[%s0 + $0x12c] sm:$0xff]
  %v55 = vld [vmem:[%s0 + $0x134] sm:$0xf]
  %v56 = vld [vmem:[%s0 + $0x138] sm:$0xff]
  %v57 = vld [vmem:[%s0 + $0x140] sm:$0xff]
  %v58 = vld [vmem:[%s0 + $0x148] sm:$0xff]
  %v59 = vld [vmem:[%s0 + $0x150] sm:$0xff]
  %v60 = vld [vmem:[%s0 + $0x158] sm:$0xff]
  %v61 = vld [vmem:[%s0 + $0x160] sm:$0xff]
  %v62 = vld [vmem:[%s0 + $0x168] sm:$0xf]
  %v63 = vld [vmem:[%s0 + $0x16c] sm:$0xff]
  %v64 = vld [vmem:[%s0 + $0x174] sm:$0xff]
  %v65 = vld [vmem:[%s0 + $0x17c] sm:$0xff]
  %v66 = vld [vmem:[%s0 + $0x184] sm:$0xff]
  %v67 = vld [vmem:[%s0 + $0x18c] sm:$0xff]
  %v68 = vld [vmem:[%s0 + $0x194] sm:$0xff]
  %v69 = vld [vmem:[%s0 + $0x19c] sm:$0xf]
  %v70 = vld [vmem:[%s1] sm:$0xf]
  %v71 = vld [vmem:[%s1 + $0x4] sm:$0xf]
  %v72 = vld [vmem:[%s1 + $0x8] sm:$0xf]
  %v73 = vld [vmem:[%s1 + $0xc] sm:$0xf]
  %v74 = vld [vmem:[%s1 + $0x10] sm:$0xf]
  %v75 = vld [vmem:[%s1 + $0x14] sm:$0xf]
  %v76 = vld [vmem:[%s1 + $0x18] sm:$0xf]
  %v77 = vld [vmem:[%s1 + $0x1c] sm:$0xf]
  %v78 = vld [vmem:[%s1 + $0x20] sm:$0xf]
  %v79 = vld [vmem:[%s1 + $0x24] sm:$0xf]
  %v80 = vld [vmem:[%s1 + $0x28] sm:$0xf]
  %v81 = vld [vmem:[%s1 + $0x2c] sm:$0xf]
  %v82 = vld [vmem:[%s1 + $0x30] sm:$0xf]
  %v83 = vld [vmem:[%s1 + $0x34] sm:$0xf]
  %v84 = vld [vmem:[%s1 + $0x38] sm:$0xf]
  %v85 = vld [vmem:[%s1 + $0x3c] sm:$0xf]
  %v86 = vld [vmem:[%s1 + $0x40] sm:$0xf]
  %v87 = vld [vmem:[%s1 + $0x44] sm:$0xf]
  %v88 = vld [vmem:[%s1 + $0x48] sm:$0xf]
  %v89 = vld [vmem:[%s1 + $0x4c] sm:$0xf]
  %v90 = vld [vmem:[%s1 + $0x50] sm:$0xf]
  %v91 = vld [vmem:[%s1 + $0x54] sm:$0xf]
  %v92 = vld [vmem:[%s1 + $0x58] sm:$0xf]
  %v93 = vld [vmem:[%s1 + $0x5c] sm:$0xf]
  %v94 = vld [vmem:[%s1 + $0x60] sm:$0xf]
  %v95 = vld [vmem:[%s1 + $0x64] sm:$0xf]
  %v96 = vld [vmem:[%s1 + $0x68] sm:$0xf]
  %v97 = vld [vmem:[%s1 + $0x6c] sm:$0xf]
  %v98 = vld [vmem:[%s1 + $0x70] sm:$0xf]
  %v99 = vld [vmem:[%s1 + $0x74] sm:$0xf]
  %v100 = vld [vmem:[%s1 + $0x78] sm:$0xf]
  %v101 = vld [vmem:[%s1 + $0x7c] sm:$0xf]
  %v102 = vld [vmem:[%s1 + $0x80] sm:$0xf]
  %v103 = vld [vmem:[%s1 + $0x84] sm:$0xf]
  %v104 = vld [vmem:[%s1 + $0x88] sm:$0xf]
  %v105 = vld [vmem:[%s1 + $0x8c] sm:$0xf]
  %v106 = vld [vmem:[%s1 + $0x90] sm:$0xf]
  %v107 = vld [vmem:[%s1 + $0x94] sm:$0xf]
  %v108 = vld [vmem:[%s1 + $0x98] sm:$0xf]
  %v109 = vld [vmem:[%s1 + $0x9c] sm:$0xf]
  %v110 = vld [vmem:[%s1 + $0xa0] sm:$0xf]
  %v111 = vld [vmem:[%s1 + $0xa4] sm:$0xf]
  %v112 = vld [vmem:[%s1 + $0xa8] sm:$0xf]
  %v113 = vld [vmem:[%s1 + $0xac] sm:$0xf]
  %v114 = vld [vmem:[%s1 + $0xb0] sm:$0xf]
  %v115 = vld [vmem:[%s1 + $0xb4] sm:$0xf]
  %v116 = vld [vmem:[%s1 + $0xb8] sm:$0xf]
  %v117 = vld [vmem:[%s1 + $0xbc] sm:$0xf]
  %v118 = vld [vmem:[%s1 + $0xc0] sm:$0xf]
  %v119 = vld [vmem:[%s1 + $0xc4] sm:$0xf]
  %v120 = vld [vmem:[%s1 + $0xc8] sm:$0xf]
  %v121 = vld [vmem:[%s1 + $0xcc] sm:$0xf]
  %v122 = vld [vmem:[%s1 + $0xd0] sm:$0xf]
  %v123 = vld [vmem:[%s1 + $0xd4] sm:$0xf]
  %v124 = vld [vmem:[%s1 + $0xd8] sm:$0xf]
  %v125 = vld [vmem:[%s1 + $0xdc] sm:$0xf]
  %v126 = vld [vmem:[%s1 + $0xe0] sm:$0xf]
  %v127 = vld [vmem:[%s1 + $0xe4] sm:$0xf]
  %v128 = vld [vmem:[%s1 + $0xe8] sm:$0xf]
  %v129 = vld [vmem:[%s1 + $0xec] sm:$0xf]
  %v130 = vld [vmem:[%s1 + $0xf0] sm:$0xf]
  %v131 = vld [vmem:[%s1 + $0xf4] sm:$0xf]
  %v132 = vld [vmem:[%s1 + $0xf8] sm:$0xf]
  %v133 = vld [vmem:[%s1 + $0xfc] sm:$0xf]
  %v134 = vld [vmem:[%s1 + $0x100] sm:$0xf]
  %v135 = vld [vmem:[%s1 + $0x104] sm:$0xf]
  %v136 = vld [vmem:[%s1 + $0x108] sm:$0xf]
  %v137 = vld [vmem:[%s1 + $0x10c] sm:$0xf]
  %v138 = vld [vmem:[%s1 + $0x110] sm:$0xf]
  %v139 = vld [vmem:[%s1 + $0x114] sm:$0xf]
  %v140 = vld [vmem:[%s1 + $0x118] sm:$0xf]
  %v141 = vld [vmem:[%s1 + $0x11c] sm:$0xf]
  %v142 = vld [vmem:[%s1 + $0x120] sm:$0xf]
  %v143 = vld [vmem:[%s1 + $0x124] sm:$0xf]
  %v144 = vld [vmem:[%s1 + $0x128] sm:$0xf]
  %v145 = vld [vmem:[%s1 + $0x12c] sm:$0xf]
  %v146 = vld [vmem:[%s1 + $0x130] sm:$0xf]
  %v147 = vld [vmem:[%s1 + $0x134] sm:$0xf]
  %v148 = vld [vmem:[%s1 + $0x138] sm:$0xf]
  %v149 = vld [vmem:[%s1 + $0x13c] sm:$0xf]
  %v150 = vld [vmem:[%s1 + $0x140] sm:$0xf]
  %v151 = vld [vmem:[%s1 + $0x144] sm:$0xf]
  %v152 = vld [vmem:[%s1 + $0x148] sm:$0xf]
  %v153 = vld [vmem:[%s1 + $0x14c] sm:$0xf]
  %v154 = vld [vmem:[%s1 + $0x150] sm:$0xf]
  %v155 = vld [vmem:[%s1 + $0x154] sm:$0xf]
  %v156 = vld [vmem:[%s1 + $0x158] sm:$0xf]
  %v157 = vld [vmem:[%s1 + $0x15c] sm:$0xf]
  %v158 = vld [vmem:[%s1 + $0x160] sm:$0xf]
  %v159 = vld [vmem:[%s1 + $0x164] sm:$0xf]
  %v160 = vld [vmem:[%s1 + $0x168] sm:$0xf]
  %v161 = vld [vmem:[%s1 + $0x16c] sm:$0xf]
  %v162 = vld [vmem:[%s1 + $0x170] sm:$0xf]
  %v163 = vld [vmem:[%s1 + $0x174] sm:$0xf]
  %v164 = vld [vmem:[%s1 + $0x178] sm:$0xf]
  %v165 = vld [vmem:[%s1 + $0x17c] sm:$0xf]
  %v166 = vld [vmem:[%s1 + $0x180] sm:$0xf]
  %v167 = vld [vmem:[%s1 + $0x184] sm:$0xf]
  %v168 = vld [vmem:[%s1 + $0x188] sm:$0xf]
  %v169 = vld [vmem:[%s1 + $0x18c] sm:$0xf]
  %v170 = vld [vmem:[%s1 + $0x190] sm:$0xf]
  %v171 = vld [vmem:[%s1 + $0x194] sm:$0xf]
  %v172 = vld [vmem:[%s1 + $0x198] sm:$0xf]
  %v173 = vld [vmem:[%s1 + $0x19c] sm:$0xf]
  %v174 = vld [vmem:[%s1 + $0x1a0] sm:$0xf]
  %v175 = vld [vmem:[%s1 + $0x1a4] sm:$0xf]
  %v176 = vld [vmem:[%s1 + $0x1a8] sm:$0xf]
  %v177 = vld [vmem:[%s1 + $0x1ac] sm:$0xf]
  %v178 = vld [vmem:[%s1 + $0x1b0] sm:$0xf]
  %v179 = vld [vmem:[%s1 + $0x1b4] sm:$0xf]
  %v180 = vld [vmem:[%s1 + $0x1b8] sm:$0xf]
  %v181 = vld [vmem:[%s1 + $0x1bc] sm:$0xf]
  %v182 = vld [vmem:[%s1 + $0x1c0] sm:$0xf]
  %v183 = vld [vmem:[%s1 + $0x1c4] sm:$0xf]
  %v184 = vld [vmem:[%s1 + $0x1c8] sm:$0xf]
  %v185 = vld [vmem:[%s1 + $0x1cc] sm:$0xf]
  %v186 = vld [vmem:[%s1 + $0x1d0] sm:$0xf]
  %v187 = vld [vmem:[%s1 + $0x1d4] sm:$0xf]
  %v188 = vld [vmem:[%s1 + $0x1d8] sm:$0xf]
  %v189 = vld [vmem:[%s1 + $0x1dc] sm:$0xf]
  %v190 = vld [vmem:[%s1 + $0x1e0] sm:$0xf]
  %v191 = vld [vmem:[%s1 + $0x1e4] sm:$0xf]
  %v192 = vld [vmem:[%s1 + $0x1e8] sm:$0xf]
  %v193 = vld [vmem:[%s1 + $0x1ec] sm:$0xf]
  %v194 = vld [vmem:[%s1 + $0x1f0] sm:$0xf]
  %v195 = vld [vmem:[%s1 + $0x1f4] sm:$0xf]
  %v196 = vld [vmem:[%s1 + $0x1f8] sm:$0xf]
  %v197 = vld [vmem:[%s1 + $0x1fc] sm:$0xf]
  %v198 = vld [vmem:[%s1 + $0x200] sm:$0xf]
  %v199 = vld [vmem:[%s1 + $0x204] sm:$0xf]
  %v200 = vld [vmem:[%s1 + $0x208] sm:$0xf]
  %v201 = vld [vmem:[%s1 + $0x20c] sm:$0xf]
  %v202 = vld [vmem:[%s1 + $0x210] sm:$0xf]
  %v203 = vld [vmem:[%s1 + $0x214] sm:$0xf]
  %v204 = vld [vmem:[%s1 + $0x218] sm:$0xf]
  %v205 = vld [vmem:[%s1 + $0x21c] sm:$0xf]
  %v206 = vld [vmem:[%s1 + $0x220] sm:$0xf]
  %v207 = vld [vmem:[%s1 + $0x224] sm:$0xf]
  %v208 = vld [vmem:[%s1 + $0x228] sm:$0xf]
  %v209 = vld [vmem:[%s1 + $0x22c] sm:$0xf]
  %v210 = vld [vmem:[%s1 + $0x230] sm:$0xf]
  %v211 = vld [vmem:[%s1 + $0x234] sm:$0xf]
  %v212 = vld [vmem:[%s1 + $0x238] sm:$0xf]
  %v213 = vld [vmem:[%s1 + $0x23c] sm:$0xf]
  %v214 = vld [vmem:[%s1 + $0x240] sm:$0xf]
  %v215 = vld [vmem:[%s1 + $0x244] sm:$0xf]
  %v216 = vld [vmem:[%s1 + $0x248] sm:$0xf]
  %v217 = vld [vmem:[%s1 + $0x24c] sm:$0xf]
  %v218 = vld [vmem:[%s1 + $0x250] sm:$0xf]
  %v219 = vld [vmem:[%s1 + $0x254] sm:$0xf]
  %v220 = vld [vmem:[%s1 + $0x258] sm:$0xf]
  %v221 = vld [vmem:[%s1 + $0x25c] sm:$0xf]
  %v222 = vld [vmem:[%s1 + $0x260] sm:$0xf]
  %v223 = vld [vmem:[%s1 + $0x264] sm:$0xf]
  %v224 = vld [vmem:[%s1 + $0x268] sm:$0xf]
  %v225 = vld [vmem:[%s1 + $0x26c] sm:$0xf]
  %v226 = vld [vmem:[%s1 + $0x270] sm:$0xf]
  %v227 = vld [vmem:[%s1 + $0x274] sm:$0xf]
  %v228 = vld [vmem:[%s1 + $0x278] sm:$0xf]
  %v229 = vld [vmem:[%s1 + $0x27c] sm:$0xf]
  %v230 = vld [vmem:[%s1 + $0x280] sm:$0xf]
  %v231 = vld [vmem:[%s1 + $0x284] sm:$0xf]
  %v232 = vld [vmem:[%s1 + $0x288] sm:$0xf]
  %v233 = vld [vmem:[%s1 + $0x28c] sm:$0xf]
  %v234 = vld [vmem:[%s1 + $0x290] sm:$0xf]
  %v235 = vld [vmem:[%s1 + $0x294] sm:$0xf]
  %v236 = vld [vmem:[%s1 + $0x298] sm:$0xf]
  %v237 = vld [vmem:[%s1 + $0x29c] sm:$0xf]
  %v238 = vld [vmem:[%s1 + $0x2a0] sm:$0xf]
  %v239 = vld [vmem:[%s1 + $0x2a4] sm:$0xf]
  %v240 = vld [vmem:[%s1 + $0x2a8] sm:$0xf]
  %v241 = vld [vmem:[%s1 + $0x2ac] sm:$0xf]
  %v242 = vld [vmem:[%s1 + $0x2b0] sm:$0xf]
  %v243 = vld [vmem:[%s1 + $0x2b4] sm:$0xf]
  %v244 = vld [vmem:[%s1 + $0x2b8] sm:$0xf]
  %v245 = vld [vmem:[%s1 + $0x2bc] sm:$0xf]
  %v246 = vld [vmem:[%s1 + $0x2c0] sm:$0xf]
  %v247 = vld [vmem:[%s1 + $0x2c4] sm:$0xf]
  %v248 = vld [vmem:[%s1 + $0x2c8] sm:$0xf]
  %v249 = vld [vmem:[%s1 + $0x2cc] sm:$0xf]
  %v250 = vld [vmem:[%s1 + $0x2d0] sm:$0xf]
  %v251 = vld [vmem:[%s1 + $0x2d4] sm:$0xf]
  %v252 = vld [vmem:[%s1 + $0x2d8] sm:$0xf]
  %v253 = vld [vmem:[%s1 + $0x2dc] sm:$0xf]
  %v254 = vld [vmem:[%s1 + $0x2e0] sm:$0xf]
  %v255 = vld [vmem:[%s1 + $0x2e4] sm:$0xf]
  %v256 = vld [vmem:[%s1 + $0x2e8] sm:$0xf]
  %v257 = vld [vmem:[%s1 + $0x2ec] sm:$0xf]
  %v258 = vld [vmem:[%s1 + $0x2f0] sm:$0xf]
  %v259 = vld [vmem:[%s1 + $0x2f4] sm:$0xf]
  %v260 = vld [vmem:[%s1 + $0x2f8] sm:$0xf]
  %v261 = vld [vmem:[%s1 + $0x2fc] sm:$0xf]
  %v262 = vld [vmem:[%s1 + $0x300] sm:$0xf]
  %v263 = vld [vmem:[%s1 + $0x304] sm:$0xf]
  %v264 = vld [vmem:[%s1 + $0x308] sm:$0xf]
  %v265 = vld [vmem:[%s1 + $0x30c] sm:$0xf]
  %v266 = vld [vmem:[%s1 + $0x310] sm:$0xf]
  %v267 = vld [vmem:[%s1 + $0x314] sm:$0xf]
  %v268 = vld [vmem:[%s1 + $0x318] sm:$0xf]
  %v269 = vld [vmem:[%s1 + $0x31c] sm:$0xf]
  %v270 = vld [vmem:[%s1 + $0x320] sm:$0xf]
  %v271 = vld [vmem:[%s1 + $0x324] sm:$0xf]
  %v272 = vld [vmem:[%s1 + $0x328] sm:$0xf]
  %v273 = vld [vmem:[%s1 + $0x32c] sm:$0xf]
  %v274 = vld [vmem:[%s1 + $0x330] sm:$0xf]
  %v275 = vld [vmem:[%s1 + $0x334] sm:$0xf]
  %v276 = vld [vmem:[%s1 + $0x338] sm:$0xf]
  %v277 = vld [vmem:[%s1 + $0x33c] sm:$0xf]
  %v278 = vld [vmem:[%s2] sm:$0x1]
  %v280 = vperm.slane %v278, 0
  %v338 = vunpack.c.l.b16 %v14
  %v339 = vunpack.c.h.b16 %v14
  %v340 = vunpack.c.l.b16 %v15
  %v341 = vunpack.c.h.b16 %v15
  %v342 = vunpack.c.l.b16 %v16
  %v343 = vunpack.c.h.b16 %v16
  %v344 = vunpack.c.l.b16 %v17
  %v345 = vunpack.c.h.b16 %v17
  %v346 = vunpack.c.l.b16 %v18
  %v347 = vunpack.c.h.b16 %v18
  %v348 = vunpack.c.l.b16 %v19
  %v349 = vunpack.c.h.b16 %v19
  %v350 = vunpack.c.l.b16 %v20
  %v351 = vunpack.c.l.b16 %v21
  %v352 = vunpack.c.h.b16 %v21
  %v353 = vunpack.c.l.b16 %v22
  %v354 = vunpack.c.h.b16 %v22
  %v355 = vunpack.c.l.b16 %v23
  %v356 = vunpack.c.h.b16 %v23
  %v357 = vunpack.c.l.b16 %v24
  %v358 = vunpack.c.h.b16 %v24
  %v359 = vunpack.c.l.b16 %v25
  %v360 = vunpack.c.h.b16 %v25
  %v361 = vunpack.c.l.b16 %v26
  %v362 = vunpack.c.h.b16 %v26
  %v363 = vunpack.c.l.b16 %v27
  %v364 = vunpack.c.l.b16 %v28
  %v365 = vunpack.c.h.b16 %v28
  %v366 = vunpack.c.l.b16 %v29
  %v367 = vunpack.c.h.b16 %v29
  %v368 = vunpack.c.l.b16 %v30
  %v369 = vunpack.c.h.b16 %v30
  %v370 = vunpack.c.l.b16 %v31
  %v371 = vunpack.c.h.b16 %v31
  %v372 = vunpack.c.l.b16 %v32
  %v373 = vunpack.c.h.b16 %v32
  %v374 = vunpack.c.l.b16 %v33
  %v375 = vunpack.c.h.b16 %v33
  %v376 = vunpack.c.l.b16 %v34
  %v377 = vunpack.c.l.b16 %v35
  %v378 = vunpack.c.h.b16 %v35
  %v379 = vunpack.c.l.b16 %v36
  %v380 = vunpack.c.h.b16 %v36
  %v381 = vunpack.c.l.b16 %v37
  %v382 = vunpack.c.h.b16 %v37
  %v383 = vunpack.c.l.b16 %v38
  %v384 = vunpack.c.h.b16 %v38
  %v385 = vunpack.c.l.b16 %v39
  %v386 = vunpack.c.h.b16 %v39
  %v387 = vunpack.c.l.b16 %v40
  %v388 = vunpack.c.h.b16 %v40
  %v389 = vunpack.c.l.b16 %v41
  %v390 = vunpack.c.l.b16 %v42
  %v391 = vunpack.c.h.b16 %v42
  %v392 = vunpack.c.l.b16 %v43
  %v393 = vunpack.c.h.b16 %v43
  %v394 = vunpack.c.l.b16 %v44
  %v395 = vunpack.c.h.b16 %v44
  %v396 = vunpack.c.l.b16 %v45
  %v397 = vunpack.c.h.b16 %v45
  %v398 = vunpack.c.l.b16 %v46
  %v399 = vunpack.c.h.b16 %v46
  %v400 = vunpack.c.l.b16 %v47
  %v401 = vunpack.c.h.b16 %v47
  %v402 = vunpack.c.l.b16 %v48
  %v403 = vunpack.c.l.b16 %v49
  %v404 = vunpack.c.h.b16 %v49
  %v405 = vunpack.c.l.b16 %v50
  %v406 = vunpack.c.h.b16 %v50
  %v407 = vunpack.c.l.b16 %v51
  %v408 = vunpack.c.h.b16 %v51
  %v409 = vunpack.c.l.b16 %v52
  %v410 = vunpack.c.h.b16 %v52
  %v411 = vunpack.c.l.b16 %v53
  %v412 = vunpack.c.h.b16 %v53
  %v413 = vunpack.c.l.b16 %v54
  %v414 = vunpack.c.h.b16 %v54
  %v415 = vunpack.c.l.b16 %v55
  %v416 = vunpack.c.l.b16 %v56
  %v417 = vunpack.c.h.b16 %v56
  %v418 = vunpack.c.l.b16 %v57
  %v419 = vunpack.c.h.b16 %v57
  %v420 = vunpack.c.l.b16 %v58
  %v421 = vunpack.c.h.b16 %v58
  %v422 = vunpack.c.l.b16 %v59
  %v423 = vunpack.c.h.b16 %v59
  %v424 = vunpack.c.l.b16 %v60
  %v425 = vunpack.c.h.b16 %v60
  %v426 = vunpack.c.l.b16 %v61
  %v427 = vunpack.c.h.b16 %v61
  %v428 = vunpack.c.l.b16 %v62
  %v429 = vunpack.c.l.b16 %v63
  %v430 = vunpack.c.h.b16 %v63
  %v431 = vunpack.c.l.b16 %v64
  %v432 = vunpack.c.h.b16 %v64
  %v433 = vunpack.c.l.b16 %v65
  %v434 = vunpack.c.h.b16 %v65
  %v435 = vunpack.c.l.b16 %v66
  %v436 = vunpack.c.h.b16 %v66
  %v437 = vunpack.c.l.b16 %v67
  %v438 = vunpack.c.h.b16 %v67
  %v439 = vunpack.c.l.b16 %v68
  %v440 = vunpack.c.h.b16 %v68
  %v441 = vunpack.c.l.b16 %v69
  %v442 = vpack.c.b16 %v351, %v338
  %v443 = vpack.c.b16 %v352, %v339
  %v444 = vpack.c.b16 %v353, %v340
  %v445 = vpack.c.b16 %v354, %v341
  %v446 = vpack.c.b16 %v355, %v342
  %v447 = vpack.c.b16 %v356, %v343
  %v448 = vpack.c.b16 %v357, %v344
  %v449 = vpack.c.b16 %v358, %v345
  %v450 = vpack.c.b16 %v359, %v346
  %v451 = vpack.c.b16 %v360, %v347
  %v452 = vpack.c.b16 %v361, %v348
  %v453 = vpack.c.b16 %v362, %v349
  %v454 = vpack.c.b16 %v363, %v350
  %v455 = vpack.c.b16 %v377, %v364
  %v456 = vpack.c.b16 %v378, %v365
  %v457 = vpack.c.b16 %v379, %v366
  %v458 = vpack.c.b16 %v380, %v367
  %v459 = vpack.c.b16 %v381, %v368
  %v460 = vpack.c.b16 %v382, %v369
  %v461 = vpack.c.b16 %v383, %v370
  %v462 = vpack.c.b16 %v384, %v371
  %v463 = vpack.c.b16 %v385, %v372
  %v464 = vpack.c.b16 %v386, %v373
  %v465 = vpack.c.b16 %v387, %v374
  %v466 = vpack.c.b16 %v388, %v375
  %v467 = vpack.c.b16 %v389, %v376
  %v468 = vpack.c.b16 %v403, %v390
  %v469 = vpack.c.b16 %v404, %v391
  %v470 = vpack.c.b16 %v405, %v392
  %v471 = vpack.c.b16 %v406, %v393
  %v472 = vpack.c.b16 %v407, %v394
  %v473 = vpack.c.b16 %v408, %v395
  %v474 = vpack.c.b16 %v409, %v396
  %v475 = vpack.c.b16 %v410, %v397
  %v476 = vpack.c.b16 %v411, %v398
  %v477 = vpack.c.b16 %v412, %v399
  %v478 = vpack.c.b16 %v413, %v400
  %v479 = vpack.c.b16 %v414, %v401
  %v480 = vpack.c.b16 %v415, %v402
  %v481 = vpack.c.b16 %v429, %v416
  %v482 = vpack.c.b16 %v430, %v417
  %v483 = vpack.c.b16 %v431, %v418
  %v484 = vpack.c.b16 %v432, %v419
  %v485 = vpack.c.b16 %v433, %v420
  %v486 = vpack.c.b16 %v434, %v421
  %v487 = vpack.c.b16 %v435, %v422
  %v488 = vpack.c.b16 %v436, %v423
  %v489 = vpack.c.b16 %v437, %v424
  %v490 = vpack.c.b16 %v438, %v425
  %v491 = vpack.c.b16 %v439, %v426
  %v492 = vpack.c.b16 %v440, %v427
  %v493 = vpack.c.b16 %v441, %v428
  %v754 = vunpack.c.l.b16 %v70
  %v755 = vunpack.c.l.b16 %v71
  %v756 = vunpack.c.l.b16 %v72
  %v757 = vunpack.c.l.b16 %v73
  %v758 = vunpack.c.l.b16 %v74
  %v759 = vunpack.c.l.b16 %v75
  %v760 = vunpack.c.l.b16 %v76
  %v761 = vunpack.c.l.b16 %v77
  %v762 = vunpack.c.l.b16 %v78
  %v763 = vunpack.c.l.b16 %v79
  %v764 = vunpack.c.l.b16 %v80
  %v765 = vunpack.c.l.b16 %v81
  %v766 = vunpack.c.l.b16 %v82
  %v767 = vunpack.c.l.b16 %v83
  %v768 = vunpack.c.l.b16 %v84
  %v769 = vunpack.c.l.b16 %v85
  %v770 = vunpack.c.l.b16 %v86
  %v771 = vunpack.c.l.b16 %v87
  %v772 = vunpack.c.l.b16 %v88
  %v773 = vunpack.c.l.b16 %v89
  %v774 = vunpack.c.l.b16 %v90
  %v775 = vunpack.c.l.b16 %v91
  %v776 = vunpack.c.l.b16 %v92
  %v777 = vunpack.c.l.b16 %v93
  %v778 = vunpack.c.l.b16 %v94
  %v779 = vunpack.c.l.b16 %v95
  %v780 = vunpack.c.l.b16 %v96
  %v781 = vunpack.c.l.b16 %v97
  %v782 = vunpack.c.l.b16 %v98
  %v783 = vunpack.c.l.b16 %v99
  %v784 = vunpack.c.l.b16 %v100
  %v785 = vunpack.c.l.b16 %v101
  %v786 = vunpack.c.l.b16 %v102
  %v787 = vunpack.c.l.b16 %v103
  %v788 = vunpack.c.l.b16 %v104
  %v789 = vunpack.c.l.b16 %v105
  %v790 = vunpack.c.l.b16 %v106
  %v791 = vunpack.c.l.b16 %v107
  %v792 = vunpack.c.l.b16 %v108
  %v793 = vunpack.c.l.b16 %v109
  %v794 = vunpack.c.l.b16 %v110
  %v795 = vunpack.c.l.b16 %v111
  %v796 = vunpack.c.l.b16 %v112
  %v797 = vunpack.c.l.b16 %v113
  %v798 = vunpack.c.l.b16 %v114
  %v799 = vunpack.c.l.b16 %v115
  %v800 = vunpack.c.l.b16 %v116
  %v801 = vunpack.c.l.b16 %v117
  %v802 = vunpack.c.l.b16 %v118
  %v803 = vunpack.c.l.b16 %v119
  %v804 = vunpack.c.l.b16 %v120
  %v805 = vunpack.c.l.b16 %v121
  %v806 = vunpack.c.l.b16 %v122
  %v807 = vunpack.c.l.b16 %v123
  %v808 = vunpack.c.l.b16 %v124
  %v809 = vunpack.c.l.b16 %v125
  %v810 = vunpack.c.l.b16 %v126
  %v811 = vunpack.c.l.b16 %v127
  %v812 = vunpack.c.l.b16 %v128
  %v813 = vunpack.c.l.b16 %v129
  %v814 = vunpack.c.l.b16 %v130
  %v815 = vunpack.c.l.b16 %v131
  %v816 = vunpack.c.l.b16 %v132
  %v817 = vunpack.c.l.b16 %v133
  %v818 = vunpack.c.l.b16 %v134
  %v819 = vunpack.c.l.b16 %v135
  %v820 = vunpack.c.l.b16 %v136
  %v821 = vunpack.c.l.b16 %v137
  %v822 = vunpack.c.l.b16 %v138
  %v823 = vunpack.c.l.b16 %v139
  %v824 = vunpack.c.l.b16 %v140
  %v825 = vunpack.c.l.b16 %v141
  %v826 = vunpack.c.l.b16 %v142
  %v827 = vunpack.c.l.b16 %v143
  %v828 = vunpack.c.l.b16 %v144
  %v829 = vunpack.c.l.b16 %v145
  %v830 = vunpack.c.l.b16 %v146
  %v831 = vunpack.c.l.b16 %v147
  %v832 = vunpack.c.l.b16 %v148
  %v833 = vunpack.c.l.b16 %v149
  %v834 = vunpack.c.l.b16 %v150
  %v835 = vunpack.c.l.b16 %v151
  %v836 = vunpack.c.l.b16 %v152
  %v837 = vunpack.c.l.b16 %v153
  %v838 = vunpack.c.l.b16 %v154
  %v839 = vunpack.c.l.b16 %v155
  %v840 = vunpack.c.l.b16 %v156
  %v841 = vunpack.c.l.b16 %v157
  %v842 = vunpack.c.l.b16 %v158
  %v843 = vunpack.c.l.b16 %v159
  %v844 = vunpack.c.l.b16 %v160
  %v845 = vunpack.c.l.b16 %v161
  %v846 = vunpack.c.l.b16 %v162
  %v847 = vunpack.c.l.b16 %v163
  %v848 = vunpack.c.l.b16 %v164
  %v849 = vunpack.c.l.b16 %v165
  %v850 = vunpack.c.l.b16 %v166
  %v851 = vunpack.c.l.b16 %v167
  %v852 = vunpack.c.l.b16 %v168
  %v853 = vunpack.c.l.b16 %v169
  %v854 = vunpack.c.l.b16 %v170
  %v855 = vunpack.c.l.b16 %v171
  %v856 = vunpack.c.l.b16 %v172
  %v857 = vunpack.c.l.b16 %v173
  %v858 = vunpack.c.l.b16 %v174
  %v859 = vunpack.c.l.b16 %v175
  %v860 = vunpack.c.l.b16 %v176
  %v861 = vunpack.c.l.b16 %v177
  %v862 = vunpack.c.l.b16 %v178
  %v863 = vunpack.c.l.b16 %v179
  %v864 = vunpack.c.l.b16 %v180
  %v865 = vunpack.c.l.b16 %v181
  %v866 = vunpack.c.l.b16 %v182
  %v867 = vunpack.c.l.b16 %v183
  %v868 = vunpack.c.l.b16 %v184
  %v869 = vunpack.c.l.b16 %v185
  %v870 = vunpack.c.l.b16 %v186
  %v871 = vunpack.c.l.b16 %v187
  %v872 = vunpack.c.l.b16 %v188
  %v873 = vunpack.c.l.b16 %v189
  %v874 = vunpack.c.l.b16 %v190
  %v875 = vunpack.c.l.b16 %v191
  %v876 = vunpack.c.l.b16 %v192
  %v877 = vunpack.c.l.b16 %v193
  %v878 = vunpack.c.l.b16 %v194
  %v879 = vunpack.c.l.b16 %v195
  %v880 = vunpack.c.l.b16 %v196
  %v881 = vunpack.c.l.b16 %v197
  %v882 = vunpack.c.l.b16 %v198
  %v883 = vunpack.c.l.b16 %v199
  %v884 = vunpack.c.l.b16 %v200
  %v885 = vunpack.c.l.b16 %v201
  %v886 = vunpack.c.l.b16 %v202
  %v887 = vunpack.c.l.b16 %v203
  %v888 = vunpack.c.l.b16 %v204
  %v889 = vunpack.c.l.b16 %v205
  %v890 = vunpack.c.l.b16 %v206
  %v891 = vunpack.c.l.b16 %v207
  %v892 = vunpack.c.l.b16 %v208
  %v893 = vunpack.c.l.b16 %v209
  %v894 = vunpack.c.l.b16 %v210
  %v895 = vunpack.c.l.b16 %v211
  %v896 = vunpack.c.l.b16 %v212
  %v897 = vunpack.c.l.b16 %v213
  %v898 = vunpack.c.l.b16 %v214
  %v899 = vunpack.c.l.b16 %v215
  %v900 = vunpack.c.l.b16 %v216
  %v901 = vunpack.c.l.b16 %v217
  %v902 = vunpack.c.l.b16 %v218
  %v903 = vunpack.c.l.b16 %v219
  %v904 = vunpack.c.l.b16 %v220
  %v905 = vunpack.c.l.b16 %v221
  %v906 = vunpack.c.l.b16 %v222
  %v907 = vunpack.c.l.b16 %v223
  %v908 = vunpack.c.l.b16 %v224
  %v909 = vunpack.c.l.b16 %v225
  %v910 = vunpack.c.l.b16 %v226
  %v911 = vunpack.c.l.b16 %v227
  %v912 = vunpack.c.l.b16 %v228
  %v913 = vunpack.c.l.b16 %v229
  %v914 = vunpack.c.l.b16 %v230
  %v915 = vunpack.c.l.b16 %v231
  %v916 = vunpack.c.l.b16 %v232
  %v917 = vunpack.c.l.b16 %v233
  %v918 = vunpack.c.l.b16 %v234
  %v919 = vunpack.c.l.b16 %v235
  %v920 = vunpack.c.l.b16 %v236
  %v921 = vunpack.c.l.b16 %v237
  %v922 = vunpack.c.l.b16 %v238
  %v923 = vunpack.c.l.b16 %v239
  %v924 = vunpack.c.l.b16 %v240
  %v925 = vunpack.c.l.b16 %v241
  %v926 = vunpack.c.l.b16 %v242
  %v927 = vunpack.c.l.b16 %v243
  %v928 = vunpack.c.l.b16 %v244
  %v929 = vunpack.c.l.b16 %v245
  %v930 = vunpack.c.l.b16 %v246
  %v931 = vunpack.c.l.b16 %v247
  %v932 = vunpack.c.l.b16 %v248
  %v933 = vunpack.c.l.b16 %v249
  %v934 = vunpack.c.l.b16 %v250
  %v935 = vunpack.c.l.b16 %v251
  %v936 = vunpack.c.l.b16 %v252
  %v937 = vunpack.c.l.b16 %v253
  %v938 = vunpack.c.l.b16 %v254
  %v939 = vunpack.c.l.b16 %v255
  %v940 = vunpack.c.l.b16 %v256
  %v941 = vunpack.c.l.b16 %v257
  %v942 = vunpack.c.l.b16 %v258
  %v943 = vunpack.c.l.b16 %v259
  %v944 = vunpack.c.l.b16 %v260
  %v945 = vunpack.c.l.b16 %v261
  %v946 = vunpack.c.l.b16 %v262
  %v947 = vunpack.c.l.b16 %v263
  %v948 = vunpack.c.l.b16 %v264
  %v949 = vunpack.c.l.b16 %v265
  %v950 = vunpack.c.l.b16 %v266
  %v951 = vunpack.c.l.b16 %v267
  %v952 = vunpack.c.l.b16 %v268
  %v953 = vunpack.c.l.b16 %v269
  %v954 = vunpack.c.l.b16 %v270
  %v955 = vunpack.c.l.b16 %v271
  %v956 = vunpack.c.l.b16 %v272
  %v957 = vunpack.c.l.b16 %v273
  %v958 = vunpack.c.l.b16 %v274
  %v959 = vunpack.c.l.b16 %v275
  %v960 = vunpack.c.l.b16 %v276
  %v961 = vunpack.c.l.b16 %v277
  %v962 = vpack.c.b16 %v755, %v754
  %v963 = vpack.c.b16 %v757, %v756
  %v964 = vpack.c.b16 %v759, %v758
  %v965 = vpack.c.b16 %v761, %v760
  %v966 = vpack.c.b16 %v763, %v762
  %v967 = vpack.c.b16 %v765, %v764
  %v968 = vpack.c.b16 %v767, %v766
  %v969 = vpack.c.b16 %v769, %v768
  %v970 = vpack.c.b16 %v771, %v770
  %v971 = vpack.c.b16 %v773, %v772
  %v972 = vpack.c.b16 %v775, %v774
  %v973 = vpack.c.b16 %v777, %v776
  %v974 = vpack.c.b16 %v779, %v778
  %v975 = vpack.c.b16 %v781, %v780
  %v976 = vpack.c.b16 %v783, %v782
  %v977 = vpack.c.b16 %v785, %v784
  %v978 = vpack.c.b16 %v787, %v786
  %v979 = vpack.c.b16 %v789, %v788
  %v980 = vpack.c.b16 %v791, %v790
  %v981 = vpack.c.b16 %v793, %v792
  %v982 = vpack.c.b16 %v795, %v794
  %v983 = vpack.c.b16 %v797, %v796
  %v984 = vpack.c.b16 %v799, %v798
  %v985 = vpack.c.b16 %v801, %v800
  %v986 = vpack.c.b16 %v803, %v802
  %v987 = vpack.c.b16 %v805, %v804
  %v988 = vpack.c.b16 %v807, %v806
  %v989 = vpack.c.b16 %v809, %v808
  %v990 = vpack.c.b16 %v811, %v810
  %v991 = vpack.c.b16 %v813, %v812
  %v992 = vpack.c.b16 %v815, %v814
  %v993 = vpack.c.b16 %v817, %v816
  %v994 = vpack.c.b16 %v819, %v818
  %v995 = vpack.c.b16 %v821, %v820
  %v996 = vpack.c.b16 %v823, %v822
  %v997 = vpack.c.b16 %v825, %v824
  %v998 = vpack.c.b16 %v827, %v826
  %v999 = vpack.c.b16 %v829, %v828
  %v1000 = vpack.c.b16 %v831, %v830
  %v1001 = vpack.c.b16 %v833, %v832
  %v1002 = vpack.c.b16 %v835, %v834
  %v1003 = vpack.c.b16 %v837, %v836
  %v1004 = vpack.c.b16 %v839, %v838
  %v1005 = vpack.c.b16 %v841, %v840
  %v1006 = vpack.c.b16 %v843, %v842
  %v1007 = vpack.c.b16 %v845, %v844
  %v1008 = vpack.c.b16 %v847, %v846
  %v1009 = vpack.c.b16 %v849, %v848
  %v1010 = vpack.c.b16 %v851, %v850
  %v1011 = vpack.c.b16 %v853, %v852
  %v1012 = vpack.c.b16 %v855, %v854
  %v1013 = vpack.c.b16 %v857, %v856
  %v1014 = vpack.c.b16 %v859, %v858
  %v1015 = vpack.c.b16 %v861, %v860
  %v1016 = vpack.c.b16 %v863, %v862
  %v1017 = vpack.c.b16 %v865, %v864
  %v1018 = vpack.c.b16 %v867, %v866
  %v1019 = vpack.c.b16 %v869, %v868
  %v1020 = vpack.c.b16 %v871, %v870
  %v1021 = vpack.c.b16 %v873, %v872
  %v1022 = vpack.c.b16 %v875, %v874
  %v1023 = vpack.c.b16 %v877, %v876
  %v1024 = vpack.c.b16 %v879, %v878
  %v1025 = vpack.c.b16 %v881, %v880
  %v1026 = vpack.c.b16 %v883, %v882
  %v1027 = vpack.c.b16 %v885, %v884
  %v1028 = vpack.c.b16 %v887, %v886
  %v1029 = vpack.c.b16 %v889, %v888
  %v1030 = vpack.c.b16 %v891, %v890
  %v1031 = vpack.c.b16 %v893, %v892
  %v1032 = vpack.c.b16 %v895, %v894
  %v1033 = vpack.c.b16 %v897, %v896
  %v1034 = vpack.c.b16 %v899, %v898
  %v1035 = vpack.c.b16 %v901, %v900
  %v1036 = vpack.c.b16 %v903, %v902
  %v1037 = vpack.c.b16 %v905, %v904
  %v1038 = vpack.c.b16 %v907, %v906
  %v1039 = vpack.c.b16 %v909, %v908
  %v1040 = vpack.c.b16 %v911, %v910
  %v1041 = vpack.c.b16 %v913, %v912
  %v1042 = vpack.c.b16 %v915, %v914
  %v1043 = vpack.c.b16 %v917, %v916
  %v1044 = vpack.c.b16 %v919, %v918
  %v1045 = vpack.c.b16 %v921, %v920
  %v1046 = vpack.c.b16 %v923, %v922
  %v1047 = vpack.c.b16 %v925, %v924
  %v1048 = vpack.c.b16 %v927, %v926
  %v1049 = vpack.c.b16 %v929, %v928
  %v1050 = vpack.c.b16 %v931, %v930
  %v1051 = vpack.c.b16 %v933, %v932
  %v1052 = vpack.c.b16 %v935, %v934
  %v1053 = vpack.c.b16 %v937, %v936
  %v1054 = vpack.c.b16 %v939, %v938
  %v1055 = vpack.c.b16 %v941, %v940
  %v1056 = vpack.c.b16 %v943, %v942
  %v1057 = vpack.c.b16 %v945, %v944
  %v1058 = vpack.c.b16 %v947, %v946
  %v1059 = vpack.c.b16 %v949, %v948
  %v1060 = vpack.c.b16 %v951, %v950
  %v1061 = vpack.c.b16 %v953, %v952
  %v1062 = vpack.c.b16 %v955, %v954
  %v1063 = vpack.c.b16 %v957, %v956
  %v1064 = vpack.c.b16 %v959, %v958
  %v1065 = vpack.c.b16 %v961, %v960
  %1170 = vmatpush.bf16.msra.mxu0 %v969
  %1171 = vmatpush.bf16.msra.mxu0 %v968
  %1172 = vmatpush.bf16.msra.mxu0 %v967
  %1173 = vmatpush.bf16.msra.mxu0 %v966
  %1174 = vmatpush.bf16.msra.mxu0 %v965
  %1175 = vmatpush.bf16.msra.mxu0 %v964
  %1176 = vmatpush.bf16.msra.mxu0 %v963
  %1177 = vmatpush.bf16.msra.mxu0 %v962
  %1178 = vmatmul.bf16.gmra.mxu0 %v442
  %v1179 = vpop.f32.mrf.mxu0
  %v1180 = vadd.f32 %v280, %v1179
  %v1181 = vpop.f32.mrf.mxu0
  %v1182 = vadd.f32 %v280, %v1181
  %1183 = vmatmul.bf16.gmra.mxu0 %v455
  %v1184 = vpop.f32.mrf.mxu0
  %v1185 = vadd.f32 %v280, %v1184
  %v1186 = vpop.f32.mrf.mxu0
  %v1187 = vadd.f32 %v280, %v1186
  %1188 = vmatmul.bf16.gmra.mxu0 %v468
  %v1189 = vpop.f32.mrf.mxu0
  %v1190 = vadd.f32 %v280, %v1189
  %v1191 = vpop.f32.mrf.mxu0
  %v1192 = vadd.f32 %v280, %v1191
  %1193 = vmatmul.bf16.gmra.mxu0 %v481
  %v1194 = vpop.f32.mrf.mxu0
  %v1195 = vadd.f32 %v280, %v1194
  %v1196 = vpop.f32.mrf.mxu0
  %v1197 = vadd.f32 %v280, %v1196
  %1198 = vdwg.mxu0
  %1199 = vmatpush.bf16.msra.mxu0 %v977
  %1200 = vmatpush.bf16.msra.mxu0 %v976
  %1201 = vmatpush.bf16.msra.mxu0 %v975
  %1202 = vmatpush.bf16.msra.mxu0 %v974
  %1203 = vmatpush.bf16.msra.mxu0 %v973
  %1204 = vmatpush.bf16.msra.mxu0 %v972
  %1205 = vmatpush.bf16.msra.mxu0 %v971
  %1206 = vmatpush.bf16.msra.mxu0 %v970
  %1207 = vmatmul.bf16.gmra.mxu0 %v443
  %v1208 = vpop.f32.mrf.mxu0
  %v1209 = vadd.f32 %v1180, %v1208
  %v1210 = vpop.f32.mrf.mxu0
  %v1211 = vadd.f32 %v1182, %v1210
  %1212 = vmatmul.bf16.gmra.mxu0 %v456
  %v1213 = vpop.f32.mrf.mxu0
  %v1214 = vadd.f32 %v1185, %v1213
  %v1215 = vpop.f32.mrf.mxu0
  %v1216 = vadd.f32 %v1187, %v1215
  %1217 = vmatmul.bf16.gmra.mxu0 %v469
  %v1218 = vpop.f32.mrf.mxu0
  %v1219 = vadd.f32 %v1190, %v1218
  %v1220 = vpop.f32.mrf.mxu0
  %v1221 = vadd.f32 %v1192, %v1220
  %1222 = vmatmul.bf16.gmra.mxu0 %v482
  %v1223 = vpop.f32.mrf.mxu0
  %v1224 = vadd.f32 %v1195, %v1223
  %v1225 = vpop.f32.mrf.mxu0
  %v1226 = vadd.f32 %v1197, %v1225
  %1227 = vdwg.mxu0
  %1228 = vmatpush.bf16.msra.mxu0 %v985
  %1229 = vmatpush.bf16.msra.mxu0 %v984
  %1230 = vmatpush.bf16.msra.mxu0 %v983
  %1231 = vmatpush.bf16.msra.mxu0 %v982
  %1232 = vmatpush.bf16.msra.mxu0 %v981
  %1233 = vmatpush.bf16.msra.mxu0 %v980
  %1234 = vmatpush.bf16.msra.mxu0 %v979
  %1235 = vmatpush.bf16.msra.mxu0 %v978
  %1236 = vmatmul.bf16.gmra.mxu0 %v444
  %v1237 = vpop.f32.mrf.mxu0
  %v1238 = vadd.f32 %v1209, %v1237
  %v1239 = vpop.f32.mrf.mxu0
  %v1240 = vadd.f32 %v1211, %v1239
  %1241 = vmatmul.bf16.gmra.mxu0 %v457
  %v1242 = vpop.f32.mrf.mxu0
  %v1243 = vadd.f32 %v1214, %v1242
  %v1244 = vpop.f32.mrf.mxu0
  %v1245 = vadd.f32 %v1216, %v1244
  %1246 = vmatmul.bf16.gmra.mxu0 %v470
  %v1247 = vpop.f32.mrf.mxu0
  %v1248 = vadd.f32 %v1219, %v1247
  %v1249 = vpop.f32.mrf.mxu0
  %v1250 = vadd.f32 %v1221, %v1249
  %1251 = vmatmul.bf16.gmra.mxu0 %v483
  %v1252 = vpop.f32.mrf.mxu0
  %v1253 = vadd.f32 %v1224, %v1252
  %v1254 = vpop.f32.mrf.mxu0
  %v1255 = vadd.f32 %v1226, %v1254
  %1256 = vdwg.mxu0
  %1257 = vmatpush.bf16.msra.mxu0 %v993
  %1258 = vmatpush.bf16.msra.mxu0 %v992
  %1259 = vmatpush.bf16.msra.mxu0 %v991
  %1260 = vmatpush.bf16.msra.mxu0 %v990
  %1261 = vmatpush.bf16.msra.mxu0 %v989
  %1262 = vmatpush.bf16.msra.mxu0 %v988
  %1263 = vmatpush.bf16.msra.mxu0 %v987
  %1264 = vmatpush.bf16.msra.mxu0 %v986
  %1265 = vmatmul.bf16.gmra.mxu0 %v445
  %v1266 = vpop.f32.mrf.mxu0
  %v1267 = vadd.f32 %v1238, %v1266
  %v1268 = vpop.f32.mrf.mxu0
  %v1269 = vadd.f32 %v1240, %v1268
  %1270 = vmatmul.bf16.gmra.mxu0 %v458
  %v1271 = vpop.f32.mrf.mxu0
  %v1272 = vadd.f32 %v1243, %v1271
  %v1273 = vpop.f32.mrf.mxu0
  %v1274 = vadd.f32 %v1245, %v1273
  %1275 = vmatmul.bf16.gmra.mxu0 %v471
  %v1276 = vpop.f32.mrf.mxu0
  %v1277 = vadd.f32 %v1248, %v1276
  %v1278 = vpop.f32.mrf.mxu0
  %v1279 = vadd.f32 %v1250, %v1278
  %1280 = vmatmul.bf16.gmra.mxu0 %v484
  %v1281 = vpop.f32.mrf.mxu0
  %v1282 = vadd.f32 %v1253, %v1281
  %v1283 = vpop.f32.mrf.mxu0
  %v1284 = vadd.f32 %v1255, %v1283
  %1285 = vdwg.mxu0
  %1286 = vmatpush.bf16.msra.mxu0 %v1001
  %1287 = vmatpush.bf16.msra.mxu0 %v1000
  %1288 = vmatpush.bf16.msra.mxu0 %v999
  %1289 = vmatpush.bf16.msra.mxu0 %v998
  %1290 = vmatpush.bf16.msra.mxu0 %v997
  %1291 = vmatpush.bf16.msra.mxu0 %v996
  %1292 = vmatpush.bf16.msra.mxu0 %v995
  %1293 = vmatpush.bf16.msra.mxu0 %v994
  %1294 = vmatmul.bf16.gmra.mxu0 %v446
  %v1295 = vpop.f32.mrf.mxu0
  %v1296 = vadd.f32 %v1267, %v1295
  %v1297 = vpop.f32.mrf.mxu0
  %v1298 = vadd.f32 %v1269, %v1297
  %1299 = vmatmul.bf16.gmra.mxu0 %v459
  %v1300 = vpop.f32.mrf.mxu0
  %v1301 = vadd.f32 %v1272, %v1300
  %v1302 = vpop.f32.mrf.mxu0
  %v1303 = vadd.f32 %v1274, %v1302
  %1304 = vmatmul.bf16.gmra.mxu0 %v472
  %v1305 = vpop.f32.mrf.mxu0
  %v1306 = vadd.f32 %v1277, %v1305
  %v1307 = vpop.f32.mrf.mxu0
  %v1308 = vadd.f32 %v1279, %v1307
  %1309 = vmatmul.bf16.gmra.mxu0 %v485
  %v1310 = vpop.f32.mrf.mxu0
  %v1311 = vadd.f32 %v1282, %v1310
  %v1312 = vpop.f32.mrf.mxu0
  %v1313 = vadd.f32 %v1284, %v1312
  %1314 = vdwg.mxu0
  %1315 = vmatpush.bf16.msra.mxu0 %v1009
  %1316 = vmatpush.bf16.msra.mxu0 %v1008
  %1317 = vmatpush.bf16.msra.mxu0 %v1007
  %1318 = vmatpush.bf16.msra.mxu0 %v1006
  %1319 = vmatpush.bf16.msra.mxu0 %v1005
  %1320 = vmatpush.bf16.msra.mxu0 %v1004
  %1321 = vmatpush.bf16.msra.mxu0 %v1003
  %1322 = vmatpush.bf16.msra.mxu0 %v1002
  %1323 = vmatmul.bf16.gmra.mxu0 %v447
  %v1324 = vpop.f32.mrf.mxu0
  %v1325 = vadd.f32 %v1296, %v1324
  %v1326 = vpop.f32.mrf.mxu0
  %v1327 = vadd.f32 %v1298, %v1326
  %1328 = vmatmul.bf16.gmra.mxu0 %v460
  %v1329 = vpop.f32.mrf.mxu0
  %v1330 = vadd.f32 %v1301, %v1329
  %v1331 = vpop.f32.mrf.mxu0
  %v1332 = vadd.f32 %v1303, %v1331
  %1333 = vmatmul.bf16.gmra.mxu0 %v473
  %v1334 = vpop.f32.mrf.mxu0
  %v1335 = vadd.f32 %v1306, %v1334
  %v1336 = vpop.f32.mrf.mxu0
  %v1337 = vadd.f32 %v1308, %v1336
  %1338 = vmatmul.bf16.gmra.mxu0 %v486
  %v1339 = vpop.f32.mrf.mxu0
  %v1340 = vadd.f32 %v1311, %v1339
  %v1341 = vpop.f32.mrf.mxu0
  %v1342 = vadd.f32 %v1313, %v1341
  %1343 = vdwg.mxu0
  %1344 = vmatpush.bf16.msra.mxu0 %v1017
  %1345 = vmatpush.bf16.msra.mxu0 %v1016
  %1346 = vmatpush.bf16.msra.mxu0 %v1015
  %1347 = vmatpush.bf16.msra.mxu0 %v1014
  %1348 = vmatpush.bf16.msra.mxu0 %v1013
  %1349 = vmatpush.bf16.msra.mxu0 %v1012
  %1350 = vmatpush.bf16.msra.mxu0 %v1011
  %1351 = vmatpush.bf16.msra.mxu0 %v1010
  %1352 = vmatmul.bf16.gmra.mxu0 %v448
  %v1353 = vpop.f32.mrf.mxu0
  %v1354 = vadd.f32 %v1325, %v1353
  %v1355 = vpop.f32.mrf.mxu0
  %v1356 = vadd.f32 %v1327, %v1355
  %1357 = vmatmul.bf16.gmra.mxu0 %v461
  %v1358 = vpop.f32.mrf.mxu0
  %v1359 = vadd.f32 %v1330, %v1358
  %v1360 = vpop.f32.mrf.mxu0
  %v1361 = vadd.f32 %v1332, %v1360
  %1362 = vmatmul.bf16.gmra.mxu0 %v474
  %v1363 = vpop.f32.mrf.mxu0
  %v1364 = vadd.f32 %v1335, %v1363
  %v1365 = vpop.f32.mrf.mxu0
  %v1366 = vadd.f32 %v1337, %v1365
  %1367 = vmatmul.bf16.gmra.mxu0 %v487
  %v1368 = vpop.f32.mrf.mxu0
  %v1369 = vadd.f32 %v1340, %v1368
  %v1370 = vpop.f32.mrf.mxu0
  %v1371 = vadd.f32 %v1342, %v1370
  %1372 = vdwg.mxu0
  %1373 = vmatpush.bf16.msra.mxu0 %v1025
  %1374 = vmatpush.bf16.msra.mxu0 %v1024
  %1375 = vmatpush.bf16.msra.mxu0 %v1023
  %1376 = vmatpush.bf16.msra.mxu0 %v1022
  %1377 = vmatpush.bf16.msra.mxu0 %v1021
  %1378 = vmatpush.bf16.msra.mxu0 %v1020
  %1379 = vmatpush.bf16.msra.mxu0 %v1019
  %1380 = vmatpush.bf16.msra.mxu0 %v1018
  %1381 = vmatmul.bf16.gmra.mxu0 %v449
  %v1382 = vpop.f32.mrf.mxu0
  %v1383 = vadd.f32 %v1354, %v1382
  %v1384 = vpop.f32.mrf.mxu0
  %v1385 = vadd.f32 %v1356, %v1384
  %1386 = vmatmul.bf16.gmra.mxu0 %v462
  %v1387 = vpop.f32.mrf.mxu0
  %v1388 = vadd.f32 %v1359, %v1387
  %v1389 = vpop.f32.mrf.mxu0
  %v1390 = vadd.f32 %v1361, %v1389
  %1391 = vmatmul.bf16.gmra.mxu0 %v475
  %v1392 = vpop.f32.mrf.mxu0
  %v1393 = vadd.f32 %v1364, %v1392
  %v1394 = vpop.f32.mrf.mxu0
  %v1395 = vadd.f32 %v1366, %v1394
  %1396 = vmatmul.bf16.gmra.mxu0 %v488
  %v1397 = vpop.f32.mrf.mxu0
  %v1398 = vadd.f32 %v1369, %v1397
  %v1399 = vpop.f32.mrf.mxu0
  %v1400 = vadd.f32 %v1371, %v1399
  %1401 = vdwg.mxu0
  %1402 = vmatpush.bf16.msra.mxu0 %v1033
  %1403 = vmatpush.bf16.msra.mxu0 %v1032
  %1404 = vmatpush.bf16.msra.mxu0 %v1031
  %1405 = vmatpush.bf16.msra.mxu0 %v1030
  %1406 = vmatpush.bf16.msra.mxu0 %v1029
  %1407 = vmatpush.bf16.msra.mxu0 %v1028
  %1408 = vmatpush.bf16.msra.mxu0 %v1027
  %1409 = vmatpush.bf16.msra.mxu0 %v1026
  %1410 = vmatmul.bf16.gmra.mxu0 %v450
  %v1411 = vpop.f32.mrf.mxu0
  %v1412 = vadd.f32 %v1383, %v1411
  %v1413 = vpop.f32.mrf.mxu0
  %v1414 = vadd.f32 %v1385, %v1413
  %1415 = vmatmul.bf16.gmra.mxu0 %v463
  %v1416 = vpop.f32.mrf.mxu0
  %v1417 = vadd.f32 %v1388, %v1416
  %v1418 = vpop.f32.mrf.mxu0
  %v1419 = vadd.f32 %v1390, %v1418
  %1420 = vmatmul.bf16.gmra.mxu0 %v476
  %v1421 = vpop.f32.mrf.mxu0
  %v1422 = vadd.f32 %v1393, %v1421
  %v1423 = vpop.f32.mrf.mxu0
  %v1424 = vadd.f32 %v1395, %v1423
  %1425 = vmatmul.bf16.gmra.mxu0 %v489
  %v1426 = vpop.f32.mrf.mxu0
  %v1427 = vadd.f32 %v1398, %v1426
  %v1428 = vpop.f32.mrf.mxu0
  %v1429 = vadd.f32 %v1400, %v1428
  %1430 = vdwg.mxu0
  %1431 = vmatpush.bf16.msra.mxu0 %v1041
  %1432 = vmatpush.bf16.msra.mxu0 %v1040
  %1433 = vmatpush.bf16.msra.mxu0 %v1039
  %1434 = vmatpush.bf16.msra.mxu0 %v1038
  %1435 = vmatpush.bf16.msra.mxu0 %v1037
  %1436 = vmatpush.bf16.msra.mxu0 %v1036
  %1437 = vmatpush.bf16.msra.mxu0 %v1035
  %1438 = vmatpush.bf16.msra.mxu0 %v1034
  %1439 = vmatmul.bf16.gmra.mxu0 %v451
  %v1440 = vpop.f32.mrf.mxu0
  %v1441 = vadd.f32 %v1412, %v1440
  %v1442 = vpop.f32.mrf.mxu0
  %v1443 = vadd.f32 %v1414, %v1442
  %1444 = vmatmul.bf16.gmra.mxu0 %v464
  %v1445 = vpop.f32.mrf.mxu0
  %v1446 = vadd.f32 %v1417, %v1445
  %v1447 = vpop.f32.mrf.mxu0
  %v1448 = vadd.f32 %v1419, %v1447
  %1449 = vmatmul.bf16.gmra.mxu0 %v477
  %v1450 = vpop.f32.mrf.mxu0
  %v1451 = vadd.f32 %v1422, %v1450
  %v1452 = vpop.f32.mrf.mxu0
  %v1453 = vadd.f32 %v1424, %v1452
  %1454 = vmatmul.bf16.gmra.mxu0 %v490
  %v1455 = vpop.f32.mrf.mxu0
  %v1456 = vadd.f32 %v1427, %v1455
  %v1457 = vpop.f32.mrf.mxu0
  %v1458 = vadd.f32 %v1429, %v1457
  %1459 = vdwg.mxu0
  %1460 = vmatpush.bf16.msra.mxu0 %v1049
  %1461 = vmatpush.bf16.msra.mxu0 %v1048
  %1462 = vmatpush.bf16.msra.mxu0 %v1047
  %1463 = vmatpush.bf16.msra.mxu0 %v1046
  %1464 = vmatpush.bf16.msra.mxu0 %v1045
  %1465 = vmatpush.bf16.msra.mxu0 %v1044
  %1466 = vmatpush.bf16.msra.mxu0 %v1043
  %1467 = vmatpush.bf16.msra.mxu0 %v1042
  %1468 = vmatmul.bf16.gmra.mxu0 %v452
  %v1469 = vpop.f32.mrf.mxu0
  %v1470 = vadd.f32 %v1441, %v1469
  %v1471 = vpop.f32.mrf.mxu0
  %v1472 = vadd.f32 %v1443, %v1471
  %1473 = vmatmul.bf16.gmra.mxu0 %v465
  %v1474 = vpop.f32.mrf.mxu0
  %v1475 = vadd.f32 %v1446, %v1474
  %v1476 = vpop.f32.mrf.mxu0
  %v1477 = vadd.f32 %v1448, %v1476
  %1478 = vmatmul.bf16.gmra.mxu0 %v478
  %v1479 = vpop.f32.mrf.mxu0
  %v1480 = vadd.f32 %v1451, %v1479
  %v1481 = vpop.f32.mrf.mxu0
  %v1482 = vadd.f32 %v1453, %v1481
  %1483 = vmatmul.bf16.gmra.mxu0 %v491
  %v1484 = vpop.f32.mrf.mxu0
  %v1485 = vadd.f32 %v1456, %v1484
  %v1486 = vpop.f32.mrf.mxu0
  %v1487 = vadd.f32 %v1458, %v1486
  %1488 = vdwg.mxu0
  %1489 = vmatpush.bf16.msra.mxu0 %v1057
  %1490 = vmatpush.bf16.msra.mxu0 %v1056
  %1491 = vmatpush.bf16.msra.mxu0 %v1055
  %1492 = vmatpush.bf16.msra.mxu0 %v1054
  %1493 = vmatpush.bf16.msra.mxu0 %v1053
  %1494 = vmatpush.bf16.msra.mxu0 %v1052
  %1495 = vmatpush.bf16.msra.mxu0 %v1051
  %1496 = vmatpush.bf16.msra.mxu0 %v1050
  %1497 = vmatmul.bf16.gmra.mxu0 %v453
  %v1498 = vpop.f32.mrf.mxu0
  %v1499 = vadd.f32 %v1470, %v1498
  %v1500 = vpop.f32.mrf.mxu0
  %v1501 = vadd.f32 %v1472, %v1500
  %1502 = vmatmul.bf16.gmra.mxu0 %v466
  %v1503 = vpop.f32.mrf.mxu0
  %v1504 = vadd.f32 %v1475, %v1503
  %v1505 = vpop.f32.mrf.mxu0
  %v1506 = vadd.f32 %v1477, %v1505
  %1507 = vmatmul.bf16.gmra.mxu0 %v479
  %v1508 = vpop.f32.mrf.mxu0
  %v1509 = vadd.f32 %v1480, %v1508
  %v1510 = vpop.f32.mrf.mxu0
  %v1511 = vadd.f32 %v1482, %v1510
  %1512 = vmatmul.bf16.gmra.mxu0 %v492
  %v1513 = vpop.f32.mrf.mxu0
  %v1514 = vadd.f32 %v1485, %v1513
  %v1515 = vpop.f32.mrf.mxu0
  %v1516 = vadd.f32 %v1487, %v1515
  %1517 = vdwg.mxu0
  %1518 = vmatpush.bf16.msra.mxu0 %v1065
  %1519 = vmatpush.bf16.msra.mxu0 %v1064
  %1520 = vmatpush.bf16.msra.mxu0 %v1063
  %1521 = vmatpush.bf16.msra.mxu0 %v1062
  %1522 = vmatpush.bf16.msra.mxu0 %v1061
  %1523 = vmatpush.bf16.msra.mxu0 %v1060
  %1524 = vmatpush.bf16.msra.mxu0 %v1059
  %1525 = vmatpush.bf16.msra.mxu0 %v1058
  %1526 = vmatmul.bf16.gmra.mxu0 %v454
  %v1527 = vpop.f32.mrf.mxu0
  %v1528 = vadd.f32 %v1499, %v1527
  %v1529 = vpop.f32.mrf.mxu0
  %v1530 = vadd.f32 %v1501, %v1529
  %1531 = vmatmul.bf16.gmra.mxu0 %v467
  %v1532 = vpop.f32.mrf.mxu0
  %v1533 = vadd.f32 %v1504, %v1532
  %v1534 = vpop.f32.mrf.mxu0
  %v1535 = vadd.f32 %v1506, %v1534
  %1536 = vmatmul.bf16.gmra.mxu0 %v480
  %v1537 = vpop.f32.mrf.mxu0
  %v1538 = vadd.f32 %v1509, %v1537
  %v1539 = vpop.f32.mrf.mxu0
  %v1540 = vadd.f32 %v1511, %v1539
  %1541 = vmatmul.bf16.gmra.mxu0 %v493
  %v1542 = vpop.f32.mrf.mxu0
  %v1543 = vadd.f32 %v1514, %v1542
  %v1544 = vpop.f32.mrf.mxu0
  %v1545 = vadd.f32 %v1516, %v1544
  %1546 = vdwg.mxu0
  %vm1547 = vcmp.ge.f32.partialorder %v1528, 0.0
  %vm1548 = vcmp.ge.f32.partialorder %v1530, 0.0
  %vm1549 = vcmp.ge.f32.partialorder %v1533, 0.0
  %vm1550 = vcmp.ge.f32.partialorder %v1535, 0.0
  %vm1551 = vcmp.ge.f32.partialorder %v1538, 0.0
  %vm1552 = vcmp.ge.f32.partialorder %v1540, 0.0
  %vm1553 = vcmp.ge.f32.partialorder %v1543, 0.0
  %vm1554 = vcmp.ge.f32.partialorder %v1545, 0.0
  %v1555 = vmul.f32 %v1528, 0.01
  %v1556 = vmul.f32 %v1530, 0.01
  %v1557 = vmul.f32 %v1533, 0.01
  %v1558 = vmul.f32 %v1535, 0.01
  %v1559 = vmul.f32 %v1538, 0.01
  %v1560 = vmul.f32 %v1540, 0.01
  %v1561 = vmul.f32 %v1543, 0.01
  %v1562 = vmul.f32 %v1545, 0.01
  %v1563 = vsel %vm1547, %v1528, %v1555
  %v1564 = vsel %vm1548, %v1530, %v1556
  %v1565 = vsel %vm1549, %v1533, %v1557
  %v1566 = vsel %vm1550, %v1535, %v1558
  %v1567 = vsel %vm1551, %v1538, %v1559
  %v1568 = vsel %vm1552, %v1540, %v1560
  %v1569 = vsel %vm1553, %v1543, %v1561
  %v1570 = vsel %vm1554, %v1545, %v1562
  %1571 = vst [vmem:[%s3] sm:$0xff] %v1563
  %1572 = vst [vmem:[%s3 + $0x8] sm:$0xff] %v1564
  %1573 = vst [vmem:[%s3 + $0x10] sm:$0xff] %v1565
  %1574 = vst [vmem:[%s3 + $0x18] sm:$0xff] %v1566
  %1575 = vst [vmem:[%s3 + $0x20] sm:$0xff] %v1567
  %1576 = vst [vmem:[%s3 + $0x28] sm:$0xff] %v1568
  %1577 = vst [vmem:[%s3 + $0x30] sm:$0xff] %v1569
  %1578 = vst [vmem:[%s3 + $0x38] sm:$0xff] %v1570
  // Predicated region
  $region14: #{encoder_forward.4} parent=0 // pred_check
    _
  $region15: #{encoder_forward.4} parent=0 // pred_check_branch
    %1580 = sbr.rel (0) target = $region17
  $region16: #{encoder_forward.4} parent=0 // pred_region
    _
  $region17: #{encoder_forward.4} parent=0 // pred_fallthru
    _
  // Predicated region
  $region18: #{encoder_forward.4} parent=0 // pred_check
    _
  $region19: #{encoder_forward.4} parent=0 // pred_check_branch
    %1582 = sbr.rel (0) target = $region21
  $region20: #{encoder_forward.4} parent=0 // pred_region
    _
  $region21: #{encoder_forward.4} parent=0 // pred_fallthru
    _

// kernel: encoder_forward.5
$region0: #{encoder_forward.5}
  #allocation0 [shape = 'u32[]', space=smem, size = 0x4, offset = 0x4, fixed_abs, tag = 'smem constant byte address 0x4 - core index']
  #allocation1 [shape = 'u32[72,128]{1,0:T(1,128)}', space=vmem, size = 0x9000, scoped, tag = 'internal scratch']
  #allocation2 [shape = 'f32[48,1152]{1,0:T(8,128)}', space=vmem, size = 0x36000, scoped, tag = 'scratch operand']
  %s0 = inlined_call_operand.vmem [shape: f32[2,32,128], index: 0, kind: input, shape index: {}]
  %s1 = inlined_call_operand.vmem [shape: f32[288,1], index: 1, kind: input, shape index: {}]
  %s2 = inlined_call_operand.vmem [shape: bf16[6,128,1152], index: 2, kind: input, shape index: {}]
  %s3 = inlined_call_operand.vmem [shape: f32[6,1,128], index: 3, kind: input, shape index: {}]
  %s4 = inlined_call_operand.vmem [shape: f32[200,32], index: 4, kind: input, shape index: {}]
  %s5 = inlined_call_operand.vmem [shape: f32[25,128,128], index: 5, kind: input, shape index: {}]
  %s6 = inlined_call_operand.vmem [shape: f32[1,128], index: 6, kind: input, shape index: {}]
  %s7 = inlined_call_operand.vmem [shape: s32[2,8,128], index: 7, kind: output, shape index: {}]
  %s8 = sld [smem:[#allocation0]]
  $region61: #{encoder_forward.5} parent=0
    _
  %s10 = ssub.s32 1, %s8
  %s11 = scalar_select 0, %s10, %s8
  loop: start=0, step=1, limit=4
  $region2: #{encoder_forward.5} parent=0 // loop_pre_header
    _
  $region3: #{encoder_forward.5} parent=0 // loop_header
    %s13 = sphi 0, %s17
    %p14 = scmp.ge.s32.totalorder %s13, 4
    %s23 = sphi 0, %s25
    %s26 = sphi 0, %s23
    %s27 = sphi 0, %s26
    %s43 = sphi 0, %s27
    %s47 = sphi 0, %s47
    %s49 = sphi 0, %s47
    %s50 = sphi 0, %s49
    %s64 = sphi 0, %s50
    %s68 = sphi 0, %s68
    %s70 = sphi 0, %s68
    %s71 = sphi 0, %s70
    %s85 = sphi 0, %s71
    %s89 = sphi 0, %s89
    %s91 = sphi 0, %s89
    %s92 = sphi 0, %s91
    %s106 = sphi 0, %s92
    %s110 = sphi 0, %s110
    %s112 = sphi 0, %s110
    %s113 = sphi 0, %s112
    %s127 = sphi 0, %s113
    %s131 = sphi 0, %s131
    %s133 = sphi 0, %s131
    %s134 = sphi 0, %s133
    %s148 = sphi 0, %s134
    %s152 = sphi 0, %s152
    %s154 = sphi 0, %s152
    %s155 = sphi 0, %s154
    %s169 = sphi 0, %s155
    %s175 = sphi 0, %s177
    %s178 = sphi 0, %s175
    %s179 = sphi 0, %s178
    %s195 = sphi 0, %s179
  $region4: #{encoder_forward.5} parent=0 // loop_header_branch
    %16 = sbr.rel (%p14) target = $region8
  $region5: #{encoder_forward.5} parent=0 // loop_body
    %s18 = ssub.s32 %s13, 1
    %s19 = ssub.s32 %s13, 2
    %s20 = sadd.s32 %s13, 1
    %s21 = ssub.s32 %s13, %s20
    %p22 = scmp.eq.s32.totalorder %s21, 0
    %s24 = sadd.s32 %s23, 1
    %s25 = scalar_select %p22, %s23, %s24
    %p28 = pneg %p22
    %p29 = scmp.eq.s32.totalorder %s13, 1
    %p30 = por %p28, %p29
    %p31 = scmp.ne.s32.totalorder %s23, %s26
    %p32 = scmp.eq.s32.totalorder %s13, 0
    %p33 = por %p31, %p32
    %p34 = scmp.ne.s32.totalorder %s23, %s26
    %p35 = scmp.eq.s32.totalorder %s18, 1
    %p36 = por %p34, %p35
    %p37 = scmp.ne.s32.totalorder %s26, %s27
    %p38 = scmp.eq.s32.totalorder %s18, 0
    %p39 = por %p37, %p38
    %p40 = scmp.ne.s32.totalorder %s26, %s27
    %p41 = scmp.eq.s32.totalorder %s19, 1
    %p42 = por %p40, %p41
    %p44 = scmp.ne.s32.totalorder %s27, %s43
    %p45 = scmp.eq.s32.totalorder %s19, 0
    %p46 = por %p44, %p45
    %s48 = sadd.s32 %s47, 1
    %p51 = scmp.eq.s32.totalorder %s13, 1
    %p52 = scmp.ne.s32.totalorder %s47, %s49
    %p53 = scmp.eq.s32.totalorder %s13, 0
    %p54 = por %p52, %p53
    %p55 = scmp.ne.s32.totalorder %s47, %s49
    %p56 = scmp.eq.s32.totalorder %s18, 1
    %p57 = por %p55, %p56
    %p58 = scmp.ne.s32.totalorder %s49, %s50
    %p59 = scmp.eq.s32.totalorder %s18, 0
    %p60 = por %p58, %p59
    %p61 = scmp.ne.s32.totalorder %s49, %s50
    %p62 = scmp.eq.s32.totalorder %s19, 1
    %p63 = por %p61, %p62
    %p65 = scmp.ne.s32.totalorder %s50, %s64
    %p66 = scmp.eq.s32.totalorder %s19, 0
    %p67 = por %p65, %p66
    %s69 = sadd.s32 %s68, 1
    %p72 = scmp.eq.s32.totalorder %s13, 1
    %p73 = scmp.ne.s32.totalorder %s68, %s70
    %p74 = scmp.eq.s32.totalorder %s13, 0
    %p75 = por %p73, %p74
    %p76 = scmp.ne.s32.totalorder %s68, %s70
    %p77 = scmp.eq.s32.totalorder %s18, 1
    %p78 = por %p76, %p77
    %p79 = scmp.ne.s32.totalorder %s70, %s71
    %p80 = scmp.eq.s32.totalorder %s18, 0
    %p81 = por %p79, %p80
    %p82 = scmp.ne.s32.totalorder %s70, %s71
    %p83 = scmp.eq.s32.totalorder %s19, 1
    %p84 = por %p82, %p83
    %p86 = scmp.ne.s32.totalorder %s71, %s85
    %p87 = scmp.eq.s32.totalorder %s19, 0
    %p88 = por %p86, %p87
    %s90 = sadd.s32 %s89, 1
    %p93 = scmp.eq.s32.totalorder %s13, 1
    %p94 = scmp.ne.s32.totalorder %s89, %s91
    %p95 = scmp.eq.s32.totalorder %s13, 0
    %p96 = por %p94, %p95
    %p97 = scmp.ne.s32.totalorder %s89, %s91
    %p98 = scmp.eq.s32.totalorder %s18, 1
    %p99 = por %p97, %p98
    %p100 = scmp.ne.s32.totalorder %s91, %s92
    %p101 = scmp.eq.s32.totalorder %s18, 0
    %p102 = por %p100, %p101
    %p103 = scmp.ne.s32.totalorder %s91, %s92
    %p104 = scmp.eq.s32.totalorder %s19, 1
    %p105 = por %p103, %p104
    %p107 = scmp.ne.s32.totalorder %s92, %s106
    %p108 = scmp.eq.s32.totalorder %s19, 0
    %p109 = por %p107, %p108
    %s111 = sadd.s32 %s110, 1
    %p114 = scmp.eq.s32.totalorder %s13, 1
    %p115 = scmp.ne.s32.totalorder %s110, %s112
    %p116 = scmp.eq.s32.totalorder %s13, 0
    %p117 = por %p115, %p116
    %p118 = scmp.ne.s32.totalorder %s110, %s112
    %p119 = scmp.eq.s32.totalorder %s18, 1
    %p120 = por %p118, %p119
    %p121 = scmp.ne.s32.totalorder %s112, %s113
    %p122 = scmp.eq.s32.totalorder %s18, 0
    %p123 = por %p121, %p122
    %p124 = scmp.ne.s32.totalorder %s112, %s113
    %p125 = scmp.eq.s32.totalorder %s19, 1
    %p126 = por %p124, %p125
    %p128 = scmp.ne.s32.totalorder %s113, %s127
    %p129 = scmp.eq.s32.totalorder %s19, 0
    %p130 = por %p128, %p129
    %s132 = sadd.s32 %s131, 1
    %p135 = scmp.eq.s32.totalorder %s13, 1
    %p136 = scmp.ne.s32.totalorder %s131, %s133
    %p137 = scmp.eq.s32.totalorder %s13, 0
    %p138 = por %p136, %p137
    %p139 = scmp.ne.s32.totalorder %s131, %s133
    %p140 = scmp.eq.s32.totalorder %s18, 1
    %p141 = por %p139, %p140
    %p142 = scmp.ne.s32.totalorder %s133, %s134
    %p143 = scmp.eq.s32.totalorder %s18, 0
    %p144 = por %p142, %p143
    %p145 = scmp.ne.s32.totalorder %s133, %s134
    %p146 = scmp.eq.s32.totalorder %s19, 1
    %p147 = por %p145, %p146
    %p149 = scmp.ne.s32.totalorder %s134, %s148
    %p150 = scmp.eq.s32.totalorder %s19, 0
    %p151 = por %p149, %p150
    %s153 = sadd.s32 %s152, 1
    %p156 = scmp.eq.s32.totalorder %s13, 1
    %p157 = scmp.ne.s32.totalorder %s152, %s154
    %p158 = scmp.eq.s32.totalorder %s13, 0
    %p159 = por %p157, %p158
    %p160 = scmp.ne.s32.totalorder %s152, %s154
    %p161 = scmp.eq.s32.totalorder %s18, 1
    %p162 = por %p160, %p161
    %p163 = scmp.ne.s32.totalorder %s154, %s155
    %p164 = scmp.eq.s32.totalorder %s18, 0
    %p165 = por %p163, %p164
    %p166 = scmp.ne.s32.totalorder %s154, %s155
    %p167 = scmp.eq.s32.totalorder %s19, 1
    %p168 = por %p166, %p167
    %p170 = scmp.ne.s32.totalorder %s155, %s169
    %p171 = scmp.eq.s32.totalorder %s19, 0
    %p172 = por %p170, %p171
    %s173 = ssub.s32 %s13, %s20
    %p174 = scmp.eq.s32.totalorder %s173, 0
    %s176 = sadd.s32 %s175, 1
    %s177 = scalar_select %p174, %s175, %s176
    %p180 = pneg %p174
    %p181 = scmp.eq.s32.totalorder %s13, 1
    %p182 = por %p180, %p181
    %p183 = scmp.ne.s32.totalorder %s175, %s178
    %p184 = scmp.eq.s32.totalorder %s13, 0
    %p185 = por %p183, %p184
    %p186 = scmp.ne.s32.totalorder %s175, %s178
    %p187 = scmp.eq.s32.totalorder %s18, 1
    %p188 = por %p186, %p187
    %p189 = scmp.ne.s32.totalorder %s178, %s179
    %p190 = scmp.eq.s32.totalorder %s18, 0
    %p191 = por %p189, %p190
    %p192 = scmp.ne.s32.totalorder %s178, %s179
    %p193 = scmp.eq.s32.totalorder %s19, 1
    %p194 = por %p192, %p193
    %p196 = scmp.ne.s32.totalorder %s179, %s195
    %p197 = scmp.eq.s32.totalorder %s19, 0
    %p198 = por %p196, %p197
    %p199 = scmp.le.s32.totalorder 1, %s13
    %p200 = scmp.lt.s32.totalorder %s13, 3
    %p201 = pnand %p199, %p200
    %p202 = pneg %p201
    // Predicated region
    $region9: #{encoder_forward.5} parent=5 // pred_check
      _
    $region10: #{encoder_forward.5} parent=5 // pred_check_branch
      %204 = sbr.rel (%p201) target = $region12
    $region11: #{encoder_forward.5} parent=5 // pred_region
      %s205 = ssub.s32 %s13, 1
      // Predicated region
      $region13: #{encoder_forward.5} parent=11 // pred_check
        %p206 = pneg %p60
      $region14: #{encoder_forward.5} parent=11 // pred_check_branch
        %208 = sbr.rel (%p206) target = $region16
      $region15: #{encoder_forward.5} parent=11 // pred_region
        _
      $region16: #{encoder_forward.5} parent=11 // pred_fallthru
        _
      // Predicated region
      $region17: #{encoder_forward.5} parent=11 // pred_check
        %p209 = pneg %p81
      $region18: #{encoder_forward.5} parent=11 // pred_check_branch
        %211 = sbr.rel (%p209) target = $region20
      $region19: #{encoder_forward.5} parent=11 // pred_region
        _
      $region20: #{encoder_forward.5} parent=11 // pred_fallthru
        _
      // Predicated region
      $region21: #{encoder_forward.5} parent=11 // pred_check
        %p212 = pneg %p102
      $region22: #{encoder_forward.5} parent=11 // pred_check_branch
        %214 = sbr.rel (%p212) target = $region24
      $region23: #{encoder_forward.5} parent=11 // pred_region
        _
      $region24: #{encoder_forward.5} parent=11 // pred_fallthru
        _
      // Predicated region
      $region25: #{encoder_forward.5} parent=11 // pred_check
        %p215 = pneg %p123
      $region26: #{encoder_forward.5} parent=11 // pred_check_branch
        %217 = sbr.rel (%p215) target = $region28
      $region27: #{encoder_forward.5} parent=11 // pred_region
        _
      $region28: #{encoder_forward.5} parent=11 // pred_fallthru
        _
      // Predicated region
      $region29: #{encoder_forward.5} parent=11 // pred_check
        %p218 = pneg %p144
      $region30: #{encoder_forward.5} parent=11 // pred_check_branch
        %220 = sbr.rel (%p218) target = $region32
      $region31: #{encoder_forward.5} parent=11 // pred_region
        _
      $region32: #{encoder_forward.5} parent=11 // pred_fallthru
        _
      // Predicated region
      $region33: #{encoder_forward.5} parent=11 // pred_check
        %p221 = pneg %p165
      $region34: #{encoder_forward.5} parent=11 // pred_check_branch
        %223 = sbr.rel (%p221) target = $region36
      $region35: #{encoder_forward.5} parent=11 // pred_region
        _
      $region36: #{encoder_forward.5} parent=11 // pred_fallthru
        _
    $region12: #{encoder_forward.5} parent=5 // pred_fallthru
      _
    %p224 = scmp.lt.s32.totalorder %s13, 2
    // Predicated region
    $region37: #{encoder_forward.5} parent=5 // pred_check
      %p225 = pneg %p224
    $region38: #{encoder_forward.5} parent=5 // pred_check_branch
      %227 = sbr.rel (%p225) target = $region40
    $region39: #{encoder_forward.5} parent=5 // pred_region
      // Predicated region
      $region41: #{encoder_forward.5} parent=39 // pred_check
        %p228 = pneg %p33
      $region42: #{encoder_forward.5} parent=39 // pred_check_branch
        %230 = sbr.rel (%p228) target = $region44
      $region43: #{encoder_forward.5} parent=39 // pred_region
        %p231 = scmp.lt.s32.totalorder %s13, 1
        %s232 = scalar_select %p231, %s13, 1
        %s233 = smul.addr %s232, 4
        %s234 = smul.addr %s233, 8
        %s235 = scalar_lea.vmem %s0, %s234
      $region44: #{encoder_forward.5} parent=39 // pred_fallthru
        _
    $region40: #{encoder_forward.5} parent=5 // pred_fallthru
      _
    %p236 = scmp.le.s32.totalorder 1, %s13
    %p237 = scmp.lt.s32.totalorder %s13, 3
    %p238 = pnand %p236, %p237
    %p239 = pneg %p238
    // Predicated region
    $region45: #{encoder_forward.5} parent=5 // pred_check
      _
    $region46: #{encoder_forward.5} parent=5 // pred_check_branch
      %241 = sbr.rel (%p238) target = $region48
    $region47: #{encoder_forward.5} parent=5 // pred_region
      %s242 = ssub.s32 %s13, 1
      %p243 = scmp.lt.s32.totalorder %s18, 1
      %s244 = scalar_select %p243, %s18, 1
      %s245 = smul.addr %s244, 4
      %s246 = smul.addr %s245, 8
      %s247 = scalar_lea.vmem %s0, %s246
      %p248 = pneg %p39
      %p249 = pneg %p36
      %p250 = pneg %p60
      %p251 = pneg %p57
      %p252 = pneg %p81
      %p253 = pneg %p78
      %p254 = pneg %p102
      %p255 = pneg %p99
      %p256 = pneg %p123
      %p257 = pneg %p120
      %p258 = pneg %p144
      %p259 = pneg %p141
      %p260 = pneg %p165
      %p261 = pneg %p162
      %p262 = pneg %p191
      %p263 = pneg %p188
      %p264 = scmp.lt.s32.totalorder %s18, 1
      %s265 = scalar_select %p264, %s18, 1
      %s266 = smul.addr %s265, 8
      %s267 = scalar_lea.vmem %s7, %s266
      %p268 = scmp.lt.s32.totalorder %s18, 1
      %s269 = scalar_select %p268, %s18, 1
      %s270 = smul.addr %s269, 4
      %s271 = smul.addr %s270, 8
      %s272 = scalar_lea.vmem %s0, %s271
      %p273 = scmp.lt.s32.totalorder %s18, 1
      %s274 = scalar_select %p273, %s18, 1
      %s275 = smul.addr %s274, 8
      %s276 = scalar_lea.vmem %s7, %s275
      %277 = vst [vmem:[#allocation2] sm:$0xff] 0.0
      %278 = vst [vmem:[#allocation2 + $0x8] sm:$0xff] 0.0
      %279 = vst [vmem:[#allocation2 + $0x10] sm:$0xff] 0.0
      %280 = vst [vmem:[#allocation2 + $0x18] sm:$0xff] 0.0
      %281 = vst [vmem:[#allocation2 + $0x20] sm:$0xff] 0.0
      %282 = vst [vmem:[#allocation2 + $0x28] sm:$0xff] 0.0
      %283 = vst [vmem:[#allocation2 + $0x30] sm:$0xff] 0.0
      %284 = vst [vmem:[#allocation2 + $0x38] sm:$0xff] 0.0
      %285 = vst [vmem:[#allocation2 + $0x40] sm:$0xff] 0.0
      %286 = vst [vmem:[#allocation2 + $0x48] sm:$0xff] 0.0
      %287 = vst [vmem:[#allocation2 + $0x50] sm:$0xff] 0.0
      %288 = vst [vmem:[#allocation2 + $0x58] sm:$0xff] 0.0
      %289 = vst [vmem:[#allocation2 + $0x60] sm:$0xff] 0.0
      %290 = vst [vmem:[#allocation2 + $0x68] sm:$0xff] 0.0
      %291 = vst [vmem:[#allocation2 + $0x70] sm:$0xff] 0.0
      %292 = vst [vmem:[#allocation2 + $0x78] sm:$0xff] 0.0
      %293 = vst [vmem:[#allocation2 + $0x80] sm:$0xff] 0.0
      %294 = vst [vmem:[#allocation2 + $0x88] sm:$0xff] 0.0
      %295 = vst [vmem:[#allocation2 + $0x90] sm:$0xff] 0.0
      %296 = vst [vmem:[#allocation2 + $0x98] sm:$0xff] 0.0
      %297 = vst [vmem:[#allocation2 + $0xa0] sm:$0xff] 0.0
      %298 = vst [vmem:[#allocation2 + $0xa8] sm:$0xff] 0.0
      %299 = vst [vmem:[#allocation2 + $0xb0] sm:$0xff] 0.0
      %300 = vst [vmem:[#allocation2 + $0xb8] sm:$0xff] 0.0
      %301 = vst [vmem:[#allocation2 + $0xc0] sm:$0xff] 0.0
      %302 = vst [vmem:[#allocation2 + $0xc8] sm:$0xff] 0.0
      %303 = vst [vmem:[#allocation2 + $0xd0] sm:$0xff] 0.0
      %304 = vst [vmem:[#allocation2 + $0xd8] sm:$0xff] 0.0
      %305 = vst [vmem:[#allocation2 + $0xe0] sm:$0xff] 0.0
      %306 = vst [vmem:[#allocation2 + $0xe8] sm:$0xff] 0.0
      %307 = vst [vmem:[#allocation2 + $0xf0] sm:$0xff] 0.0
      %308 = vst [vmem:[#allocation2 + $0xf8] sm:$0xff] 0.0
      %309 = vst [vmem:[#allocation2 + $0x100] sm:$0xff] 0.0
      %310 = vst [vmem:[#allocation2 + $0x108] sm:$0xff] 0.0
      %311 = vst [vmem:[#allocation2 + $0x110] sm:$0xff] 0.0
      %312 = vst [vmem:[#allocation2 + $0x118] sm:$0xff] 0.0
      %313 = vst [vmem:[#allocation2 + $0x120] sm:$0xff] 0.0
      %314 = vst [vmem:[#allocation2 + $0x128] sm:$0xff] 0.0
      %315 = vst [vmem:[#allocation2 + $0x130] sm:$0xff] 0.0
      %316 = vst [vmem:[#allocation2 + $0x138] sm:$0xff] 0.0
      %317 = vst [vmem:[#allocation2 + $0x140] sm:$0xff] 0.0
      %318 = vst [vmem:[#allocation2 + $0x148] sm:$0xff] 0.0
      %319 = vst [vmem:[#allocation2 + $0x150] sm:$0xff] 0.0
      %320 = vst [vmem:[#allocation2 + $0x158] sm:$0xff] 0.0
      %321 = vst [vmem:[#allocation2 + $0x160] sm:$0xff] 0.0
      %322 = vst [vmem:[#allocation2 + $0x168] sm:$0xff] 0.0
      %323 = vst [vmem:[#allocation2 + $0x170] sm:$0xff] 0.0
      %324 = vst [vmem:[#allocation2 + $0x178] sm:$0xff] 0.0
      %325 = vst [vmem:[#allocation2 + $0x180] sm:$0xff] 0.0
      %326 = vst [vmem:[#allocation2 + $0x188] sm:$0xff] 0.0
      %327 = vst [vmem:[#allocation2 + $0x190] sm:$0xff] 0.0
      %328 = vst [vmem:[#allocation2 + $0x198] sm:$0xff] 0.0
      %329 = vst [vmem:[#allocation2 + $0x1a0] sm:$0xff] 0.0
      %330 = vst [vmem:[#allocation2 + $0x1a8] sm:$0xff] 0.0
      %v331 = vld [vmem:[%s272] sm:$0xff]
      %v332 = vld [vmem:[%s272 + $0x8] sm:$0xff]
      %v333 = vld [vmem:[%s272 + $0x10] sm:$0xff]
      %v334 = vld [vmem:[%s272 + $0x18] sm:$0xff]
      %v335 = vpack.c.bf16 %v332, %v331
      %v336 = vpack.c.bf16 %v334, %v333
      %v337 = vld [vmem:[%s2] sm:$0xff]
      %v338 = vld [vmem:[%s2 + $0x8] sm:$0xff]
      %v339 = vld [vmem:[%s2 + $0x10] sm:$0xff]
      %v340 = vld [vmem:[%s2 + $0x18] sm:$0xff]
      %v341 = vld [vmem:[%s2 + $0x20] sm:$0xf]
      %v342 = vld [vmem:[%s2 + $0x24] sm:$0xff]
      %v343 = vld [vmem:[%s2 + $0x2c] sm:$0xff]
      %v344 = vld [vmem:[%s2 + $0x34] sm:$0xff]
      %v345 = vld [vmem:[%s2 + $0x3c] sm:$0xff]
      %v346 = vld [vmem:[%s2 + $0x44] sm:$0xf]
      %v347 = vld [vmem:[%s2 + $0x48] sm:$0xff]
      %v348 = vld [vmem:[%s2 + $0x50] sm:$0xff]
      %v349 = vld [vmem:[%s2 + $0x58] sm:$0xff]
      %v350 = vld [vmem:[%s2 + $0x60] sm:$0xff]
      %v351 = vld [vmem:[%s2 + $0x68] sm:$0xf]
      %v352 = vld [vmem:[%s2 + $0x6c] sm:$0xff]
      %v353 = vld [vmem:[%s2 + $0x74] sm:$0xff]
      %v354 = vld [vmem:[%s2 + $0x7c] sm:$0xff]
      %v355 = vld [vmem:[%s2 + $0x84] sm:$0xff]
      %v356 = vld [vmem:[%s2 + $0x8c] sm:$0xf]
      %v357 = vld [vmem:[%s2 + $0x90] sm:$0xff]
      %v358 = vld [vmem:[%s2 + $0x98] sm:$0xff]
      %v359 = vld [vmem:[%s2 + $0xa0] sm:$0xff]
      %v360 = vld [vmem:[%s2 + $0xa8] sm:$0xff]
      %v361 = vld [vmem:[%s2 + $0xb0] sm:$0xf]
      %v362 = vld [vmem:[%s2 + $0xb4] sm:$0xff]
      %v363 = vld [vmem:[%s2 + $0xbc] sm:$0xff]
      %v364 = vld [vmem:[%s2 + $0xc4] sm:$0xff]
      %v365 = vld [vmem:[%s2 + $0xcc] sm:$0xff]
      %v366 = vld [vmem:[%s2 + $0xd4] sm:$0xf]
      %v367 = vld [vmem:[%s2 + $0xd8] sm:$0xff]
      %v368 = vld [vmem:[%s2 + $0xe0] sm:$0xff]
      %v369 = vld [vmem:[%s2 + $0xe8] sm:$0xff]
      %v370 = vld [vmem:[%s2 + $0xf0] sm:$0xff]
      %v371 = vld [vmem:[%s2 + $0xf8] sm:$0xf]
      %v372 = vld [vmem:[%s2 + $0xfc] sm:$0xff]
      %v373 = vld [vmem:[%s2 + $0x104] sm:$0xff]
      %v374 = vld [vmem:[%s2 + $0x10c] sm:$0xff]
      %v375 = vld [vmem:[%s2 + $0x114] sm:$0xff]
      %v376 = vld [vmem:[%s2 + $0x11c] sm:$0xf]
      %v377 = vld [vmem:[%s2 + $0x120] sm:$0xff]
      %v378 = vld [vmem:[%s2 + $0x128] sm:$0xff]
      %v379 = vld [vmem:[%s2 + $0x130] sm:$0xff]
      %v380 = vld [vmem:[%s2 + $0x138] sm:$0xff]
      %v381 = vld [vmem:[%s2 + $0x140] sm:$0xf]
      %v382 = vld [vmem:[%s2 + $0x144] sm:$0xff]
      %v383 = vld [vmem:[%s2 + $0x14c] sm:$0xff]
      %v384 = vld [vmem:[%s2 + $0x154] sm:$0xff]
      %v385 = vld [vmem:[%s2 + $0x15c] sm:$0xff]
      %v386 = vld [vmem:[%s2 + $0x164] sm:$0xf]
      %v387 = vld [vmem:[%s2 + $0x168] sm:$0xff]
      %v388 = vld [vmem:[%s2 + $0x170] sm:$0xff]
      %v389 = vld [vmem:[%s2 + $0x178] sm:$0xff]
      %v390 = vld [vmem:[%s2 + $0x180] sm:$0xff]
      %v391 = vld [vmem:[%s2 + $0x188] sm:$0xf]
      %v392 = vld [vmem:[%s2 + $0x18c] sm:$0xff]
      %v393 = vld [vmem:[%s2 + $0x194] sm:$0xff]
      %v394 = vld [vmem:[%s2 + $0x19c] sm:$0xff]
      %v395 = vld [vmem:[%s2 + $0x1a4] sm:$0xff]
      %v396 = vld [vmem:[%s2 + $0x1ac] sm:$0xf]
      %v397 = vld [vmem:[%s2 + $0x1b0] sm:$0xff]
      %v398 = vld [vmem:[%s2 + $0x1b8] sm:$0xff]
      %v399 = vld [vmem:[%s2 + $0x1c0] sm:$0xff]
      %v400 = vld [vmem:[%s2 + $0x1c8] sm:$0xff]
      %v401 = vld [vmem:[%s2 + $0x1d0] sm:$0xf]
      %v402 = vld [vmem:[%s2 + $0x1d4] sm:$0xff]
      %v403 = vld [vmem:[%s2 + $0x1dc] sm:$0xff]
      %v404 = vld [vmem:[%s2 + $0x1e4] sm:$0xff]
      %v405 = vld [vmem:[%s2 + $0x1ec] sm:$0xff]
      %v406 = vld [vmem:[%s2 + $0x1f4] sm:$0xf]
      %v407 = vld [vmem:[%s2 + $0x1f8] sm:$0xff]
      %v408 = vld [vmem:[%s2 + $0x200] sm:$0xff]
      %v409 = vld [vmem:[%s2 + $0x208] sm:$0xff]
      %v410 = vld [vmem:[%s2 + $0x210] sm:$0xff]
      %v411 = vld [vmem:[%s2 + $0x218] sm:$0xf]
      %v412 = vld [vmem:[%s2 + $0x21c] sm:$0xff]
      %v413 = vld [vmem:[%s2 + $0x224] sm:$0xff]
      %v414 = vld [vmem:[%s2 + $0x22c] sm:$0xff]
      %v415 = vld [vmem:[%s2 + $0x234] sm:$0xff]
      %v416 = vld [vmem:[%s2 + $0x23c] sm:$0xf]
      %v497 = vunpack.c.l.b16 %v337
      %v498 = vunpack.c.h.b16 %v337
      %v499 = vunpack.c.l.b16 %v338
      %v500 = vunpack.c.h.b16 %v338
      %v501 = vunpack.c.l.b16 %v339
      %v502 = vunpack.c.h.b16 %v339
      %v503 = vunpack.c.l.b16 %v340
      %v504 = vunpack.c.h.b16 %v340
      %v505 = vunpack.c.l.b16 %v341
      %v506 = vunpack.c.l.b16 %v342
      %v507 = vunpack.c.h.b16 %v342
      %v508 = vunpack.c.l.b16 %v343
      %v509 = vunpack.c.h.b16 %v343
      %v510 = vunpack.c.l.b16 %v344
      %v511 = vunpack.c.h.b16 %v344
      %v512 = vunpack.c.l.b16 %v345
      %v513 = vunpack.c.h.b16 %v345
      %v514 = vunpack.c.l.b16 %v346
      %v515 = vunpack.c.l.b16 %v347
      %v516 = vunpack.c.h.b16 %v347
      %v517 = vunpack.c.l.b16 %v348
      %v518 = vunpack.c.h.b16 %v348
      %v519 = vunpack.c.l.b16 %v349
      %v520 = vunpack.c.h.b16 %v349
      %v521 = vunpack.c.l.b16 %v350
      %v522 = vunpack.c.h.b16 %v350
      %v523 = vunpack.c.l.b16 %v351
      %v524 = vunpack.c.l.b16 %v352
      %v525 = vunpack.c.h.b16 %v352
      %v526 = vunpack.c.l.b16 %v353
      %v527 = vunpack.c.h.b16 %v353
      %v528 = vunpack.c.l.b16 %v354
      %v529 = vunpack.c.h.b16 %v354
      %v530 = vunpack.c.l.b16 %v355
      %v531 = vunpack.c.h.b16 %v355
      %v532 = vunpack.c.l.b16 %v356
      %v533 = vunpack.c.l.b16 %v357
      %v534 = vunpack.c.h.b16 %v357
      %v535 = vunpack.c.l.b16 %v358
      %v536 = vunpack.c.h.b16 %v358
      %v537 = vunpack.c.l.b16 %v359
      %v538 = vunpack.c.h.b16 %v359
      %v539 = vunpack.c.l.b16 %v360
      %v540 = vunpack.c.h.b16 %v360
      %v541 = vunpack.c.l.b16 %v361
      %v542 = vunpack.c.l.b16 %v362
      %v543 = vunpack.c.h.b16 %v362
      %v544 = vunpack.c.l.b16 %v363
      %v545 = vunpack.c.h.b16 %v363
      %v546 = vunpack.c.l.b16 %v364
      %v547 = vunpack.c.h.b16 %v364
      %v548 = vunpack.c.l.b16 %v365
      %v549 = vunpack.c.h.b16 %v365
      %v550 = vunpack.c.l.b16 %v366
      %v551 = vunpack.c.l.b16 %v367
      %v552 = vunpack.c.h.b16 %v367
      %v553 = vunpack.c.l.b16 %v368
      %v554 = vunpack.c.h.b16 %v368
      %v555 = vunpack.c.l.b16 %v369
      %v556 = vunpack.c.h.b16 %v369
      %v557 = vunpack.c.l.b16 %v370
      %v558 = vunpack.c.h.b16 %v370
      %v559 = vunpack.c.l.b16 %v371
      %v560 = vunpack.c.l.b16 %v372
      %v561 = vunpack.c.h.b16 %v372
      %v562 = vunpack.c.l.b16 %v373
      %v563 = vunpack.c.h.b16 %v373
      %v564 = vunpack.c.l.b16 %v374
      %v565 = vunpack.c.h.b16 %v374
      %v566 = vunpack.c.l.b16 %v375
      %v567 = vunpack.c.h.b16 %v375
      %v568 = vunpack.c.l.b16 %v376
      %v569 = vunpack.c.l.b16 %v377
      %v570 = vunpack.c.h.b16 %v377
      %v571 = vunpack.c.l.b16 %v378
      %v572 = vunpack.c.h.b16 %v378
      %v573 = vunpack.c.l.b16 %v379
      %v574 = vunpack.c.h.b16 %v379
      %v575 = vunpack.c.l.b16 %v380
      %v576 = vunpack.c.h.b16 %v380
      %v577 = vunpack.c.l.b16 %v381
      %v578 = vunpack.c.l.b16 %v382
      %v579 = vunpack.c.h.b16 %v382
      %v580 = vunpack.c.l.b16 %v383
      %v581 = vunpack.c.h.b16 %v383
      %v582 = vunpack.c.l.b16 %v384
      %v583 = vunpack.c.h.b16 %v384
      %v584 = vunpack.c.l.b16 %v385
      %v585 = vunpack.c.h.b16 %v385
      %v586 = vunpack.c.l.b16 %v386
      %v587 = vunpack.c.l.b16 %v387
      %v588 = vunpack.c.h.b16 %v387
      %v589 = vunpack.c.l.b16 %v388
      %v590 = vunpack.c.h.b16 %v388
      %v591 = vunpack.c.l.b16 %v389
      %v592 = vunpack.c.h.b16 %v389
      %v593 = vunpack.c.l.b16 %v390
      %v594 = vunpack.c.h.b16 %v390
      %v595 = vunpack.c.l.b16 %v391
      %v596 = vunpack.c.l.b16 %v392
      %v597 = vunpack.c.h.b16 %v392
      %v598 = vunpack.c.l.b16 %v393
      %v599 = vunpack.c.h.b16 %v393
      %v600 = vunpack.c.l.b16 %v394
      %v601 = vunpack.c.h.b16 %v394
      %v602 = vunpack.c.l.b16 %v395
      %v603 = vunpack.c.h.b16 %v395
      %v604 = vunpack.c.l.b16 %v396
      %v605 = vunpack.c.l.b16 %v397
      %v606 = vunpack.c.h.b16 %v397
      %v607 = vunpack.c.l.b16 %v398
      %v608 = vunpack.c.h.b16 %v398
      %v609 = vunpack.c.l.b16 %v399
      %v610 = vunpack.c.h.b16 %v399
      %v611 = vunpack.c.l.b16 %v400
      %v612 = vunpack.c.h.b16 %v400
      %v613 = vunpack.c.l.b16 %v401
      %v614 = vunpack.c.l.b16 %v402
      %v615 = vunpack.c.h.b16 %v402
      %v616 = vunpack.c.l.b16 %v403
      %v617 = vunpack.c.h.b16 %v403
      %v618 = vunpack.c.l.b16 %v404
      %v619 = vunpack.c.h.b16 %v404
      %v620 = vunpack.c.l.b16 %v405
      %v621 = vunpack.c.h.b16 %v405
      %v622 = vunpack.c.l.b16 %v406
      %v623 = vunpack.c.l.b16 %v407
      %v624 = vunpack.c.h.b16 %v407
      %v625 = vunpack.c.l.b16 %v408
      %v626 = vunpack.c.h.b16 %v408
      %v627 = vunpack.c.l.b16 %v409
      %v628 = vunpack.c.h.b16 %v409
      %v629 = vunpack.c.l.b16 %v410
      %v630 = vunpack.c.h.b16 %v410
      %v631 = vunpack.c.l.b16 %v411
      %v632 = vunpack.c.l.b16 %v412
      %v633 = vunpack.c.h.b16 %v412
      %v634 = vunpack.c.l.b16 %v413
      %v635 = vunpack.c.h.b16 %v413
      %v636 = vunpack.c.l.b16 %v414
      %v637 = vunpack.c.h.b16 %v414
      %v638 = vunpack.c.l.b16 %v415
      %v639 = vunpack.c.h.b16 %v415
      %v640 = vunpack.c.l.b16 %v416
      %v641 = vpack.c.b16 %v506, %v497
      %v642 = vpack.c.b16 %v507, %v498
      %v643 = vpack.c.b16 %v508, %v499
      %v644 = vpack.c.b16 %v509, %v500
      %v645 = vpack.c.b16 %v510, %v501
      %v646 = vpack.c.b16 %v511, %v502
      %v647 = vpack.c.b16 %v512, %v503
      %v648 = vpack.c.b16 %v513, %v504
      %v649 = vpack.c.b16 %v514, %v505
      %v650 = vpack.c.b16 %v524, %v515
      %v651 = vpack.c.b16 %v525, %v516
      %v652 = vpack.c.b16 %v526, %v517
      %v653 = vpack.c.b16 %v527, %v518
      %v654 = vpack.c.b16 %v528, %v519
      %v655 = vpack.c.b16 %v529, %v520
      %v656 = vpack.c.b16 %v530, %v521
      %v657 = vpack.c.b16 %v531, %v522
      %v658 = vpack.c.b16 %v532, %v523
      %v659 = vpack.c.b16 %v542, %v533
      %v660 = vpack.c.b16 %v543, %v534
      %v661 = vpack.c.b16 %v544, %v535
      %v662 = vpack.c.b16 %v545, %v536
      %v663 = vpack.c.b16 %v546, %v537
      %v664 = vpack.c.b16 %v547, %v538
      %v665 = vpack.c.b16 %v548, %v539
      %v666 = vpack.c.b16 %v549, %v540
      %v667 = vpack.c.b16 %v550, %v541
      %v668 = vpack.c.b16 %v560, %v551
      %v669 = vpack.c.b16 %v561, %v552
      %v670 = vpack.c.b16 %v562, %v553
      %v671 = vpack.c.b16 %v563, %v554
      %v672 = vpack.c.b16 %v564, %v555
      %v673 = vpack.c.b16 %v565, %v556
      %v674 = vpack.c.b16 %v566, %v557
      %v675 = vpack.c.b16 %v567, %v558
      %v676 = vpack.c.b16 %v568, %v559
      %v677 = vpack.c.b16 %v578, %v569
      %v678 = vpack.c.b16 %v579, %v570
      %v679 = vpack.c.b16 %v580, %v571
      %v680 = vpack.c.b16 %v581, %v572
      %v681 = vpack.c.b16 %v582, %v573
      %v682 = vpack.c.b16 %v583, %v574
      %v683 = vpack.c.b16 %v584, %v575
      %v684 = vpack.c.b16 %v585, %v576
      %v685 = vpack.c.b16 %v586, %v577
      %v686 = vpack.c.b16 %v596, %v587
      %v687 = vpack.c.b16 %v597, %v588
      %v688 = vpack.c.b16 %v598, %v589
      %v689 = vpack.c.b16 %v599, %v590
      %v690 = vpack.c.b16 %v600, %v591
      %v691 = vpack.c.b16 %v601, %v592
      %v692 = vpack.c.b16 %v602, %v593
      %v693 = vpack.c.b16 %v603, %v594
      %v694 = vpack.c.b16 %v604, %v595
      %v695 = vpack.c.b16 %v614, %v605
      %v696 = vpack.c.b16 %v615, %v606
      %v697 = vpack.c.b16 %v616, %v607
      %v698 = vpack.c.b16 %v617, %v608
      %v699 = vpack.c.b16 %v618, %v609
      %v700 = vpack.c.b16 %v619, %v610
      %v701 = vpack.c.b16 %v620, %v611
      %v702 = vpack.c.b16 %v621, %v612
      %v703 = vpack.c.b16 %v622, %v613
      %v704 = vpack.c.b16 %v632, %v623
      %v705 = vpack.c.b16 %v633, %v624
      %v706 = vpack.c.b16 %v634, %v625
      %v707 = vpack.c.b16 %v635, %v626
      %v708 = vpack.c.b16 %v636, %v627
      %v709 = vpack.c.b16 %v637, %v628
      %v710 = vpack.c.b16 %v638, %v629
      %v711 = vpack.c.b16 %v639, %v630
      %v712 = vpack.c.b16 %v640, %v631
      %785 = vmatpush.bf16.msra.mxu0 %v704
      %786 = vmatpush.bf16.msra.mxu0 %v695
      %787 = vmatpush.bf16.msra.mxu0 %v686
      %788 = vmatpush.bf16.msra.mxu0 %v677
      %789 = vmatpush.bf16.msra.mxu0 %v668
      %790 = vmatpush.bf16.msra.mxu0 %v659
      %791 = vmatpush.bf16.msra.mxu0 %v650
      %792 = vmatpush.bf16.msra.mxu0 %v641
      %793 = vmatmul.bf16.gmra.mxu0 %v335
      %v794 = vpop.f32.mrf.mxu0
      %v795 = vadd.f32 0.0, %v794
      %v796 = vpop.f32.mrf.mxu0
      %v797 = vadd.f32 0.0, %v796
      %798 = vmatmul.bf16.gmra.mxu0 %v336
      %v799 = vpop.f32.mrf.mxu0
      %v800 = vadd.f32 0.0, %v799
      %v801 = vpop.f32.mrf.mxu0
      %v802 = vadd.f32 0.0, %v801
      %803 = vdwg.mxu0
      %804 = vmatpush.bf16.msra.mxu0 %v705
      %805 = vmatpush.bf16.msra.mxu0 %v696
      %806 = vmatpush.bf16.msra.mxu0 %v687
      %807 = vmatpush.bf16.msra.mxu0 %v678
      %808 = vmatpush.bf16.msra.mxu0 %v669
      %809 = vmatpush.bf16.msra.mxu0 %v660
      %810 = vmatpush.bf16.msra.mxu0 %v651
      %811 = vmatpush.bf16.msra.mxu0 %v642
      %812 = vmatmul.bf16.gmra.mxu0 %v335
      %v813 = vpop.f32.mrf.mxu0
      %v814 = vadd.f32 0.0, %v813
      %v815 = vpop.f32.mrf.mxu0
      %v816 = vadd.f32 0.0, %v815
      %817 = vmatmul.bf16.gmra.mxu0 %v336
      %v818 = vpop.f32.mrf.mxu0
      %v819 = vadd.f32 0.0, %v818
      %v820 = vpop.f32.mrf.mxu0
      %v821 = vadd.f32 0.0, %v820
      %822 = vdwg.mxu0
      %823 = vmatpush.bf16.msra.mxu0 %v706
      %824 = vmatpush.bf16.msra.mxu0 %v697
      %825 = vmatpush.bf16.msra.mxu0 %v688
      %826 = vmatpush.bf16.msra.mxu0 %v679
      %827 = vmatpush.bf16.msra.mxu0 %v670
      %828 = vmatpush.bf16.msra.mxu0 %v661
      %829 = vmatpush.bf16.msra.mxu0 %v652
      %830 = vmatpush.bf16.msra.mxu0 %v643
      %831 = vmatmul.bf16.gmra.mxu0 %v335
      %v832 = vpop.f32.mrf.mxu0
      %v833 = vadd.f32 0.0, %v832
      %v834 = vpop.f32.mrf.mxu0
      %v835 = vadd.f32 0.0, %v834
      %836 = vmatmul.bf16.gmra.mxu0 %v336
      %v837 = vpop.f32.mrf.mxu0
      %v838 = vadd.f32 0.0, %v837
      %v839 = vpop.f32.mrf.mxu0
      %v840 = vadd.f32 0.0, %v839
      %841 = vdwg.mxu0
      %842 = vmatpush.bf16.msra.mxu0 %v707
      %843 = vmatpush.bf16.msra.mxu0 %v698
      %844 = vmatpush.bf16.msra.mxu0 %v689
      %845 = vmatpush.bf16.msra.mxu0 %v680
      %846 = vmatpush.bf16.msra.mxu0 %v671
      %847 = vmatpush.bf16.msra.mxu0 %v662
      %848 = vmatpush.bf16.msra.mxu0 %v653
      %849 = vmatpush.bf16.msra.mxu0 %v644
      %850 = vmatmul.bf16.gmra.mxu0 %v335
      %v851 = vpop.f32.mrf.mxu0
      %v852 = vadd.f32 0.0, %v851
      %v853 = vpop.f32.mrf.mxu0
      %v854 = vadd.f32 0.0, %v853
      %855 = vmatmul.bf16.gmra.mxu0 %v336
      %v856 = vpop.f32.mrf.mxu0
      %v857 = vadd.f32 0.0, %v856
      %v858 = vpop.f32.mrf.mxu0
      %v859 = vadd.f32 0.0, %v858
      %860 = vdwg.mxu0
      %861 = vmatpush.bf16.msra.mxu0 %v708
      %862 = vmatpush.bf16.msra.mxu0 %v699
      %863 = vmatpush.bf16.msra.mxu0 %v690
      %864 = vmatpush.bf16.msra.mxu0 %v681
      %865 = vmatpush.bf16.msra.mxu0 %v672
      %866 = vmatpush.bf16.msra.mxu0 %v663
      %867 = vmatpush.bf16.msra.mxu0 %v654
      %868 = vmatpush.bf16.msra.mxu0 %v645
      %869 = vmatmul.bf16.gmra.mxu0 %v335
      %v870 = vpop.f32.mrf.mxu0
      %v871 = vadd.f32 0.0, %v870
      %v872 = vpop.f32.mrf.mxu0
      %v873 = vadd.f32 0.0, %v872
      %874 = vmatmul.bf16.gmra.mxu0 %v336
      %v875 = vpop.f32.mrf.mxu0
      %v876 = vadd.f32 0.0, %v875
      %v877 = vpop.f32.mrf.mxu0
      %v878 = vadd.f32 0.0, %v877
      %879 = vdwg.mxu0
      %880 = vmatpush.bf16.msra.mxu0 %v709
      %881 = vmatpush.bf16.msra.mxu0 %v700
      %882 = vmatpush.bf16.msra.mxu0 %v691
      %883 = vmatpush.bf16.msra.mxu0 %v682
      %884 = vmatpush.bf16.msra.mxu0 %v673
      %885 = vmatpush.bf16.msra.mxu0 %v664
      %886 = vmatpush.bf16.msra.mxu0 %v655
      %887 = vmatpush.bf16.msra.mxu0 %v646
      %888 = vmatmul.bf16.gmra.mxu0 %v335
      %v889 = vpop.f32.mrf.mxu0
      %v890 = vadd.f32 0.0, %v889
      %v891 = vpop.f32.mrf.mxu0
      %v892 = vadd.f32 0.0, %v891
      %893 = vmatmul.bf16.gmra.mxu0 %v336
      %v894 = vpop.f32.mrf.mxu0
      %v895 = vadd.f32 0.0, %v894
      %v896 = vpop.f32.mrf.mxu0
      %v897 = vadd.f32 0.0, %v896
      %898 = vdwg.mxu0
      %899 = vmatpush.bf16.msra.mxu0 %v710
      %900 = vmatpush.bf16.msra.mxu0 %v701
      %901 = vmatpush.bf16.msra.mxu0 %v692
      %902 = vmatpush.bf16.msra.mxu0 %v683
      %903 = vmatpush.bf16.msra.mxu0 %v674
      %904 = vmatpush.bf16.msra.mxu0 %v665
      %905 = vmatpush.bf16.msra.mxu0 %v656
      %906 = vmatpush.bf16.msra.mxu0 %v647
      %907 = vmatmul.bf16.gmra.mxu0 %v335
      %v908 = vpop.f32.mrf.mxu0
      %v909 = vadd.f32 0.0, %v908
      %v910 = vpop.f32.mrf.mxu0
      %v911 = vadd.f32 0.0, %v910
      %912 = vmatmul.bf16.gmra.mxu0 %v336
      %v913 = vpop.f32.mrf.mxu0
      %v914 = vadd.f32 0.0, %v913
      %v915 = vpop.f32.mrf.mxu0
      %v916 = vadd.f32 0.0, %v915
      %917 = vdwg.mxu0
      %918 = vmatpush.bf16.msra.mxu0 %v711
      %919 = vmatpush.bf16.msra.mxu0 %v702
      %920 = vmatpush.bf16.msra.mxu0 %v693
      %921 = vmatpush.bf16.msra.mxu0 %v684
      %922 = vmatpush.bf16.msra.mxu0 %v675
      %923 = vmatpush.bf16.msra.mxu0 %v666
      %924 = vmatpush.bf16.msra.mxu0 %v657
      %925 = vmatpush.bf16.msra.mxu0 %v648
      %926 = vmatmul.bf16.gmra.mxu0 %v335
      %v927 = vpop.f32.mrf.mxu0
      %v928 = vadd.f32 0.0, %v927
      %v929 = vpop.f32.mrf.mxu0
      %v930 = vadd.f32 0.0, %v929
      %931 = vmatmul.bf16.gmra.mxu0 %v336
      %v932 = vpop.f32.mrf.mxu0
      %v933 = vadd.f32 0.0, %v932
      %v934 = vpop.f32.mrf.mxu0
      %v935 = vadd.f32 0.0, %v934
      %936 = vdwg.mxu0
      %937 = vmatpush.bf16.msra.mxu0 %v712
      %938 = vmatpush.bf16.msra.mxu0 %v703
      %939 = vmatpush.bf16.msra.mxu0 %v694
      %940 = vmatpush.bf16.msra.mxu0 %v685
      %941 = vmatpush.bf16.msra.mxu0 %v676
      %942 = vmatpush.bf16.msra.mxu0 %v667
      %943 = vmatpush.bf16.msra.mxu0 %v658
      %944 = vmatpush.bf16.msra.mxu0 %v649
      %945 = vmatmul.bf16.gmra.mxu0 %v335
      %v946 = vpop.f32.mrf.mxu0
      %v947 = vadd.f32 0.0, %v946
      %v948 = vpop.f32.mrf.mxu0
      %v949 = vadd.f32 0.0, %v948
      %950 = vmatmul.bf16.gmra.mxu0 %v336
      %v951 = vpop.f32.mrf.mxu0
      %v952 = vadd.f32 0.0, %v951
      %v953 = vpop.f32.mrf.mxu0
      %v954 = vadd.f32 0.0, %v953
      %955 = vdwg.mxu0
      %956 = vst [vmem:[#allocation2 + $0x48] sm:$0xff] %v795
      %957 = vst [vmem:[#allocation2 + $0x50] sm:$0xff] %v814
      %958 = vst [vmem:[#allocation2 + $0x58] sm:$0xff] %v833
      %959 = vst [vmem:[#allocation2 + $0x60] sm:$0xff] %v852
      %960 = vst [vmem:[#allocation2 + $0x68] sm:$0xff] %v871
      %961 = vst [vmem:[#allocation2 + $0x70] sm:$0xff] %v890
      %962 = vst [vmem:[#allocation2 + $0x78] sm:$0xff] %v909
      %963 = vst [vmem:[#allocation2 + $0x80] sm:$0xff] %v928
      %964 = vst [vmem:[#allocation2 + $0x88] sm:$0xff] %v947
      %965 = vst [vmem:[#allocation2 + $0x90] sm:$0xff] %v797
      %966 = vst [vmem:[#allocation2 + $0x98] sm:$0xff] %v816
      %967 = vst [vmem:[#allocation2 + $0xa0] sm:$0xff] %v835
      %968 = vst [vmem:[#allocation2 + $0xa8] sm:$0xff] %v854
      %969 = vst [vmem:[#allocation2 + $0xb0] sm:$0xff] %v873
      %970 = vst [vmem:[#allocation2 + $0xb8] sm:$0xff] %v892
      %971 = vst [vmem:[#allocation2 + $0xc0] sm:$0xff] %v911
      %972 = vst [vmem:[#allocation2 + $0xc8] sm:$0xff] %v930
      %973 = vst [vmem:[#allocation2 + $0xd0] sm:$0xff] %v949
      %974 = vst [vmem:[#allocation2 + $0xd8] sm:$0xff] %v800
      %975 = vst [vmem:[#allocation2 + $0xe0] sm:$0xff] %v819
      %976 = vst [vmem:[#allocation2 + $0xe8] sm:$0xff] %v838
      %977 = vst [vmem:[#allocation2 + $0xf0] sm:$0xff] %v857
      %978 = vst [vmem:[#allocation2 + $0xf8] sm:$0xff] %v876
      %979 = vst [vmem:[#allocation2 + $0x100] sm:$0xff] %v895
      %980 = vst [vmem:[#allocation2 + $0x108] sm:$0xff] %v914
      %981 = vst [vmem:[#allocation2 + $0x110] sm:$0xff] %v933
      %982 = vst [vmem:[#allocation2 + $0x118] sm:$0xff] %v952
      %983 = vst [vmem:[#allocation2 + $0x120] sm:$0xff] %v802
      %984 = vst [vmem:[#allocation2 + $0x128] sm:$0xff] %v821
      %985 = vst [vmem:[#allocation2 + $0x130] sm:$0xff] %v840
      %986 = vst [vmem:[#allocation2 + $0x138] sm:$0xff] %v859
      %987 = vst [vmem:[#allocation2 + $0x140] sm:$0xff] %v878
      %988 = vst [vmem:[#allocation2 + $0x148] sm:$0xff] %v897
      %989 = vst [vmem:[#allocation2 + $0x150] sm:$0xff] %v916
      %990 = vst [vmem:[#allocation2 + $0x158] sm:$0xff] %v935
      %991 = vst [vmem:[#allocation2 + $0x160] sm:$0xff] %v954
      %v992 = vld [vmem:[#allocation2] sm:$0xfc]
      %v993 = vld [vmem:[#allocation2 + $0x48] sm:$0xff]
      %v994 = vld [vmem:[#allocation2 + $0x90] sm:$0xff]
      %v995 = vld [vmem:[#allocation2 + $0xd8] sm:$0xff]
      %v996 = vld [vmem:[#allocation2 + $0x120] sm:$0x3]
      %v997 = vld [vmem:[%s1] sm:$0xff]
      %v998 = vld [vmem:[%s1 + $0x8] sm:$0xff]
      %v999 = vld [vmem:[%s1 + $0x10] sm:$0xff]
      %v1000 = vld [vmem:[%s1 + $0x18] sm:$0xff]
      %1002 = vset.pattern.permute.xlu0 0
      %1003 = vperm.xlu0 %1002, %v997
      %v1004 = vpop.permute.xlu0 %1003
      %1006 = vset.pattern.permute.xlu0 0
      %1007 = vperm.xlu0 %1006, %v998
      %v1008 = vpop.permute.xlu0 %1007
      %1010 = vset.pattern.permute.xlu0 0
      %1011 = vperm.xlu0 %1010, %v999
      %v1012 = vpop.permute.xlu0 %1011
      %1014 = vset.pattern.permute.xlu0 0
      %1015 = vperm.xlu0 %1014, %v1000
      %v1016 = vpop.permute.xlu0 %1015
      %vm1017 = vcmask 1041408
      %v1018 = vrot.slane %v1004, 6
      %v1019 = vrot.slane %v1008, 6
      %v1020 = vsel %vm1017, %v1018, %v1019
      %v1021 = vrot.slane %v1012, 6
      %v1022 = vsel %vm1017, %v1019, %v1021
      %v1023 = vrot.slane %v1016, 6
      %v1024 = vsel %vm1017, %v1021, %v1023
      %v1030 = vmul.f32 %v992, %v1018
      %v1031 = vmul.f32 %v993, %v1020
      %v1032 = vmul.f32 %v994, %v1022
      %v1033 = vmul.f32 %v995, %v1024
      %v1034 = vmul.f32 %v996, %v1023
      %v1035 = vadd.f32 %v1030, 0.0
      %v1036 = vadd.f32 %v1031, 0.0
      %v1037 = vadd.f32 %v1032, 0.0
      %v1038 = vadd.f32 %v1033, 0.0
      %v1039 = vadd.f32 %v1034, 0.0
      %v1040 = vld [vmem:[#allocation2 + $0x8] sm:$0xf8]
      %v1041 = vld [vmem:[#allocation2 + $0x50] sm:$0xff]
      %v1042 = vld [vmem:[#allocation2 + $0x98] sm:$0xff]
      %v1043 = vld [vmem:[#allocation2 + $0xe0] sm:$0xff]
      %v1044 = vld [vmem:[#allocation2 + $0x128] sm:$0x7]
      %v1045 = vld [vmem:[%s1 + $0x20] sm:$0xff]
      %v1046 = vld [vmem:[%s1 + $0x28] sm:$0xff]
      %v1047 = vld [vmem:[%s1 + $0x30] sm:$0xff]
      %v1048 = vld [vmem:[%s1 + $0x38] sm:$0xff]
      %1050 = vset.pattern.permute.xlu0 0
      %1051 = vperm.xlu0 %1050, %v1045
      %v1052 = vpop.permute.xlu0 %1051
      %1054 = vset.pattern.permute.xlu0 0
      %1055 = vperm.xlu0 %1054, %v1046
      %v1056 = vpop.permute.xlu0 %1055
      %1058 = vset.pattern.permute.xlu0 0
      %1059 = vperm.xlu0 %1058, %v1047
      %v1060 = vpop.permute.xlu0 %1059
      %1062 = vset.pattern.permute.xlu0 0
      %1063 = vperm.xlu0 %1062, %v1048
      %v1064 = vpop.permute.xlu0 %1063
      %vm1065 = vcmask 1042432
      %v1066 = vrot.slane %v1052, 5
      %v1067 = vrot.slane %v1056, 5
      %v1068 = vsel %vm1065, %v1066, %v1067
      %v1069 = vrot.slane %v1060, 5
      %v1070 = vsel %vm1065, %v1067, %v1069
      %v1071 = vrot.slane %v1064, 5
      %v1072 = vsel %vm1065, %v1069, %v1071
      %v1078 = vmul.f32 %v1040, %v1066
      %v1079 = vmul.f32 %v1041, %v1068
      %v1080 = vmul.f32 %v1042, %v1070
      %v1081 = vmul.f32 %v1043, %v1072
      %v1082 = vmul.f32 %v1044, %v1071
      %vm1088 = vcmask 1046528
      %v1089 = vrot.slane %v1078, 1
      %v1090 = vrot.slane %v1079, 1
      %v1091 = vsel %vm1088, %v1089, %v1090
      %v1092 = vrot.slane %v1080, 1
      %v1093 = vsel %vm1088, %v1090, %v1092
      %v1094 = vrot.slane %v1081, 1
      %v1095 = vsel %vm1088, %v1092, %v1094
      %v1096 = vrot.slane %v1082, 1
      %v1097 = vsel %vm1088, %v1094, %v1096
      %v1103 = vadd.f32 %v1035, %v1091
      %v1104 = vadd.f32 %v1036, %v1093
      %v1105 = vadd.f32 %v1037, %v1095
      %v1106 = vadd.f32 %v1038, %v1097
      %v1107 = vadd.f32 %v1039, %v1096
      %v1108 = vld [vmem:[#allocation2 + $0x10] sm:$0xf0]
      %v1109 = vld [vmem:[#allocation2 + $0x58] sm:$0xff]
      %v1110 = vld [vmem:[#allocation2 + $0xa0] sm:$0xff]
      %v1111 = vld [vmem:[#allocation2 + $0xe8] sm:$0xff]
      %v1112 = vld [vmem:[#allocation2 + $0x130] sm:$0xf]
      %v1113 = vld [vmem:[%s1 + $0x40] sm:$0xff]
      %v1114 = vld [vmem:[%s1 + $0x48] sm:$0xff]
      %v1115 = vld [vmem:[%s1 + $0x50] sm:$0xff]
      %v1116 = vld [vmem:[%s1 + $0x58] sm:$0xff]
      %1118 = vset.pattern.permute.xlu0 0
      %1119 = vperm.xlu0 %1118, %v1113
      %v1120 = vpop.permute.xlu0 %1119
      %1122 = vset.pattern.permute.xlu0 0
      %1123 = vperm.xlu0 %1122, %v1114
      %v1124 = vpop.permute.xlu0 %1123
      %1126 = vset.pattern.permute.xlu0 0
      %1127 = vperm.xlu0 %1126, %v1115
      %v1128 = vpop.permute.xlu0 %1127
      %1130 = vset.pattern.permute.xlu0 0
      %1131 = vperm.xlu0 %1130, %v1116
      %v1132 = vpop.permute.xlu0 %1131
      %vm1133 = vcmask 1043456
      %v1134 = vrot.slane %v1120, 4
      %v1135 = vrot.slane %v1124, 4
      %v1136 = vsel %vm1133, %v1134, %v1135
      %v1137 = vrot.slane %v1128, 4
      %v1138 = vsel %vm1133, %v1135, %v1137
      %v1139 = vrot.slane %v1132, 4
      %v1140 = vsel %vm1133, %v1137, %v1139
      %v1146 = vmul.f32 %v1108, %v1134
      %v1147 = vmul.f32 %v1109, %v1136
      %v1148 = vmul.f32 %v1110, %v1138
      %v1149 = vmul.f32 %v1111, %v1140
      %v1150 = vmul.f32 %v1112, %v1139
      %vm1156 = vcmask 1045504
      %v1157 = vrot.slane %v1146, 2
      %v1158 = vrot.slane %v1147, 2
      %v1159 = vsel %vm1156, %v1157, %v1158
      %v1160 = vrot.slane %v1148, 2
      %v1161 = vsel %vm1156, %v1158, %v1160
      %v1162 = vrot.slane %v1149, 2
      %v1163 = vsel %vm1156, %v1160, %v1162
      %v1164 = vrot.slane %v1150, 2
      %v1165 = vsel %vm1156, %v1162, %v1164
      %v1171 = vadd.f32 %v1103, %v1159
      %v1172 = vadd.f32 %v1104, %v1161
      %v1173 = vadd.f32 %v1105, %v1163
      %v1174 = vadd.f32 %v1106, %v1165
      %v1175 = vadd.f32 %v1107, %v1164
      %v1176 = vld [vmem:[#allocation2 + $0x18] sm:$0x80]
      %v1177 = vld [vmem:[#allocation2 + $0x60] sm:$0xff]
      %v1178 = vld [vmem:[#allocation2 + $0xa8] sm:$0xff]
      %v1179 = vld [vmem:[#allocation2 + $0xf0] sm:$0xff]
      %v1180 = vld [vmem:[#allocation2 + $0x138] sm:$0x7f]
      %v1181 = vld [vmem:[%s1 + $0x60] sm:$0xff]
      %v1182 = vld [vmem:[%s1 + $0x68] sm:$0xff]
      %v1183 = vld [vmem:[%s1 + $0x70] sm:$0xff]
      %v1184 = vld [vmem:[%s1 + $0x78] sm:$0xff]
      %1186 = vset.pattern.permute.xlu0 0
      %1187 = vperm.xlu0 %1186, %v1181
      %v1188 = vpop.permute.xlu0 %1187
      %1190 = vset.pattern.permute.xlu0 0
      %1191 = vperm.xlu0 %1190, %v1182
      %v1192 = vpop.permute.xlu0 %1191
      %1194 = vset.pattern.permute.xlu0 0
      %1195 = vperm.xlu0 %1194, %v1183
      %v1196 = vpop.permute.xlu0 %1195
      %1198 = vset.pattern.permute.xlu0 0
      %1199 = vperm.xlu0 %1198, %v1184
      %v1200 = vpop.permute.xlu0 %1199
      %v1201 = vrot.slane %v1188, 1
      %v1202 = vrot.slane %v1192, 1
      %v1203 = vsel %vm1088, %v1201, %v1202
      %v1204 = vrot.slane %v1196, 1
      %v1205 = vsel %vm1088, %v1202, %v1204
      %v1206 = vrot.slane %v1200, 1
      %v1207 = vsel %vm1088, %v1204, %v1206
      %v1213 = vmul.f32 %v1176, %v1201
      %v1214 = vmul.f32 %v1177, %v1203
      %v1215 = vmul.f32 %v1178, %v1205
      %v1216 = vmul.f32 %v1179, %v1207
      %v1217 = vmul.f32 %v1180, %v1206
      %v1223 = vrot.slane %v1213, 5
      %v1224 = vrot.slane %v1214, 5
      %v1225 = vsel %vm1065, %v1223, %v1224
      %v1226 = vrot.slane %v1215, 5
      %v1227 = vsel %vm1065, %v1224, %v1226
      %v1228 = vrot.slane %v1216, 5
      %v1229 = vsel %vm1065, %v1226, %v1228
      %v1230 = vrot.slane %v1217, 5
      %v1231 = vsel %vm1065, %v1228, %v1230
      %v1237 = vadd.f32 %v1171, %v1225
      %v1238 = vadd.f32 %v1172, %v1227
      %v1239 = vadd.f32 %v1173, %v1229
      %v1240 = vadd.f32 %v1174, %v1231
      %v1241 = vadd.f32 %v1175, %v1230
      %v1242 = vld [vmem:[#allocation2 + $0x68] sm:$0xff]
      %v1243 = vld [vmem:[#allocation2 + $0xb0] sm:$0xff]
      %v1244 = vld [vmem:[#allocation2 + $0xf8] sm:$0xff]
      %v1245 = vld [vmem:[#allocation2 + $0x140] sm:$0xff]
      %v1246 = vld [vmem:[%s1 + $0x80] sm:$0xff]
      %v1247 = vld [vmem:[%s1 + $0x88] sm:$0xff]
      %v1248 = vld [vmem:[%s1 + $0x90] sm:$0xff]
      %v1249 = vld [vmem:[%s1 + $0x98] sm:$0xff]
      %1251 = vset.pattern.permute.xlu0 0
      %1252 = vperm.xlu0 %1251, %v1246
      %v1253 = vpop.permute.xlu0 %1252
      %1256 = vset.pattern.permute.xlu0 0
      %1257 = vperm.xlu0 %1256, %v1247
      %v1258 = vpop.permute.xlu0 %1257
      %1261 = vset.pattern.permute.xlu0 0
      %1262 = vperm.xlu0 %1261, %v1248
      %v1263 = vpop.permute.xlu0 %1262
      %1266 = vset.pattern.permute.xlu0 0
      %1267 = vperm.xlu0 %1266, %v1249
      %v1268 = vpop.permute.xlu0 %1267
      %v1270 = vmul.f32 %v1242, %v1253
      %v1271 = vmul.f32 %v1243, %v1258
      %v1272 = vmul.f32 %v1244, %v1263
      %v1273 = vmul.f32 %v1245, %v1268
      %v1278 = vrot.slane %v1270, 6
      %v1279 = vrot.slane %v1271, 6
      %v1280 = vsel %vm1017, %v1278, %v1279
      %v1281 = vrot.slane %v1272, 6
      %v1282 = vsel %vm1017, %v1279, %v1281
      %v1283 = vrot.slane %v1273, 6
      %v1284 = vsel %vm1017, %v1281, %v1283
      %v1290 = vadd.f32 %v1237, %v1278
      %v1291 = vadd.f32 %v1238, %v1280
      %v1292 = vadd.f32 %v1239, %v1282
      %v1293 = vadd.f32 %v1240, %v1284
      %v1294 = vadd.f32 %v1241, %v1283
      %v1295 = vld [vmem:[#allocation2 + $0x70] sm:$0xfe]
      %v1296 = vld [vmem:[#allocation2 + $0xb8] sm:$0xff]
      %v1297 = vld [vmem:[#allocation2 + $0x100] sm:$0xff]
      %v1298 = vld [vmem:[#allocation2 + $0x148] sm:$0xff]
      %v1299 = vld [vmem:[#allocation2 + $0x190] sm:$0x1]
      %v1300 = vld [vmem:[%s1 + $0xa0] sm:$0xff]
      %v1301 = vld [vmem:[%s1 + $0xa8] sm:$0xff]
      %v1302 = vld [vmem:[%s1 + $0xb0] sm:$0xff]
      %v1303 = vld [vmem:[%s1 + $0xb8] sm:$0xff]
      %1305 = vset.pattern.permute.xlu0 0
      %1306 = vperm.xlu0 %1305, %v1300
      %v1307 = vpop.permute.xlu0 %1306
      %1309 = vset.pattern.permute.xlu0 0
      %1310 = vperm.xlu0 %1309, %v1301
      %v1311 = vpop.permute.xlu0 %1310
      %1313 = vset.pattern.permute.xlu0 0
      %1314 = vperm.xlu0 %1313, %v1302
      %v1315 = vpop.permute.xlu0 %1314
      %1317 = vset.pattern.permute.xlu0 0
      %1318 = vperm.xlu0 %1317, %v1303
      %v1319 = vpop.permute.xlu0 %1318
      %vm1320 = vcmask 1040384
      %v1321 = vrot.slane %v1307, 7
      %v1322 = vrot.slane %v1311, 7
      %v1323 = vsel %vm1320, %v1321, %v1322
      %v1324 = vrot.slane %v1315, 7
      %v1325 = vsel %vm1320, %v1322, %v1324
      %v1326 = vrot.slane %v1319, 7
      %v1327 = vsel %vm1320, %v1324, %v1326
      %v1333 = vmul.f32 %v1295, %v1321
      %v1334 = vmul.f32 %v1296, %v1323
      %v1335 = vmul.f32 %v1297, %v1325
      %v1336 = vmul.f32 %v1298, %v1327
      %v1337 = vmul.f32 %v1299, %v1326
      %v1343 = vrot.slane %v1333, 7
      %v1344 = vrot.slane %v1334, 7
      %v1345 = vsel %vm1320, %v1343, %v1344
      %v1346 = vrot.slane %v1335, 7
      %v1347 = vsel %vm1320, %v1344, %v1346
      %v1348 = vrot.slane %v1336, 7
      %v1349 = vsel %vm1320, %v1346, %v1348
      %v1350 = vrot.slane %v1337, 7
      %v1351 = vsel %vm1320, %v1348, %v1350
      %v1357 = vadd.f32 %v1290, %v1343
      %v1358 = vadd.f32 %v1291, %v1345
      %v1359 = vadd.f32 %v1292, %v1347
      %v1360 = vadd.f32 %v1293, %v1349
      %v1361 = vadd.f32 %v1294, %v1351
      %v1362 = vld [vmem:[#allocation2 + $0x78] sm:$0xf0]
      %v1363 = vld [vmem:[#allocation2 + $0xc0] sm:$0xff]
      %v1364 = vld [vmem:[#allocation2 + $0x108] sm:$0xff]
      %v1365 = vld [vmem:[#allocation2 + $0x150] sm:$0xff]
      %v1366 = vld [vmem:[#allocation2 + $0x198] sm:$0xf]
      %v1367 = vld [vmem:[%s1 + $0xc0] sm:$0xff]
      %v1368 = vld [vmem:[%s1 + $0xc8] sm:$0xff]
      %v1369 = vld [vmem:[%s1 + $0xd0] sm:$0xff]
      %v1370 = vld [vmem:[%s1 + $0xd8] sm:$0xff]
      %1372 = vset.pattern.permute.xlu0 0
      %1373 = vperm.xlu0 %1372, %v1367
      %v1374 = vpop.permute.xlu0 %1373
      %1376 = vset.pattern.permute.xlu0 0
      %1377 = vperm.xlu0 %1376, %v1368
      %v1378 = vpop.permute.xlu0 %1377
      %1380 = vset.pattern.permute.xlu0 0
      %1381 = vperm.xlu0 %1380, %v1369
      %v1382 = vpop.permute.xlu0 %1381
      %1384 = vset.pattern.permute.xlu0 0
      %1385 = vperm.xlu0 %1384, %v1370
      %v1386 = vpop.permute.xlu0 %1385
      %v1387 = vrot.slane %v1374, 4
      %v1388 = vrot.slane %v1378, 4
      %v1389 = vsel %vm1133, %v1387, %v1388
      %v1390 = vrot.slane %v1382, 4
      %v1391 = vsel %vm1133, %v1388, %v1390
      %v1392 = vrot.slane %v1386, 4
      %v1393 = vsel %vm1133, %v1390, %v1392
      %v1399 = vmul.f32 %v1362, %v1387
      %v1400 = vmul.f32 %v1363, %v1389
      %v1401 = vmul.f32 %v1364, %v1391
      %v1402 = vmul.f32 %v1365, %v1393
      %v1403 = vmul.f32 %v1366, %v1392
      %v1409 = vrot.slane %v1399, 2
      %v1410 = vrot.slane %v1400, 2
      %v1411 = vsel %vm1156, %v1409, %v1410
      %v1412 = vrot.slane %v1401, 2
      %v1413 = vsel %vm1156, %v1410, %v1412
      %v1414 = vrot.slane %v1402, 2
      %v1415 = vsel %vm1156, %v1412, %v1414
      %v1416 = vrot.slane %v1403, 2
      %v1417 = vsel %vm1156, %v1414, %v1416
      %v1423 = vadd.f32 %v1357, %v1411
      %v1424 = vadd.f32 %v1358, %v1413
      %v1425 = vadd.f32 %v1359, %v1415
      %v1426 = vadd.f32 %v1360, %v1417
      %v1427 = vadd.f32 %v1361, %v1416
      %v1428 = vld [vmem:[#allocation2 + $0x80] sm:$0xe0]
      %v1429 = vld [vmem:[#allocation2 + $0xc8] sm:$0xff]
      %v1430 = vld [vmem:[#allocation2 + $0x110] sm:$0xff]
      %v1431 = vld [vmem:[#allocation2 + $0x158] sm:$0xff]
      %v1432 = vld [vmem:[#allocation2 + $0x1a0] sm:$0x1f]
      %v1433 = vld [vmem:[%s1 + $0xe0] sm:$0xff]
      %v1434 = vld [vmem:[%s1 + $0xe8] sm:$0xff]
      %v1435 = vld [vmem:[%s1 + $0xf0] sm:$0xff]
      %v1436 = vld [vmem:[%s1 + $0xf8] sm:$0xff]
      %1438 = vset.pattern.permute.xlu0 0
      %1439 = vperm.xlu0 %1438, %v1433
      %v1440 = vpop.permute.xlu0 %1439
      %1442 = vset.pattern.permute.xlu0 0
      %1443 = vperm.xlu0 %1442, %v1434
      %v1444 = vpop.permute.xlu0 %1443
      %1446 = vset.pattern.permute.xlu0 0
      %1447 = vperm.xlu0 %1446, %v1435
      %v1448 = vpop.permute.xlu0 %1447
      %1450 = vset.pattern.permute.xlu0 0
      %1451 = vperm.xlu0 %1450, %v1436
      %v1452 = vpop.permute.xlu0 %1451
      %vm1453 = vcmask 1044480
      %v1454 = vrot.slane %v1440, 3
      %v1455 = vrot.slane %v1444, 3
      %v1456 = vsel %vm1453, %v1454, %v1455
      %v1457 = vrot.slane %v1448, 3
      %v1458 = vsel %vm1453, %v1455, %v1457
      %v1459 = vrot.slane %v1452, 3
      %v1460 = vsel %vm1453, %v1457, %v1459
      %v1466 = vmul.f32 %v1428, %v1454
      %v1467 = vmul.f32 %v1429, %v1456
      %v1468 = vmul.f32 %v1430, %v1458
      %v1469 = vmul.f32 %v1431, %v1460
      %v1470 = vmul.f32 %v1432, %v1459
      %v1476 = vrot.slane %v1466, 3
      %v1477 = vrot.slane %v1467, 3
      %v1478 = vsel %vm1453, %v1476, %v1477
      %v1479 = vrot.slane %v1468, 3
      %v1480 = vsel %vm1453, %v1477, %v1479
      %v1481 = vrot.slane %v1469, 3
      %v1482 = vsel %vm1453, %v1479, %v1481
      %v1483 = vrot.slane %v1470, 3
      %v1484 = vsel %vm1453, %v1481, %v1483
      %v1490 = vadd.f32 %v1423, %v1478
      %v1491 = vadd.f32 %v1424, %v1480
      %v1492 = vadd.f32 %v1425, %v1482
      %v1493 = vadd.f32 %v1426, %v1484
      %v1494 = vadd.f32 %v1427, %v1483
      %v1495 = vld [vmem:[#allocation2 + $0x88] sm:$0xc0]
      %v1496 = vld [vmem:[#allocation2 + $0xd0] sm:$0xff]
      %v1497 = vld [vmem:[#allocation2 + $0x118] sm:$0xff]
      %v1498 = vld [vmem:[#allocation2 + $0x160] sm:$0xff]
      %v1499 = vld [vmem:[#allocation2 + $0x1a8] sm:$0x3f]
      %v1500 = vld [vmem:[%s1 + $0x100] sm:$0xff]
      %v1501 = vld [vmem:[%s1 + $0x108] sm:$0xff]
      %v1502 = vld [vmem:[%s1 + $0x110] sm:$0xff]
      %v1503 = vld [vmem:[%s1 + $0x118] sm:$0xff]
      %1505 = vset.pattern.permute.xlu0 0
      %1506 = vperm.xlu0 %1505, %v1500
      %v1507 = vpop.permute.xlu0 %1506
      %1509 = vset.pattern.permute.xlu0 0
      %1510 = vperm.xlu0 %1509, %v1501
      %v1511 = vpop.permute.xlu0 %1510
      %1513 = vset.pattern.permute.xlu0 0
      %1514 = vperm.xlu0 %1513, %v1502
      %v1515 = vpop.permute.xlu0 %1514
      %1517 = vset.pattern.permute.xlu0 0
      %1518 = vperm.xlu0 %1517, %v1503
      %v1519 = vpop.permute.xlu0 %1518
      %v1520 = vrot.slane %v1507, 2
      %v1521 = vrot.slane %v1511, 2
      %v1522 = vsel %vm1156, %v1520, %v1521
      %v1523 = vrot.slane %v1515, 2
      %v1524 = vsel %vm1156, %v1521, %v1523
      %v1525 = vrot.slane %v1519, 2
      %v1526 = vsel %vm1156, %v1523, %v1525
      %v1532 = vmul.f32 %v1495, %v1520
      %v1533 = vmul.f32 %v1496, %v1522
      %v1534 = vmul.f32 %v1497, %v1524
      %v1535 = vmul.f32 %v1498, %v1526
      %v1536 = vmul.f32 %v1499, %v1525
      %v1542 = vrot.slane %v1532, 4
      %v1543 = vrot.slane %v1533, 4
      %v1544 = vsel %vm1133, %v1542, %v1543
      %v1545 = vrot.slane %v1534, 4
      %v1546 = vsel %vm1133, %v1543, %v1545
      %v1547 = vrot.slane %v1535, 4
      %v1548 = vsel %vm1133, %v1545, %v1547
      %v1549 = vrot.slane %v1536, 4
      %v1550 = vsel %vm1133, %v1547, %v1549
      %v1556 = vadd.f32 %v1490, %v1544
      %v1557 = vadd.f32 %v1491, %v1546
      %v1558 = vadd.f32 %v1492, %v1548
      %v1559 = vadd.f32 %v1493, %v1550
      %v1560 = vadd.f32 %v1494, %v1549
      %v1561 = vld [vmem:[%s3] sm:$0x1]
      %v1563 = vperm.slane %v1561, 0
      %v1565 = vadd.f32 %v1556, %v1563
      %v1566 = vadd.f32 %v1557, %v1563
      %v1567 = vadd.f32 %v1558, %v1563
      %v1568 = vadd.f32 %v1559, %v1563
      %v1569 = vadd.f32 %v1560, %v1563
      %vm1570 = vcmp.ge.f32.partialorder %v1565, 0.0
      %vm1571 = vcmp.ge.f32.partialorder %v1566, 0.0
      %vm1572 = vcmp.ge.f32.partialorder %v1567, 0.0
      %vm1573 = vcmp.ge.f32.partialorder %v1568, 0.0
      %vm1574 = vcmp.ge.f32.partialorder %v1569, 0.0
      %v1575 = vmul.f32 %v1565, 0.01
      %v1576 = vmul.f32 %v1566, 0.01
      %v1577 = vmul.f32 %v1567, 0.01
      %v1578 = vmul.f32 %v1568, 0.01
      %v1579 = vmul.f32 %v1569, 0.01
      %v1580 = vsel %vm1570, %v1565, %v1575
      %v1581 = vsel %vm1571, %v1566, %v1576
      %v1582 = vsel %vm1572, %v1567, %v1577
      %v1583 = vsel %vm1573, %v1568, %v1578
      %v1584 = vsel %vm1574, %v1569, %v1579
      %v1585 = vpack.c.bf16 %v1581, %v1580
      %v1586 = vpack.c.bf16 %v1583, %v1582
      %v1587 = vpack.c.bf16 %v1584, %v1584
      %s1588 = scalar_lea.vmem %s2, 576
      %v1589 = vld [vmem:[%s1588] sm:$0xff]
      %v1590 = vld [vmem:[%s1588 + $0x8] sm:$0xff]
      %v1591 = vld [vmem:[%s1588 + $0x10] sm:$0xff]
      %v1592 = vld [vmem:[%s1588 + $0x18] sm:$0xff]
      %v1593 = vld [vmem:[%s1588 + $0x20] sm:$0xf]
      %v1594 = vld [vmem:[%s1588 + $0x24] sm:$0xff]
      %v1595 = vld [vmem:[%s1588 + $0x2c] sm:$0xff]
      %v1596 = vld [vmem:[%s1588 + $0x34] sm:$0xff]
      %v1597 = vld [vmem:[%s1588 + $0x3c] sm:$0xff]
      %v1598 = vld [vmem:[%s1588 + $0x44] sm:$0xf]
      %v1599 = vld [vmem:[%s1588 + $0x48] sm:$0xff]
      %v1600 = vld [vmem:[%s1588 + $0x50] sm:$0xff]
      %v1601 = vld [vmem:[%s1588 + $0x58] sm:$0xff]
      %v1602 = vld [vmem:[%s1588 + $0x60] sm:$0xff]
      %v1603 = vld [vmem:[%s1588 + $0x68] sm:$0xf]
      %v1604 = vld [vmem:[%s1588 + $0x6c] sm:$0xff]
      %v1605 = vld [vmem:[%s1588 + $0x74] sm:$0xff]
      %v1606 = vld [vmem:[%s1588 + $0x7c] sm:$0xff]
      %v1607 = vld [vmem:[%s1588 + $0x84] sm:$0xff]
      %v1608 = vld [vmem:[%s1588 + $0x8c] sm:$0xf]
      %v1609 = vld [vmem:[%s1588 + $0x90] sm:$0xff]
      %v1610 = vld [vmem:[%s1588 + $0x98] sm:$0xff]
      %v1611 = vld [vmem:[%s1588 + $0xa0] sm:$0xff]
      %v1612 = vld [vmem:[%s1588 + $0xa8] sm:$0xff]
      %v1613 = vld [vmem:[%s1588 + $0xb0] sm:$0xf]
      %v1614 = vld [vmem:[%s1588 + $0xb4] sm:$0xff]
      %v1615 = vld [vmem:[%s1588 + $0xbc] sm:$0xff]
      %v1616 = vld [vmem:[%s1588 + $0xc4] sm:$0xff]
      %v1617 = vld [vmem:[%s1588 + $0xcc] sm:$0xff]
      %v1618 = vld [vmem:[%s1588 + $0xd4] sm:$0xf]
      %v1619 = vld [vmem:[%s1588 + $0xd8] sm:$0xff]
      %v1620 = vld [vmem:[%s1588 + $0xe0] sm:$0xff]
      %v1621 = vld [vmem:[%s1588 + $0xe8] sm:$0xff]
      %v1622 = vld [vmem:[%s1588 + $0xf0] sm:$0xff]
      %v1623 = vld [vmem:[%s1588 + $0xf8] sm:$0xf]
      %v1624 = vld [vmem:[%s1588 + $0xfc] sm:$0xff]
      %v1625 = vld [vmem:[%s1588 + $0x104] sm:$0xff]
      %v1626 = vld [vmem:[%s1588 + $0x10c] sm:$0xff]
      %v1627 = vld [vmem:[%s1588 + $0x114] sm:$0xff]
      %v1628 = vld [vmem:[%s1588 + $0x11c] sm:$0xf]
      %v1629 = vld [vmem:[%s1588 + $0x120] sm:$0xff]
      %v1630 = vld [vmem:[%s1588 + $0x128] sm:$0xff]
      %v1631 = vld [vmem:[%s1588 + $0x130] sm:$0xff]
      %v1632 = vld [vmem:[%s1588 + $0x138] sm:$0xff]
      %v1633 = vld [vmem:[%s1588 + $0x140] sm:$0xf]
      %v1634 = vld [vmem:[%s1588 + $0x144] sm:$0xff]
      %v1635 = vld [vmem:[%s1588 + $0x14c] sm:$0xff]
      %v1636 = vld [vmem:[%s1588 + $0x154] sm:$0xff]
      %v1637 = vld [vmem:[%s1588 + $0x15c] sm:$0xff]
      %v1638 = vld [vmem:[%s1588 + $0x164] sm:$0xf]
      %v1639 = vld [vmem:[%s1588 + $0x168] sm:$0xff]
      %v1640 = vld [vmem:[%s1588 + $0x170] sm:$0xff]
      %v1641 = vld [vmem:[%s1588 + $0x178] sm:$0xff]
      %v1642 = vld [vmem:[%s1588 + $0x180] sm:$0xff]
      %v1643 = vld [vmem:[%s1588 + $0x188] sm:$0xf]
      %v1644 = vld [vmem:[%s1588 + $0x18c] sm:$0xff]
      %v1645 = vld [vmem:[%s1588 + $0x194] sm:$0xff]
      %v1646 = vld [vmem:[%s1588 + $0x19c] sm:$0xff]
      %v1647 = vld [vmem:[%s1588 + $0x1a4] sm:$0xff]
      %v1648 = vld [vmem:[%s1588 + $0x1ac] sm:$0xf]
      %v1649 = vld [vmem:[%s1588 + $0x1b0] sm:$0xff]
      %v1650 = vld [vmem:[%s1588 + $0x1b8] sm:$0xff]
      %v1651 = vld [vmem:[%s1588 + $0x1c0] sm:$0xff]
      %v1652 = vld [vmem:[%s1588 + $0x1c8] sm:$0xff]
      %v1653 = vld [vmem:[%s1588 + $0x1d0] sm:$0xf]
      %v1654 = vld [vmem:[%s1588 + $0x1d4] sm:$0xff]
      %v1655 = vld [vmem:[%s1588 + $0x1dc] sm:$0xff]
      %v1656 = vld [vmem:[%s1588 + $0x1e4] sm:$0xff]
      %v1657 = vld [vmem:[%s1588 + $0x1ec] sm:$0xff]
      %v1658 = vld [vmem:[%s1588 + $0x1f4] sm:$0xf]
      %v1659 = vld [vmem:[%s1588 + $0x1f8] sm:$0xff]
      %v1660 = vld [vmem:[%s1588 + $0x200] sm:$0xff]
      %v1661 = vld [vmem:[%s1588 + $0x208] sm:$0xff]
      %v1662 = vld [vmem:[%s1588 + $0x210] sm:$0xff]
      %v1663 = vld [vmem:[%s1588 + $0x218] sm:$0xf]
      %v1664 = vld [vmem:[%s1588 + $0x21c] sm:$0xff]
      %v1665 = vld [vmem:[%s1588 + $0x224] sm:$0xff]
      %v1666 = vld [vmem:[%s1588 + $0x22c] sm:$0xff]
      %v1667 = vld [vmem:[%s1588 + $0x234] sm:$0xff]
      %v1668 = vld [vmem:[%s1588 + $0x23c] sm:$0xf]
      %vm1672 = vcmask 1046528
      %v1673 = vrot.slane %v1585, 1
      %v1674 = vrot.slane %v1586, 1
      %v1675 = vsel %vm1672, %v1673, %v1674
      %v1676 = vrot.slane %v1587, 1
      %v1677 = vsel %vm1672, %v1674, %v1676
      %v1760 = vunpack.c.l.b16 %v1589
      %v1761 = vunpack.c.h.b16 %v1589
      %v1762 = vunpack.c.l.b16 %v1590
      %v1763 = vunpack.c.h.b16 %v1590
      %v1764 = vunpack.c.l.b16 %v1591
      %v1765 = vunpack.c.h.b16 %v1591
      %v1766 = vunpack.c.l.b16 %v1592
      %v1767 = vunpack.c.h.b16 %v1592
      %v1768 = vunpack.c.l.b16 %v1593
      %v1769 = vunpack.c.l.b16 %v1594
      %v1770 = vunpack.c.h.b16 %v1594
      %v1771 = vunpack.c.l.b16 %v1595
      %v1772 = vunpack.c.h.b16 %v1595
      %v1773 = vunpack.c.l.b16 %v1596
      %v1774 = vunpack.c.h.b16 %v1596
      %v1775 = vunpack.c.l.b16 %v1597
      %v1776 = vunpack.c.h.b16 %v1597
      %v1777 = vunpack.c.l.b16 %v1598
      %v1778 = vunpack.c.l.b16 %v1599
      %v1779 = vunpack.c.h.b16 %v1599
      %v1780 = vunpack.c.l.b16 %v1600
      %v1781 = vunpack.c.h.b16 %v1600
      %v1782 = vunpack.c.l.b16 %v1601
      %v1783 = vunpack.c.h.b16 %v1601
      %v1784 = vunpack.c.l.b16 %v1602
      %v1785 = vunpack.c.h.b16 %v1602
      %v1786 = vunpack.c.l.b16 %v1603
      %v1787 = vunpack.c.l.b16 %v1604
      %v1788 = vunpack.c.h.b16 %v1604
      %v1789 = vunpack.c.l.b16 %v1605
      %v1790 = vunpack.c.h.b16 %v1605
      %v1791 = vunpack.c.l.b16 %v1606
      %v1792 = vunpack.c.h.b16 %v1606
      %v1793 = vunpack.c.l.b16 %v1607
      %v1794 = vunpack.c.h.b16 %v1607
      %v1795 = vunpack.c.l.b16 %v1608
      %v1796 = vunpack.c.l.b16 %v1609
      %v1797 = vunpack.c.h.b16 %v1609
      %v1798 = vunpack.c.l.b16 %v1610
      %v1799 = vunpack.c.h.b16 %v1610
      %v1800 = vunpack.c.l.b16 %v1611
      %v1801 = vunpack.c.h.b16 %v1611
      %v1802 = vunpack.c.l.b16 %v1612
      %v1803 = vunpack.c.h.b16 %v1612
      %v1804 = vunpack.c.l.b16 %v1613
      %v1805 = vunpack.c.l.b16 %v1614
      %v1806 = vunpack.c.h.b16 %v1614
      %v1807 = vunpack.c.l.b16 %v1615
      %v1808 = vunpack.c.h.b16 %v1615
      %v1809 = vunpack.c.l.b16 %v1616
      %v1810 = vunpack.c.h.b16 %v1616
      %v1811 = vunpack.c.l.b16 %v1617
      %v1812 = vunpack.c.h.b16 %v1617
      %v1813 = vunpack.c.l.b16 %v1618
      %v1814 = vunpack.c.l.b16 %v1619
      %v1815 = vunpack.c.h.b16 %v1619
      %v1816 = vunpack.c.l.b16 %v1620
      %v1817 = vunpack.c.h.b16 %v1620
      %v1818 = vunpack.c.l.b16 %v1621
      %v1819 = vunpack.c.h.b16 %v1621
      %v1820 = vunpack.c.l.b16 %v1622
      %v1821 = vunpack.c.h.b16 %v1622
      %v1822 = vunpack.c.l.b16 %v1623
      %v1823 = vunpack.c.l.b16 %v1624
      %v1824 = vunpack.c.h.b16 %v1624
      %v1825 = vunpack.c.l.b16 %v1625
      %v1826 = vunpack.c.h.b16 %v1625
      %v1827 = vunpack.c.l.b16 %v1626
      %v1828 = vunpack.c.h.b16 %v1626
      %v1829 = vunpack.c.l.b16 %v1627
      %v1830 = vunpack.c.h.b16 %v1627
      %v1831 = vunpack.c.l.b16 %v1628
      %v1832 = vunpack.c.l.b16 %v1629
      %v1833 = vunpack.c.h.b16 %v1629
      %v1834 = vunpack.c.l.b16 %v1630
      %v1835 = vunpack.c.h.b16 %v1630
      %v1836 = vunpack.c.l.b16 %v1631
      %v1837 = vunpack.c.h.b16 %v1631
      %v1838 = vunpack.c.l.b16 %v1632
      %v1839 = vunpack.c.h.b16 %v1632
      %v1840 = vunpack.c.l.b16 %v1633
      %v1841 = vunpack.c.l.b16 %v1634
      %v1842 = vunpack.c.h.b16 %v1634
      %v1843 = vunpack.c.l.b16 %v1635
      %v1844 = vunpack.c.h.b16 %v1635
      %v1845 = vunpack.c.l.b16 %v1636
      %v1846 = vunpack.c.h.b16 %v1636
      %v1847 = vunpack.c.l.b16 %v1637
      %v1848 = vunpack.c.h.b16 %v1637
      %v1849 = vunpack.c.l.b16 %v1638
      %v1850 = vunpack.c.l.b16 %v1639
      %v1851 = vunpack.c.h.b16 %v1639
      %v1852 = vunpack.c.l.b16 %v1640
      %v1853 = vunpack.c.h.b16 %v1640
      %v1854 = vunpack.c.l.b16 %v1641
      %v1855 = vunpack.c.h.b16 %v1641
      %v1856 = vunpack.c.l.b16 %v1642
      %v1857 = vunpack.c.h.b16 %v1642
      %v1858 = vunpack.c.l.b16 %v1643
      %v1859 = vunpack.c.l.b16 %v1644
      %v1860 = vunpack.c.h.b16 %v1644
      %v1861 = vunpack.c.l.b16 %v1645
      %v1862 = vunpack.c.h.b16 %v1645
      %v1863 = vunpack.c.l.b16 %v1646
      %v1864 = vunpack.c.h.b16 %v1646
      %v1865 = vunpack.c.l.b16 %v1647
      %v1866 = vunpack.c.h.b16 %v1647
      %v1867 = vunpack.c.l.b16 %v1648
      %v1868 = vunpack.c.l.b16 %v1649
      %v1869 = vunpack.c.h.b16 %v1649
      %v1870 = vunpack.c.l.b16 %v1650
      %v1871 = vunpack.c.h.b16 %v1650
      %v1872 = vunpack.c.l.b16 %v1651
      %v1873 = vunpack.c.h.b16 %v1651
      %v1874 = vunpack.c.l.b16 %v1652
      %v1875 = vunpack.c.h.b16 %v1652
      %v1876 = vunpack.c.l.b16 %v1653
      %v1877 = vunpack.c.l.b16 %v1654
      %v1878 = vunpack.c.h.b16 %v1654
      %v1879 = vunpack.c.l.b16 %v1655
      %v1880 = vunpack.c.h.b16 %v1655
      %v1881 = vunpack.c.l.b16 %v1656
      %v1882 = vunpack.c.h.b16 %v1656
      %v1883 = vunpack.c.l.b16 %v1657
      %v1884 = vunpack.c.h.b16 %v1657
      %v1885 = vunpack.c.l.b16 %v1658
      %v1886 = vunpack.c.l.b16 %v1659
      %v1887 = vunpack.c.h.b16 %v1659
      %v1888 = vunpack.c.l.b16 %v1660
      %v1889 = vunpack.c.h.b16 %v1660
      %v1890 = vunpack.c.l.b16 %v1661
      %v1891 = vunpack.c.h.b16 %v1661
      %v1892 = vunpack.c.l.b16 %v1662
      %v1893 = vunpack.c.h.b16 %v1662
      %v1894 = vunpack.c.l.b16 %v1663
      %v1895 = vunpack.c.l.b16 %v1664
      %v1896 = vunpack.c.h.b16 %v1664
      %v1897 = vunpack.c.l.b16 %v1665
      %v1898 = vunpack.c.h.b16 %v1665
      %v1899 = vunpack.c.l.b16 %v1666
      %v1900 = vunpack.c.h.b16 %v1666
      %v1901 = vunpack.c.l.b16 %v1667
      %v1902 = vunpack.c.h.b16 %v1667
      %v1903 = vunpack.c.l.b16 %v1668
      %v1904 = vpack.c.b16 %v1769, %v1760
      %v1905 = vpack.c.b16 %v1770, %v1761
      %v1906 = vpack.c.b16 %v1771, %v1762
      %v1907 = vpack.c.b16 %v1772, %v1763
      %v1908 = vpack.c.b16 %v1773, %v1764
      %v1909 = vpack.c.b16 %v1774, %v1765
      %v1910 = vpack.c.b16 %v1775, %v1766
      %v1911 = vpack.c.b16 %v1776, %v1767
      %v1912 = vpack.c.b16 %v1777, %v1768
      %v1913 = vpack.c.b16 %v1787, %v1778
      %v1914 = vpack.c.b16 %v1788, %v1779
      %v1915 = vpack.c.b16 %v1789, %v1780
      %v1916 = vpack.c.b16 %v1790, %v1781
      %v1917 = vpack.c.b16 %v1791, %v1782
      %v1918 = vpack.c.b16 %v1792, %v1783
      %v1919 = vpack.c.b16 %v1793, %v1784
      %v1920 = vpack.c.b16 %v1794, %v1785
      %v1921 = vpack.c.b16 %v1795, %v1786
      %v1922 = vpack.c.b16 %v1805, %v1796
      %v1923 = vpack.c.b16 %v1806, %v1797
      %v1924 = vpack.c.b16 %v1807, %v1798
      %v1925 = vpack.c.b16 %v1808, %v1799
      %v1926 = vpack.c.b16 %v1809, %v1800
      %v1927 = vpack.c.b16 %v1810, %v1801
      %v1928 = vpack.c.b16 %v1811, %v1802
      %v1929 = vpack.c.b16 %v1812, %v1803
      %v1930 = vpack.c.b16 %v1813, %v1804
      %v1931 = vpack.c.b16 %v1823, %v1814
      %v1932 = vpack.c.b16 %v1824, %v1815
      %v1933 = vpack.c.b16 %v1825, %v1816
      %v1934 = vpack.c.b16 %v1826, %v1817
      %v1935 = vpack.c.b16 %v1827, %v1818
      %v1936 = vpack.c.b16 %v1828, %v1819
      %v1937 = vpack.c.b16 %v1829, %v1820
      %v1938 = vpack.c.b16 %v1830, %v1821
      %v1939 = vpack.c.b16 %v1831, %v1822
      %v1940 = vpack.c.b16 %v1841, %v1832
      %v1941 = vpack.c.b16 %v1842, %v1833
      %v1942 = vpack.c.b16 %v1843, %v1834
      %v1943 = vpack.c.b16 %v1844, %v1835
      %v1944 = vpack.c.b16 %v1845, %v1836
      %v1945 = vpack.c.b16 %v1846, %v1837
      %v1946 = vpack.c.b16 %v1847, %v1838
      %v1947 = vpack.c.b16 %v1848, %v1839
      %v1948 = vpack.c.b16 %v1849, %v1840
      %v1949 = vpack.c.b16 %v1859, %v1850
      %v1950 = vpack.c.b16 %v1860, %v1851
      %v1951 = vpack.c.b16 %v1861, %v1852
      %v1952 = vpack.c.b16 %v1862, %v1853
      %v1953 = vpack.c.b16 %v1863, %v1854
      %v1954 = vpack.c.b16 %v1864, %v1855
      %v1955 = vpack.c.b16 %v1865, %v1856
      %v1956 = vpack.c.b16 %v1866, %v1857
      %v1957 = vpack.c.b16 %v1867, %v1858
      %v1958 = vpack.c.b16 %v1877, %v1868
      %v1959 = vpack.c.b16 %v1878, %v1869
      %v1960 = vpack.c.b16 %v1879, %v1870
      %v1961 = vpack.c.b16 %v1880, %v1871
      %v1962 = vpack.c.b16 %v1881, %v1872
      %v1963 = vpack.c.b16 %v1882, %v1873
      %v1964 = vpack.c.b16 %v1883, %v1874
      %v1965 = vpack.c.b16 %v1884, %v1875
      %v1966 = vpack.c.b16 %v1885, %v1876
      %v1967 = vpack.c.b16 %v1895, %v1886
      %v1968 = vpack.c.b16 %v1896, %v1887
      %v1969 = vpack.c.b16 %v1897, %v1888
      %v1970 = vpack.c.b16 %v1898, %v1889
      %v1971 = vpack.c.b16 %v1899, %v1890
      %v1972 = vpack.c.b16 %v1900, %v1891
      %v1973 = vpack.c.b16 %v1901, %v1892
      %v1974 = vpack.c.b16 %v1902, %v1893
      %v1975 = vpack.c.b16 %v1903, %v1894
      %2048 = vmatpush.bf16.msra.mxu0 %v1967
      %2049 = vmatpush.bf16.msra.mxu0 %v1958
      %2050 = vmatpush.bf16.msra.mxu0 %v1949
      %2051 = vmatpush.bf16.msra.mxu0 %v1940
      %2052 = vmatpush.bf16.msra.mxu0 %v1931
      %2053 = vmatpush.bf16.msra.mxu0 %v1922
      %2054 = vmatpush.bf16.msra.mxu0 %v1913
      %2055 = vmatpush.bf16.msra.mxu0 %v1904
      %2056 = vmatmul.bf16.gmra.mxu0 %v1675
      %v2057 = vpop.f32.mrf.mxu0
      %v2058 = vadd.f32 0.0, %v2057
      %v2059 = vpop.f32.mrf.mxu0
      %v2060 = vadd.f32 0.0, %v2059
      %2061 = vmatmul.bf16.gmra.mxu0 %v1677
      %v2062 = vpop.f32.mrf.mxu0
      %v2063 = vadd.f32 0.0, %v2062
      %v2064 = vpop.f32.mrf.mxu0
      %v2065 = vadd.f32 0.0, %v2064
      %2066 = vdwg.mxu0
      %2067 = vmatpush.bf16.msra.mxu0 %v1968
      %2068 = vmatpush.bf16.msra.mxu0 %v1959
      %2069 = vmatpush.bf16.msra.mxu0 %v1950
      %2070 = vmatpush.bf16.msra.mxu0 %v1941
      %2071 = vmatpush.bf16.msra.mxu0 %v1932
      %2072 = vmatpush.bf16.msra.mxu0 %v1923
      %2073 = vmatpush.bf16.msra.mxu0 %v1914
      %2074 = vmatpush.bf16.msra.mxu0 %v1905
      %2075 = vmatmul.bf16.gmra.mxu0 %v1675
      %v2076 = vpop.f32.mrf.mxu0
      %v2077 = vadd.f32 0.0, %v2076
      %v2078 = vpop.f32.mrf.mxu0
      %v2079 = vadd.f32 0.0, %v2078
      %2080 = vmatmul.bf16.gmra.mxu0 %v1677
      %v2081 = vpop.f32.mrf.mxu0
      %v2082 = vadd.f32 0.0, %v2081
      %v2083 = vpop.f32.mrf.mxu0
      %v2084 = vadd.f32 0.0, %v2083
      %2085 = vdwg.mxu0
      %2086 = vmatpush.bf16.msra.mxu0 %v1969
      %2087 = vmatpush.bf16.msra.mxu0 %v1960
      %2088 = vmatpush.bf16.msra.mxu0 %v1951
      %2089 = vmatpush.bf16.msra.mxu0 %v1942
      %2090 = vmatpush.bf16.msra.mxu0 %v1933
      %2091 = vmatpush.bf16.msra.mxu0 %v1924
      %2092 = vmatpush.bf16.msra.mxu0 %v1915
      %2093 = vmatpush.bf16.msra.mxu0 %v1906
      %2094 = vmatmul.bf16.gmra.mxu0 %v1675
      %v2095 = vpop.f32.mrf.mxu0
      %v2096 = vadd.f32 0.0, %v2095
      %v2097 = vpop.f32.mrf.mxu0
      %v2098 = vadd.f32 0.0, %v2097
      %2099 = vmatmul.bf16.gmra.mxu0 %v1677
      %v2100 = vpop.f32.mrf.mxu0
      %v2101 = vadd.f32 0.0, %v2100
      %v2102 = vpop.f32.mrf.mxu0
      %v2103 = vadd.f32 0.0, %v2102
      %2104 = vdwg.mxu0
      %2105 = vmatpush.bf16.msra.mxu0 %v1970
      %2106 = vmatpush.bf16.msra.mxu0 %v1961
      %2107 = vmatpush.bf16.msra.mxu0 %v1952
      %2108 = vmatpush.bf16.msra.mxu0 %v1943
      %2109 = vmatpush.bf16.msra.mxu0 %v1934
      %2110 = vmatpush.bf16.msra.mxu0 %v1925
      %2111 = vmatpush.bf16.msra.mxu0 %v1916
      %2112 = vmatpush.bf16.msra.mxu0 %v1907
      %2113 = vmatmul.bf16.gmra.mxu0 %v1675
      %v2114 = vpop.f32.mrf.mxu0
      %v2115 = vadd.f32 0.0, %v2114
      %v2116 = vpop.f32.mrf.mxu0
      %v2117 = vadd.f32 0.0, %v2116
      %2118 = vmatmul.bf16.gmra.mxu0 %v1677
      %v2119 = vpop.f32.mrf.mxu0
      %v2120 = vadd.f32 0.0, %v2119
      %v2121 = vpop.f32.mrf.mxu0
      %v2122 = vadd.f32 0.0, %v2121
      %2123 = vdwg.mxu0
      %2124 = vmatpush.bf16.msra.mxu0 %v1971
      %2125 = vmatpush.bf16.msra.mxu0 %v1962
      %2126 = vmatpush.bf16.msra.mxu0 %v1953
      %2127 = vmatpush.bf16.msra.mxu0 %v1944
      %2128 = vmatpush.bf16.msra.mxu0 %v1935
      %2129 = vmatpush.bf16.msra.mxu0 %v1926
      %2130 = vmatpush.bf16.msra.mxu0 %v1917
      %2131 = vmatpush.bf16.msra.mxu0 %v1908
      %2132 = vmatmul.bf16.gmra.mxu0 %v1675
      %v2133 = vpop.f32.mrf.mxu0
      %v2134 = vadd.f32 0.0, %v2133
      %v2135 = vpop.f32.mrf.mxu0
      %v2136 = vadd.f32 0.0, %v2135
      %2137 = vmatmul.bf16.gmra.mxu0 %v1677
      %v2138 = vpop.f32.mrf.mxu0
      %v2139 = vadd.f32 0.0, %v2138
      %v2140 = vpop.f32.mrf.mxu0
      %v2141 = vadd.f32 0.0, %v2140
      %2142 = vdwg.mxu0
      %2143 = vmatpush.bf16.msra.mxu0 %v1972
      %2144 = vmatpush.bf16.msra.mxu0 %v1963
      %2145 = vmatpush.bf16.msra.mxu0 %v1954
      %2146 = vmatpush.bf16.msra.mxu0 %v1945
      %2147 = vmatpush.bf16.msra.mxu0 %v1936
      %2148 = vmatpush.bf16.msra.mxu0 %v1927
      %2149 = vmatpush.bf16.msra.mxu0 %v1918
      %2150 = vmatpush.bf16.msra.mxu0 %v1909
      %2151 = vmatmul.bf16.gmra.mxu0 %v1675
      %v2152 = vpop.f32.mrf.mxu0
      %v2153 = vadd.f32 0.0, %v2152
      %v2154 = vpop.f32.mrf.mxu0
      %v2155 = vadd.f32 0.0, %v2154
      %2156 = vmatmul.bf16.gmra.mxu0 %v1677
      %v2157 = vpop.f32.mrf.mxu0
      %v2158 = vadd.f32 0.0, %v2157
      %v2159 = vpop.f32.mrf.mxu0
      %v2160 = vadd.f32 0.0, %v2159
      %2161 = vdwg.mxu0
      %2162 = vmatpush.bf16.msra.mxu0 %v1973
      %2163 = vmatpush.bf16.msra.mxu0 %v1964
      %2164 = vmatpush.bf16.msra.mxu0 %v1955
      %2165 = vmatpush.bf16.msra.mxu0 %v1946
      %2166 = vmatpush.bf16.msra.mxu0 %v1937
      %2167 = vmatpush.bf16.msra.mxu0 %v1928
      %2168 = vmatpush.bf16.msra.mxu0 %v1919
      %2169 = vmatpush.bf16.msra.mxu0 %v1910
      %2170 = vmatmul.bf16.gmra.mxu0 %v1675
      %v2171 = vpop.f32.mrf.mxu0
      %v2172 = vadd.f32 0.0, %v2171
      %v2173 = vpop.f32.mrf.mxu0
      %v2174 = vadd.f32 0.0, %v2173
      %2175 = vmatmul.bf16.gmra.mxu0 %v1677
      %v2176 = vpop.f32.mrf.mxu0
      %v2177 = vadd.f32 0.0, %v2176
      %v2178 = vpop.f32.mrf.mxu0
      %v2179 = vadd.f32 0.0, %v2178
      %2180 = vdwg.mxu0
      %2181 = vmatpush.bf16.msra.mxu0 %v1974
      %2182 = vmatpush.bf16.msra.mxu0 %v1965
      %2183 = vmatpush.bf16.msra.mxu0 %v1956
      %2184 = vmatpush.bf16.msra.mxu0 %v1947
      %2185 = vmatpush.bf16.msra.mxu0 %v1938
      %2186 = vmatpush.bf16.msra.mxu0 %v1929
      %2187 = vmatpush.bf16.msra.mxu0 %v1920
      %2188 = vmatpush.bf16.msra.mxu0 %v1911
      %2189 = vmatmul.bf16.gmra.mxu0 %v1675
      %v2190 = vpop.f32.mrf.mxu0
      %v2191 = vadd.f32 0.0, %v2190
      %v2192 = vpop.f32.mrf.mxu0
      %v2193 = vadd.f32 0.0, %v2192
      %2194 = vmatmul.bf16.gmra.mxu0 %v1677
      %v2195 = vpop.f32.mrf.mxu0
      %v2196 = vadd.f32 0.0, %v2195
      %v2197 = vpop.f32.mrf.mxu0
      %v2198 = vadd.f32 0.0, %v2197
      %2199 = vdwg.mxu0
      %2200 = vmatpush.bf16.msra.mxu0 %v1975
      %2201 = vmatpush.bf16.msra.mxu0 %v1966
      %2202 = vmatpush.bf16.msra.mxu0 %v1957
      %2203 = vmatpush.bf16.msra.mxu0 %v1948
      %2204 = vmatpush.bf16.msra.mxu0 %v1939
      %2205 = vmatpush.bf16.msra.mxu0 %v1930
      %2206 = vmatpush.bf16.msra.mxu0 %v1921
      %2207 = vmatpush.bf16.msra.mxu0 %v1912
      %2208 = vmatmul.bf16.gmra.mxu0 %v1675
      %v2209 = vpop.f32.mrf.mxu0
      %v2210 = vadd.f32 0.0, %v2209
      %v2211 = vpop.f32.mrf.mxu0
      %v2212 = vadd.f32 0.0, %v2211
      %2213 = vmatmul.bf16.gmra.mxu0 %v1677
      %v2214 = vpop.f32.mrf.mxu0
      %v2215 = vadd.f32 0.0, %v2214
      %v2216 = vpop.f32.mrf.mxu0
      %v2217 = vadd.f32 0.0, %v2216
      %2218 = vdwg.mxu0
      %2219 = vst [vmem:[#allocation2 + $0x48] sm:$0xff] %v2058
      %2220 = vst [vmem:[#allocation2 + $0x50] sm:$0xff] %v2077
      %2221 = vst [vmem:[#allocation2 + $0x58] sm:$0xff] %v2096
      %2222 = vst [vmem:[#allocation2 + $0x60] sm:$0xff] %v2115
      %2223 = vst [vmem:[#allocation2 + $0x68] sm:$0xff] %v2134
      %2224 = vst [vmem:[#allocation2 + $0x70] sm:$0xff] %v2153
      %2225 = vst [vmem:[#allocation2 + $0x78] sm:$0xff] %v2172
      %2226 = vst [vmem:[#allocation2 + $0x80] sm:$0xff] %v2191
      %2227 = vst [vmem:[#allocation2 + $0x88] sm:$0xff] %v2210
      %2228 = vst [vmem:[#allocation2 + $0x90] sm:$0xff] %v2060
      %2229 = vst [vmem:[#allocation2 + $0x98] sm:$0xff] %v2079
      %2230 = vst [vmem:[#allocation2 + $0xa0] sm:$0xff] %v2098
      %2231 = vst [vmem:[#allocation2 + $0xa8] sm:$0xff] %v2117
      %2232 = vst [vmem:[#allocation2 + $0xb0] sm:$0xff] %v2136
      %2233 = vst [vmem:[#allocation2 + $0xb8] sm:$0xff] %v2155
      %2234 = vst [vmem:[#allocation2 + $0xc0] sm:$0xff] %v2174
      %2235 = vst [vmem:[#allocation2 + $0xc8] sm:$0xff] %v2193
      %2236 = vst [vmem:[#allocation2 + $0xd0] sm:$0xff] %v2212
      %2237 = vst [vmem:[#allocation2 + $0xd8] sm:$0xff] %v2063
      %2238 = vst [vmem:[#allocation2 + $0xe0] sm:$0xff] %v2082
      %2239 = vst [vmem:[#allocation2 + $0xe8] sm:$0xff] %v2101
      %2240 = vst [vmem:[#allocation2 + $0xf0] sm:$0xff] %v2120
      %2241 = vst [vmem:[#allocation2 + $0xf8] sm:$0xff] %v2139
      %2242 = vst [vmem:[#allocation2 + $0x100] sm:$0xff] %v2158
      %2243 = vst [vmem:[#allocation2 + $0x108] sm:$0xff] %v2177
      %2244 = vst [vmem:[#allocation2 + $0x110] sm:$0xff] %v2196
      %2245 = vst [vmem:[#allocation2 + $0x118] sm:$0xff] %v2215
      %2246 = vst [vmem:[#allocation2 + $0x120] sm:$0xff] %v2065
      %2247 = vst [vmem:[#allocation2 + $0x128] sm:$0xff] %v2084
      %2248 = vst [vmem:[#allocation2 + $0x130] sm:$0xff] %v2103
      %2249 = vst [vmem:[#allocation2 + $0x138] sm:$0xff] %v2122
      %2250 = vst [vmem:[#allocation2 + $0x140] sm:$0xff] %v2141
      %2251 = vst [vmem:[#allocation2 + $0x148] sm:$0xff] %v2160
      %2252 = vst [vmem:[#allocation2 + $0x150] sm:$0xff] %v2179
      %2253 = vst [vmem:[#allocation2 + $0x158] sm:$0xff] %v2198
      %2254 = vst [vmem:[#allocation2 + $0x160] sm:$0xff] %v2217
      %v2255 = vld [vmem:[#allocation2] sm:$0xfc]
      %v2256 = vld [vmem:[#allocation2 + $0x48] sm:$0xff]
      %v2257 = vld [vmem:[#allocation2 + $0x90] sm:$0xff]
      %v2258 = vld [vmem:[#allocation2 + $0xd8] sm:$0xff]
      %v2259 = vld [vmem:[#allocation2 + $0x120] sm:$0x3]
      %v2260 = vld [vmem:[%s1] sm:$0xff]
      %v2261 = vld [vmem:[%s1 + $0x8] sm:$0xff]
      %v2262 = vld [vmem:[%s1 + $0x10] sm:$0xff]
      %v2263 = vld [vmem:[%s1 + $0x18] sm:$0xff]
      %2265 = vset.pattern.permute.xlu0 0
      %2266 = vperm.xlu0 %2265, %v2260
      %v2267 = vpop.permute.xlu0 %2266
      %2269 = vset.pattern.permute.xlu0 0
      %2270 = vperm.xlu0 %2269, %v2261
      %v2271 = vpop.permute.xlu0 %2270
      %2273 = vset.pattern.permute.xlu0 0
      %2274 = vperm.xlu0 %2273, %v2262
      %v2275 = vpop.permute.xlu0 %2274
      %2277 = vset.pattern.permute.xlu0 0
      %2278 = vperm.xlu0 %2277, %v2263
      %v2279 = vpop.permute.xlu0 %2278
      %v2280 = vrot.slane %v2267, 6
      %v2281 = vrot.slane %v2271, 6
      %v2282 = vsel %vm1017, %v2280, %v2281
      %v2283 = vrot.slane %v2275, 6
      %v2284 = vsel %vm1017, %v2281, %v2283
      %v2285 = vrot.slane %v2279, 6
      %v2286 = vsel %vm1017, %v2283, %v2285
      %v2292 = vmul.f32 %v2255, %v2280
      %v2293 = vmul.f32 %v2256, %v2282
      %v2294 = vmul.f32 %v2257, %v2284
      %v2295 = vmul.f32 %v2258, %v2286
      %v2296 = vmul.f32 %v2259, %v2285
      %v2297 = vadd.f32 %v2292, 0.0
      %v2298 = vadd.f32 %v2293, 0.0
      %v2299 = vadd.f32 %v2294, 0.0
      %v2300 = vadd.f32 %v2295, 0.0
      %v2301 = vadd.f32 %v2296, 0.0
      %v2302 = vld [vmem:[#allocation2 + $0x8] sm:$0xf8]
      %v2303 = vld [vmem:[#allocation2 + $0x50] sm:$0xff]
      %v2304 = vld [vmem:[#allocation2 + $0x98] sm:$0xff]
      %v2305 = vld [vmem:[#allocation2 + $0xe0] sm:$0xff]
      %v2306 = vld [vmem:[#allocation2 + $0x128] sm:$0x7]
      %v2307 = vld [vmem:[%s1 + $0x20] sm:$0xff]
      %v2308 = vld [vmem:[%s1 + $0x28] sm:$0xff]
      %v2309 = vld [vmem:[%s1 + $0x30] sm:$0xff]
      %v2310 = vld [vmem:[%s1 + $0x38] sm:$0xff]
      %2312 = vset.pattern.permute.xlu0 0
      %2313 = vperm.xlu0 %2312, %v2307
      %v2314 = vpop.permute.xlu0 %2313
      %2316 = vset.pattern.permute.xlu0 0
      %2317 = vperm.xlu0 %2316, %v2308
      %v2318 = vpop.permute.xlu0 %2317
      %2320 = vset.pattern.permute.xlu0 0
      %2321 = vperm.xlu0 %2320, %v2309
      %v2322 = vpop.permute.xlu0 %2321
      %2324 = vset.pattern.permute.xlu0 0
      %2325 = vperm.xlu0 %2324, %v2310
      %v2326 = vpop.permute.xlu0 %2325
      %v2327 = vrot.slane %v2314, 5
      %v2328 = vrot.slane %v2318, 5
      %v2329 = vsel %vm1065, %v2327, %v2328
      %v2330 = vrot.slane %v2322, 5
      %v2331 = vsel %vm1065, %v2328, %v2330
      %v2332 = vrot.slane %v2326, 5
      %v2333 = vsel %vm1065, %v2330, %v2332
      %v2339 = vmul.f32 %v2302, %v2327
      %v2340 = vmul.f32 %v2303, %v2329
      %v2341 = vmul.f32 %v2304, %v2331
      %v2342 = vmul.f32 %v2305, %v2333
      %v2343 = vmul.f32 %v2306, %v2332
      %v2349 = vrot.slane %v2339, 1
      %v2350 = vrot.slane %v2340, 1
      %v2351 = vsel %vm1088, %v2349, %v2350
      %v2352 = vrot.slane %v2341, 1
      %v2353 = vsel %vm1088, %v2350, %v2352
      %v2354 = vrot.slane %v2342, 1
      %v2355 = vsel %vm1088, %v2352, %v2354
      %v2356 = vrot.slane %v2343, 1
      %v2357 = vsel %vm1088, %v2354, %v2356
      %v2363 = vadd.f32 %v2297, %v2351
      %v2364 = vadd.f32 %v2298, %v2353
      %v2365 = vadd.f32 %v2299, %v2355
      %v2366 = vadd.f32 %v2300, %v2357
      %v2367 = vadd.f32 %v2301, %v2356
      %v2368 = vld [vmem:[#allocation2 + $0x10] sm:$0xf0]
      %v2369 = vld [vmem:[#allocation2 + $0x58] sm:$0xff]
      %v2370 = vld [vmem:[#allocation2 + $0xa0] sm:$0xff]
      %v2371 = vld [vmem:[#allocation2 + $0xe8] sm:$0xff]
      %v2372 = vld [vmem:[#allocation2 + $0x130] sm:$0xf]
      %v2373 = vld [vmem:[%s1 + $0x40] sm:$0xff]
      %v2374 = vld [vmem:[%s1 + $0x48] sm:$0xff]
      %v2375 = vld [vmem:[%s1 + $0x50] sm:$0xff]
      %v2376 = vld [vmem:[%s1 + $0x58] sm:$0xff]
      %2378 = vset.pattern.permute.xlu0 0
      %2379 = vperm.xlu0 %2378, %v2373
      %v2380 = vpop.permute.xlu0 %2379
      %2382 = vset.pattern.permute.xlu0 0
      %2383 = vperm.xlu0 %2382, %v2374
      %v2384 = vpop.permute.xlu0 %2383
      %2386 = vset.pattern.permute.xlu0 0
      %2387 = vperm.xlu0 %2386, %v2375
      %v2388 = vpop.permute.xlu0 %2387
      %2390 = vset.pattern.permute.xlu0 0
      %2391 = vperm.xlu0 %2390, %v2376
      %v2392 = vpop.permute.xlu0 %2391
      %v2393 = vrot.slane %v2380, 4
      %v2394 = vrot.slane %v2384, 4
      %v2395 = vsel %vm1133, %v2393, %v2394
      %v2396 = vrot.slane %v2388, 4
      %v2397 = vsel %vm1133, %v2394, %v2396
      %v2398 = vrot.slane %v2392, 4
      %v2399 = vsel %vm1133, %v2396, %v2398
      %v2405 = vmul.f32 %v2368, %v2393
      %v2406 = vmul.f32 %v2369, %v2395
      %v2407 = vmul.f32 %v2370, %v2397
      %v2408 = vmul.f32 %v2371, %v2399
      %v2409 = vmul.f32 %v2372, %v2398
      %v2415 = vrot.slane %v2405, 2
      %v2416 = vrot.slane %v2406, 2
      %v2417 = vsel %vm1156, %v2415, %v2416
      %v2418 = vrot.slane %v2407, 2
      %v2419 = vsel %vm1156, %v2416, %v2418
      %v2420 = vrot.slane %v2408, 2
      %v2421 = vsel %vm1156, %v2418, %v2420
      %v2422 = vrot.slane %v2409, 2
      %v2423 = vsel %vm1156, %v2420, %v2422
      %v2429 = vadd.f32 %v2363, %v2417
      %v2430 = vadd.f32 %v2364, %v2419
      %v2431 = vadd.f32 %v2365, %v2421
      %v2432 = vadd.f32 %v2366, %v2423
      %v2433 = vadd.f32 %v2367, %v2422
      %v2434 = vld [vmem:[#allocation2 + $0x18] sm:$0x80]
      %v2435 = vld [vmem:[#allocation2 + $0x60] sm:$0xff]
      %v2436 = vld [vmem:[#allocation2 + $0xa8] sm:$0xff]
      %v2437 = vld [vmem:[#allocation2 + $0xf0] sm:$0xff]
      %v2438 = vld [vmem:[#allocation2 + $0x138] sm:$0x7f]
      %v2439 = vld [vmem:[%s1 + $0x60] sm:$0xff]
      %v2440 = vld [vmem:[%s1 + $0x68] sm:$0xff]
      %v2441 = vld [vmem:[%s1 + $0x70] sm:$0xff]
      %v2442 = vld [vmem:[%s1 + $0x78] sm:$0xff]
      %2444 = vset.pattern.permute.xlu0 0
      %2445 = vperm.xlu0 %2444, %v2439
      %v2446 = vpop.permute.xlu0 %2445
      %2448 = vset.pattern.permute.xlu0 0
      %2449 = vperm.xlu0 %2448, %v2440
      %v2450 = vpop.permute.xlu0 %2449
      %2452 = vset.pattern.permute.xlu0 0
      %2453 = vperm.xlu0 %2452, %v2441
      %v2454 = vpop.permute.xlu0 %2453
      %2456 = vset.pattern.permute.xlu0 0
      %2457 = vperm.xlu0 %2456, %v2442
      %v2458 = vpop.permute.xlu0 %2457
      %v2459 = vrot.slane %v2446, 1
      %v2460 = vrot.slane %v2450, 1
      %v2461 = vsel %vm1088, %v2459, %v2460
      %v2462 = vrot.slane %v2454, 1
      %v2463 = vsel %vm1088, %v2460, %v2462
      %v2464 = vrot.slane %v2458, 1
      %v2465 = vsel %vm1088, %v2462, %v2464
      %v2471 = vmul.f32 %v2434, %v2459
      %v2472 = vmul.f32 %v2435, %v2461
      %v2473 = vmul.f32 %v2436, %v2463
      %v2474 = vmul.f32 %v2437, %v2465
      %v2475 = vmul.f32 %v2438, %v2464
      %v2481 = vrot.slane %v2471, 5
      %v2482 = vrot.slane %v2472, 5
      %v2483 = vsel %vm1065, %v2481, %v2482
      %v2484 = vrot.slane %v2473, 5
      %v2485 = vsel %vm1065, %v2482, %v2484
      %v2486 = vrot.slane %v2474, 5
      %v2487 = vsel %vm1065, %v2484, %v2486
      %v2488 = vrot.slane %v2475, 5
      %v2489 = vsel %vm1065, %v2486, %v2488
      %v2495 = vadd.f32 %v2429, %v2483
      %v2496 = vadd.f32 %v2430, %v2485
      %v2497 = vadd.f32 %v2431, %v2487
      %v2498 = vadd.f32 %v2432, %v2489
      %v2499 = vadd.f32 %v2433, %v2488
      %v2500 = vld [vmem:[#allocation2 + $0x68] sm:$0xff]
      %v2501 = vld [vmem:[#allocation2 + $0xb0] sm:$0xff]
      %v2502 = vld [vmem:[#allocation2 + $0xf8] sm:$0xff]
      %v2503 = vld [vmem:[#allocation2 + $0x140] sm:$0xff]
      %v2504 = vld [vmem:[%s1 + $0x80] sm:$0xff]
      %v2505 = vld [vmem:[%s1 + $0x88] sm:$0xff]
      %v2506 = vld [vmem:[%s1 + $0x90] sm:$0xff]
      %v2507 = vld [vmem:[%s1 + $0x98] sm:$0xff]
      %2509 = vset.pattern.permute.xlu0 0
      %2510 = vperm.xlu0 %2509, %v2504
      %v2511 = vpop.permute.xlu0 %2510
      %2514 = vset.pattern.permute.xlu0 0
      %2515 = vperm.xlu0 %2514, %v2505
      %v2516 = vpop.permute.xlu0 %2515
      %2519 = vset.pattern.permute.xlu0 0
      %2520 = vperm.xlu0 %2519, %v2506
      %v2521 = vpop.permute.xlu0 %2520
      %2524 = vset.pattern.permute.xlu0 0
      %2525 = vperm.xlu0 %2524, %v2507
      %v2526 = vpop.permute.xlu0 %2525
      %v2528 = vmul.f32 %v2500, %v2511
      %v2529 = vmul.f32 %v2501, %v2516
      %v2530 = vmul.f32 %v2502, %v2521
      %v2531 = vmul.f32 %v2503, %v2526
      %v2536 = vrot.slane %v2528, 6
      %v2537 = vrot.slane %v2529, 6
      %v2538 = vsel %vm1017, %v2536, %v2537
      %v2539 = vrot.slane %v2530, 6
      %v2540 = vsel %vm1017, %v2537, %v2539
      %v2541 = vrot.slane %v2531, 6
      %v2542 = vsel %vm1017, %v2539, %v2541
      %v2548 = vadd.f32 %v2495, %v2536
      %v2549 = vadd.f32 %v2496, %v2538
      %v2550 = vadd.f32 %v2497, %v2540
      %v2551 = vadd.f32 %v2498, %v2542
      %v2552 = vadd.f32 %v2499, %v2541
      %v2553 = vld [vmem:[#allocation2 + $0x70] sm:$0xfe]
      %v2554 = vld [vmem:[#allocation2 + $0xb8] sm:$0xff]
      %v2555 = vld [vmem:[#allocation2 + $0x100] sm:$0xff]
      %v2556 = vld [vmem:[#allocation2 + $0x148] sm:$0xff]
      %v2557 = vld [vmem:[#allocation2 + $0x190] sm:$0x1]
      %v2558 = vld [vmem:[%s1 + $0xa0] sm:$0xff]
      %v2559 = vld [vmem:[%s1 + $0xa8] sm:$0xff]
      %v2560 = vld [vmem:[%s1 + $0xb0] sm:$0xff]
      %v2561 = vld [vmem:[%s1 + $0xb8] sm:$0xff]
      %2563 = vset.pattern.permute.xlu0 0
      %2564 = vperm.xlu0 %2563, %v2558
      %v2565 = vpop.permute.xlu0 %2564
      %2567 = vset.pattern.permute.xlu0 0
      %2568 = vperm.xlu0 %2567, %v2559
      %v2569 = vpop.permute.xlu0 %2568
      %2571 = vset.pattern.permute.xlu0 0
      %2572 = vperm.xlu0 %2571, %v2560
      %v2573 = vpop.permute.xlu0 %2572
      %2575 = vset.pattern.permute.xlu0 0
      %2576 = vperm.xlu0 %2575, %v2561
      %v2577 = vpop.permute.xlu0 %2576
      %v2578 = vrot.slane %v2565, 7
      %v2579 = vrot.slane %v2569, 7
      %v2580 = vsel %vm1320, %v2578, %v2579
      %v2581 = vrot.slane %v2573, 7
      %v2582 = vsel %vm1320, %v2579, %v2581
      %v2583 = vrot.slane %v2577, 7
      %v2584 = vsel %vm1320, %v2581, %v2583
      %v2590 = vmul.f32 %v2553, %v2578
      %v2591 = vmul.f32 %v2554, %v2580
      %v2592 = vmul.f32 %v2555, %v2582
      %v2593 = vmul.f32 %v2556, %v2584
      %v2594 = vmul.f32 %v2557, %v2583
      %v2600 = vrot.slane %v2590, 7
      %v2601 = vrot.slane %v2591, 7
      %v2602 = vsel %vm1320, %v2600, %v2601
      %v2603 = vrot.slane %v2592, 7
      %v2604 = vsel %vm1320, %v2601, %v2603
      %v2605 = vrot.slane %v2593, 7
      %v2606 = vsel %vm1320, %v2603, %v2605
      %v2607 = vrot.slane %v2594, 7
      %v2608 = vsel %vm1320, %v2605, %v2607
      %v2614 = vadd.f32 %v2548, %v2600
      %v2615 = vadd.f32 %v2549, %v2602
      %v2616 = vadd.f32 %v2550, %v2604
      %v2617 = vadd.f32 %v2551, %v2606
      %v2618 = vadd.f32 %v2552, %v2608
      %v2619 = vld [vmem:[#allocation2 + $0x78] sm:$0xf0]
      %v2620 = vld [vmem:[#allocation2 + $0xc0] sm:$0xff]
      %v2621 = vld [vmem:[#allocation2 + $0x108] sm:$0xff]
      %v2622 = vld [vmem:[#allocation2 + $0x150] sm:$0xff]
      %v2623 = vld [vmem:[#allocation2 + $0x198] sm:$0xf]
      %v2624 = vld [vmem:[%s1 + $0xc0] sm:$0xff]
      %v2625 = vld [vmem:[%s1 + $0xc8] sm:$0xff]
      %v2626 = vld [vmem:[%s1 + $0xd0] sm:$0xff]
      %v2627 = vld [vmem:[%s1 + $0xd8] sm:$0xff]
      %2629 = vset.pattern.permute.xlu0 0
      %2630 = vperm.xlu0 %2629, %v2624
      %v2631 = vpop.permute.xlu0 %2630
      %2633 = vset.pattern.permute.xlu0 0
      %2634 = vperm.xlu0 %2633, %v2625
      %v2635 = vpop.permute.xlu0 %2634
      %2637 = vset.pattern.permute.xlu0 0
      %2638 = vperm.xlu0 %2637, %v2626
      %v2639 = vpop.permute.xlu0 %2638
      %2641 = vset.pattern.permute.xlu0 0
      %2642 = vperm.xlu0 %2641, %v2627
      %v2643 = vpop.permute.xlu0 %2642
      %v2644 = vrot.slane %v2631, 4
      %v2645 = vrot.slane %v2635, 4
      %v2646 = vsel %vm1133, %v2644, %v2645
      %v2647 = vrot.slane %v2639, 4
      %v2648 = vsel %vm1133, %v2645, %v2647
      %v2649 = vrot.slane %v2643, 4
      %v2650 = vsel %vm1133, %v2647, %v2649
      %v2656 = vmul.f32 %v2619, %v2644
      %v2657 = vmul.f32 %v2620, %v2646
      %v2658 = vmul.f32 %v2621, %v2648
      %v2659 = vmul.f32 %v2622, %v2650
      %v2660 = vmul.f32 %v2623, %v2649
      %v2666 = vrot.slane %v2656, 2
      %v2667 = vrot.slane %v2657, 2
      %v2668 = vsel %vm1156, %v2666, %v2667
      %v2669 = vrot.slane %v2658, 2
      %v2670 = vsel %vm1156, %v2667, %v2669
      %v2671 = vrot.slane %v2659, 2
      %v2672 = vsel %vm1156, %v2669, %v2671
      %v2673 = vrot.slane %v2660, 2
      %v2674 = vsel %vm1156, %v2671, %v2673
      %v2680 = vadd.f32 %v2614, %v2668
      %v2681 = vadd.f32 %v2615, %v2670
      %v2682 = vadd.f32 %v2616, %v2672
      %v2683 = vadd.f32 %v2617, %v2674
      %v2684 = vadd.f32 %v2618, %v2673
      %v2685 = vld [vmem:[#allocation2 + $0x80] sm:$0xe0]
      %v2686 = vld [vmem:[#allocation2 + $0xc8] sm:$0xff]
      %v2687 = vld [vmem:[#allocation2 + $0x110] sm:$0xff]
      %v2688 = vld [vmem:[#allocation2 + $0x158] sm:$0xff]
      %v2689 = vld [vmem:[#allocation2 + $0x1a0] sm:$0x1f]
      %v2690 = vld [vmem:[%s1 + $0xe0] sm:$0xff]
      %v2691 = vld [vmem:[%s1 + $0xe8] sm:$0xff]
      %v2692 = vld [vmem:[%s1 + $0xf0] sm:$0xff]
      %v2693 = vld [vmem:[%s1 + $0xf8] sm:$0xff]
      %2695 = vset.pattern.permute.xlu0 0
      %2696 = vperm.xlu0 %2695, %v2690
      %v2697 = vpop.permute.xlu0 %2696
      %2699 = vset.pattern.permute.xlu0 0
      %2700 = vperm.xlu0 %2699, %v2691
      %v2701 = vpop.permute.xlu0 %2700
      %2703 = vset.pattern.permute.xlu0 0
      %2704 = vperm.xlu0 %2703, %v2692
      %v2705 = vpop.permute.xlu0 %2704
      %2707 = vset.pattern.permute.xlu0 0
      %2708 = vperm.xlu0 %2707, %v2693
      %v2709 = vpop.permute.xlu0 %2708
      %v2710 = vrot.slane %v2697, 3
      %v2711 = vrot.slane %v2701, 3
      %v2712 = vsel %vm1453, %v2710, %v2711
      %v2713 = vrot.slane %v2705, 3
      %v2714 = vsel %vm1453, %v2711, %v2713
      %v2715 = vrot.slane %v2709, 3
      %v2716 = vsel %vm1453, %v2713, %v2715
      %v2722 = vmul.f32 %v2685, %v2710
      %v2723 = vmul.f32 %v2686, %v2712
      %v2724 = vmul.f32 %v2687, %v2714
      %v2725 = vmul.f32 %v2688, %v2716
      %v2726 = vmul.f32 %v2689, %v2715
      %v2732 = vrot.slane %v2722, 3
      %v2733 = vrot.slane %v2723, 3
      %v2734 = vsel %vm1453, %v2732, %v2733
      %v2735 = vrot.slane %v2724, 3
      %v2736 = vsel %vm1453, %v2733, %v2735
      %v2737 = vrot.slane %v2725, 3
      %v2738 = vsel %vm1453, %v2735, %v2737
      %v2739 = vrot.slane %v2726, 3
      %v2740 = vsel %vm1453, %v2737, %v2739
      %v2746 = vadd.f32 %v2680, %v2734
      %v2747 = vadd.f32 %v2681, %v2736
      %v2748 = vadd.f32 %v2682, %v2738
      %v2749 = vadd.f32 %v2683, %v2740
      %v2750 = vadd.f32 %v2684, %v2739
      %v2751 = vld [vmem:[#allocation2 + $0x88] sm:$0xc0]
      %v2752 = vld [vmem:[#allocation2 + $0xd0] sm:$0xff]
      %v2753 = vld [vmem:[#allocation2 + $0x118] sm:$0xff]
      %v2754 = vld [vmem:[#allocation2 + $0x160] sm:$0xff]
      %v2755 = vld [vmem:[#allocation2 + $0x1a8] sm:$0x3f]
      %v2756 = vld [vmem:[%s1 + $0x100] sm:$0xff]
      %v2757 = vld [vmem:[%s1 + $0x108] sm:$0xff]
      %v2758 = vld [vmem:[%s1 + $0x110] sm:$0xff]
      %v2759 = vld [vmem:[%s1 + $0x118] sm:$0xff]
      %2761 = vset.pattern.permute.xlu0 0
      %2762 = vperm.xlu0 %2761, %v2756
      %v2763 = vpop.permute.xlu0 %2762
      %2765 = vset.pattern.permute.xlu0 0
      %2766 = vperm.xlu0 %2765, %v2757
      %v2767 = vpop.permute.xlu0 %2766
      %2769 = vset.pattern.permute.xlu0 0
      %2770 = vperm.xlu0 %2769, %v2758
      %v2771 = vpop.permute.xlu0 %2770
      %2773 = vset.pattern.permute.xlu0 0
      %2774 = vperm.xlu0 %2773, %v2759
      %v2775 = vpop.permute.xlu0 %2774
      %v2776 = vrot.slane %v2763, 2
      %v2777 = vrot.slane %v2767, 2
      %v2778 = vsel %vm1156, %v2776, %v2777
      %v2779 = vrot.slane %v2771, 2
      %v2780 = vsel %vm1156, %v2777, %v2779
      %v2781 = vrot.slane %v2775, 2
      %v2782 = vsel %vm1156, %v2779, %v2781
      %v2788 = vmul.f32 %v2751, %v2776
      %v2789 = vmul.f32 %v2752, %v2778
      %v2790 = vmul.f32 %v2753, %v2780
      %v2791 = vmul.f32 %v2754, %v2782
      %v2792 = vmul.f32 %v2755, %v2781
      %v2798 = vrot.slane %v2788, 4
      %v2799 = vrot.slane %v2789, 4
      %v2800 = vsel %vm1133, %v2798, %v2799
      %v2801 = vrot.slane %v2790, 4
      %v2802 = vsel %vm1133, %v2799, %v2801
      %v2803 = vrot.slane %v2791, 4
      %v2804 = vsel %vm1133, %v2801, %v2803
      %v2805 = vrot.slane %v2792, 4
      %v2806 = vsel %vm1133, %v2803, %v2805
      %v2812 = vadd.f32 %v2746, %v2800
      %v2813 = vadd.f32 %v2747, %v2802
      %v2814 = vadd.f32 %v2748, %v2804
      %v2815 = vadd.f32 %v2749, %v2806
      %v2816 = vadd.f32 %v2750, %v2805
      %s2817 = scalar_lea.vmem %s3, 1
      %v2818 = vld [vmem:[%s2817] sm:$0x1]
      %v2820 = vperm.slane %v2818, 0
      %v2822 = vadd.f32 %v2812, %v2820
      %v2823 = vadd.f32 %v2813, %v2820
      %v2824 = vadd.f32 %v2814, %v2820
      %v2825 = vadd.f32 %v2815, %v2820
      %v2826 = vadd.f32 %v2816, %v2820
      %v2831 = vrot.slane %v331, 6
      %v2832 = vrot.slane %v332, 6
      %v2833 = vsel %vm1017, %v2831, %v2832
      %v2834 = vrot.slane %v333, 6
      %v2835 = vsel %vm1017, %v2832, %v2834
      %v2836 = vrot.slane %v334, 6
      %v2837 = vsel %vm1017, %v2834, %v2836
      %v2843 = vadd.f32 %v2822, %v2831
      %v2844 = vadd.f32 %v2823, %v2833
      %v2845 = vadd.f32 %v2824, %v2835
      %v2846 = vadd.f32 %v2825, %v2837
      %v2847 = vadd.f32 %v2826, %v2836
      %v2848 = vpack.c.bf16 %v2844, %v2843
      %v2849 = vpack.c.bf16 %v2846, %v2845
      %v2850 = vpack.c.bf16 %v2847, %v2847
      %s2851 = scalar_lea.vmem %s2, 1152
      %v2852 = vld [vmem:[%s2851] sm:$0xff]
      %v2853 = vld [vmem:[%s2851 + $0x8] sm:$0xff]
      %v2854 = vld [vmem:[%s2851 + $0x10] sm:$0xff]
      %v2855 = vld [vmem:[%s2851 + $0x18] sm:$0xff]
      %v2856 = vld [vmem:[%s2851 + $0x20] sm:$0xf]
      %v2857 = vld [vmem:[%s2851 + $0x24] sm:$0xff]
      %v2858 = vld [vmem:[%s2851 + $0x2c] sm:$0xff]
      %v2859 = vld [vmem:[%s2851 + $0x34] sm:$0xff]
      %v2860 = vld [vmem:[%s2851 + $0x3c] sm:$0xff]
      %v2861 = vld [vmem:[%s2851 + $0x44] sm:$0xf]
      %v2862 = vld [vmem:[%s2851 + $0x48] sm:$0xff]
      %v2863 = vld [vmem:[%s2851 + $0x50] sm:$0xff]
      %v2864 = vld [vmem:[%s2851 + $0x58] sm:$0xff]
      %v2865 = vld [vmem:[%s2851 + $0x60] sm:$0xff]
      %v2866 = vld [vmem:[%s2851 + $0x68] sm:$0xf]
      %v2867 = vld [vmem:[%s2851 + $0x6c] sm:$0xff]
      %v2868 = vld [vmem:[%s2851 + $0x74] sm:$0xff]
      %v2869 = vld [vmem:[%s2851 + $0x7c] sm:$0xff]
      %v2870 = vld [vmem:[%s2851 + $0x84] sm:$0xff]
      %v2871 = vld [vmem:[%s2851 + $0x8c] sm:$0xf]
      %v2872 = vld [vmem:[%s2851 + $0x90] sm:$0xff]
      %v2873 = vld [vmem:[%s2851 + $0x98] sm:$0xff]
      %v2874 = vld [vmem:[%s2851 + $0xa0] sm:$0xff]
      %v2875 = vld [vmem:[%s2851 + $0xa8] sm:$0xff]
      %v2876 = vld [vmem:[%s2851 + $0xb0] sm:$0xf]
      %v2877 = vld [vmem:[%s2851 + $0xb4] sm:$0xff]
      %v2878 = vld [vmem:[%s2851 + $0xbc] sm:$0xff]
      %v2879 = vld [vmem:[%s2851 + $0xc4] sm:$0xff]
      %v2880 = vld [vmem:[%s2851 + $0xcc] sm:$0xff]
      %v2881 = vld [vmem:[%s2851 + $0xd4] sm:$0xf]
      %v2882 = vld [vmem:[%s2851 + $0xd8] sm:$0xff]
      %v2883 = vld [vmem:[%s2851 + $0xe0] sm:$0xff]
      %v2884 = vld [vmem:[%s2851 + $0xe8] sm:$0xff]
      %v2885 = vld [vmem:[%s2851 + $0xf0] sm:$0xff]
      %v2886 = vld [vmem:[%s2851 + $0xf8] sm:$0xf]
      %v2887 = vld [vmem:[%s2851 + $0xfc] sm:$0xff]
      %v2888 = vld [vmem:[%s2851 + $0x104] sm:$0xff]
      %v2889 = vld [vmem:[%s2851 + $0x10c] sm:$0xff]
      %v2890 = vld [vmem:[%s2851 + $0x114] sm:$0xff]
      %v2891 = vld [vmem:[%s2851 + $0x11c] sm:$0xf]
      %v2892 = vld [vmem:[%s2851 + $0x120] sm:$0xff]
      %v2893 = vld [vmem:[%s2851 + $0x128] sm:$0xff]
      %v2894 = vld [vmem:[%s2851 + $0x130] sm:$0xff]
      %v2895 = vld [vmem:[%s2851 + $0x138] sm:$0xff]
      %v2896 = vld [vmem:[%s2851 + $0x140] sm:$0xf]
      %v2897 = vld [vmem:[%s2851 + $0x144] sm:$0xff]
      %v2898 = vld [vmem:[%s2851 + $0x14c] sm:$0xff]
      %v2899 = vld [vmem:[%s2851 + $0x154] sm:$0xff]
      %v2900 = vld [vmem:[%s2851 + $0x15c] sm:$0xff]
      %v2901 = vld [vmem:[%s2851 + $0x164] sm:$0xf]
      %v2902 = vld [vmem:[%s2851 + $0x168] sm:$0xff]
      %v2903 = vld [vmem:[%s2851 + $0x170] sm:$0xff]
      %v2904 = vld [vmem:[%s2851 + $0x178] sm:$0xff]
      %v2905 = vld [vmem:[%s2851 + $0x180] sm:$0xff]
      %v2906 = vld [vmem:[%s2851 + $0x188] sm:$0xf]
      %v2907 = vld [vmem:[%s2851 + $0x18c] sm:$0xff]
      %v2908 = vld [vmem:[%s2851 + $0x194] sm:$0xff]
      %v2909 = vld [vmem:[%s2851 + $0x19c] sm:$0xff]
      %v2910 = vld [vmem:[%s2851 + $0x1a4] sm:$0xff]
      %v2911 = vld [vmem:[%s2851 + $0x1ac] sm:$0xf]
      %v2912 = vld [vmem:[%s2851 + $0x1b0] sm:$0xff]
      %v2913 = vld [vmem:[%s2851 + $0x1b8] sm:$0xff]
      %v2914 = vld [vmem:[%s2851 + $0x1c0] sm:$0xff]
      %v2915 = vld [vmem:[%s2851 + $0x1c8] sm:$0xff]
      %v2916 = vld [vmem:[%s2851 + $0x1d0] sm:$0xf]
      %v2917 = vld [vmem:[%s2851 + $0x1d4] sm:$0xff]
      %v2918 = vld [vmem:[%s2851 + $0x1dc] sm:$0xff]
      %v2919 = vld [vmem:[%s2851 + $0x1e4] sm:$0xff]
      %v2920 = vld [vmem:[%s2851 + $0x1ec] sm:$0xff]
      %v2921 = vld [vmem:[%s2851 + $0x1f4] sm:$0xf]
      %v2922 = vld [vmem:[%s2851 + $0x1f8] sm:$0xff]
      %v2923 = vld [vmem:[%s2851 + $0x200] sm:$0xff]
      %v2924 = vld [vmem:[%s2851 + $0x208] sm:$0xff]
      %v2925 = vld [vmem:[%s2851 + $0x210] sm:$0xff]
      %v2926 = vld [vmem:[%s2851 + $0x218] sm:$0xf]
      %v2927 = vld [vmem:[%s2851 + $0x21c] sm:$0xff]
      %v2928 = vld [vmem:[%s2851 + $0x224] sm:$0xff]
      %v2929 = vld [vmem:[%s2851 + $0x22c] sm:$0xff]
      %v2930 = vld [vmem:[%s2851 + $0x234] sm:$0xff]
      %v2931 = vld [vmem:[%s2851 + $0x23c] sm:$0xf]
      %v2935 = vrot.slane %v2848, 1
      %v2936 = vrot.slane %v2849, 1
      %v2937 = vsel %vm1672, %v2935, %v2936
      %v2938 = vrot.slane %v2850, 1
      %v2939 = vsel %vm1672, %v2936, %v2938
      %v3022 = vunpack.c.l.b16 %v2852
      %v3023 = vunpack.c.h.b16 %v2852
      %v3024 = vunpack.c.l.b16 %v2853
      %v3025 = vunpack.c.h.b16 %v2853
      %v3026 = vunpack.c.l.b16 %v2854
      %v3027 = vunpack.c.h.b16 %v2854
      %v3028 = vunpack.c.l.b16 %v2855
      %v3029 = vunpack.c.h.b16 %v2855
      %v3030 = vunpack.c.l.b16 %v2856
      %v3031 = vunpack.c.l.b16 %v2857
      %v3032 = vunpack.c.h.b16 %v2857
      %v3033 = vunpack.c.l.b16 %v2858
      %v3034 = vunpack.c.h.b16 %v2858
      %v3035 = vunpack.c.l.b16 %v2859
      %v3036 = vunpack.c.h.b16 %v2859
      %v3037 = vunpack.c.l.b16 %v2860
      %v3038 = vunpack.c.h.b16 %v2860
      %v3039 = vunpack.c.l.b16 %v2861
      %v3040 = vunpack.c.l.b16 %v2862
      %v3041 = vunpack.c.h.b16 %v2862
      %v3042 = vunpack.c.l.b16 %v2863
      %v3043 = vunpack.c.h.b16 %v2863
      %v3044 = vunpack.c.l.b16 %v2864
      %v3045 = vunpack.c.h.b16 %v2864
      %v3046 = vunpack.c.l.b16 %v2865
      %v3047 = vunpack.c.h.b16 %v2865
      %v3048 = vunpack.c.l.b16 %v2866
      %v3049 = vunpack.c.l.b16 %v2867
      %v3050 = vunpack.c.h.b16 %v2867
      %v3051 = vunpack.c.l.b16 %v2868
      %v3052 = vunpack.c.h.b16 %v2868
      %v3053 = vunpack.c.l.b16 %v2869
      %v3054 = vunpack.c.h.b16 %v2869
      %v3055 = vunpack.c.l.b16 %v2870
      %v3056 = vunpack.c.h.b16 %v2870
      %v3057 = vunpack.c.l.b16 %v2871
      %v3058 = vunpack.c.l.b16 %v2872
      %v3059 = vunpack.c.h.b16 %v2872
      %v3060 = vunpack.c.l.b16 %v2873
      %v3061 = vunpack.c.h.b16 %v2873
      %v3062 = vunpack.c.l.b16 %v2874
      %v3063 = vunpack.c.h.b16 %v2874
      %v3064 = vunpack.c.l.b16 %v2875
      %v3065 = vunpack.c.h.b16 %v2875
      %v3066 = vunpack.c.l.b16 %v2876
      %v3067 = vunpack.c.l.b16 %v2877
      %v3068 = vunpack.c.h.b16 %v2877
      %v3069 = vunpack.c.l.b16 %v2878
      %v3070 = vunpack.c.h.b16 %v2878
      %v3071 = vunpack.c.l.b16 %v2879
      %v3072 = vunpack.c.h.b16 %v2879
      %v3073 = vunpack.c.l.b16 %v2880
      %v3074 = vunpack.c.h.b16 %v2880
      %v3075 = vunpack.c.l.b16 %v2881
      %v3076 = vunpack.c.l.b16 %v2882
      %v3077 = vunpack.c.h.b16 %v2882
      %v3078 = vunpack.c.l.b16 %v2883
      %v3079 = vunpack.c.h.b16 %v2883
      %v3080 = vunpack.c.l.b16 %v2884
      %v3081 = vunpack.c.h.b16 %v2884
      %v3082 = vunpack.c.l.b16 %v2885
      %v3083 = vunpack.c.h.b16 %v2885
      %v3084 = vunpack.c.l.b16 %v2886
      %v3085 = vunpack.c.l.b16 %v2887
      %v3086 = vunpack.c.h.b16 %v2887
      %v3087 = vunpack.c.l.b16 %v2888
      %v3088 = vunpack.c.h.b16 %v2888
      %v3089 = vunpack.c.l.b16 %v2889
      %v3090 = vunpack.c.h.b16 %v2889
      %v3091 = vunpack.c.l.b16 %v2890
      %v3092 = vunpack.c.h.b16 %v2890
      %v3093 = vunpack.c.l.b16 %v2891
      %v3094 = vunpack.c.l.b16 %v2892
      %v3095 = vunpack.c.h.b16 %v2892
      %v3096 = vunpack.c.l.b16 %v2893
      %v3097 = vunpack.c.h.b16 %v2893
      %v3098 = vunpack.c.l.b16 %v2894
      %v3099 = vunpack.c.h.b16 %v2894
      %v3100 = vunpack.c.l.b16 %v2895
      %v3101 = vunpack.c.h.b16 %v2895
      %v3102 = vunpack.c.l.b16 %v2896
      %v3103 = vunpack.c.l.b16 %v2897
      %v3104 = vunpack.c.h.b16 %v2897
      %v3105 = vunpack.c.l.b16 %v2898
      %v3106 = vunpack.c.h.b16 %v2898
      %v3107 = vunpack.c.l.b16 %v2899
      %v3108 = vunpack.c.h.b16 %v2899
      %v3109 = vunpack.c.l.b16 %v2900
      %v3110 = vunpack.c.h.b16 %v2900
      %v3111 = vunpack.c.l.b16 %v2901
      %v3112 = vunpack.c.l.b16 %v2902
      %v3113 = vunpack.c.h.b16 %v2902
      %v3114 = vunpack.c.l.b16 %v2903
      %v3115 = vunpack.c.h.b16 %v2903
      %v3116 = vunpack.c.l.b16 %v2904
      %v3117 = vunpack.c.h.b16 %v2904
      %v3118 = vunpack.c.l.b16 %v2905
      %v3119 = vunpack.c.h.b16 %v2905
      %v3120 = vunpack.c.l.b16 %v2906
      %v3121 = vunpack.c.l.b16 %v2907
      %v3122 = vunpack.c.h.b16 %v2907
      %v3123 = vunpack.c.l.b16 %v2908
      %v3124 = vunpack.c.h.b16 %v2908
      %v3125 = vunpack.c.l.b16 %v2909
      %v3126 = vunpack.c.h.b16 %v2909
      %v3127 = vunpack.c.l.b16 %v2910
      %v3128 = vunpack.c.h.b16 %v2910
      %v3129 = vunpack.c.l.b16 %v2911
      %v3130 = vunpack.c.l.b16 %v2912
      %v3131 = vunpack.c.h.b16 %v2912
      %v3132 = vunpack.c.l.b16 %v2913
      %v3133 = vunpack.c.h.b16 %v2913
      %v3134 = vunpack.c.l.b16 %v2914
      %v3135 = vunpack.c.h.b16 %v2914
      %v3136 = vunpack.c.l.b16 %v2915
      %v3137 = vunpack.c.h.b16 %v2915
      %v3138 = vunpack.c.l.b16 %v2916
      %v3139 = vunpack.c.l.b16 %v2917
      %v3140 = vunpack.c.h.b16 %v2917
      %v3141 = vunpack.c.l.b16 %v2918
      %v3142 = vunpack.c.h.b16 %v2918
      %v3143 = vunpack.c.l.b16 %v2919
      %v3144 = vunpack.c.h.b16 %v2919
      %v3145 = vunpack.c.l.b16 %v2920
      %v3146 = vunpack.c.h.b16 %v2920
      %v3147 = vunpack.c.l.b16 %v2921
      %v3148 = vunpack.c.l.b16 %v2922
      %v3149 = vunpack.c.h.b16 %v2922
      %v3150 = vunpack.c.l.b16 %v2923
      %v3151 = vunpack.c.h.b16 %v2923
      %v3152 = vunpack.c.l.b16 %v2924
      %v3153 = vunpack.c.h.b16 %v2924
      %v3154 = vunpack.c.l.b16 %v2925
      %v3155 = vunpack.c.h.b16 %v2925
      %v3156 = vunpack.c.l.b16 %v2926
      %v3157 = vunpack.c.l.b16 %v2927
      %v3158 = vunpack.c.h.b16 %v2927
      %v3159 = vunpack.c.l.b16 %v2928
      %v3160 = vunpack.c.h.b16 %v2928
      %v3161 = vunpack.c.l.b16 %v2929
      %v3162 = vunpack.c.h.b16 %v2929
      %v3163 = vunpack.c.l.b16 %v2930
      %v3164 = vunpack.c.h.b16 %v2930
      %v3165 = vunpack.c.l.b16 %v2931
      %v3166 = vpack.c.b16 %v3031, %v3022
      %v3167 = vpack.c.b16 %v3032, %v3023
      %v3168 = vpack.c.b16 %v3033, %v3024
      %v3169 = vpack.c.b16 %v3034, %v3025
      %v3170 = vpack.c.b16 %v3035, %v3026
      %v3171 = vpack.c.b16 %v3036, %v3027
      %v3172 = vpack.c.b16 %v3037, %v3028
      %v3173 = vpack.c.b16 %v3038, %v3029
      %v3174 = vpack.c.b16 %v3039, %v3030
      %v3175 = vpack.c.b16 %v3049, %v3040
      %v3176 = vpack.c.b16 %v3050, %v3041
      %v3177 = vpack.c.b16 %v3051, %v3042
      %v3178 = vpack.c.b16 %v3052, %v3043
      %v3179 = vpack.c.b16 %v3053, %v3044
      %v3180 = vpack.c.b16 %v3054, %v3045
      %v3181 = vpack.c.b16 %v3055, %v3046
      %v3182 = vpack.c.b16 %v3056, %v3047
      %v3183 = vpack.c.b16 %v3057, %v3048
      %v3184 = vpack.c.b16 %v3067, %v3058
      %v3185 = vpack.c.b16 %v3068, %v3059
      %v3186 = vpack.c.b16 %v3069, %v3060
      %v3187 = vpack.c.b16 %v3070, %v3061
      %v3188 = vpack.c.b16 %v3071, %v3062
      %v3189 = vpack.c.b16 %v3072, %v3063
      %v3190 = vpack.c.b16 %v3073, %v3064
      %v3191 = vpack.c.b16 %v3074, %v3065
      %v3192 = vpack.c.b16 %v3075, %v3066
      %v3193 = vpack.c.b16 %v3085, %v3076
      %v3194 = vpack.c.b16 %v3086, %v3077
      %v3195 = vpack.c.b16 %v3087, %v3078
      %v3196 = vpack.c.b16 %v3088, %v3079
      %v3197 = vpack.c.b16 %v3089, %v3080
      %v3198 = vpack.c.b16 %v3090, %v3081
      %v3199 = vpack.c.b16 %v3091, %v3082
      %v3200 = vpack.c.b16 %v3092, %v3083
      %v3201 = vpack.c.b16 %v3093, %v3084
      %v3202 = vpack.c.b16 %v3103, %v3094
      %v3203 = vpack.c.b16 %v3104, %v3095
      %v3204 = vpack.c.b16 %v3105, %v3096
      %v3205 = vpack.c.b16 %v3106, %v3097
      %v3206 = vpack.c.b16 %v3107, %v3098
      %v3207 = vpack.c.b16 %v3108, %v3099
      %v3208 = vpack.c.b16 %v3109, %v3100
      %v3209 = vpack.c.b16 %v3110, %v3101
      %v3210 = vpack.c.b16 %v3111, %v3102
      %v3211 = vpack.c.b16 %v3121, %v3112
      %v3212 = vpack.c.b16 %v3122, %v3113
      %v3213 = vpack.c.b16 %v3123, %v3114
      %v3214 = vpack.c.b16 %v3124, %v3115
      %v3215 = vpack.c.b16 %v3125, %v3116
      %v3216 = vpack.c.b16 %v3126, %v3117
      %v3217 = vpack.c.b16 %v3127, %v3118
      %v3218 = vpack.c.b16 %v3128, %v3119
      %v3219 = vpack.c.b16 %v3129, %v3120
      %v3220 = vpack.c.b16 %v3139, %v3130
      %v3221 = vpack.c.b16 %v3140, %v3131
      %v3222 = vpack.c.b16 %v3141, %v3132
      %v3223 = vpack.c.b16 %v3142, %v3133
      %v3224 = vpack.c.b16 %v3143, %v3134
      %v3225 = vpack.c.b16 %v3144, %v3135
      %v3226 = vpack.c.b16 %v3145, %v3136
      %v3227 = vpack.c.b16 %v3146, %v3137
      %v3228 = vpack.c.b16 %v3147, %v3138
      %v3229 = vpack.c.b16 %v3157, %v3148
      %v3230 = vpack.c.b16 %v3158, %v3149
      %v3231 = vpack.c.b16 %v3159, %v3150
      %v3232 = vpack.c.b16 %v3160, %v3151
      %v3233 = vpack.c.b16 %v3161, %v3152
      %v3234 = vpack.c.b16 %v3162, %v3153
      %v3235 = vpack.c.b16 %v3163, %v3154
      %v3236 = vpack.c.b16 %v3164, %v3155
      %v3237 = vpack.c.b16 %v3165, %v3156
      %3310 = vmatpush.bf16.msra.mxu0 %v3229
      %3311 = vmatpush.bf16.msra.mxu0 %v3220
      %3312 = vmatpush.bf16.msra.mxu0 %v3211
      %3313 = vmatpush.bf16.msra.mxu0 %v3202
      %3314 = vmatpush.bf16.msra.mxu0 %v3193
      %3315 = vmatpush.bf16.msra.mxu0 %v3184
      %3316 = vmatpush.bf16.msra.mxu0 %v3175
      %3317 = vmatpush.bf16.msra.mxu0 %v3166
      %3318 = vmatmul.bf16.gmra.mxu0 %v2937
      %v3319 = vpop.f32.mrf.mxu0
      %v3320 = vadd.f32 0.0, %v3319
      %v3321 = vpop.f32.mrf.mxu0
      %v3322 = vadd.f32 0.0, %v3321
      %3323 = vmatmul.bf16.gmra.mxu0 %v2939
      %v3324 = vpop.f32.mrf.mxu0
      %v3325 = vadd.f32 0.0, %v3324
      %v3326 = vpop.f32.mrf.mxu0
      %v3327 = vadd.f32 0.0, %v3326
      %3328 = vdwg.mxu0
      %3329 = vmatpush.bf16.msra.mxu0 %v3230
      %3330 = vmatpush.bf16.msra.mxu0 %v3221
      %3331 = vmatpush.bf16.msra.mxu0 %v3212
      %3332 = vmatpush.bf16.msra.mxu0 %v3203
      %3333 = vmatpush.bf16.msra.mxu0 %v3194
      %3334 = vmatpush.bf16.msra.mxu0 %v3185
      %3335 = vmatpush.bf16.msra.mxu0 %v3176
      %3336 = vmatpush.bf16.msra.mxu0 %v3167
      %3337 = vmatmul.bf16.gmra.mxu0 %v2937
      %v3338 = vpop.f32.mrf.mxu0
      %v3339 = vadd.f32 0.0, %v3338
      %v3340 = vpop.f32.mrf.mxu0
      %v3341 = vadd.f32 0.0, %v3340
      %3342 = vmatmul.bf16.gmra.mxu0 %v2939
      %v3343 = vpop.f32.mrf.mxu0
      %v3344 = vadd.f32 0.0, %v3343
      %v3345 = vpop.f32.mrf.mxu0
      %v3346 = vadd.f32 0.0, %v3345
      %3347 = vdwg.mxu0
      %3348 = vmatpush.bf16.msra.mxu0 %v3231
      %3349 = vmatpush.bf16.msra.mxu0 %v3222
      %3350 = vmatpush.bf16.msra.mxu0 %v3213
      %3351 = vmatpush.bf16.msra.mxu0 %v3204
      %3352 = vmatpush.bf16.msra.mxu0 %v3195
      %3353 = vmatpush.bf16.msra.mxu0 %v3186
      %3354 = vmatpush.bf16.msra.mxu0 %v3177
      %3355 = vmatpush.bf16.msra.mxu0 %v3168
      %3356 = vmatmul.bf16.gmra.mxu0 %v2937
      %v3357 = vpop.f32.mrf.mxu0
      %v3358 = vadd.f32 0.0, %v3357
      %v3359 = vpop.f32.mrf.mxu0
      %v3360 = vadd.f32 0.0, %v3359
      %3361 = vmatmul.bf16.gmra.mxu0 %v2939
      %v3362 = vpop.f32.mrf.mxu0
      %v3363 = vadd.f32 0.0, %v3362
      %v3364 = vpop.f32.mrf.mxu0
      %v3365 = vadd.f32 0.0, %v3364
      %3366 = vdwg.mxu0
      %3367 = vmatpush.bf16.msra.mxu0 %v3232
      %3368 = vmatpush.bf16.msra.mxu0 %v3223
      %3369 = vmatpush.bf16.msra.mxu0 %v3214
      %3370 = vmatpush.bf16.msra.mxu0 %v3205
      %3371 = vmatpush.bf16.msra.mxu0 %v3196
      %3372 = vmatpush.bf16.msra.mxu0 %v3187
      %3373 = vmatpush.bf16.msra.mxu0 %v3178
      %3374 = vmatpush.bf16.msra.mxu0 %v3169
      %3375 = vmatmul.bf16.gmra.mxu0 %v2937
      %v3376 = vpop.f32.mrf.mxu0
      %v3377 = vadd.f32 0.0, %v3376
      %v3378 = vpop.f32.mrf.mxu0
      %v3379 = vadd.f32 0.0, %v3378
      %3380 = vmatmul.bf16.gmra.mxu0 %v2939
      %v3381 = vpop.f32.mrf.mxu0
      %v3382 = vadd.f32 0.0, %v3381
      %v3383 = vpop.f32.mrf.mxu0
      %v3384 = vadd.f32 0.0, %v3383
      %3385 = vdwg.mxu0
      %3386 = vmatpush.bf16.msra.mxu0 %v3233
      %3387 = vmatpush.bf16.msra.mxu0 %v3224
      %3388 = vmatpush.bf16.msra.mxu0 %v3215
      %3389 = vmatpush.bf16.msra.mxu0 %v3206
      %3390 = vmatpush.bf16.msra.mxu0 %v3197
      %3391 = vmatpush.bf16.msra.mxu0 %v3188
      %3392 = vmatpush.bf16.msra.mxu0 %v3179
      %3393 = vmatpush.bf16.msra.mxu0 %v3170
      %3394 = vmatmul.bf16.gmra.mxu0 %v2937
      %v3395 = vpop.f32.mrf.mxu0
      %v3396 = vadd.f32 0.0, %v3395
      %v3397 = vpop.f32.mrf.mxu0
      %v3398 = vadd.f32 0.0, %v3397
      %3399 = vmatmul.bf16.gmra.mxu0 %v2939
      %v3400 = vpop.f32.mrf.mxu0
      %v3401 = vadd.f32 0.0, %v3400
      %v3402 = vpop.f32.mrf.mxu0
      %v3403 = vadd.f32 0.0, %v3402
      %3404 = vdwg.mxu0
      %3405 = vmatpush.bf16.msra.mxu0 %v3234
      %3406 = vmatpush.bf16.msra.mxu0 %v3225
      %3407 = vmatpush.bf16.msra.mxu0 %v3216
      %3408 = vmatpush.bf16.msra.mxu0 %v3207
      %3409 = vmatpush.bf16.msra.mxu0 %v3198
      %3410 = vmatpush.bf16.msra.mxu0 %v3189
      %3411 = vmatpush.bf16.msra.mxu0 %v3180
      %3412 = vmatpush.bf16.msra.mxu0 %v3171
      %3413 = vmatmul.bf16.gmra.mxu0 %v2937
      %v3414 = vpop.f32.mrf.mxu0
      %v3415 = vadd.f32 0.0, %v3414
      %v3416 = vpop.f32.mrf.mxu0
      %v3417 = vadd.f32 0.0, %v3416
      %3418 = vmatmul.bf16.gmra.mxu0 %v2939
      %v3419 = vpop.f32.mrf.mxu0
      %v3420 = vadd.f32 0.0, %v3419
      %v3421 = vpop.f32.mrf.mxu0
      %v3422 = vadd.f32 0.0, %v3421
      %3423 = vdwg.mxu0
      %3424 = vmatpush.bf16.msra.mxu0 %v3235
      %3425 = vmatpush.bf16.msra.mxu0 %v3226
      %3426 = vmatpush.bf16.msra.mxu0 %v3217
      %3427 = vmatpush.bf16.msra.mxu0 %v3208
      %3428 = vmatpush.bf16.msra.mxu0 %v3199
      %3429 = vmatpush.bf16.msra.mxu0 %v3190
      %3430 = vmatpush.bf16.msra.mxu0 %v3181
      %3431 = vmatpush.bf16.msra.mxu0 %v3172
      %3432 = vmatmul.bf16.gmra.mxu0 %v2937
      %v3433 = vpop.f32.mrf.mxu0
      %v3434 = vadd.f32 0.0, %v3433
      %v3435 = vpop.f32.mrf.mxu0
      %v3436 = vadd.f32 0.0, %v3435
      %3437 = vmatmul.bf16.gmra.mxu0 %v2939
      %v3438 = vpop.f32.mrf.mxu0
      %v3439 = vadd.f32 0.0, %v3438
      %v3440 = vpop.f32.mrf.mxu0
      %v3441 = vadd.f32 0.0, %v3440
      %3442 = vdwg.mxu0
      %3443 = vmatpush.bf16.msra.mxu0 %v3236
      %3444 = vmatpush.bf16.msra.mxu0 %v3227
      %3445 = vmatpush.bf16.msra.mxu0 %v3218
      %3446 = vmatpush.bf16.msra.mxu0 %v3209
      %3447 = vmatpush.bf16.msra.mxu0 %v3200
      %3448 = vmatpush.bf16.msra.mxu0 %v3191
      %3449 = vmatpush.bf16.msra.mxu0 %v3182
      %3450 = vmatpush.bf16.msra.mxu0 %v3173
      %3451 = vmatmul.bf16.gmra.mxu0 %v2937
      %v3452 = vpop.f32.mrf.mxu0
      %v3453 = vadd.f32 0.0, %v3452
      %v3454 = vpop.f32.mrf.mxu0
      %v3455 = vadd.f32 0.0, %v3454
      %3456 = vmatmul.bf16.gmra.mxu0 %v2939
      %v3457 = vpop.f32.mrf.mxu0
      %v3458 = vadd.f32 0.0, %v3457
      %v3459 = vpop.f32.mrf.mxu0
      %v3460 = vadd.f32 0.0, %v3459
      %3461 = vdwg.mxu0
      %3462 = vmatpush.bf16.msra.mxu0 %v3237
      %3463 = vmatpush.bf16.msra.mxu0 %v3228
      %3464 = vmatpush.bf16.msra.mxu0 %v3219
      %3465 = vmatpush.bf16.msra.mxu0 %v3210
      %3466 = vmatpush.bf16.msra.mxu0 %v3201
      %3467 = vmatpush.bf16.msra.mxu0 %v3192
      %3468 = vmatpush.bf16.msra.mxu0 %v3183
      %3469 = vmatpush.bf16.msra.mxu0 %v3174
      %3470 = vmatmul.bf16.gmra.mxu0 %v2937
      %v3471 = vpop.f32.mrf.mxu0
      %v3472 = vadd.f32 0.0, %v3471
      %v3473 = vpop.f32.mrf.mxu0
      %v3474 = vadd.f32 0.0, %v3473
      %3475 = vmatmul.bf16.gmra.mxu0 %v2939
      %v3476 = vpop.f32.mrf.mxu0
      %v3477 = vadd.f32 0.0, %v3476
      %v3478 = vpop.f32.mrf.mxu0
      %v3479 = vadd.f32 0.0, %v3478
      %3480 = vdwg.mxu0
      %3481 = vst [vmem:[#allocation2 + $0x48] sm:$0xff] %v3320
      %3482 = vst [vmem:[#allocation2 + $0x50] sm:$0xff] %v3339
      %3483 = vst [vmem:[#allocation2 + $0x58] sm:$0xff] %v3358
      %3484 = vst [vmem:[#allocation2 + $0x60] sm:$0xff] %v3377
      %3485 = vst [vmem:[#allocation2 + $0x68] sm:$0xff] %v3396
      %3486 = vst [vmem:[#allocation2 + $0x70] sm:$0xff] %v3415
      %3487 = vst [vmem:[#allocation2 + $0x78] sm:$0xff] %v3434
      %3488 = vst [vmem:[#allocation2 + $0x80] sm:$0xff] %v3453
      %3489 = vst [vmem:[#allocation2 + $0x88] sm:$0xff] %v3472
      %3490 = vst [vmem:[#allocation2 + $0x90] sm:$0xff] %v3322
      %3491 = vst [vmem:[#allocation2 + $0x98] sm:$0xff] %v3341
      %3492 = vst [vmem:[#allocation2 + $0xa0] sm:$0xff] %v3360
      %3493 = vst [vmem:[#allocation2 + $0xa8] sm:$0xff] %v3379
      %3494 = vst [vmem:[#allocation2 + $0xb0] sm:$0xff] %v3398
      %3495 = vst [vmem:[#allocation2 + $0xb8] sm:$0xff] %v3417
      %3496 = vst [vmem:[#allocation2 + $0xc0] sm:$0xff] %v3436
      %3497 = vst [vmem:[#allocation2 + $0xc8] sm:$0xff] %v3455
      %3498 = vst [vmem:[#allocation2 + $0xd0] sm:$0xff] %v3474
      %3499 = vst [vmem:[#allocation2 + $0xd8] sm:$0xff] %v3325
      %3500 = vst [vmem:[#allocation2 + $0xe0] sm:$0xff] %v3344
      %3501 = vst [vmem:[#allocation2 + $0xe8] sm:$0xff] %v3363
      %3502 = vst [vmem:[#allocation2 + $0xf0] sm:$0xff] %v3382
      %3503 = vst [vmem:[#allocation2 + $0xf8] sm:$0xff] %v3401
      %3504 = vst [vmem:[#allocation2 + $0x100] sm:$0xff] %v3420
      %3505 = vst [vmem:[#allocation2 + $0x108] sm:$0xff] %v3439
      %3506 = vst [vmem:[#allocation2 + $0x110] sm:$0xff] %v3458
      %3507 = vst [vmem:[#allocation2 + $0x118] sm:$0xff] %v3477
      %3508 = vst [vmem:[#allocation2 + $0x120] sm:$0xff] %v3327
      %3509 = vst [vmem:[#allocation2 + $0x128] sm:$0xff] %v3346
      %3510 = vst [vmem:[#allocation2 + $0x130] sm:$0xff] %v3365
      %3511 = vst [vmem:[#allocation2 + $0x138] sm:$0xff] %v3384
      %3512 = vst [vmem:[#allocation2 + $0x140] sm:$0xff] %v3403
      %3513 = vst [vmem:[#allocation2 + $0x148] sm:$0xff] %v3422
      %3514 = vst [vmem:[#allocation2 + $0x150] sm:$0xff] %v3441
      %3515 = vst [vmem:[#allocation2 + $0x158] sm:$0xff] %v3460
      %3516 = vst [vmem:[#allocation2 + $0x160] sm:$0xff] %v3479
      %v3517 = vld [vmem:[#allocation2] sm:$0xfc]
      %v3518 = vld [vmem:[#allocation2 + $0x48] sm:$0xff]
      %v3519 = vld [vmem:[#allocation2 + $0x90] sm:$0xff]
      %v3520 = vld [vmem:[#allocation2 + $0xd8] sm:$0xff]
      %v3521 = vld [vmem:[#allocation2 + $0x120] sm:$0x3]
      %v3522 = vld [vmem:[%s1] sm:$0xff]
      %v3523 = vld [vmem:[%s1 + $0x8] sm:$0xff]
      %v3524 = vld [vmem:[%s1 + $0x10] sm:$0xff]
      %v3525 = vld [vmem:[%s1 + $0x18] sm:$0xff]
      %3527 = vset.pattern.permute.xlu0 0
      %3528 = vperm.xlu0 %3527, %v3522
      %v3529 = vpop.permute.xlu0 %3528
      %3531 = vset.pattern.permute.xlu0 0
      %3532 = vperm.xlu0 %3531, %v3523
      %v3533 = vpop.permute.xlu0 %3532
      %3535 = vset.pattern.permute.xlu0 0
      %3536 = vperm.xlu0 %3535, %v3524
      %v3537 = vpop.permute.xlu0 %3536
      %3539 = vset.pattern.permute.xlu0 0
      %3540 = vperm.xlu0 %3539, %v3525
      %v3541 = vpop.permute.xlu0 %3540
      %v3542 = vrot.slane %v3529, 6
      %v3543 = vrot.slane %v3533, 6
      %v3544 = vsel %vm1017, %v3542, %v3543
      %v3545 = vrot.slane %v3537, 6
      %v3546 = vsel %vm1017, %v3543, %v3545
      %v3547 = vrot.slane %v3541, 6
      %v3548 = vsel %vm1017, %v3545, %v3547
      %v3554 = vmul.f32 %v3517, %v3542
      %v3555 = vmul.f32 %v3518, %v3544
      %v3556 = vmul.f32 %v3519, %v3546
      %v3557 = vmul.f32 %v3520, %v3548
      %v3558 = vmul.f32 %v3521, %v3547
      %v3559 = vadd.f32 %v3554, 0.0
      %v3560 = vadd.f32 %v3555, 0.0
      %v3561 = vadd.f32 %v3556, 0.0
      %v3562 = vadd.f32 %v3557, 0.0
      %v3563 = vadd.f32 %v3558, 0.0
      %v3564 = vld [vmem:[#allocation2 + $0x8] sm:$0xf8]
      %v3565 = vld [vmem:[#allocation2 + $0x50] sm:$0xff]
      %v3566 = vld [vmem:[#allocation2 + $0x98] sm:$0xff]
      %v3567 = vld [vmem:[#allocation2 + $0xe0] sm:$0xff]
      %v3568 = vld [vmem:[#allocation2 + $0x128] sm:$0x7]
      %v3569 = vld [vmem:[%s1 + $0x20] sm:$0xff]
      %v3570 = vld [vmem:[%s1 + $0x28] sm:$0xff]
      %v3571 = vld [vmem:[%s1 + $0x30] sm:$0xff]
      %v3572 = vld [vmem:[%s1 + $0x38] sm:$0xff]
      %3574 = vset.pattern.permute.xlu0 0
      %3575 = vperm.xlu0 %3574, %v3569
      %v3576 = vpop.permute.xlu0 %3575
      %3578 = vset.pattern.permute.xlu0 0
      %3579 = vperm.xlu0 %3578, %v3570
      %v3580 = vpop.permute.xlu0 %3579
      %3582 = vset.pattern.permute.xlu0 0
      %3583 = vperm.xlu0 %3582, %v3571
      %v3584 = vpop.permute.xlu0 %3583
      %3586 = vset.pattern.permute.xlu0 0
      %3587 = vperm.xlu0 %3586, %v3572
      %v3588 = vpop.permute.xlu0 %3587
      %v3589 = vrot.slane %v3576, 5
      %v3590 = vrot.slane %v3580, 5
      %v3591 = vsel %vm1065, %v3589, %v3590
      %v3592 = vrot.slane %v3584, 5
      %v3593 = vsel %vm1065, %v3590, %v3592
      %v3594 = vrot.slane %v3588, 5
      %v3595 = vsel %vm1065, %v3592, %v3594
      %v3601 = vmul.f32 %v3564, %v3589
      %v3602 = vmul.f32 %v3565, %v3591
      %v3603 = vmul.f32 %v3566, %v3593
      %v3604 = vmul.f32 %v3567, %v3595
      %v3605 = vmul.f32 %v3568, %v3594
      %v3611 = vrot.slane %v3601, 1
      %v3612 = vrot.slane %v3602, 1
      %v3613 = vsel %vm1088, %v3611, %v3612
      %v3614 = vrot.slane %v3603, 1
      %v3615 = vsel %vm1088, %v3612, %v3614
      %v3616 = vrot.slane %v3604, 1
      %v3617 = vsel %vm1088, %v3614, %v3616
      %v3618 = vrot.slane %v3605, 1
      %v3619 = vsel %vm1088, %v3616, %v3618
      %v3625 = vadd.f32 %v3559, %v3613
      %v3626 = vadd.f32 %v3560, %v3615
      %v3627 = vadd.f32 %v3561, %v3617
      %v3628 = vadd.f32 %v3562, %v3619
      %v3629 = vadd.f32 %v3563, %v3618
      %v3630 = vld [vmem:[#allocation2 + $0x10] sm:$0xf0]
      %v3631 = vld [vmem:[#allocation2 + $0x58] sm:$0xff]
      %v3632 = vld [vmem:[#allocation2 + $0xa0] sm:$0xff]
      %v3633 = vld [vmem:[#allocation2 + $0xe8] sm:$0xff]
      %v3634 = vld [vmem:[#allocation2 + $0x130] sm:$0xf]
      %v3635 = vld [vmem:[%s1 + $0x40] sm:$0xff]
      %v3636 = vld [vmem:[%s1 + $0x48] sm:$0xff]
      %v3637 = vld [vmem:[%s1 + $0x50] sm:$0xff]
      %v3638 = vld [vmem:[%s1 + $0x58] sm:$0xff]
      %3640 = vset.pattern.permute.xlu0 0
      %3641 = vperm.xlu0 %3640, %v3635
      %v3642 = vpop.permute.xlu0 %3641
      %3644 = vset.pattern.permute.xlu0 0
      %3645 = vperm.xlu0 %3644, %v3636
      %v3646 = vpop.permute.xlu0 %3645
      %3648 = vset.pattern.permute.xlu0 0
      %3649 = vperm.xlu0 %3648, %v3637
      %v3650 = vpop.permute.xlu0 %3649
      %3652 = vset.pattern.permute.xlu0 0
      %3653 = vperm.xlu0 %3652, %v3638
      %v3654 = vpop.permute.xlu0 %3653
      %v3655 = vrot.slane %v3642, 4
      %v3656 = vrot.slane %v3646, 4
      %v3657 = vsel %vm1133, %v3655, %v3656
      %v3658 = vrot.slane %v3650, 4
      %v3659 = vsel %vm1133, %v3656, %v3658
      %v3660 = vrot.slane %v3654, 4
      %v3661 = vsel %vm1133, %v3658, %v3660
      %v3667 = vmul.f32 %v3630, %v3655
      %v3668 = vmul.f32 %v3631, %v3657
      %v3669 = vmul.f32 %v3632, %v3659
      %v3670 = vmul.f32 %v3633, %v3661
      %v3671 = vmul.f32 %v3634, %v3660
      %v3677 = vrot.slane %v3667, 2
      %v3678 = vrot.slane %v3668, 2
      %v3679 = vsel %vm1156, %v3677, %v3678
      %v3680 = vrot.slane %v3669, 2
      %v3681 = vsel %vm1156, %v3678, %v3680
      %v3682 = vrot.slane %v3670, 2
      %v3683 = vsel %vm1156, %v3680, %v3682
      %v3684 = vrot.slane %v3671, 2
      %v3685 = vsel %vm1156, %v3682, %v3684
      %v3691 = vadd.f32 %v3625, %v3679
      %v3692 = vadd.f32 %v3626, %v3681
      %v3693 = vadd.f32 %v3627, %v3683
      %v3694 = vadd.f32 %v3628, %v3685
      %v3695 = vadd.f32 %v3629, %v3684
      %v3696 = vld [vmem:[#allocation2 + $0x18] sm:$0x80]
      %v3697 = vld [vmem:[#allocation2 + $0x60] sm:$0xff]
      %v3698 = vld [vmem:[#allocation2 + $0xa8] sm:$0xff]
      %v3699 = vld [vmem:[#allocation2 + $0xf0] sm:$0xff]
      %v3700 = vld [vmem:[#allocation2 + $0x138] sm:$0x7f]
      %v3701 = vld [vmem:[%s1 + $0x60] sm:$0xff]
      %v3702 = vld [vmem:[%s1 + $0x68] sm:$0xff]
      %v3703 = vld [vmem:[%s1 + $0x70] sm:$0xff]
      %v3704 = vld [vmem:[%s1 + $0x78] sm:$0xff]
      %3706 = vset.pattern.permute.xlu0 0
      %3707 = vperm.xlu0 %3706, %v3701
      %v3708 = vpop.permute.xlu0 %3707
      %3710 = vset.pattern.permute.xlu0 0
      %3711 = vperm.xlu0 %3710, %v3702
      %v3712 = vpop.permute.xlu0 %3711
      %3714 = vset.pattern.permute.xlu0 0
      %3715 = vperm.xlu0 %3714, %v3703
      %v3716 = vpop.permute.xlu0 %3715
      %3718 = vset.pattern.permute.xlu0 0
      %3719 = vperm.xlu0 %3718, %v3704
      %v3720 = vpop.permute.xlu0 %3719
      %v3721 = vrot.slane %v3708, 1
      %v3722 = vrot.slane %v3712, 1
      %v3723 = vsel %vm1088, %v3721, %v3722
      %v3724 = vrot.slane %v3716, 1
      %v3725 = vsel %vm1088, %v3722, %v3724
      %v3726 = vrot.slane %v3720, 1
      %v3727 = vsel %vm1088, %v3724, %v3726
      %v3733 = vmul.f32 %v3696, %v3721
      %v3734 = vmul.f32 %v3697, %v3723
      %v3735 = vmul.f32 %v3698, %v3725
      %v3736 = vmul.f32 %v3699, %v3727
      %v3737 = vmul.f32 %v3700, %v3726
      %v3743 = vrot.slane %v3733, 5
      %v3744 = vrot.slane %v3734, 5
      %v3745 = vsel %vm1065, %v3743, %v3744
      %v3746 = vrot.slane %v3735, 5
      %v3747 = vsel %vm1065, %v3744, %v3746
      %v3748 = vrot.slane %v3736, 5
      %v3749 = vsel %vm1065, %v3746, %v3748
      %v3750 = vrot.slane %v3737, 5
      %v3751 = vsel %vm1065, %v3748, %v3750
      %v3757 = vadd.f32 %v3691, %v3745
      %v3758 = vadd.f32 %v3692, %v3747
      %v3759 = vadd.f32 %v3693, %v3749
      %v3760 = vadd.f32 %v3694, %v3751
      %v3761 = vadd.f32 %v3695, %v3750
      %v3762 = vld [vmem:[#allocation2 + $0x68] sm:$0xff]
      %v3763 = vld [vmem:[#allocation2 + $0xb0] sm:$0xff]
      %v3764 = vld [vmem:[#allocation2 + $0xf8] sm:$0xff]
      %v3765 = vld [vmem:[#allocation2 + $0x140] sm:$0xff]
      %v3766 = vld [vmem:[%s1 + $0x80] sm:$0xff]
      %v3767 = vld [vmem:[%s1 + $0x88] sm:$0xff]
      %v3768 = vld [vmem:[%s1 + $0x90] sm:$0xff]
      %v3769 = vld [vmem:[%s1 + $0x98] sm:$0xff]
      %3771 = vset.pattern.permute.xlu0 0
      %3772 = vperm.xlu0 %3771, %v3766
      %v3773 = vpop.permute.xlu0 %3772
      %3776 = vset.pattern.permute.xlu0 0
      %3777 = vperm.xlu0 %3776, %v3767
      %v3778 = vpop.permute.xlu0 %3777
      %3781 = vset.pattern.permute.xlu0 0
      %3782 = vperm.xlu0 %3781, %v3768
      %v3783 = vpop.permute.xlu0 %3782
      %3786 = vset.pattern.permute.xlu0 0
      %3787 = vperm.xlu0 %3786, %v3769
      %v3788 = vpop.permute.xlu0 %3787
      %v3790 = vmul.f32 %v3762, %v3773
      %v3791 = vmul.f32 %v3763, %v3778
      %v3792 = vmul.f32 %v3764, %v3783
      %v3793 = vmul.f32 %v3765, %v3788
      %v3798 = vrot.slane %v3790, 6
      %v3799 = vrot.slane %v3791, 6
      %v3800 = vsel %vm1017, %v3798, %v3799
      %v3801 = vrot.slane %v3792, 6
      %v3802 = vsel %vm1017, %v3799, %v3801
      %v3803 = vrot.slane %v3793, 6
      %v3804 = vsel %vm1017, %v3801, %v3803
      %v3810 = vadd.f32 %v3757, %v3798
      %v3811 = vadd.f32 %v3758, %v3800
      %v3812 = vadd.f32 %v3759, %v3802
      %v3813 = vadd.f32 %v3760, %v3804
      %v3814 = vadd.f32 %v3761, %v3803
      %v3815 = vld [vmem:[#allocation2 + $0x70] sm:$0xfe]
      %v3816 = vld [vmem:[#allocation2 + $0xb8] sm:$0xff]
      %v3817 = vld [vmem:[#allocation2 + $0x100] sm:$0xff]
      %v3818 = vld [vmem:[#allocation2 + $0x148] sm:$0xff]
      %v3819 = vld [vmem:[#allocation2 + $0x190] sm:$0x1]
      %v3820 = vld [vmem:[%s1 + $0xa0] sm:$0xff]
      %v3821 = vld [vmem:[%s1 + $0xa8] sm:$0xff]
      %v3822 = vld [vmem:[%s1 + $0xb0] sm:$0xff]
      %v3823 = vld [vmem:[%s1 + $0xb8] sm:$0xff]
      %3825 = vset.pattern.permute.xlu0 0
      %3826 = vperm.xlu0 %3825, %v3820
      %v3827 = vpop.permute.xlu0 %3826
      %3829 = vset.pattern.permute.xlu0 0
      %3830 = vperm.xlu0 %3829, %v3821
      %v3831 = vpop.permute.xlu0 %3830
      %3833 = vset.pattern.permute.xlu0 0
      %3834 = vperm.xlu0 %3833, %v3822
      %v3835 = vpop.permute.xlu0 %3834
      %3837 = vset.pattern.permute.xlu0 0
      %3838 = vperm.xlu0 %3837, %v3823
      %v3839 = vpop.permute.xlu0 %3838
      %v3840 = vrot.slane %v3827, 7
      %v3841 = vrot.slane %v3831, 7
      %v3842 = vsel %vm1320, %v3840, %v3841
      %v3843 = vrot.slane %v3835, 7
      %v3844 = vsel %vm1320, %v3841, %v3843
      %v3845 = vrot.slane %v3839, 7
      %v3846 = vsel %vm1320, %v3843, %v3845
      %v3852 = vmul.f32 %v3815, %v3840
      %v3853 = vmul.f32 %v3816, %v3842
      %v3854 = vmul.f32 %v3817, %v3844
      %v3855 = vmul.f32 %v3818, %v3846
      %v3856 = vmul.f32 %v3819, %v3845
      %v3862 = vrot.slane %v3852, 7
      %v3863 = vrot.slane %v3853, 7
      %v3864 = vsel %vm1320, %v3862, %v3863
      %v3865 = vrot.slane %v3854, 7
      %v3866 = vsel %vm1320, %v3863, %v3865
      %v3867 = vrot.slane %v3855, 7
      %v3868 = vsel %vm1320, %v3865, %v3867
      %v3869 = vrot.slane %v3856, 7
      %v3870 = vsel %vm1320, %v3867, %v3869
      %v3876 = vadd.f32 %v3810, %v3862
      %v3877 = vadd.f32 %v3811, %v3864
      %v3878 = vadd.f32 %v3812, %v3866
      %v3879 = vadd.f32 %v3813, %v3868
      %v3880 = vadd.f32 %v3814, %v3870
      %v3881 = vld [vmem:[#allocation2 + $0x78] sm:$0xf0]
      %v3882 = vld [vmem:[#allocation2 + $0xc0] sm:$0xff]
      %v3883 = vld [vmem:[#allocation2 + $0x108] sm:$0xff]
      %v3884 = vld [vmem:[#allocation2 + $0x150] sm:$0xff]
      %v3885 = vld [vmem:[#allocation2 + $0x198] sm:$0xf]
      %v3886 = vld [vmem:[%s1 + $0xc0] sm:$0xff]
      %v3887 = vld [vmem:[%s1 + $0xc8] sm:$0xff]
      %v3888 = vld [vmem:[%s1 + $0xd0] sm:$0xff]
      %v3889 = vld [vmem:[%s1 + $0xd8] sm:$0xff]
      %3891 = vset.pattern.permute.xlu0 0
      %3892 = vperm.xlu0 %3891, %v3886
      %v3893 = vpop.permute.xlu0 %3892
      %3895 = vset.pattern.permute.xlu0 0
      %3896 = vperm.xlu0 %3895, %v3887
      %v3897 = vpop.permute.xlu0 %3896
      %3899 = vset.pattern.permute.xlu0 0
      %3900 = vperm.xlu0 %3899, %v3888
      %v3901 = vpop.permute.xlu0 %3900
      %3903 = vset.pattern.permute.xlu0 0
      %3904 = vperm.xlu0 %3903, %v3889
      %v3905 = vpop.permute.xlu0 %3904
      %v3906 = vrot.slane %v3893, 4
      %v3907 = vrot.slane %v3897, 4
      %v3908 = vsel %vm1133, %v3906, %v3907
      %v3909 = vrot.slane %v3901, 4
      %v3910 = vsel %vm1133, %v3907, %v3909
      %v3911 = vrot.slane %v3905, 4
      %v3912 = vsel %vm1133, %v3909, %v3911
      %v3918 = vmul.f32 %v3881, %v3906
      %v3919 = vmul.f32 %v3882, %v3908
      %v3920 = vmul.f32 %v3883, %v3910
      %v3921 = vmul.f32 %v3884, %v3912
      %v3922 = vmul.f32 %v3885, %v3911
      %v3928 = vrot.slane %v3918, 2
      %v3929 = vrot.slane %v3919, 2
      %v3930 = vsel %vm1156, %v3928, %v3929
      %v3931 = vrot.slane %v3920, 2
      %v3932 = vsel %vm1156, %v3929, %v3931
      %v3933 = vrot.slane %v3921, 2
      %v3934 = vsel %vm1156, %v3931, %v3933
      %v3935 = vrot.slane %v3922, 2
      %v3936 = vsel %vm1156, %v3933, %v3935
      %v3942 = vadd.f32 %v3876, %v3930
      %v3943 = vadd.f32 %v3877, %v3932
      %v3944 = vadd.f32 %v3878, %v3934
      %v3945 = vadd.f32 %v3879, %v3936
      %v3946 = vadd.f32 %v3880, %v3935
      %v3947 = vld [vmem:[#allocation2 + $0x80] sm:$0xe0]
      %v3948 = vld [vmem:[#allocation2 + $0xc8] sm:$0xff]
      %v3949 = vld [vmem:[#allocation2 + $0x110] sm:$0xff]
      %v3950 = vld [vmem:[#allocation2 + $0x158] sm:$0xff]
      %v3951 = vld [vmem:[#allocation2 + $0x1a0] sm:$0x1f]
      %v3952 = vld [vmem:[%s1 + $0xe0] sm:$0xff]
      %v3953 = vld [vmem:[%s1 + $0xe8] sm:$0xff]
      %v3954 = vld [vmem:[%s1 + $0xf0] sm:$0xff]
      %v3955 = vld [vmem:[%s1 + $0xf8] sm:$0xff]
      %3957 = vset.pattern.permute.xlu0 0
      %3958 = vperm.xlu0 %3957, %v3952
      %v3959 = vpop.permute.xlu0 %3958
      %3961 = vset.pattern.permute.xlu0 0
      %3962 = vperm.xlu0 %3961, %v3953
      %v3963 = vpop.permute.xlu0 %3962
      %3965 = vset.pattern.permute.xlu0 0
      %3966 = vperm.xlu0 %3965, %v3954
      %v3967 = vpop.permute.xlu0 %3966
      %3969 = vset.pattern.permute.xlu0 0
      %3970 = vperm.xlu0 %3969, %v3955
      %v3971 = vpop.permute.xlu0 %3970
      %v3972 = vrot.slane %v3959, 3
      %v3973 = vrot.slane %v3963, 3
      %v3974 = vsel %vm1453, %v3972, %v3973
      %v3975 = vrot.slane %v3967, 3
      %v3976 = vsel %vm1453, %v3973, %v3975
      %v3977 = vrot.slane %v3971, 3
      %v3978 = vsel %vm1453, %v3975, %v3977
      %v3984 = vmul.f32 %v3947, %v3972
      %v3985 = vmul.f32 %v3948, %v3974
      %v3986 = vmul.f32 %v3949, %v3976
      %v3987 = vmul.f32 %v3950, %v3978
      %v3988 = vmul.f32 %v3951, %v3977
      %v3994 = vrot.slane %v3984, 3
      %v3995 = vrot.slane %v3985, 3
      %v3996 = vsel %vm1453, %v3994, %v3995
      %v3997 = vrot.slane %v3986, 3
      %v3998 = vsel %vm1453, %v3995, %v3997
      %v3999 = vrot.slane %v3987, 3
      %v4000 = vsel %vm1453, %v3997, %v3999
      %v4001 = vrot.slane %v3988, 3
      %v4002 = vsel %vm1453, %v3999, %v4001
      %v4008 = vadd.f32 %v3942, %v3996
      %v4009 = vadd.f32 %v3943, %v3998
      %v4010 = vadd.f32 %v3944, %v4000
      %v4011 = vadd.f32 %v3945, %v4002
      %v4012 = vadd.f32 %v3946, %v4001
      %v4013 = vld [vmem:[#allocation2 + $0x88] sm:$0xc0]
      %v4014 = vld [vmem:[#allocation2 + $0xd0] sm:$0xff]
      %v4015 = vld [vmem:[#allocation2 + $0x118] sm:$0xff]
      %v4016 = vld [vmem:[#allocation2 + $0x160] sm:$0xff]
      %v4017 = vld [vmem:[#allocation2 + $0x1a8] sm:$0x3f]
      %v4018 = vld [vmem:[%s1 + $0x100] sm:$0xff]
      %v4019 = vld [vmem:[%s1 + $0x108] sm:$0xff]
      %v4020 = vld [vmem:[%s1 + $0x110] sm:$0xff]
      %v4021 = vld [vmem:[%s1 + $0x118] sm:$0xff]
      %4023 = vset.pattern.permute.xlu0 0
      %4024 = vperm.xlu0 %4023, %v4018
      %v4025 = vpop.permute.xlu0 %4024
      %4027 = vset.pattern.permute.xlu0 0
      %4028 = vperm.xlu0 %4027, %v4019
      %v4029 = vpop.permute.xlu0 %4028
      %4031 = vset.pattern.permute.xlu0 0
      %4032 = vperm.xlu0 %4031, %v4020
      %v4033 = vpop.permute.xlu0 %4032
      %4035 = vset.pattern.permute.xlu0 0
      %4036 = vperm.xlu0 %4035, %v4021
      %v4037 = vpop.permute.xlu0 %4036
      %v4038 = vrot.slane %v4025, 2
      %v4039 = vrot.slane %v4029, 2
      %v4040 = vsel %vm1156, %v4038, %v4039
      %v4041 = vrot.slane %v4033, 2
      %v4042 = vsel %vm1156, %v4039, %v4041
      %v4043 = vrot.slane %v4037, 2
      %v4044 = vsel %vm1156, %v4041, %v4043
      %v4050 = vmul.f32 %v4013, %v4038
      %v4051 = vmul.f32 %v4014, %v4040
      %v4052 = vmul.f32 %v4015, %v4042
      %v4053 = vmul.f32 %v4016, %v4044
      %v4054 = vmul.f32 %v4017, %v4043
      %v4060 = vrot.slane %v4050, 4
      %v4061 = vrot.slane %v4051, 4
      %v4062 = vsel %vm1133, %v4060, %v4061
      %v4063 = vrot.slane %v4052, 4
      %v4064 = vsel %vm1133, %v4061, %v4063
      %v4065 = vrot.slane %v4053, 4
      %v4066 = vsel %vm1133, %v4063, %v4065
      %v4067 = vrot.slane %v4054, 4
      %v4068 = vsel %vm1133, %v4065, %v4067
      %v4074 = vadd.f32 %v4008, %v4062
      %v4075 = vadd.f32 %v4009, %v4064
      %v4076 = vadd.f32 %v4010, %v4066
      %v4077 = vadd.f32 %v4011, %v4068
      %v4078 = vadd.f32 %v4012, %v4067
      %s4079 = scalar_lea.vmem %s3, 2
      %v4080 = vld [vmem:[%s4079] sm:$0x1]
      %v4082 = vperm.slane %v4080, 0
      %v4084 = vadd.f32 %v4074, %v4082
      %v4085 = vadd.f32 %v4075, %v4082
      %v4086 = vadd.f32 %v4076, %v4082
      %v4087 = vadd.f32 %v4077, %v4082
      %v4088 = vadd.f32 %v4078, %v4082
      %vm4089 = vcmp.ge.f32.partialorder %v4084, 0.0
      %vm4090 = vcmp.ge.f32.partialorder %v4085, 0.0
      %vm4091 = vcmp.ge.f32.partialorder %v4086, 0.0
      %vm4092 = vcmp.ge.f32.partialorder %v4087, 0.0
      %vm4093 = vcmp.ge.f32.partialorder %v4088, 0.0
      %v4094 = vmul.f32 %v4084, 0.01
      %v4095 = vmul.f32 %v4085, 0.01
      %v4096 = vmul.f32 %v4086, 0.01
      %v4097 = vmul.f32 %v4087, 0.01
      %v4098 = vmul.f32 %v4088, 0.01
      %v4099 = vsel %vm4089, %v4084, %v4094
      %v4100 = vsel %vm4090, %v4085, %v4095
      %v4101 = vsel %vm4091, %v4086, %v4096
      %v4102 = vsel %vm4092, %v4087, %v4097
      %v4103 = vsel %vm4093, %v4088, %v4098
      %v4104 = vpack.c.bf16 %v4100, %v4099
      %v4105 = vpack.c.bf16 %v4102, %v4101
      %v4106 = vpack.c.bf16 %v4103, %v4103
      %s4107 = scalar_lea.vmem %s2, 1728
      %v4108 = vld [vmem:[%s4107] sm:$0xff]
      %v4109 = vld [vmem:[%s4107 + $0x8] sm:$0xff]
      %v4110 = vld [vmem:[%s4107 + $0x10] sm:$0xff]
      %v4111 = vld [vmem:[%s4107 + $0x18] sm:$0xff]
      %v4112 = vld [vmem:[%s4107 + $0x20] sm:$0xf]
      %v4113 = vld [vmem:[%s4107 + $0x24] sm:$0xff]
      %v4114 = vld [vmem:[%s4107 + $0x2c] sm:$0xff]
      %v4115 = vld [vmem:[%s4107 + $0x34] sm:$0xff]
      %v4116 = vld [vmem:[%s4107 + $0x3c] sm:$0xff]
      %v4117 = vld [vmem:[%s4107 + $0x44] sm:$0xf]
      %v4118 = vld [vmem:[%s4107 + $0x48] sm:$0xff]
      %v4119 = vld [vmem:[%s4107 + $0x50] sm:$0xff]
      %v4120 = vld [vmem:[%s4107 + $0x58] sm:$0xff]
      %v4121 = vld [vmem:[%s4107 + $0x60] sm:$0xff]
      %v4122 = vld [vmem:[%s4107 + $0x68] sm:$0xf]
      %v4123 = vld [vmem:[%s4107 + $0x6c] sm:$0xff]
      %v4124 = vld [vmem:[%s4107 + $0x74] sm:$0xff]
      %v4125 = vld [vmem:[%s4107 + $0x7c] sm:$0xff]
      %v4126 = vld [vmem:[%s4107 + $0x84] sm:$0xff]
      %v4127 = vld [vmem:[%s4107 + $0x8c] sm:$0xf]
      %v4128 = vld [vmem:[%s4107 + $0x90] sm:$0xff]
      %v4129 = vld [vmem:[%s4107 + $0x98] sm:$0xff]
      %v4130 = vld [vmem:[%s4107 + $0xa0] sm:$0xff]
      %v4131 = vld [vmem:[%s4107 + $0xa8] sm:$0xff]
      %v4132 = vld [vmem:[%s4107 + $0xb0] sm:$0xf]
      %v4133 = vld [vmem:[%s4107 + $0xb4] sm:$0xff]
      %v4134 = vld [vmem:[%s4107 + $0xbc] sm:$0xff]
      %v4135 = vld [vmem:[%s4107 + $0xc4] sm:$0xff]
      %v4136 = vld [vmem:[%s4107 + $0xcc] sm:$0xff]
      %v4137 = vld [vmem:[%s4107 + $0xd4] sm:$0xf]
      %v4138 = vld [vmem:[%s4107 + $0xd8] sm:$0xff]
      %v4139 = vld [vmem:[%s4107 + $0xe0] sm:$0xff]
      %v4140 = vld [vmem:[%s4107 + $0xe8] sm:$0xff]
      %v4141 = vld [vmem:[%s4107 + $0xf0] sm:$0xff]
      %v4142 = vld [vmem:[%s4107 + $0xf8] sm:$0xf]
      %v4143 = vld [vmem:[%s4107 + $0xfc] sm:$0xff]
      %v4144 = vld [vmem:[%s4107 + $0x104] sm:$0xff]
      %v4145 = vld [vmem:[%s4107 + $0x10c] sm:$0xff]
      %v4146 = vld [vmem:[%s4107 + $0x114] sm:$0xff]
      %v4147 = vld [vmem:[%s4107 + $0x11c] sm:$0xf]
      %v4148 = vld [vmem:[%s4107 + $0x120] sm:$0xff]
      %v4149 = vld [vmem:[%s4107 + $0x128] sm:$0xff]
      %v4150 = vld [vmem:[%s4107 + $0x130] sm:$0xff]
      %v4151 = vld [vmem:[%s4107 + $0x138] sm:$0xff]
      %v4152 = vld [vmem:[%s4107 + $0x140] sm:$0xf]
      %v4153 = vld [vmem:[%s4107 + $0x144] sm:$0xff]
      %v4154 = vld [vmem:[%s4107 + $0x14c] sm:$0xff]
      %v4155 = vld [vmem:[%s4107 + $0x154] sm:$0xff]
      %v4156 = vld [vmem:[%s4107 + $0x15c] sm:$0xff]
      %v4157 = vld [vmem:[%s4107 + $0x164] sm:$0xf]
      %v4158 = vld [vmem:[%s4107 + $0x168] sm:$0xff]
      %v4159 = vld [vmem:[%s4107 + $0x170] sm:$0xff]
      %v4160 = vld [vmem:[%s4107 + $0x178] sm:$0xff]
      %v4161 = vld [vmem:[%s4107 + $0x180] sm:$0xff]
      %v4162 = vld [vmem:[%s4107 + $0x188] sm:$0xf]
      %v4163 = vld [vmem:[%s4107 + $0x18c] sm:$0xff]
      %v4164 = vld [vmem:[%s4107 + $0x194] sm:$0xff]
      %v4165 = vld [vmem:[%s4107 + $0x19c] sm:$0xff]
      %v4166 = vld [vmem:[%s4107 + $0x1a4] sm:$0xff]
      %v4167 = vld [vmem:[%s4107 + $0x1ac] sm:$0xf]
      %v4168 = vld [vmem:[%s4107 + $0x1b0] sm:$0xff]
      %v4169 = vld [vmem:[%s4107 + $0x1b8] sm:$0xff]
      %v4170 = vld [vmem:[%s4107 + $0x1c0] sm:$0xff]
      %v4171 = vld [vmem:[%s4107 + $0x1c8] sm:$0xff]
      %v4172 = vld [vmem:[%s4107 + $0x1d0] sm:$0xf]
      %v4173 = vld [vmem:[%s4107 + $0x1d4] sm:$0xff]
      %v4174 = vld [vmem:[%s4107 + $0x1dc] sm:$0xff]
      %v4175 = vld [vmem:[%s4107 + $0x1e4] sm:$0xff]
      %v4176 = vld [vmem:[%s4107 + $0x1ec] sm:$0xff]
      %v4177 = vld [vmem:[%s4107 + $0x1f4] sm:$0xf]
      %v4178 = vld [vmem:[%s4107 + $0x1f8] sm:$0xff]
      %v4179 = vld [vmem:[%s4107 + $0x200] sm:$0xff]
      %v4180 = vld [vmem:[%s4107 + $0x208] sm:$0xff]
      %v4181 = vld [vmem:[%s4107 + $0x210] sm:$0xff]
      %v4182 = vld [vmem:[%s4107 + $0x218] sm:$0xf]
      %v4183 = vld [vmem:[%s4107 + $0x21c] sm:$0xff]
      %v4184 = vld [vmem:[%s4107 + $0x224] sm:$0xff]
      %v4185 = vld [vmem:[%s4107 + $0x22c] sm:$0xff]
      %v4186 = vld [vmem:[%s4107 + $0x234] sm:$0xff]
      %v4187 = vld [vmem:[%s4107 + $0x23c] sm:$0xf]
      %v4191 = vrot.slane %v4104, 1
      %v4192 = vrot.slane %v4105, 1
      %v4193 = vsel %vm1672, %v4191, %v4192
      %v4194 = vrot.slane %v4106, 1
      %v4195 = vsel %vm1672, %v4192, %v4194
      %v4278 = vunpack.c.l.b16 %v4108
      %v4279 = vunpack.c.h.b16 %v4108
      %v4280 = vunpack.c.l.b16 %v4109
      %v4281 = vunpack.c.h.b16 %v4109
      %v4282 = vunpack.c.l.b16 %v4110
      %v4283 = vunpack.c.h.b16 %v4110
      %v4284 = vunpack.c.l.b16 %v4111
      %v4285 = vunpack.c.h.b16 %v4111
      %v4286 = vunpack.c.l.b16 %v4112
      %v4287 = vunpack.c.l.b16 %v4113
      %v4288 = vunpack.c.h.b16 %v4113
      %v4289 = vunpack.c.l.b16 %v4114
      %v4290 = vunpack.c.h.b16 %v4114
      %v4291 = vunpack.c.l.b16 %v4115
      %v4292 = vunpack.c.h.b16 %v4115
      %v4293 = vunpack.c.l.b16 %v4116
      %v4294 = vunpack.c.h.b16 %v4116
      %v4295 = vunpack.c.l.b16 %v4117
      %v4296 = vunpack.c.l.b16 %v4118
      %v4297 = vunpack.c.h.b16 %v4118
      %v4298 = vunpack.c.l.b16 %v4119
      %v4299 = vunpack.c.h.b16 %v4119
      %v4300 = vunpack.c.l.b16 %v4120
      %v4301 = vunpack.c.h.b16 %v4120
      %v4302 = vunpack.c.l.b16 %v4121
      %v4303 = vunpack.c.h.b16 %v4121
      %v4304 = vunpack.c.l.b16 %v4122
      %v4305 = vunpack.c.l.b16 %v4123
      %v4306 = vunpack.c.h.b16 %v4123
      %v4307 = vunpack.c.l.b16 %v4124
      %v4308 = vunpack.c.h.b16 %v4124
      %v4309 = vunpack.c.l.b16 %v4125
      %v4310 = vunpack.c.h.b16 %v4125
      %v4311 = vunpack.c.l.b16 %v4126
      %v4312 = vunpack.c.h.b16 %v4126
      %v4313 = vunpack.c.l.b16 %v4127
      %v4314 = vunpack.c.l.b16 %v4128
      %v4315 = vunpack.c.h.b16 %v4128
      %v4316 = vunpack.c.l.b16 %v4129
      %v4317 = vunpack.c.h.b16 %v4129
      %v4318 = vunpack.c.l.b16 %v4130
      %v4319 = vunpack.c.h.b16 %v4130
      %v4320 = vunpack.c.l.b16 %v4131
      %v4321 = vunpack.c.h.b16 %v4131
      %v4322 = vunpack.c.l.b16 %v4132
      %v4323 = vunpack.c.l.b16 %v4133
      %v4324 = vunpack.c.h.b16 %v4133
      %v4325 = vunpack.c.l.b16 %v4134
      %v4326 = vunpack.c.h.b16 %v4134
      %v4327 = vunpack.c.l.b16 %v4135
      %v4328 = vunpack.c.h.b16 %v4135
      %v4329 = vunpack.c.l.b16 %v4136
      %v4330 = vunpack.c.h.b16 %v4136
      %v4331 = vunpack.c.l.b16 %v4137
      %v4332 = vunpack.c.l.b16 %v4138
      %v4333 = vunpack.c.h.b16 %v4138
      %v4334 = vunpack.c.l.b16 %v4139
      %v4335 = vunpack.c.h.b16 %v4139
      %v4336 = vunpack.c.l.b16 %v4140
      %v4337 = vunpack.c.h.b16 %v4140
      %v4338 = vunpack.c.l.b16 %v4141
      %v4339 = vunpack.c.h.b16 %v4141
      %v4340 = vunpack.c.l.b16 %v4142
      %v4341 = vunpack.c.l.b16 %v4143
      %v4342 = vunpack.c.h.b16 %v4143
      %v4343 = vunpack.c.l.b16 %v4144
      %v4344 = vunpack.c.h.b16 %v4144
      %v4345 = vunpack.c.l.b16 %v4145
      %v4346 = vunpack.c.h.b16 %v4145
      %v4347 = vunpack.c.l.b16 %v4146
      %v4348 = vunpack.c.h.b16 %v4146
      %v4349 = vunpack.c.l.b16 %v4147
      %v4350 = vunpack.c.l.b16 %v4148
      %v4351 = vunpack.c.h.b16 %v4148
      %v4352 = vunpack.c.l.b16 %v4149
      %v4353 = vunpack.c.h.b16 %v4149
      %v4354 = vunpack.c.l.b16 %v4150
      %v4355 = vunpack.c.h.b16 %v4150
      %v4356 = vunpack.c.l.b16 %v4151
      %v4357 = vunpack.c.h.b16 %v4151
      %v4358 = vunpack.c.l.b16 %v4152
      %v4359 = vunpack.c.l.b16 %v4153
      %v4360 = vunpack.c.h.b16 %v4153
      %v4361 = vunpack.c.l.b16 %v4154
      %v4362 = vunpack.c.h.b16 %v4154
      %v4363 = vunpack.c.l.b16 %v4155
      %v4364 = vunpack.c.h.b16 %v4155
      %v4365 = vunpack.c.l.b16 %v4156
      %v4366 = vunpack.c.h.b16 %v4156
      %v4367 = vunpack.c.l.b16 %v4157
      %v4368 = vunpack.c.l.b16 %v4158
      %v4369 = vunpack.c.h.b16 %v4158
      %v4370 = vunpack.c.l.b16 %v4159
      %v4371 = vunpack.c.h.b16 %v4159
      %v4372 = vunpack.c.l.b16 %v4160
      %v4373 = vunpack.c.h.b16 %v4160
      %v4374 = vunpack.c.l.b16 %v4161
      %v4375 = vunpack.c.h.b16 %v4161
      %v4376 = vunpack.c.l.b16 %v4162
      %v4377 = vunpack.c.l.b16 %v4163
      %v4378 = vunpack.c.h.b16 %v4163
      %v4379 = vunpack.c.l.b16 %v4164
      %v4380 = vunpack.c.h.b16 %v4164
      %v4381 = vunpack.c.l.b16 %v4165
      %v4382 = vunpack.c.h.b16 %v4165
      %v4383 = vunpack.c.l.b16 %v4166
      %v4384 = vunpack.c.h.b16 %v4166
      %v4385 = vunpack.c.l.b16 %v4167
      %v4386 = vunpack.c.l.b16 %v4168
      %v4387 = vunpack.c.h.b16 %v4168
      %v4388 = vunpack.c.l.b16 %v4169
      %v4389 = vunpack.c.h.b16 %v4169
      %v4390 = vunpack.c.l.b16 %v4170
      %v4391 = vunpack.c.h.b16 %v4170
      %v4392 = vunpack.c.l.b16 %v4171
      %v4393 = vunpack.c.h.b16 %v4171
      %v4394 = vunpack.c.l.b16 %v4172
      %v4395 = vunpack.c.l.b16 %v4173
      %v4396 = vunpack.c.h.b16 %v4173
      %v4397 = vunpack.c.l.b16 %v4174
      %v4398 = vunpack.c.h.b16 %v4174
      %v4399 = vunpack.c.l.b16 %v4175
      %v4400 = vunpack.c.h.b16 %v4175
      %v4401 = vunpack.c.l.b16 %v4176
      %v4402 = vunpack.c.h.b16 %v4176
      %v4403 = vunpack.c.l.b16 %v4177
      %v4404 = vunpack.c.l.b16 %v4178
      %v4405 = vunpack.c.h.b16 %v4178
      %v4406 = vunpack.c.l.b16 %v4179
      %v4407 = vunpack.c.h.b16 %v4179
      %v4408 = vunpack.c.l.b16 %v4180
      %v4409 = vunpack.c.h.b16 %v4180
      %v4410 = vunpack.c.l.b16 %v4181
      %v4411 = vunpack.c.h.b16 %v4181
      %v4412 = vunpack.c.l.b16 %v4182
      %v4413 = vunpack.c.l.b16 %v4183
      %v4414 = vunpack.c.h.b16 %v4183
      %v4415 = vunpack.c.l.b16 %v4184
      %v4416 = vunpack.c.h.b16 %v4184
      %v4417 = vunpack.c.l.b16 %v4185
      %v4418 = vunpack.c.h.b16 %v4185
      %v4419 = vunpack.c.l.b16 %v4186
      %v4420 = vunpack.c.h.b16 %v4186
      %v4421 = vunpack.c.l.b16 %v4187
      %v4422 = vpack.c.b16 %v4287, %v4278
      %v4423 = vpack.c.b16 %v4288, %v4279
      %v4424 = vpack.c.b16 %v4289, %v4280
      %v4425 = vpack.c.b16 %v4290, %v4281
      %v4426 = vpack.c.b16 %v4291, %v4282
      %v4427 = vpack.c.b16 %v4292, %v4283
      %v4428 = vpack.c.b16 %v4293, %v4284
      %v4429 = vpack.c.b16 %v4294, %v4285
      %v4430 = vpack.c.b16 %v4295, %v4286
      %v4431 = vpack.c.b16 %v4305, %v4296
      %v4432 = vpack.c.b16 %v4306, %v4297
      %v4433 = vpack.c.b16 %v4307, %v4298
      %v4434 = vpack.c.b16 %v4308, %v4299
      %v4435 = vpack.c.b16 %v4309, %v4300
      %v4436 = vpack.c.b16 %v4310, %v4301
      %v4437 = vpack.c.b16 %v4311, %v4302
      %v4438 = vpack.c.b16 %v4312, %v4303
      %v4439 = vpack.c.b16 %v4313, %v4304
      %v4440 = vpack.c.b16 %v4323, %v4314
      %v4441 = vpack.c.b16 %v4324, %v4315
      %v4442 = vpack.c.b16 %v4325, %v4316
      %v4443 = vpack.c.b16 %v4326, %v4317
      %v4444 = vpack.c.b16 %v4327, %v4318
      %v4445 = vpack.c.b16 %v4328, %v4319
      %v4446 = vpack.c.b16 %v4329, %v4320
      %v4447 = vpack.c.b16 %v4330, %v4321
      %v4448 = vpack.c.b16 %v4331, %v4322
      %v4449 = vpack.c.b16 %v4341, %v4332
      %v4450 = vpack.c.b16 %v4342, %v4333
      %v4451 = vpack.c.b16 %v4343, %v4334
      %v4452 = vpack.c.b16 %v4344, %v4335
      %v4453 = vpack.c.b16 %v4345, %v4336
      %v4454 = vpack.c.b16 %v4346, %v4337
      %v4455 = vpack.c.b16 %v4347, %v4338
      %v4456 = vpack.c.b16 %v4348, %v4339
      %v4457 = vpack.c.b16 %v4349, %v4340
      %v4458 = vpack.c.b16 %v4359, %v4350
      %v4459 = vpack.c.b16 %v4360, %v4351
      %v4460 = vpack.c.b16 %v4361, %v4352
      %v4461 = vpack.c.b16 %v4362, %v4353
      %v4462 = vpack.c.b16 %v4363, %v4354
      %v4463 = vpack.c.b16 %v4364, %v4355
      %v4464 = vpack.c.b16 %v4365, %v4356
      %v4465 = vpack.c.b16 %v4366, %v4357
      %v4466 = vpack.c.b16 %v4367, %v4358
      %v4467 = vpack.c.b16 %v4377, %v4368
      %v4468 = vpack.c.b16 %v4378, %v4369
      %v4469 = vpack.c.b16 %v4379, %v4370
      %v4470 = vpack.c.b16 %v4380, %v4371
      %v4471 = vpack.c.b16 %v4381, %v4372
      %v4472 = vpack.c.b16 %v4382, %v4373
      %v4473 = vpack.c.b16 %v4383, %v4374
      %v4474 = vpack.c.b16 %v4384, %v4375
      %v4475 = vpack.c.b16 %v4385, %v4376
      %v4476 = vpack.c.b16 %v4395, %v4386
      %v4477 = vpack.c.b16 %v4396, %v4387
      %v4478 = vpack.c.b16 %v4397, %v4388
      %v4479 = vpack.c.b16 %v4398, %v4389
      %v4480 = vpack.c.b16 %v4399, %v4390
      %v4481 = vpack.c.b16 %v4400, %v4391
      %v4482 = vpack.c.b16 %v4401, %v4392
      %v4483 = vpack.c.b16 %v4402, %v4393
      %v4484 = vpack.c.b16 %v4403, %v4394
      %v4485 = vpack.c.b16 %v4413, %v4404
      %v4486 = vpack.c.b16 %v4414, %v4405
      %v4487 = vpack.c.b16 %v4415, %v4406
      %v4488 = vpack.c.b16 %v4416, %v4407
      %v4489 = vpack.c.b16 %v4417, %v4408
      %v4490 = vpack.c.b16 %v4418, %v4409
      %v4491 = vpack.c.b16 %v4419, %v4410
      %v4492 = vpack.c.b16 %v4420, %v4411
      %v4493 = vpack.c.b16 %v4421, %v4412
      %4566 = vmatpush.bf16.msra.mxu0 %v4485
      %4567 = vmatpush.bf16.msra.mxu0 %v4476
      %4568 = vmatpush.bf16.msra.mxu0 %v4467
      %4569 = vmatpush.bf16.msra.mxu0 %v4458
      %4570 = vmatpush.bf16.msra.mxu0 %v4449
      %4571 = vmatpush.bf16.msra.mxu0 %v4440
      %4572 = vmatpush.bf16.msra.mxu0 %v4431
      %4573 = vmatpush.bf16.msra.mxu0 %v4422
      %4574 = vmatmul.bf16.gmra.mxu0 %v4193
      %v4575 = vpop.f32.mrf.mxu0
      %v4576 = vadd.f32 0.0, %v4575
      %v4577 = vpop.f32.mrf.mxu0
      %v4578 = vadd.f32 0.0, %v4577
      %4579 = vmatmul.bf16.gmra.mxu0 %v4195
      %v4580 = vpop.f32.mrf.mxu0
      %v4581 = vadd.f32 0.0, %v4580
      %v4582 = vpop.f32.mrf.mxu0
      %v4583 = vadd.f32 0.0, %v4582
      %4584 = vdwg.mxu0
      %4585 = vmatpush.bf16.msra.mxu0 %v4486
      %4586 = vmatpush.bf16.msra.mxu0 %v4477
      %4587 = vmatpush.bf16.msra.mxu0 %v4468
      %4588 = vmatpush.bf16.msra.mxu0 %v4459
      %4589 = vmatpush.bf16.msra.mxu0 %v4450
      %4590 = vmatpush.bf16.msra.mxu0 %v4441
      %4591 = vmatpush.bf16.msra.mxu0 %v4432
      %4592 = vmatpush.bf16.msra.mxu0 %v4423
      %4593 = vmatmul.bf16.gmra.mxu0 %v4193
      %v4594 = vpop.f32.mrf.mxu0
      %v4595 = vadd.f32 0.0, %v4594
      %v4596 = vpop.f32.mrf.mxu0
      %v4597 = vadd.f32 0.0, %v4596
      %4598 = vmatmul.bf16.gmra.mxu0 %v4195
      %v4599 = vpop.f32.mrf.mxu0
      %v4600 = vadd.f32 0.0, %v4599
      %v4601 = vpop.f32.mrf.mxu0
      %v4602 = vadd.f32 0.0, %v4601
      %4603 = vdwg.mxu0
      %4604 = vmatpush.bf16.msra.mxu0 %v4487
      %4605 = vmatpush.bf16.msra.mxu0 %v4478
      %4606 = vmatpush.bf16.msra.mxu0 %v4469
      %4607 = vmatpush.bf16.msra.mxu0 %v4460
      %4608 = vmatpush.bf16.msra.mxu0 %v4451
      %4609 = vmatpush.bf16.msra.mxu0 %v4442
      %4610 = vmatpush.bf16.msra.mxu0 %v4433
      %4611 = vmatpush.bf16.msra.mxu0 %v4424
      %4612 = vmatmul.bf16.gmra.mxu0 %v4193
      %v4613 = vpop.f32.mrf.mxu0
      %v4614 = vadd.f32 0.0, %v4613
      %v4615 = vpop.f32.mrf.mxu0
      %v4616 = vadd.f32 0.0, %v4615
      %4617 = vmatmul.bf16.gmra.mxu0 %v4195
      %v4618 = vpop.f32.mrf.mxu0
      %v4619 = vadd.f32 0.0, %v4618
      %v4620 = vpop.f32.mrf.mxu0
      %v4621 = vadd.f32 0.0, %v4620
      %4622 = vdwg.mxu0
      %4623 = vmatpush.bf16.msra.mxu0 %v4488
      %4624 = vmatpush.bf16.msra.mxu0 %v4479
      %4625 = vmatpush.bf16.msra.mxu0 %v4470
      %4626 = vmatpush.bf16.msra.mxu0 %v4461
      %4627 = vmatpush.bf16.msra.mxu0 %v4452
      %4628 = vmatpush.bf16.msra.mxu0 %v4443
      %4629 = vmatpush.bf16.msra.mxu0 %v4434
      %4630 = vmatpush.bf16.msra.mxu0 %v4425
      %4631 = vmatmul.bf16.gmra.mxu0 %v4193
      %v4632 = vpop.f32.mrf.mxu0
      %v4633 = vadd.f32 0.0, %v4632
      %v4634 = vpop.f32.mrf.mxu0
      %v4635 = vadd.f32 0.0, %v4634
      %4636 = vmatmul.bf16.gmra.mxu0 %v4195
      %v4637 = vpop.f32.mrf.mxu0
      %v4638 = vadd.f32 0.0, %v4637
      %v4639 = vpop.f32.mrf.mxu0
      %v4640 = vadd.f32 0.0, %v4639
      %4641 = vdwg.mxu0
      %4642 = vmatpush.bf16.msra.mxu0 %v4489
      %4643 = vmatpush.bf16.msra.mxu0 %v4480
      %4644 = vmatpush.bf16.msra.mxu0 %v4471
      %4645 = vmatpush.bf16.msra.mxu0 %v4462
      %4646 = vmatpush.bf16.msra.mxu0 %v4453
      %4647 = vmatpush.bf16.msra.mxu0 %v4444
      %4648 = vmatpush.bf16.msra.mxu0 %v4435
      %4649 = vmatpush.bf16.msra.mxu0 %v4426
      %4650 = vmatmul.bf16.gmra.mxu0 %v4193
      %v4651 = vpop.f32.mrf.mxu0
      %v4652 = vadd.f32 0.0, %v4651
      %v4653 = vpop.f32.mrf.mxu0
      %v4654 = vadd.f32 0.0, %v4653
      %4655 = vmatmul.bf16.gmra.mxu0 %v4195
      %v4656 = vpop.f32.mrf.mxu0
      %v4657 = vadd.f32 0.0, %v4656
      %v4658 = vpop.f32.mrf.mxu0
      %v4659 = vadd.f32 0.0, %v4658
      %4660 = vdwg.mxu0
      %4661 = vmatpush.bf16.msra.mxu0 %v4490
      %4662 = vmatpush.bf16.msra.mxu0 %v4481
      %4663 = vmatpush.bf16.msra.mxu0 %v4472
      %4664 = vmatpush.bf16.msra.mxu0 %v4463
      %4665 = vmatpush.bf16.msra.mxu0 %v4454
      %4666 = vmatpush.bf16.msra.mxu0 %v4445
      %4667 = vmatpush.bf16.msra.mxu0 %v4436
      %4668 = vmatpush.bf16.msra.mxu0 %v4427
      %4669 = vmatmul.bf16.gmra.mxu0 %v4193
      %v4670 = vpop.f32.mrf.mxu0
      %v4671 = vadd.f32 0.0, %v4670
      %v4672 = vpop.f32.mrf.mxu0
      %v4673 = vadd.f32 0.0, %v4672
      %4674 = vmatmul.bf16.gmra.mxu0 %v4195
      %v4675 = vpop.f32.mrf.mxu0
      %v4676 = vadd.f32 0.0, %v4675
      %v4677 = vpop.f32.mrf.mxu0
      %v4678 = vadd.f32 0.0, %v4677
      %4679 = vdwg.mxu0
      %4680 = vmatpush.bf16.msra.mxu0 %v4491
      %4681 = vmatpush.bf16.msra.mxu0 %v4482
      %4682 = vmatpush.bf16.msra.mxu0 %v4473
      %4683 = vmatpush.bf16.msra.mxu0 %v4464
      %4684 = vmatpush.bf16.msra.mxu0 %v4455
      %4685 = vmatpush.bf16.msra.mxu0 %v4446
      %4686 = vmatpush.bf16.msra.mxu0 %v4437
      %4687 = vmatpush.bf16.msra.mxu0 %v4428
      %4688 = vmatmul.bf16.gmra.mxu0 %v4193
      %v4689 = vpop.f32.mrf.mxu0
      %v4690 = vadd.f32 0.0, %v4689
      %v4691 = vpop.f32.mrf.mxu0
      %v4692 = vadd.f32 0.0, %v4691
      %4693 = vmatmul.bf16.gmra.mxu0 %v4195
      %v4694 = vpop.f32.mrf.mxu0
      %v4695 = vadd.f32 0.0, %v4694
      %v4696 = vpop.f32.mrf.mxu0
      %v4697 = vadd.f32 0.0, %v4696
      %4698 = vdwg.mxu0
      %4699 = vmatpush.bf16.msra.mxu0 %v4492
      %4700 = vmatpush.bf16.msra.mxu0 %v4483
      %4701 = vmatpush.bf16.msra.mxu0 %v4474
      %4702 = vmatpush.bf16.msra.mxu0 %v4465
      %4703 = vmatpush.bf16.msra.mxu0 %v4456
      %4704 = vmatpush.bf16.msra.mxu0 %v4447
      %4705 = vmatpush.bf16.msra.mxu0 %v4438
      %4706 = vmatpush.bf16.msra.mxu0 %v4429
      %4707 = vmatmul.bf16.gmra.mxu0 %v4193
      %v4708 = vpop.f32.mrf.mxu0
      %v4709 = vadd.f32 0.0, %v4708
      %v4710 = vpop.f32.mrf.mxu0
      %v4711 = vadd.f32 0.0, %v4710
      %4712 = vmatmul.bf16.gmra.mxu0 %v4195
      %v4713 = vpop.f32.mrf.mxu0
      %v4714 = vadd.f32 0.0, %v4713
      %v4715 = vpop.f32.mrf.mxu0
      %v4716 = vadd.f32 0.0, %v4715
      %4717 = vdwg.mxu0
      %4718 = vmatpush.bf16.msra.mxu0 %v4493
      %4719 = vmatpush.bf16.msra.mxu0 %v4484
      %4720 = vmatpush.bf16.msra.mxu0 %v4475
      %4721 = vmatpush.bf16.msra.mxu0 %v4466
      %4722 = vmatpush.bf16.msra.mxu0 %v4457
      %4723 = vmatpush.bf16.msra.mxu0 %v4448
      %4724 = vmatpush.bf16.msra.mxu0 %v4439
      %4725 = vmatpush.bf16.msra.mxu0 %v4430
      %4726 = vmatmul.bf16.gmra.mxu0 %v4193
      %v4727 = vpop.f32.mrf.mxu0
      %v4728 = vadd.f32 0.0, %v4727
      %v4729 = vpop.f32.mrf.mxu0
      %v4730 = vadd.f32 0.0, %v4729
      %4731 = vmatmul.bf16.gmra.mxu0 %v4195
      %v4732 = vpop.f32.mrf.mxu0
      %v4733 = vadd.f32 0.0, %v4732
      %v4734 = vpop.f32.mrf.mxu0
      %v4735 = vadd.f32 0.0, %v4734
      %4736 = vdwg.mxu0
      %4737 = vst [vmem:[#allocation2 + $0x48] sm:$0xff] %v4576
      %4738 = vst [vmem:[#allocation2 + $0x50] sm:$0xff] %v4595
      %4739 = vst [vmem:[#allocation2 + $0x58] sm:$0xff] %v4614
      %4740 = vst [vmem:[#allocation2 + $0x60] sm:$0xff] %v4633
      %4741 = vst [vmem:[#allocation2 + $0x68] sm:$0xff] %v4652
      %4742 = vst [vmem:[#allocation2 + $0x70] sm:$0xff] %v4671
      %4743 = vst [vmem:[#allocation2 + $0x78] sm:$0xff] %v4690
      %4744 = vst [vmem:[#allocation2 + $0x80] sm:$0xff] %v4709
      %4745 = vst [vmem:[#allocation2 + $0x88] sm:$0xff] %v4728
      %4746 = vst [vmem:[#allocation2 + $0x90] sm:$0xff] %v4578
      %4747 = vst [vmem:[#allocation2 + $0x98] sm:$0xff] %v4597
      %4748 = vst [vmem:[#allocation2 + $0xa0] sm:$0xff] %v4616
      %4749 = vst [vmem:[#allocation2 + $0xa8] sm:$0xff] %v4635
      %4750 = vst [vmem:[#allocation2 + $0xb0] sm:$0xff] %v4654
      %4751 = vst [vmem:[#allocation2 + $0xb8] sm:$0xff] %v4673
      %4752 = vst [vmem:[#allocation2 + $0xc0] sm:$0xff] %v4692
      %4753 = vst [vmem:[#allocation2 + $0xc8] sm:$0xff] %v4711
      %4754 = vst [vmem:[#allocation2 + $0xd0] sm:$0xff] %v4730
      %4755 = vst [vmem:[#allocation2 + $0xd8] sm:$0xff] %v4581
      %4756 = vst [vmem:[#allocation2 + $0xe0] sm:$0xff] %v4600
      %4757 = vst [vmem:[#allocation2 + $0xe8] sm:$0xff] %v4619
      %4758 = vst [vmem:[#allocation2 + $0xf0] sm:$0xff] %v4638
      %4759 = vst [vmem:[#allocation2 + $0xf8] sm:$0xff] %v4657
      %4760 = vst [vmem:[#allocation2 + $0x100] sm:$0xff] %v4676
      %4761 = vst [vmem:[#allocation2 + $0x108] sm:$0xff] %v4695
      %4762 = vst [vmem:[#allocation2 + $0x110] sm:$0xff] %v4714
      %4763 = vst [vmem:[#allocation2 + $0x118] sm:$0xff] %v4733
      %4764 = vst [vmem:[#allocation2 + $0x120] sm:$0xff] %v4583
      %4765 = vst [vmem:[#allocation2 + $0x128] sm:$0xff] %v4602
      %4766 = vst [vmem:[#allocation2 + $0x130] sm:$0xff] %v4621
      %4767 = vst [vmem:[#allocation2 + $0x138] sm:$0xff] %v4640
      %4768 = vst [vmem:[#allocation2 + $0x140] sm:$0xff] %v4659
      %4769 = vst [vmem:[#allocation2 + $0x148] sm:$0xff] %v4678
      %4770 = vst [vmem:[#allocation2 + $0x150] sm:$0xff] %v4697
      %4771 = vst [vmem:[#allocation2 + $0x158] sm:$0xff] %v4716
      %4772 = vst [vmem:[#allocation2 + $0x160] sm:$0xff] %v4735
      %v4773 = vld [vmem:[#allocation2] sm:$0xfc]
      %v4774 = vld [vmem:[#allocation2 + $0x48] sm:$0xff]
      %v4775 = vld [vmem:[#allocation2 + $0x90] sm:$0xff]
      %v4776 = vld [vmem:[#allocation2 + $0xd8] sm:$0xff]
      %v4777 = vld [vmem:[#allocation2 + $0x120] sm:$0x3]
      %v4778 = vld [vmem:[%s1] sm:$0xff]
      %v4779 = vld [vmem:[%s1 + $0x8] sm:$0xff]
      %v4780 = vld [vmem:[%s1 + $0x10] sm:$0xff]
      %v4781 = vld [vmem:[%s1 + $0x18] sm:$0xff]
      %4783 = vset.pattern.permute.xlu0 0
      %4784 = vperm.xlu0 %4783, %v4778
      %v4785 = vpop.permute.xlu0 %4784
      %4787 = vset.pattern.permute.xlu0 0
      %4788 = vperm.xlu0 %4787, %v4779
      %v4789 = vpop.permute.xlu0 %4788
      %4791 = vset.pattern.permute.xlu0 0
      %4792 = vperm.xlu0 %4791, %v4780
      %v4793 = vpop.permute.xlu0 %4792
      %4795 = vset.pattern.permute.xlu0 0
      %4796 = vperm.xlu0 %4795, %v4781
      %v4797 = vpop.permute.xlu0 %4796
      %v4798 = vrot.slane %v4785, 6
      %v4799 = vrot.slane %v4789, 6
      %v4800 = vsel %vm1017, %v4798, %v4799
      %v4801 = vrot.slane %v4793, 6
      %v4802 = vsel %vm1017, %v4799, %v4801
      %v4803 = vrot.slane %v4797, 6
      %v4804 = vsel %vm1017, %v4801, %v4803
      %v4810 = vmul.f32 %v4773, %v4798
      %v4811 = vmul.f32 %v4774, %v4800
      %v4812 = vmul.f32 %v4775, %v4802
      %v4813 = vmul.f32 %v4776, %v4804
      %v4814 = vmul.f32 %v4777, %v4803
      %v4815 = vadd.f32 %v4810, 0.0
      %v4816 = vadd.f32 %v4811, 0.0
      %v4817 = vadd.f32 %v4812, 0.0
      %v4818 = vadd.f32 %v4813, 0.0
      %v4819 = vadd.f32 %v4814, 0.0
      %v4820 = vld [vmem:[#allocation2 + $0x8] sm:$0xf8]
      %v4821 = vld [vmem:[#allocation2 + $0x50] sm:$0xff]
      %v4822 = vld [vmem:[#allocation2 + $0x98] sm:$0xff]
      %v4823 = vld [vmem:[#allocation2 + $0xe0] sm:$0xff]
      %v4824 = vld [vmem:[#allocation2 + $0x128] sm:$0x7]
      %v4825 = vld [vmem:[%s1 + $0x20] sm:$0xff]
      %v4826 = vld [vmem:[%s1 + $0x28] sm:$0xff]
      %v4827 = vld [vmem:[%s1 + $0x30] sm:$0xff]
      %v4828 = vld [vmem:[%s1 + $0x38] sm:$0xff]
      %4830 = vset.pattern.permute.xlu0 0
      %4831 = vperm.xlu0 %4830, %v4825
      %v4832 = vpop.permute.xlu0 %4831
      %4834 = vset.pattern.permute.xlu0 0
      %4835 = vperm.xlu0 %4834, %v4826
      %v4836 = vpop.permute.xlu0 %4835
      %4838 = vset.pattern.permute.xlu0 0
      %4839 = vperm.xlu0 %4838, %v4827
      %v4840 = vpop.permute.xlu0 %4839
      %4842 = vset.pattern.permute.xlu0 0
      %4843 = vperm.xlu0 %4842, %v4828
      %v4844 = vpop.permute.xlu0 %4843
      %v4845 = vrot.slane %v4832, 5
      %v4846 = vrot.slane %v4836, 5
      %v4847 = vsel %vm1065, %v4845, %v4846
      %v4848 = vrot.slane %v4840, 5
      %v4849 = vsel %vm1065, %v4846, %v4848
      %v4850 = vrot.slane %v4844, 5
      %v4851 = vsel %vm1065, %v4848, %v4850
      %v4857 = vmul.f32 %v4820, %v4845
      %v4858 = vmul.f32 %v4821, %v4847
      %v4859 = vmul.f32 %v4822, %v4849
      %v4860 = vmul.f32 %v4823, %v4851
      %v4861 = vmul.f32 %v4824, %v4850
      %v4867 = vrot.slane %v4857, 1
      %v4868 = vrot.slane %v4858, 1
      %v4869 = vsel %vm1088, %v4867, %v4868
      %v4870 = vrot.slane %v4859, 1
      %v4871 = vsel %vm1088, %v4868, %v4870
      %v4872 = vrot.slane %v4860, 1
      %v4873 = vsel %vm1088, %v4870, %v4872
      %v4874 = vrot.slane %v4861, 1
      %v4875 = vsel %vm1088, %v4872, %v4874
      %v4881 = vadd.f32 %v4815, %v4869
      %v4882 = vadd.f32 %v4816, %v4871
      %v4883 = vadd.f32 %v4817, %v4873
      %v4884 = vadd.f32 %v4818, %v4875
      %v4885 = vadd.f32 %v4819, %v4874
      %v4886 = vld [vmem:[#allocation2 + $0x10] sm:$0xf0]
      %v4887 = vld [vmem:[#allocation2 + $0x58] sm:$0xff]
      %v4888 = vld [vmem:[#allocation2 + $0xa0] sm:$0xff]
      %v4889 = vld [vmem:[#allocation2 + $0xe8] sm:$0xff]
      %v4890 = vld [vmem:[#allocation2 + $0x130] sm:$0xf]
      %v4891 = vld [vmem:[%s1 + $0x40] sm:$0xff]
      %v4892 = vld [vmem:[%s1 + $0x48] sm:$0xff]
      %v4893 = vld [vmem:[%s1 + $0x50] sm:$0xff]
      %v4894 = vld [vmem:[%s1 + $0x58] sm:$0xff]
      %4896 = vset.pattern.permute.xlu0 0
      %4897 = vperm.xlu0 %4896, %v4891
      %v4898 = vpop.permute.xlu0 %4897
      %4900 = vset.pattern.permute.xlu0 0
      %4901 = vperm.xlu0 %4900, %v4892
      %v4902 = vpop.permute.xlu0 %4901
      %4904 = vset.pattern.permute.xlu0 0
      %4905 = vperm.xlu0 %4904, %v4893
      %v4906 = vpop.permute.xlu0 %4905
      %4908 = vset.pattern.permute.xlu0 0
      %4909 = vperm.xlu0 %4908, %v4894
      %v4910 = vpop.permute.xlu0 %4909
      %v4911 = vrot.slane %v4898, 4
      %v4912 = vrot.slane %v4902, 4
      %v4913 = vsel %vm1133, %v4911, %v4912
      %v4914 = vrot.slane %v4906, 4
      %v4915 = vsel %vm1133, %v4912, %v4914
      %v4916 = vrot.slane %v4910, 4
      %v4917 = vsel %vm1133, %v4914, %v4916
      %v4923 = vmul.f32 %v4886, %v4911
      %v4924 = vmul.f32 %v4887, %v4913
      %v4925 = vmul.f32 %v4888, %v4915
      %v4926 = vmul.f32 %v4889, %v4917
      %v4927 = vmul.f32 %v4890, %v4916
      %v4933 = vrot.slane %v4923, 2
      %v4934 = vrot.slane %v4924, 2
      %v4935 = vsel %vm1156, %v4933, %v4934
      %v4936 = vrot.slane %v4925, 2
      %v4937 = vsel %vm1156, %v4934, %v4936
      %v4938 = vrot.slane %v4926, 2
      %v4939 = vsel %vm1156, %v4936, %v4938
      %v4940 = vrot.slane %v4927, 2
      %v4941 = vsel %vm1156, %v4938, %v4940
      %v4947 = vadd.f32 %v4881, %v4935
      %v4948 = vadd.f32 %v4882, %v4937
      %v4949 = vadd.f32 %v4883, %v4939
      %v4950 = vadd.f32 %v4884, %v4941
      %v4951 = vadd.f32 %v4885, %v4940
      %v4952 = vld [vmem:[#allocation2 + $0x18] sm:$0x80]
      %v4953 = vld [vmem:[#allocation2 + $0x60] sm:$0xff]
      %v4954 = vld [vmem:[#allocation2 + $0xa8] sm:$0xff]
      %v4955 = vld [vmem:[#allocation2 + $0xf0] sm:$0xff]
      %v4956 = vld [vmem:[#allocation2 + $0x138] sm:$0x7f]
      %v4957 = vld [vmem:[%s1 + $0x60] sm:$0xff]
      %v4958 = vld [vmem:[%s1 + $0x68] sm:$0xff]
      %v4959 = vld [vmem:[%s1 + $0x70] sm:$0xff]
      %v4960 = vld [vmem:[%s1 + $0x78] sm:$0xff]
      %4962 = vset.pattern.permute.xlu0 0
      %4963 = vperm.xlu0 %4962, %v4957
      %v4964 = vpop.permute.xlu0 %4963
      %4966 = vset.pattern.permute.xlu0 0
      %4967 = vperm.xlu0 %4966, %v4958
      %v4968 = vpop.permute.xlu0 %4967
      %4970 = vset.pattern.permute.xlu0 0
      %4971 = vperm.xlu0 %4970, %v4959
      %v4972 = vpop.permute.xlu0 %4971
      %4974 = vset.pattern.permute.xlu0 0
      %4975 = vperm.xlu0 %4974, %v4960
      %v4976 = vpop.permute.xlu0 %4975
      %v4977 = vrot.slane %v4964, 1
      %v4978 = vrot.slane %v4968, 1
      %v4979 = vsel %vm1088, %v4977, %v4978
      %v4980 = vrot.slane %v4972, 1
      %v4981 = vsel %vm1088, %v4978, %v4980
      %v4982 = vrot.slane %v4976, 1
      %v4983 = vsel %vm1088, %v4980, %v4982
      %v4989 = vmul.f32 %v4952, %v4977
      %v4990 = vmul.f32 %v4953, %v4979
      %v4991 = vmul.f32 %v4954, %v4981
      %v4992 = vmul.f32 %v4955, %v4983
      %v4993 = vmul.f32 %v4956, %v4982
      %v4999 = vrot.slane %v4989, 5
      %v5000 = vrot.slane %v4990, 5
      %v5001 = vsel %vm1065, %v4999, %v5000
      %v5002 = vrot.slane %v4991, 5
      %v5003 = vsel %vm1065, %v5000, %v5002
      %v5004 = vrot.slane %v4992, 5
      %v5005 = vsel %vm1065, %v5002, %v5004
      %v5006 = vrot.slane %v4993, 5
      %v5007 = vsel %vm1065, %v5004, %v5006
      %v5013 = vadd.f32 %v4947, %v5001
      %v5014 = vadd.f32 %v4948, %v5003
      %v5015 = vadd.f32 %v4949, %v5005
      %v5016 = vadd.f32 %v4950, %v5007
      %v5017 = vadd.f32 %v4951, %v5006
      %v5018 = vld [vmem:[#allocation2 + $0x68] sm:$0xff]
      %v5019 = vld [vmem:[#allocation2 + $0xb0] sm:$0xff]
      %v5020 = vld [vmem:[#allocation2 + $0xf8] sm:$0xff]
      %v5021 = vld [vmem:[#allocation2 + $0x140] sm:$0xff]
      %v5022 = vld [vmem:[%s1 + $0x80] sm:$0xff]
      %v5023 = vld [vmem:[%s1 + $0x88] sm:$0xff]
      %v5024 = vld [vmem:[%s1 + $0x90] sm:$0xff]
      %v5025 = vld [vmem:[%s1 + $0x98] sm:$0xff]
      %5027 = vset.pattern.permute.xlu0 0
      %5028 = vperm.xlu0 %5027, %v5022
      %v5029 = vpop.permute.xlu0 %5028
      %5032 = vset.pattern.permute.xlu0 0
      %5033 = vperm.xlu0 %5032, %v5023
      %v5034 = vpop.permute.xlu0 %5033
      %5037 = vset.pattern.permute.xlu0 0
      %5038 = vperm.xlu0 %5037, %v5024
      %v5039 = vpop.permute.xlu0 %5038
      %5042 = vset.pattern.permute.xlu0 0
      %5043 = vperm.xlu0 %5042, %v5025
      %v5044 = vpop.permute.xlu0 %5043
      %v5046 = vmul.f32 %v5018, %v5029
      %v5047 = vmul.f32 %v5019, %v5034
      %v5048 = vmul.f32 %v5020, %v5039
      %v5049 = vmul.f32 %v5021, %v5044
      %v5054 = vrot.slane %v5046, 6
      %v5055 = vrot.slane %v5047, 6
      %v5056 = vsel %vm1017, %v5054, %v5055
      %v5057 = vrot.slane %v5048, 6
      %v5058 = vsel %vm1017, %v5055, %v5057
      %v5059 = vrot.slane %v5049, 6
      %v5060 = vsel %vm1017, %v5057, %v5059
      %v5066 = vadd.f32 %v5013, %v5054
      %v5067 = vadd.f32 %v5014, %v5056
      %v5068 = vadd.f32 %v5015, %v5058
      %v5069 = vadd.f32 %v5016, %v5060
      %v5070 = vadd.f32 %v5017, %v5059
      %v5071 = vld [vmem:[#allocation2 + $0x70] sm:$0xfe]
      %v5072 = vld [vmem:[#allocation2 + $0xb8] sm:$0xff]
      %v5073 = vld [vmem:[#allocation2 + $0x100] sm:$0xff]
      %v5074 = vld [vmem:[#allocation2 + $0x148] sm:$0xff]
      %v5075 = vld [vmem:[#allocation2 + $0x190] sm:$0x1]
      %v5076 = vld [vmem:[%s1 + $0xa0] sm:$0xff]
      %v5077 = vld [vmem:[%s1 + $0xa8] sm:$0xff]
      %v5078 = vld [vmem:[%s1 + $0xb0] sm:$0xff]
      %v5079 = vld [vmem:[%s1 + $0xb8] sm:$0xff]
      %5081 = vset.pattern.permute.xlu0 0
      %5082 = vperm.xlu0 %5081, %v5076
      %v5083 = vpop.permute.xlu0 %5082
      %5085 = vset.pattern.permute.xlu0 0
      %5086 = vperm.xlu0 %5085, %v5077
      %v5087 = vpop.permute.xlu0 %5086
      %5089 = vset.pattern.permute.xlu0 0
      %5090 = vperm.xlu0 %5089, %v5078
      %v5091 = vpop.permute.xlu0 %5090
      %5093 = vset.pattern.permute.xlu0 0
      %5094 = vperm.xlu0 %5093, %v5079
      %v5095 = vpop.permute.xlu0 %5094
      %v5096 = vrot.slane %v5083, 7
      %v5097 = vrot.slane %v5087, 7
      %v5098 = vsel %vm1320, %v5096, %v5097
      %v5099 = vrot.slane %v5091, 7
      %v5100 = vsel %vm1320, %v5097, %v5099
      %v5101 = vrot.slane %v5095, 7
      %v5102 = vsel %vm1320, %v5099, %v5101
      %v5108 = vmul.f32 %v5071, %v5096
      %v5109 = vmul.f32 %v5072, %v5098
      %v5110 = vmul.f32 %v5073, %v5100
      %v5111 = vmul.f32 %v5074, %v5102
      %v5112 = vmul.f32 %v5075, %v5101
      %v5118 = vrot.slane %v5108, 7
      %v5119 = vrot.slane %v5109, 7
      %v5120 = vsel %vm1320, %v5118, %v5119
      %v5121 = vrot.slane %v5110, 7
      %v5122 = vsel %vm1320, %v5119, %v5121
      %v5123 = vrot.slane %v5111, 7
      %v5124 = vsel %vm1320, %v5121, %v5123
      %v5125 = vrot.slane %v5112, 7
      %v5126 = vsel %vm1320, %v5123, %v5125
      %v5132 = vadd.f32 %v5066, %v5118
      %v5133 = vadd.f32 %v5067, %v5120
      %v5134 = vadd.f32 %v5068, %v5122
      %v5135 = vadd.f32 %v5069, %v5124
      %v5136 = vadd.f32 %v5070, %v5126
      %v5137 = vld [vmem:[#allocation2 + $0x78] sm:$0xf0]
      %v5138 = vld [vmem:[#allocation2 + $0xc0] sm:$0xff]
      %v5139 = vld [vmem:[#allocation2 + $0x108] sm:$0xff]
      %v5140 = vld [vmem:[#allocation2 + $0x150] sm:$0xff]
      %v5141 = vld [vmem:[#allocation2 + $0x198] sm:$0xf]
      %v5142 = vld [vmem:[%s1 + $0xc0] sm:$0xff]
      %v5143 = vld [vmem:[%s1 + $0xc8] sm:$0xff]
      %v5144 = vld [vmem:[%s1 + $0xd0] sm:$0xff]
      %v5145 = vld [vmem:[%s1 + $0xd8] sm:$0xff]
      %5147 = vset.pattern.permute.xlu0 0
      %5148 = vperm.xlu0 %5147, %v5142
      %v5149 = vpop.permute.xlu0 %5148
      %5151 = vset.pattern.permute.xlu0 0
      %5152 = vperm.xlu0 %5151, %v5143
      %v5153 = vpop.permute.xlu0 %5152
      %5155 = vset.pattern.permute.xlu0 0
      %5156 = vperm.xlu0 %5155, %v5144
      %v5157 = vpop.permute.xlu0 %5156
      %5159 = vset.pattern.permute.xlu0 0
      %5160 = vperm.xlu0 %5159, %v5145
      %v5161 = vpop.permute.xlu0 %5160
      %v5162 = vrot.slane %v5149, 4
      %v5163 = vrot.slane %v5153, 4
      %v5164 = vsel %vm1133, %v5162, %v5163
      %v5165 = vrot.slane %v5157, 4
      %v5166 = vsel %vm1133, %v5163, %v5165
      %v5167 = vrot.slane %v5161, 4
      %v5168 = vsel %vm1133, %v5165, %v5167
      %v5174 = vmul.f32 %v5137, %v5162
      %v5175 = vmul.f32 %v5138, %v5164
      %v5176 = vmul.f32 %v5139, %v5166
      %v5177 = vmul.f32 %v5140, %v5168
      %v5178 = vmul.f32 %v5141, %v5167
      %v5184 = vrot.slane %v5174, 2
      %v5185 = vrot.slane %v5175, 2
      %v5186 = vsel %vm1156, %v5184, %v5185
      %v5187 = vrot.slane %v5176, 2
      %v5188 = vsel %vm1156, %v5185, %v5187
      %v5189 = vrot.slane %v5177, 2
      %v5190 = vsel %vm1156, %v5187, %v5189
      %v5191 = vrot.slane %v5178, 2
      %v5192 = vsel %vm1156, %v5189, %v5191
      %v5198 = vadd.f32 %v5132, %v5186
      %v5199 = vadd.f32 %v5133, %v5188
      %v5200 = vadd.f32 %v5134, %v5190
      %v5201 = vadd.f32 %v5135, %v5192
      %v5202 = vadd.f32 %v5136, %v5191
      %v5203 = vld [vmem:[#allocation2 + $0x80] sm:$0xe0]
      %v5204 = vld [vmem:[#allocation2 + $0xc8] sm:$0xff]
      %v5205 = vld [vmem:[#allocation2 + $0x110] sm:$0xff]
      %v5206 = vld [vmem:[#allocation2 + $0x158] sm:$0xff]
      %v5207 = vld [vmem:[#allocation2 + $0x1a0] sm:$0x1f]
      %v5208 = vld [vmem:[%s1 + $0xe0] sm:$0xff]
      %v5209 = vld [vmem:[%s1 + $0xe8] sm:$0xff]
      %v5210 = vld [vmem:[%s1 + $0xf0] sm:$0xff]
      %v5211 = vld [vmem:[%s1 + $0xf8] sm:$0xff]
      %5213 = vset.pattern.permute.xlu0 0
      %5214 = vperm.xlu0 %5213, %v5208
      %v5215 = vpop.permute.xlu0 %5214
      %5217 = vset.pattern.permute.xlu0 0
      %5218 = vperm.xlu0 %5217, %v5209
      %v5219 = vpop.permute.xlu0 %5218
      %5221 = vset.pattern.permute.xlu0 0
      %5222 = vperm.xlu0 %5221, %v5210
      %v5223 = vpop.permute.xlu0 %5222
      %5225 = vset.pattern.permute.xlu0 0
      %5226 = vperm.xlu0 %5225, %v5211
      %v5227 = vpop.permute.xlu0 %5226
      %v5228 = vrot.slane %v5215, 3
      %v5229 = vrot.slane %v5219, 3
      %v5230 = vsel %vm1453, %v5228, %v5229
      %v5231 = vrot.slane %v5223, 3
      %v5232 = vsel %vm1453, %v5229, %v5231
      %v5233 = vrot.slane %v5227, 3
      %v5234 = vsel %vm1453, %v5231, %v5233
      %v5240 = vmul.f32 %v5203, %v5228
      %v5241 = vmul.f32 %v5204, %v5230
      %v5242 = vmul.f32 %v5205, %v5232
      %v5243 = vmul.f32 %v5206, %v5234
      %v5244 = vmul.f32 %v5207, %v5233
      %v5250 = vrot.slane %v5240, 3
      %v5251 = vrot.slane %v5241, 3
      %v5252 = vsel %vm1453, %v5250, %v5251
      %v5253 = vrot.slane %v5242, 3
      %v5254 = vsel %vm1453, %v5251, %v5253
      %v5255 = vrot.slane %v5243, 3
      %v5256 = vsel %vm1453, %v5253, %v5255
      %v5257 = vrot.slane %v5244, 3
      %v5258 = vsel %vm1453, %v5255, %v5257
      %v5264 = vadd.f32 %v5198, %v5252
      %v5265 = vadd.f32 %v5199, %v5254
      %v5266 = vadd.f32 %v5200, %v5256
      %v5267 = vadd.f32 %v5201, %v5258
      %v5268 = vadd.f32 %v5202, %v5257
      %v5269 = vld [vmem:[#allocation2 + $0x88] sm:$0xc0]
      %v5270 = vld [vmem:[#allocation2 + $0xd0] sm:$0xff]
      %v5271 = vld [vmem:[#allocation2 + $0x118] sm:$0xff]
      %v5272 = vld [vmem:[#allocation2 + $0x160] sm:$0xff]
      %v5273 = vld [vmem:[#allocation2 + $0x1a8] sm:$0x3f]
      %v5274 = vld [vmem:[%s1 + $0x100] sm:$0xff]
      %v5275 = vld [vmem:[%s1 + $0x108] sm:$0xff]
      %v5276 = vld [vmem:[%s1 + $0x110] sm:$0xff]
      %v5277 = vld [vmem:[%s1 + $0x118] sm:$0xff]
      %5279 = vset.pattern.permute.xlu0 0
      %5280 = vperm.xlu0 %5279, %v5274
      %v5281 = vpop.permute.xlu0 %5280
      %5283 = vset.pattern.permute.xlu0 0
      %5284 = vperm.xlu0 %5283, %v5275
      %v5285 = vpop.permute.xlu0 %5284
      %5287 = vset.pattern.permute.xlu0 0
      %5288 = vperm.xlu0 %5287, %v5276
      %v5289 = vpop.permute.xlu0 %5288
      %5291 = vset.pattern.permute.xlu0 0
      %5292 = vperm.xlu0 %5291, %v5277
      %v5293 = vpop.permute.xlu0 %5292
      %v5294 = vrot.slane %v5281, 2
      %v5295 = vrot.slane %v5285, 2
      %v5296 = vsel %vm1156, %v5294, %v5295
      %v5297 = vrot.slane %v5289, 2
      %v5298 = vsel %vm1156, %v5295, %v5297
      %v5299 = vrot.slane %v5293, 2
      %v5300 = vsel %vm1156, %v5297, %v5299
      %v5306 = vmul.f32 %v5269, %v5294
      %v5307 = vmul.f32 %v5270, %v5296
      %v5308 = vmul.f32 %v5271, %v5298
      %v5309 = vmul.f32 %v5272, %v5300
      %v5310 = vmul.f32 %v5273, %v5299
      %v5316 = vrot.slane %v5306, 4
      %v5317 = vrot.slane %v5307, 4
      %v5318 = vsel %vm1133, %v5316, %v5317
      %v5319 = vrot.slane %v5308, 4
      %v5320 = vsel %vm1133, %v5317, %v5319
      %v5321 = vrot.slane %v5309, 4
      %v5322 = vsel %vm1133, %v5319, %v5321
      %v5323 = vrot.slane %v5310, 4
      %v5324 = vsel %vm1133, %v5321, %v5323
      %v5330 = vadd.f32 %v5264, %v5318
      %v5331 = vadd.f32 %v5265, %v5320
      %v5332 = vadd.f32 %v5266, %v5322
      %v5333 = vadd.f32 %v5267, %v5324
      %v5334 = vadd.f32 %v5268, %v5323
      %s5335 = scalar_lea.vmem %s3, 3
      %v5336 = vld [vmem:[%s5335] sm:$0x1]
      %v5338 = vperm.slane %v5336, 0
      %v5340 = vadd.f32 %v5330, %v5338
      %v5341 = vadd.f32 %v5331, %v5338
      %v5342 = vadd.f32 %v5332, %v5338
      %v5343 = vadd.f32 %v5333, %v5338
      %v5344 = vadd.f32 %v5334, %v5338
      %v5345 = vadd.f32 %v5340, %v2843
      %v5346 = vadd.f32 %v5341, %v2844
      %v5347 = vadd.f32 %v5342, %v2845
      %v5348 = vadd.f32 %v5343, %v2846
      %v5349 = vadd.f32 %v5344, %v2847
      %v5350 = vpack.c.bf16 %v5346, %v5345
      %v5351 = vpack.c.bf16 %v5348, %v5347
      %v5352 = vpack.c.bf16 %v5349, %v5349
      %s5353 = scalar_lea.vmem %s2, 2304
      %v5354 = vld [vmem:[%s5353] sm:$0xff]
      %v5355 = vld [vmem:[%s5353 + $0x8] sm:$0xff]
      %v5356 = vld [vmem:[%s5353 + $0x10] sm:$0xff]
      %v5357 = vld [vmem:[%s5353 + $0x18] sm:$0xff]
      %v5358 = vld [vmem:[%s5353 + $0x20] sm:$0xf]
      %v5359 = vld [vmem:[%s5353 + $0x24] sm:$0xff]
      %v5360 = vld [vmem:[%s5353 + $0x2c] sm:$0xff]
      %v5361 = vld [vmem:[%s5353 + $0x34] sm:$0xff]
      %v5362 = vld [vmem:[%s5353 + $0x3c] sm:$0xff]
      %v5363 = vld [vmem:[%s5353 + $0x44] sm:$0xf]
      %v5364 = vld [vmem:[%s5353 + $0x48] sm:$0xff]
      %v5365 = vld [vmem:[%s5353 + $0x50] sm:$0xff]
      %v5366 = vld [vmem:[%s5353 + $0x58] sm:$0xff]
      %v5367 = vld [vmem:[%s5353 + $0x60] sm:$0xff]
      %v5368 = vld [vmem:[%s5353 + $0x68] sm:$0xf]
      %v5369 = vld [vmem:[%s5353 + $0x6c] sm:$0xff]
      %v5370 = vld [vmem:[%s5353 + $0x74] sm:$0xff]
      %v5371 = vld [vmem:[%s5353 + $0x7c] sm:$0xff]
      %v5372 = vld [vmem:[%s5353 + $0x84] sm:$0xff]
      %v5373 = vld [vmem:[%s5353 + $0x8c] sm:$0xf]
      %v5374 = vld [vmem:[%s5353 + $0x90] sm:$0xff]
      %v5375 = vld [vmem:[%s5353 + $0x98] sm:$0xff]
      %v5376 = vld [vmem:[%s5353 + $0xa0] sm:$0xff]
      %v5377 = vld [vmem:[%s5353 + $0xa8] sm:$0xff]
      %v5378 = vld [vmem:[%s5353 + $0xb0] sm:$0xf]
      %v5379 = vld [vmem:[%s5353 + $0xb4] sm:$0xff]
      %v5380 = vld [vmem:[%s5353 + $0xbc] sm:$0xff]
      %v5381 = vld [vmem:[%s5353 + $0xc4] sm:$0xff]
      %v5382 = vld [vmem:[%s5353 + $0xcc] sm:$0xff]
      %v5383 = vld [vmem:[%s5353 + $0xd4] sm:$0xf]
      %v5384 = vld [vmem:[%s5353 + $0xd8] sm:$0xff]
      %v5385 = vld [vmem:[%s5353 + $0xe0] sm:$0xff]
      %v5386 = vld [vmem:[%s5353 + $0xe8] sm:$0xff]
      %v5387 = vld [vmem:[%s5353 + $0xf0] sm:$0xff]
      %v5388 = vld [vmem:[%s5353 + $0xf8] sm:$0xf]
      %v5389 = vld [vmem:[%s5353 + $0xfc] sm:$0xff]
      %v5390 = vld [vmem:[%s5353 + $0x104] sm:$0xff]
      %v5391 = vld [vmem:[%s5353 + $0x10c] sm:$0xff]
      %v5392 = vld [vmem:[%s5353 + $0x114] sm:$0xff]
      %v5393 = vld [vmem:[%s5353 + $0x11c] sm:$0xf]
      %v5394 = vld [vmem:[%s5353 + $0x120] sm:$0xff]
      %v5395 = vld [vmem:[%s5353 + $0x128] sm:$0xff]
      %v5396 = vld [vmem:[%s5353 + $0x130] sm:$0xff]
      %v5397 = vld [vmem:[%s5353 + $0x138] sm:$0xff]
      %v5398 = vld [vmem:[%s5353 + $0x140] sm:$0xf]
      %v5399 = vld [vmem:[%s5353 + $0x144] sm:$0xff]
      %v5400 = vld [vmem:[%s5353 + $0x14c] sm:$0xff]
      %v5401 = vld [vmem:[%s5353 + $0x154] sm:$0xff]
      %v5402 = vld [vmem:[%s5353 + $0x15c] sm:$0xff]
      %v5403 = vld [vmem:[%s5353 + $0x164] sm:$0xf]
      %v5404 = vld [vmem:[%s5353 + $0x168] sm:$0xff]
      %v5405 = vld [vmem:[%s5353 + $0x170] sm:$0xff]
      %v5406 = vld [vmem:[%s5353 + $0x178] sm:$0xff]
      %v5407 = vld [vmem:[%s5353 + $0x180] sm:$0xff]
      %v5408 = vld [vmem:[%s5353 + $0x188] sm:$0xf]
      %v5409 = vld [vmem:[%s5353 + $0x18c] sm:$0xff]
      %v5410 = vld [vmem:[%s5353 + $0x194] sm:$0xff]
      %v5411 = vld [vmem:[%s5353 + $0x19c] sm:$0xff]
      %v5412 = vld [vmem:[%s5353 + $0x1a4] sm:$0xff]
      %v5413 = vld [vmem:[%s5353 + $0x1ac] sm:$0xf]
      %v5414 = vld [vmem:[%s5353 + $0x1b0] sm:$0xff]
      %v5415 = vld [vmem:[%s5353 + $0x1b8] sm:$0xff]
      %v5416 = vld [vmem:[%s5353 + $0x1c0] sm:$0xff]
      %v5417 = vld [vmem:[%s5353 + $0x1c8] sm:$0xff]
      %v5418 = vld [vmem:[%s5353 + $0x1d0] sm:$0xf]
      %v5419 = vld [vmem:[%s5353 + $0x1d4] sm:$0xff]
      %v5420 = vld [vmem:[%s5353 + $0x1dc] sm:$0xff]
      %v5421 = vld [vmem:[%s5353 + $0x1e4] sm:$0xff]
      %v5422 = vld [vmem:[%s5353 + $0x1ec] sm:$0xff]
      %v5423 = vld [vmem:[%s5353 + $0x1f4] sm:$0xf]
      %v5424 = vld [vmem:[%s5353 + $0x1f8] sm:$0xff]
      %v5425 = vld [vmem:[%s5353 + $0x200] sm:$0xff]
      %v5426 = vld [vmem:[%s5353 + $0x208] sm:$0xff]
      %v5427 = vld [vmem:[%s5353 + $0x210] sm:$0xff]
      %v5428 = vld [vmem:[%s5353 + $0x218] sm:$0xf]
      %v5429 = vld [vmem:[%s5353 + $0x21c] sm:$0xff]
      %v5430 = vld [vmem:[%s5353 + $0x224] sm:$0xff]
      %v5431 = vld [vmem:[%s5353 + $0x22c] sm:$0xff]
      %v5432 = vld [vmem:[%s5353 + $0x234] sm:$0xff]
      %v5433 = vld [vmem:[%s5353 + $0x23c] sm:$0xf]
      %v5437 = vrot.slane %v5350, 1
      %v5438 = vrot.slane %v5351, 1
      %v5439 = vsel %vm1672, %v5437, %v5438
      %v5440 = vrot.slane %v5352, 1
      %v5441 = vsel %vm1672, %v5438, %v5440
      %v5524 = vunpack.c.l.b16 %v5354
      %v5525 = vunpack.c.h.b16 %v5354
      %v5526 = vunpack.c.l.b16 %v5355
      %v5527 = vunpack.c.h.b16 %v5355
      %v5528 = vunpack.c.l.b16 %v5356
      %v5529 = vunpack.c.h.b16 %v5356
      %v5530 = vunpack.c.l.b16 %v5357
      %v5531 = vunpack.c.h.b16 %v5357
      %v5532 = vunpack.c.l.b16 %v5358
      %v5533 = vunpack.c.l.b16 %v5359
      %v5534 = vunpack.c.h.b16 %v5359
      %v5535 = vunpack.c.l.b16 %v5360
      %v5536 = vunpack.c.h.b16 %v5360
      %v5537 = vunpack.c.l.b16 %v5361
      %v5538 = vunpack.c.h.b16 %v5361
      %v5539 = vunpack.c.l.b16 %v5362
      %v5540 = vunpack.c.h.b16 %v5362
      %v5541 = vunpack.c.l.b16 %v5363
      %v5542 = vunpack.c.l.b16 %v5364
      %v5543 = vunpack.c.h.b16 %v5364
      %v5544 = vunpack.c.l.b16 %v5365
      %v5545 = vunpack.c.h.b16 %v5365
      %v5546 = vunpack.c.l.b16 %v5366
      %v5547 = vunpack.c.h.b16 %v5366
      %v5548 = vunpack.c.l.b16 %v5367
      %v5549 = vunpack.c.h.b16 %v5367
      %v5550 = vunpack.c.l.b16 %v5368
      %v5551 = vunpack.c.l.b16 %v5369
      %v5552 = vunpack.c.h.b16 %v5369
      %v5553 = vunpack.c.l.b16 %v5370
      %v5554 = vunpack.c.h.b16 %v5370
      %v5555 = vunpack.c.l.b16 %v5371
      %v5556 = vunpack.c.h.b16 %v5371
      %v5557 = vunpack.c.l.b16 %v5372
      %v5558 = vunpack.c.h.b16 %v5372
      %v5559 = vunpack.c.l.b16 %v5373
      %v5560 = vunpack.c.l.b16 %v5374
      %v5561 = vunpack.c.h.b16 %v5374
      %v5562 = vunpack.c.l.b16 %v5375
      %v5563 = vunpack.c.h.b16 %v5375
      %v5564 = vunpack.c.l.b16 %v5376
      %v5565 = vunpack.c.h.b16 %v5376
      %v5566 = vunpack.c.l.b16 %v5377
      %v5567 = vunpack.c.h.b16 %v5377
      %v5568 = vunpack.c.l.b16 %v5378
      %v5569 = vunpack.c.l.b16 %v5379
      %v5570 = vunpack.c.h.b16 %v5379
      %v5571 = vunpack.c.l.b16 %v5380
      %v5572 = vunpack.c.h.b16 %v5380
      %v5573 = vunpack.c.l.b16 %v5381
      %v5574 = vunpack.c.h.b16 %v5381
      %v5575 = vunpack.c.l.b16 %v5382
      %v5576 = vunpack.c.h.b16 %v5382
      %v5577 = vunpack.c.l.b16 %v5383
      %v5578 = vunpack.c.l.b16 %v5384
      %v5579 = vunpack.c.h.b16 %v5384
      %v5580 = vunpack.c.l.b16 %v5385
      %v5581 = vunpack.c.h.b16 %v5385
      %v5582 = vunpack.c.l.b16 %v5386
      %v5583 = vunpack.c.h.b16 %v5386
      %v5584 = vunpack.c.l.b16 %v5387
      %v5585 = vunpack.c.h.b16 %v5387
      %v5586 = vunpack.c.l.b16 %v5388
      %v5587 = vunpack.c.l.b16 %v5389
      %v5588 = vunpack.c.h.b16 %v5389
      %v5589 = vunpack.c.l.b16 %v5390
      %v5590 = vunpack.c.h.b16 %v5390
      %v5591 = vunpack.c.l.b16 %v5391
      %v5592 = vunpack.c.h.b16 %v5391
      %v5593 = vunpack.c.l.b16 %v5392
      %v5594 = vunpack.c.h.b16 %v5392
      %v5595 = vunpack.c.l.b16 %v5393
      %v5596 = vunpack.c.l.b16 %v5394
      %v5597 = vunpack.c.h.b16 %v5394
      %v5598 = vunpack.c.l.b16 %v5395
      %v5599 = vunpack.c.h.b16 %v5395
      %v5600 = vunpack.c.l.b16 %v5396
      %v5601 = vunpack.c.h.b16 %v5396
      %v5602 = vunpack.c.l.b16 %v5397
      %v5603 = vunpack.c.h.b16 %v5397
      %v5604 = vunpack.c.l.b16 %v5398
      %v5605 = vunpack.c.l.b16 %v5399
      %v5606 = vunpack.c.h.b16 %v5399
      %v5607 = vunpack.c.l.b16 %v5400
      %v5608 = vunpack.c.h.b16 %v5400
      %v5609 = vunpack.c.l.b16 %v5401
      %v5610 = vunpack.c.h.b16 %v5401
      %v5611 = vunpack.c.l.b16 %v5402
      %v5612 = vunpack.c.h.b16 %v5402
      %v5613 = vunpack.c.l.b16 %v5403
      %v5614 = vunpack.c.l.b16 %v5404
      %v5615 = vunpack.c.h.b16 %v5404
      %v5616 = vunpack.c.l.b16 %v5405
      %v5617 = vunpack.c.h.b16 %v5405
      %v5618 = vunpack.c.l.b16 %v5406
      %v5619 = vunpack.c.h.b16 %v5406
      %v5620 = vunpack.c.l.b16 %v5407
      %v5621 = vunpack.c.h.b16 %v5407
      %v5622 = vunpack.c.l.b16 %v5408
      %v5623 = vunpack.c.l.b16 %v5409
      %v5624 = vunpack.c.h.b16 %v5409
      %v5625 = vunpack.c.l.b16 %v5410
      %v5626 = vunpack.c.h.b16 %v5410
      %v5627 = vunpack.c.l.b16 %v5411
      %v5628 = vunpack.c.h.b16 %v5411
      %v5629 = vunpack.c.l.b16 %v5412
      %v5630 = vunpack.c.h.b16 %v5412
      %v5631 = vunpack.c.l.b16 %v5413
      %v5632 = vunpack.c.l.b16 %v5414
      %v5633 = vunpack.c.h.b16 %v5414
      %v5634 = vunpack.c.l.b16 %v5415
      %v5635 = vunpack.c.h.b16 %v5415
      %v5636 = vunpack.c.l.b16 %v5416
      %v5637 = vunpack.c.h.b16 %v5416
      %v5638 = vunpack.c.l.b16 %v5417
      %v5639 = vunpack.c.h.b16 %v5417
      %v5640 = vunpack.c.l.b16 %v5418
      %v5641 = vunpack.c.l.b16 %v5419
      %v5642 = vunpack.c.h.b16 %v5419
      %v5643 = vunpack.c.l.b16 %v5420
      %v5644 = vunpack.c.h.b16 %v5420
      %v5645 = vunpack.c.l.b16 %v5421
      %v5646 = vunpack.c.h.b16 %v5421
      %v5647 = vunpack.c.l.b16 %v5422
      %v5648 = vunpack.c.h.b16 %v5422
      %v5649 = vunpack.c.l.b16 %v5423
      %v5650 = vunpack.c.l.b16 %v5424
      %v5651 = vunpack.c.h.b16 %v5424
      %v5652 = vunpack.c.l.b16 %v5425
      %v5653 = vunpack.c.h.b16 %v5425
      %v5654 = vunpack.c.l.b16 %v5426
      %v5655 = vunpack.c.h.b16 %v5426
      %v5656 = vunpack.c.l.b16 %v5427
      %v5657 = vunpack.c.h.b16 %v5427
      %v5658 = vunpack.c.l.b16 %v5428
      %v5659 = vunpack.c.l.b16 %v5429
      %v5660 = vunpack.c.h.b16 %v5429
      %v5661 = vunpack.c.l.b16 %v5430
      %v5662 = vunpack.c.h.b16 %v5430
      %v5663 = vunpack.c.l.b16 %v5431
      %v5664 = vunpack.c.h.b16 %v5431
      %v5665 = vunpack.c.l.b16 %v5432
      %v5666 = vunpack.c.h.b16 %v5432
      %v5667 = vunpack.c.l.b16 %v5433
      %v5668 = vpack.c.b16 %v5533, %v5524
      %v5669 = vpack.c.b16 %v5534, %v5525
      %v5670 = vpack.c.b16 %v5535, %v5526
      %v5671 = vpack.c.b16 %v5536, %v5527
      %v5672 = vpack.c.b16 %v5537, %v5528
      %v5673 = vpack.c.b16 %v5538, %v5529
      %v5674 = vpack.c.b16 %v5539, %v5530
      %v5675 = vpack.c.b16 %v5540, %v5531
      %v5676 = vpack.c.b16 %v5541, %v5532
      %v5677 = vpack.c.b16 %v5551, %v5542
      %v5678 = vpack.c.b16 %v5552, %v5543
      %v5679 = vpack.c.b16 %v5553, %v5544
      %v5680 = vpack.c.b16 %v5554, %v5545
      %v5681 = vpack.c.b16 %v5555, %v5546
      %v5682 = vpack.c.b16 %v5556, %v5547
      %v5683 = vpack.c.b16 %v5557, %v5548
      %v5684 = vpack.c.b16 %v5558, %v5549
      %v5685 = vpack.c.b16 %v5559, %v5550
      %v5686 = vpack.c.b16 %v5569, %v5560
      %v5687 = vpack.c.b16 %v5570, %v5561
      %v5688 = vpack.c.b16 %v5571, %v5562
      %v5689 = vpack.c.b16 %v5572, %v5563
      %v5690 = vpack.c.b16 %v5573, %v5564
      %v5691 = vpack.c.b16 %v5574, %v5565
      %v5692 = vpack.c.b16 %v5575, %v5566
      %v5693 = vpack.c.b16 %v5576, %v5567
      %v5694 = vpack.c.b16 %v5577, %v5568
      %v5695 = vpack.c.b16 %v5587, %v5578
      %v5696 = vpack.c.b16 %v5588, %v5579
      %v5697 = vpack.c.b16 %v5589, %v5580
      %v5698 = vpack.c.b16 %v5590, %v5581
      %v5699 = vpack.c.b16 %v5591, %v5582
      %v5700 = vpack.c.b16 %v5592, %v5583
      %v5701 = vpack.c.b16 %v5593, %v5584
      %v5702 = vpack.c.b16 %v5594, %v5585
      %v5703 = vpack.c.b16 %v5595, %v5586
      %v5704 = vpack.c.b16 %v5605, %v5596
      %v5705 = vpack.c.b16 %v5606, %v5597
      %v5706 = vpack.c.b16 %v5607, %v5598
      %v5707 = vpack.c.b16 %v5608, %v5599
      %v5708 = vpack.c.b16 %v5609, %v5600
      %v5709 = vpack.c.b16 %v5610, %v5601
      %v5710 = vpack.c.b16 %v5611, %v5602
      %v5711 = vpack.c.b16 %v5612, %v5603
      %v5712 = vpack.c.b16 %v5613, %v5604
      %v5713 = vpack.c.b16 %v5623, %v5614
      %v5714 = vpack.c.b16 %v5624, %v5615
      %v5715 = vpack.c.b16 %v5625, %v5616
      %v5716 = vpack.c.b16 %v5626, %v5617
      %v5717 = vpack.c.b16 %v5627, %v5618
      %v5718 = vpack.c.b16 %v5628, %v5619
      %v5719 = vpack.c.b16 %v5629, %v5620
      %v5720 = vpack.c.b16 %v5630, %v5621
      %v5721 = vpack.c.b16 %v5631, %v5622
      %v5722 = vpack.c.b16 %v5641, %v5632
      %v5723 = vpack.c.b16 %v5642, %v5633
      %v5724 = vpack.c.b16 %v5643, %v5634
      %v5725 = vpack.c.b16 %v5644, %v5635
      %v5726 = vpack.c.b16 %v5645, %v5636
      %v5727 = vpack.c.b16 %v5646, %v5637
      %v5728 = vpack.c.b16 %v5647, %v5638
      %v5729 = vpack.c.b16 %v5648, %v5639
      %v5730 = vpack.c.b16 %v5649, %v5640
      %v5731 = vpack.c.b16 %v5659, %v5650
      %v5732 = vpack.c.b16 %v5660, %v5651
      %v5733 = vpack.c.b16 %v5661, %v5652
      %v5734 = vpack.c.b16 %v5662, %v5653
      %v5735 = vpack.c.b16 %v5663, %v5654
      %v5736 = vpack.c.b16 %v5664, %v5655
      %v5737 = vpack.c.b16 %v5665, %v5656
      %v5738 = vpack.c.b16 %v5666, %v5657
      %v5739 = vpack.c.b16 %v5667, %v5658
      %5812 = vmatpush.bf16.msra.mxu0 %v5731
      %5813 = vmatpush.bf16.msra.mxu0 %v5722
      %5814 = vmatpush.bf16.msra.mxu0 %v5713
      %5815 = vmatpush.bf16.msra.mxu0 %v5704
      %5816 = vmatpush.bf16.msra.mxu0 %v5695
      %5817 = vmatpush.bf16.msra.mxu0 %v5686
      %5818 = vmatpush.bf16.msra.mxu0 %v5677
      %5819 = vmatpush.bf16.msra.mxu0 %v5668
      %5820 = vmatmul.bf16.gmra.mxu0 %v5439
      %v5821 = vpop.f32.mrf.mxu0
      %v5822 = vadd.f32 0.0, %v5821
      %v5823 = vpop.f32.mrf.mxu0
      %v5824 = vadd.f32 0.0, %v5823
      %5825 = vmatmul.bf16.gmra.mxu0 %v5441
      %v5826 = vpop.f32.mrf.mxu0
      %v5827 = vadd.f32 0.0, %v5826
      %v5828 = vpop.f32.mrf.mxu0
      %v5829 = vadd.f32 0.0, %v5828
      %5830 = vdwg.mxu0
      %5831 = vmatpush.bf16.msra.mxu0 %v5732
      %5832 = vmatpush.bf16.msra.mxu0 %v5723
      %5833 = vmatpush.bf16.msra.mxu0 %v5714
      %5834 = vmatpush.bf16.msra.mxu0 %v5705
      %5835 = vmatpush.bf16.msra.mxu0 %v5696
      %5836 = vmatpush.bf16.msra.mxu0 %v5687
      %5837 = vmatpush.bf16.msra.mxu0 %v5678
      %5838 = vmatpush.bf16.msra.mxu0 %v5669
      %5839 = vmatmul.bf16.gmra.mxu0 %v5439
      %v5840 = vpop.f32.mrf.mxu0
      %v5841 = vadd.f32 0.0, %v5840
      %v5842 = vpop.f32.mrf.mxu0
      %v5843 = vadd.f32 0.0, %v5842
      %5844 = vmatmul.bf16.gmra.mxu0 %v5441
      %v5845 = vpop.f32.mrf.mxu0
      %v5846 = vadd.f32 0.0, %v5845
      %v5847 = vpop.f32.mrf.mxu0
      %v5848 = vadd.f32 0.0, %v5847
      %5849 = vdwg.mxu0
      %5850 = vmatpush.bf16.msra.mxu0 %v5733
      %5851 = vmatpush.bf16.msra.mxu0 %v5724
      %5852 = vmatpush.bf16.msra.mxu0 %v5715
      %5853 = vmatpush.bf16.msra.mxu0 %v5706
      %5854 = vmatpush.bf16.msra.mxu0 %v5697
      %5855 = vmatpush.bf16.msra.mxu0 %v5688
      %5856 = vmatpush.bf16.msra.mxu0 %v5679
      %5857 = vmatpush.bf16.msra.mxu0 %v5670
      %5858 = vmatmul.bf16.gmra.mxu0 %v5439
      %v5859 = vpop.f32.mrf.mxu0
      %v5860 = vadd.f32 0.0, %v5859
      %v5861 = vpop.f32.mrf.mxu0
      %v5862 = vadd.f32 0.0, %v5861
      %5863 = vmatmul.bf16.gmra.mxu0 %v5441
      %v5864 = vpop.f32.mrf.mxu0
      %v5865 = vadd.f32 0.0, %v5864
      %v5866 = vpop.f32.mrf.mxu0
      %v5867 = vadd.f32 0.0, %v5866
      %5868 = vdwg.mxu0
      %5869 = vmatpush.bf16.msra.mxu0 %v5734
      %5870 = vmatpush.bf16.msra.mxu0 %v5725
      %5871 = vmatpush.bf16.msra.mxu0 %v5716
      %5872 = vmatpush.bf16.msra.mxu0 %v5707
      %5873 = vmatpush.bf16.msra.mxu0 %v5698
      %5874 = vmatpush.bf16.msra.mxu0 %v5689
      %5875 = vmatpush.bf16.msra.mxu0 %v5680
      %5876 = vmatpush.bf16.msra.mxu0 %v5671
      %5877 = vmatmul.bf16.gmra.mxu0 %v5439
      %v5878 = vpop.f32.mrf.mxu0
      %v5879 = vadd.f32 0.0, %v5878
      %v5880 = vpop.f32.mrf.mxu0
      %v5881 = vadd.f32 0.0, %v5880
      %5882 = vmatmul.bf16.gmra.mxu0 %v5441
      %v5883 = vpop.f32.mrf.mxu0
      %v5884 = vadd.f32 0.0, %v5883
      %v5885 = vpop.f32.mrf.mxu0
      %v5886 = vadd.f32 0.0, %v5885
      %5887 = vdwg.mxu0
      %5888 = vmatpush.bf16.msra.mxu0 %v5735
      %5889 = vmatpush.bf16.msra.mxu0 %v5726
      %5890 = vmatpush.bf16.msra.mxu0 %v5717
      %5891 = vmatpush.bf16.msra.mxu0 %v5708
      %5892 = vmatpush.bf16.msra.mxu0 %v5699
      %5893 = vmatpush.bf16.msra.mxu0 %v5690
      %5894 = vmatpush.bf16.msra.mxu0 %v5681
      %5895 = vmatpush.bf16.msra.mxu0 %v5672
      %5896 = vmatmul.bf16.gmra.mxu0 %v5439
      %v5897 = vpop.f32.mrf.mxu0
      %v5898 = vadd.f32 0.0, %v5897
      %v5899 = vpop.f32.mrf.mxu0
      %v5900 = vadd.f32 0.0, %v5899
      %5901 = vmatmul.bf16.gmra.mxu0 %v5441
      %v5902 = vpop.f32.mrf.mxu0
      %v5903 = vadd.f32 0.0, %v5902
      %v5904 = vpop.f32.mrf.mxu0
      %v5905 = vadd.f32 0.0, %v5904
      %5906 = vdwg.mxu0
      %5907 = vmatpush.bf16.msra.mxu0 %v5736
      %5908 = vmatpush.bf16.msra.mxu0 %v5727
      %5909 = vmatpush.bf16.msra.mxu0 %v5718
      %5910 = vmatpush.bf16.msra.mxu0 %v5709
      %5911 = vmatpush.bf16.msra.mxu0 %v5700
      %5912 = vmatpush.bf16.msra.mxu0 %v5691
      %5913 = vmatpush.bf16.msra.mxu0 %v5682
      %5914 = vmatpush.bf16.msra.mxu0 %v5673
      %5915 = vmatmul.bf16.gmra.mxu0 %v5439
      %v5916 = vpop.f32.mrf.mxu0
      %v5917 = vadd.f32 0.0, %v5916
      %v5918 = vpop.f32.mrf.mxu0
      %v5919 = vadd.f32 0.0, %v5918
      %5920 = vmatmul.bf16.gmra.mxu0 %v5441
      %v5921 = vpop.f32.mrf.mxu0
      %v5922 = vadd.f32 0.0, %v5921
      %v5923 = vpop.f32.mrf.mxu0
      %v5924 = vadd.f32 0.0, %v5923
      %5925 = vdwg.mxu0
      %5926 = vmatpush.bf16.msra.mxu0 %v5737
      %5927 = vmatpush.bf16.msra.mxu0 %v5728
      %5928 = vmatpush.bf16.msra.mxu0 %v5719
      %5929 = vmatpush.bf16.msra.mxu0 %v5710
      %5930 = vmatpush.bf16.msra.mxu0 %v5701
      %5931 = vmatpush.bf16.msra.mxu0 %v5692
      %5932 = vmatpush.bf16.msra.mxu0 %v5683
      %5933 = vmatpush.bf16.msra.mxu0 %v5674
      %5934 = vmatmul.bf16.gmra.mxu0 %v5439
      %v5935 = vpop.f32.mrf.mxu0
      %v5936 = vadd.f32 0.0, %v5935
      %v5937 = vpop.f32.mrf.mxu0
      %v5938 = vadd.f32 0.0, %v5937
      %5939 = vmatmul.bf16.gmra.mxu0 %v5441
      %v5940 = vpop.f32.mrf.mxu0
      %v5941 = vadd.f32 0.0, %v5940
      %v5942 = vpop.f32.mrf.mxu0
      %v5943 = vadd.f32 0.0, %v5942
      %5944 = vdwg.mxu0
      %5945 = vmatpush.bf16.msra.mxu0 %v5738
      %5946 = vmatpush.bf16.msra.mxu0 %v5729
      %5947 = vmatpush.bf16.msra.mxu0 %v5720
      %5948 = vmatpush.bf16.msra.mxu0 %v5711
      %5949 = vmatpush.bf16.msra.mxu0 %v5702
      %5950 = vmatpush.bf16.msra.mxu0 %v5693
      %5951 = vmatpush.bf16.msra.mxu0 %v5684
      %5952 = vmatpush.bf16.msra.mxu0 %v5675
      %5953 = vmatmul.bf16.gmra.mxu0 %v5439
      %v5954 = vpop.f32.mrf.mxu0
      %v5955 = vadd.f32 0.0, %v5954
      %v5956 = vpop.f32.mrf.mxu0
      %v5957 = vadd.f32 0.0, %v5956
      %5958 = vmatmul.bf16.gmra.mxu0 %v5441
      %v5959 = vpop.f32.mrf.mxu0
      %v5960 = vadd.f32 0.0, %v5959
      %v5961 = vpop.f32.mrf.mxu0
      %v5962 = vadd.f32 0.0, %v5961
      %5963 = vdwg.mxu0
      %5964 = vmatpush.bf16.msra.mxu0 %v5739
      %5965 = vmatpush.bf16.msra.mxu0 %v5730
      %5966 = vmatpush.bf16.msra.mxu0 %v5721
      %5967 = vmatpush.bf16.msra.mxu0 %v5712
      %5968 = vmatpush.bf16.msra.mxu0 %v5703
      %5969 = vmatpush.bf16.msra.mxu0 %v5694
      %5970 = vmatpush.bf16.msra.mxu0 %v5685
      %5971 = vmatpush.bf16.msra.mxu0 %v5676
      %5972 = vmatmul.bf16.gmra.mxu0 %v5439
      %v5973 = vpop.f32.mrf.mxu0
      %v5974 = vadd.f32 0.0, %v5973
      %v5975 = vpop.f32.mrf.mxu0
      %v5976 = vadd.f32 0.0, %v5975
      %5977 = vmatmul.bf16.gmra.mxu0 %v5441
      %v5978 = vpop.f32.mrf.mxu0
      %v5979 = vadd.f32 0.0, %v5978
      %v5980 = vpop.f32.mrf.mxu0
      %v5981 = vadd.f32 0.0, %v5980
      %5982 = vdwg.mxu0
      %5983 = vst [vmem:[#allocation2 + $0x48] sm:$0xff] %v5822
      %5984 = vst [vmem:[#allocation2 + $0x50] sm:$0xff] %v5841
      %5985 = vst [vmem:[#allocation2 + $0x58] sm:$0xff] %v5860
      %5986 = vst [vmem:[#allocation2 + $0x60] sm:$0xff] %v5879
      %5987 = vst [vmem:[#allocation2 + $0x68] sm:$0xff] %v5898
      %5988 = vst [vmem:[#allocation2 + $0x70] sm:$0xff] %v5917
      %5989 = vst [vmem:[#allocation2 + $0x78] sm:$0xff] %v5936
      %5990 = vst [vmem:[#allocation2 + $0x80] sm:$0xff] %v5955
      %5991 = vst [vmem:[#allocation2 + $0x88] sm:$0xff] %v5974
      %5992 = vst [vmem:[#allocation2 + $0x90] sm:$0xff] %v5824
      %5993 = vst [vmem:[#allocation2 + $0x98] sm:$0xff] %v5843
      %5994 = vst [vmem:[#allocation2 + $0xa0] sm:$0xff] %v5862
      %5995 = vst [vmem:[#allocation2 + $0xa8] sm:$0xff] %v5881
      %5996 = vst [vmem:[#allocation2 + $0xb0] sm:$0xff] %v5900
      %5997 = vst [vmem:[#allocation2 + $0xb8] sm:$0xff] %v5919
      %5998 = vst [vmem:[#allocation2 + $0xc0] sm:$0xff] %v5938
      %5999 = vst [vmem:[#allocation2 + $0xc8] sm:$0xff] %v5957
      %6000 = vst [vmem:[#allocation2 + $0xd0] sm:$0xff] %v5976
      %6001 = vst [vmem:[#allocation2 + $0xd8] sm:$0xff] %v5827
      %6002 = vst [vmem:[#allocation2 + $0xe0] sm:$0xff] %v5846
      %6003 = vst [vmem:[#allocation2 + $0xe8] sm:$0xff] %v5865
      %6004 = vst [vmem:[#allocation2 + $0xf0] sm:$0xff] %v5884
      %6005 = vst [vmem:[#allocation2 + $0xf8] sm:$0xff] %v5903
      %6006 = vst [vmem:[#allocation2 + $0x100] sm:$0xff] %v5922
      %6007 = vst [vmem:[#allocation2 + $0x108] sm:$0xff] %v5941
      %6008 = vst [vmem:[#allocation2 + $0x110] sm:$0xff] %v5960
      %6009 = vst [vmem:[#allocation2 + $0x118] sm:$0xff] %v5979
      %6010 = vst [vmem:[#allocation2 + $0x120] sm:$0xff] %v5829
      %6011 = vst [vmem:[#allocation2 + $0x128] sm:$0xff] %v5848
      %6012 = vst [vmem:[#allocation2 + $0x130] sm:$0xff] %v5867
      %6013 = vst [vmem:[#allocation2 + $0x138] sm:$0xff] %v5886
      %6014 = vst [vmem:[#allocation2 + $0x140] sm:$0xff] %v5905
      %6015 = vst [vmem:[#allocation2 + $0x148] sm:$0xff] %v5924
      %6016 = vst [vmem:[#allocation2 + $0x150] sm:$0xff] %v5943
      %6017 = vst [vmem:[#allocation2 + $0x158] sm:$0xff] %v5962
      %6018 = vst [vmem:[#allocation2 + $0x160] sm:$0xff] %v5981
      %v6019 = vld [vmem:[#allocation2] sm:$0xfc]
      %v6020 = vld [vmem:[#allocation2 + $0x48] sm:$0xff]
      %v6021 = vld [vmem:[#allocation2 + $0x90] sm:$0xff]
      %v6022 = vld [vmem:[#allocation2 + $0xd8] sm:$0xff]
      %v6023 = vld [vmem:[#allocation2 + $0x120] sm:$0x3]
      %v6024 = vld [vmem:[%s1] sm:$0xff]
      %v6025 = vld [vmem:[%s1 + $0x8] sm:$0xff]
      %v6026 = vld [vmem:[%s1 + $0x10] sm:$0xff]
      %v6027 = vld [vmem:[%s1 + $0x18] sm:$0xff]
      %6029 = vset.pattern.permute.xlu0 0
      %6030 = vperm.xlu0 %6029, %v6024
      %v6031 = vpop.permute.xlu0 %6030
      %6033 = vset.pattern.permute.xlu0 0
      %6034 = vperm.xlu0 %6033, %v6025
      %v6035 = vpop.permute.xlu0 %6034
      %6037 = vset.pattern.permute.xlu0 0
      %6038 = vperm.xlu0 %6037, %v6026
      %v6039 = vpop.permute.xlu0 %6038
      %6041 = vset.pattern.permute.xlu0 0
      %6042 = vperm.xlu0 %6041, %v6027
      %v6043 = vpop.permute.xlu0 %6042
      %v6044 = vrot.slane %v6031, 6
      %v6045 = vrot.slane %v6035, 6
      %v6046 = vsel %vm1017, %v6044, %v6045
      %v6047 = vrot.slane %v6039, 6
      %v6048 = vsel %vm1017, %v6045, %v6047
      %v6049 = vrot.slane %v6043, 6
      %v6050 = vsel %vm1017, %v6047, %v6049
      %v6056 = vmul.f32 %v6019, %v6044
      %v6057 = vmul.f32 %v6020, %v6046
      %v6058 = vmul.f32 %v6021, %v6048
      %v6059 = vmul.f32 %v6022, %v6050
      %v6060 = vmul.f32 %v6023, %v6049
      %v6061 = vadd.f32 %v6056, 0.0
      %v6062 = vadd.f32 %v6057, 0.0
      %v6063 = vadd.f32 %v6058, 0.0
      %v6064 = vadd.f32 %v6059, 0.0
      %v6065 = vadd.f32 %v6060, 0.0
      %v6066 = vld [vmem:[#allocation2 + $0x8] sm:$0xf8]
      %v6067 = vld [vmem:[#allocation2 + $0x50] sm:$0xff]
      %v6068 = vld [vmem:[#allocation2 + $0x98] sm:$0xff]
      %v6069 = vld [vmem:[#allocation2 + $0xe0] sm:$0xff]
      %v6070 = vld [vmem:[#allocation2 + $0x128] sm:$0x7]
      %v6071 = vld [vmem:[%s1 + $0x20] sm:$0xff]
      %v6072 = vld [vmem:[%s1 + $0x28] sm:$0xff]
      %v6073 = vld [vmem:[%s1 + $0x30] sm:$0xff]
      %v6074 = vld [vmem:[%s1 + $0x38] sm:$0xff]
      %6076 = vset.pattern.permute.xlu0 0
      %6077 = vperm.xlu0 %6076, %v6071
      %v6078 = vpop.permute.xlu0 %6077
      %6080 = vset.pattern.permute.xlu0 0
      %6081 = vperm.xlu0 %6080, %v6072
      %v6082 = vpop.permute.xlu0 %6081
      %6084 = vset.pattern.permute.xlu0 0
      %6085 = vperm.xlu0 %6084, %v6073
      %v6086 = vpop.permute.xlu0 %6085
      %6088 = vset.pattern.permute.xlu0 0
      %6089 = vperm.xlu0 %6088, %v6074
      %v6090 = vpop.permute.xlu0 %6089
      %v6091 = vrot.slane %v6078, 5
      %v6092 = vrot.slane %v6082, 5
      %v6093 = vsel %vm1065, %v6091, %v6092
      %v6094 = vrot.slane %v6086, 5
      %v6095 = vsel %vm1065, %v6092, %v6094
      %v6096 = vrot.slane %v6090, 5
      %v6097 = vsel %vm1065, %v6094, %v6096
      %v6103 = vmul.f32 %v6066, %v6091
      %v6104 = vmul.f32 %v6067, %v6093
      %v6105 = vmul.f32 %v6068, %v6095
      %v6106 = vmul.f32 %v6069, %v6097
      %v6107 = vmul.f32 %v6070, %v6096
      %v6113 = vrot.slane %v6103, 1
      %v6114 = vrot.slane %v6104, 1
      %v6115 = vsel %vm1088, %v6113, %v6114
      %v6116 = vrot.slane %v6105, 1
      %v6117 = vsel %vm1088, %v6114, %v6116
      %v6118 = vrot.slane %v6106, 1
      %v6119 = vsel %vm1088, %v6116, %v6118
      %v6120 = vrot.slane %v6107, 1
      %v6121 = vsel %vm1088, %v6118, %v6120
      %v6127 = vadd.f32 %v6061, %v6115
      %v6128 = vadd.f32 %v6062, %v6117
      %v6129 = vadd.f32 %v6063, %v6119
      %v6130 = vadd.f32 %v6064, %v6121
      %v6131 = vadd.f32 %v6065, %v6120
      %v6132 = vld [vmem:[#allocation2 + $0x10] sm:$0xf0]
      %v6133 = vld [vmem:[#allocation2 + $0x58] sm:$0xff]
      %v6134 = vld [vmem:[#allocation2 + $0xa0] sm:$0xff]
      %v6135 = vld [vmem:[#allocation2 + $0xe8] sm:$0xff]
      %v6136 = vld [vmem:[#allocation2 + $0x130] sm:$0xf]
      %v6137 = vld [vmem:[%s1 + $0x40] sm:$0xff]
      %v6138 = vld [vmem:[%s1 + $0x48] sm:$0xff]
      %v6139 = vld [vmem:[%s1 + $0x50] sm:$0xff]
      %v6140 = vld [vmem:[%s1 + $0x58] sm:$0xff]
      %6142 = vset.pattern.permute.xlu0 0
      %6143 = vperm.xlu0 %6142, %v6137
      %v6144 = vpop.permute.xlu0 %6143
      %6146 = vset.pattern.permute.xlu0 0
      %6147 = vperm.xlu0 %6146, %v6138
      %v6148 = vpop.permute.xlu0 %6147
      %6150 = vset.pattern.permute.xlu0 0
      %6151 = vperm.xlu0 %6150, %v6139
      %v6152 = vpop.permute.xlu0 %6151
      %6154 = vset.pattern.permute.xlu0 0
      %6155 = vperm.xlu0 %6154, %v6140
      %v6156 = vpop.permute.xlu0 %6155
      %v6157 = vrot.slane %v6144, 4
      %v6158 = vrot.slane %v6148, 4
      %v6159 = vsel %vm1133, %v6157, %v6158
      %v6160 = vrot.slane %v6152, 4
      %v6161 = vsel %vm1133, %v6158, %v6160
      %v6162 = vrot.slane %v6156, 4
      %v6163 = vsel %vm1133, %v6160, %v6162
      %v6169 = vmul.f32 %v6132, %v6157
      %v6170 = vmul.f32 %v6133, %v6159
      %v6171 = vmul.f32 %v6134, %v6161
      %v6172 = vmul.f32 %v6135, %v6163
      %v6173 = vmul.f32 %v6136, %v6162
      %v6179 = vrot.slane %v6169, 2
      %v6180 = vrot.slane %v6170, 2
      %v6181 = vsel %vm1156, %v6179, %v6180
      %v6182 = vrot.slane %v6171, 2
      %v6183 = vsel %vm1156, %v6180, %v6182
      %v6184 = vrot.slane %v6172, 2
      %v6185 = vsel %vm1156, %v6182, %v6184
      %v6186 = vrot.slane %v6173, 2
      %v6187 = vsel %vm1156, %v6184, %v6186
      %v6193 = vadd.f32 %v6127, %v6181
      %v6194 = vadd.f32 %v6128, %v6183
      %v6195 = vadd.f32 %v6129, %v6185
      %v6196 = vadd.f32 %v6130, %v6187
      %v6197 = vadd.f32 %v6131, %v6186
      %v6198 = vld [vmem:[#allocation2 + $0x18] sm:$0x80]
      %v6199 = vld [vmem:[#allocation2 + $0x60] sm:$0xff]
      %v6200 = vld [vmem:[#allocation2 + $0xa8] sm:$0xff]
      %v6201 = vld [vmem:[#allocation2 + $0xf0] sm:$0xff]
      %v6202 = vld [vmem:[#allocation2 + $0x138] sm:$0x7f]
      %v6203 = vld [vmem:[%s1 + $0x60] sm:$0xff]
      %v6204 = vld [vmem:[%s1 + $0x68] sm:$0xff]
      %v6205 = vld [vmem:[%s1 + $0x70] sm:$0xff]
      %v6206 = vld [vmem:[%s1 + $0x78] sm:$0xff]
      %6208 = vset.pattern.permute.xlu0 0
      %6209 = vperm.xlu0 %6208, %v6203
      %v6210 = vpop.permute.xlu0 %6209
      %6212 = vset.pattern.permute.xlu0 0
      %6213 = vperm.xlu0 %6212, %v6204
      %v6214 = vpop.permute.xlu0 %6213
      %6216 = vset.pattern.permute.xlu0 0
      %6217 = vperm.xlu0 %6216, %v6205
      %v6218 = vpop.permute.xlu0 %6217
      %6220 = vset.pattern.permute.xlu0 0
      %6221 = vperm.xlu0 %6220, %v6206
      %v6222 = vpop.permute.xlu0 %6221
      %v6223 = vrot.slane %v6210, 1
      %v6224 = vrot.slane %v6214, 1
      %v6225 = vsel %vm1088, %v6223, %v6224
      %v6226 = vrot.slane %v6218, 1
      %v6227 = vsel %vm1088, %v6224, %v6226
      %v6228 = vrot.slane %v6222, 1
      %v6229 = vsel %vm1088, %v6226, %v6228
      %v6235 = vmul.f32 %v6198, %v6223
      %v6236 = vmul.f32 %v6199, %v6225
      %v6237 = vmul.f32 %v6200, %v6227
      %v6238 = vmul.f32 %v6201, %v6229
      %v6239 = vmul.f32 %v6202, %v6228
      %v6245 = vrot.slane %v6235, 5
      %v6246 = vrot.slane %v6236, 5
      %v6247 = vsel %vm1065, %v6245, %v6246
      %v6248 = vrot.slane %v6237, 5
      %v6249 = vsel %vm1065, %v6246, %v6248
      %v6250 = vrot.slane %v6238, 5
      %v6251 = vsel %vm1065, %v6248, %v6250
      %v6252 = vrot.slane %v6239, 5
      %v6253 = vsel %vm1065, %v6250, %v6252
      %v6259 = vadd.f32 %v6193, %v6247
      %v6260 = vadd.f32 %v6194, %v6249
      %v6261 = vadd.f32 %v6195, %v6251
      %v6262 = vadd.f32 %v6196, %v6253
      %v6263 = vadd.f32 %v6197, %v6252
      %v6264 = vld [vmem:[#allocation2 + $0x68] sm:$0xff]
      %v6265 = vld [vmem:[#allocation2 + $0xb0] sm:$0xff]
      %v6266 = vld [vmem:[#allocation2 + $0xf8] sm:$0xff]
      %v6267 = vld [vmem:[#allocation2 + $0x140] sm:$0xff]
      %v6268 = vld [vmem:[%s1 + $0x80] sm:$0xff]
      %v6269 = vld [vmem:[%s1 + $0x88] sm:$0xff]
      %v6270 = vld [vmem:[%s1 + $0x90] sm:$0xff]
      %v6271 = vld [vmem:[%s1 + $0x98] sm:$0xff]
      %6273 = vset.pattern.permute.xlu0 0
      %6274 = vperm.xlu0 %6273, %v6268
      %v6275 = vpop.permute.xlu0 %6274
      %6278 = vset.pattern.permute.xlu0 0
      %6279 = vperm.xlu0 %6278, %v6269
      %v6280 = vpop.permute.xlu0 %6279
      %6283 = vset.pattern.permute.xlu0 0
      %6284 = vperm.xlu0 %6283, %v6270
      %v6285 = vpop.permute.xlu0 %6284
      %6288 = vset.pattern.permute.xlu0 0
      %6289 = vperm.xlu0 %6288, %v6271
      %v6290 = vpop.permute.xlu0 %6289
      %v6292 = vmul.f32 %v6264, %v6275
      %v6293 = vmul.f32 %v6265, %v6280
      %v6294 = vmul.f32 %v6266, %v6285
      %v6295 = vmul.f32 %v6267, %v6290
      %v6300 = vrot.slane %v6292, 6
      %v6301 = vrot.slane %v6293, 6
      %v6302 = vsel %vm1017, %v6300, %v6301
      %v6303 = vrot.slane %v6294, 6
      %v6304 = vsel %vm1017, %v6301, %v6303
      %v6305 = vrot.slane %v6295, 6
      %v6306 = vsel %vm1017, %v6303, %v6305
      %v6312 = vadd.f32 %v6259, %v6300
      %v6313 = vadd.f32 %v6260, %v6302
      %v6314 = vadd.f32 %v6261, %v6304
      %v6315 = vadd.f32 %v6262, %v6306
      %v6316 = vadd.f32 %v6263, %v6305
      %v6317 = vld [vmem:[#allocation2 + $0x70] sm:$0xfe]
      %v6318 = vld [vmem:[#allocation2 + $0xb8] sm:$0xff]
      %v6319 = vld [vmem:[#allocation2 + $0x100] sm:$0xff]
      %v6320 = vld [vmem:[#allocation2 + $0x148] sm:$0xff]
      %v6321 = vld [vmem:[#allocation2 + $0x190] sm:$0x1]
      %v6322 = vld [vmem:[%s1 + $0xa0] sm:$0xff]
      %v6323 = vld [vmem:[%s1 + $0xa8] sm:$0xff]
      %v6324 = vld [vmem:[%s1 + $0xb0] sm:$0xff]
      %v6325 = vld [vmem:[%s1 + $0xb8] sm:$0xff]
      %6327 = vset.pattern.permute.xlu0 0
      %6328 = vperm.xlu0 %6327, %v6322
      %v6329 = vpop.permute.xlu0 %6328
      %6331 = vset.pattern.permute.xlu0 0
      %6332 = vperm.xlu0 %6331, %v6323
      %v6333 = vpop.permute.xlu0 %6332
      %6335 = vset.pattern.permute.xlu0 0
      %6336 = vperm.xlu0 %6335, %v6324
      %v6337 = vpop.permute.xlu0 %6336
      %6339 = vset.pattern.permute.xlu0 0
      %6340 = vperm.xlu0 %6339, %v6325
      %v6341 = vpop.permute.xlu0 %6340
      %v6342 = vrot.slane %v6329, 7
      %v6343 = vrot.slane %v6333, 7
      %v6344 = vsel %vm1320, %v6342, %v6343
      %v6345 = vrot.slane %v6337, 7
      %v6346 = vsel %vm1320, %v6343, %v6345
      %v6347 = vrot.slane %v6341, 7
      %v6348 = vsel %vm1320, %v6345, %v6347
      %v6354 = vmul.f32 %v6317, %v6342
      %v6355 = vmul.f32 %v6318, %v6344
      %v6356 = vmul.f32 %v6319, %v6346
      %v6357 = vmul.f32 %v6320, %v6348
      %v6358 = vmul.f32 %v6321, %v6347
      %v6364 = vrot.slane %v6354, 7
      %v6365 = vrot.slane %v6355, 7
      %v6366 = vsel %vm1320, %v6364, %v6365
      %v6367 = vrot.slane %v6356, 7
      %v6368 = vsel %vm1320, %v6365, %v6367
      %v6369 = vrot.slane %v6357, 7
      %v6370 = vsel %vm1320, %v6367, %v6369
      %v6371 = vrot.slane %v6358, 7
      %v6372 = vsel %vm1320, %v6369, %v6371
      %v6378 = vadd.f32 %v6312, %v6364
      %v6379 = vadd.f32 %v6313, %v6366
      %v6380 = vadd.f32 %v6314, %v6368
      %v6381 = vadd.f32 %v6315, %v6370
      %v6382 = vadd.f32 %v6316, %v6372
      %v6383 = vld [vmem:[#allocation2 + $0x78] sm:$0xf0]
      %v6384 = vld [vmem:[#allocation2 + $0xc0] sm:$0xff]
      %v6385 = vld [vmem:[#allocation2 + $0x108] sm:$0xff]
      %v6386 = vld [vmem:[#allocation2 + $0x150] sm:$0xff]
      %v6387 = vld [vmem:[#allocation2 + $0x198] sm:$0xf]
      %v6388 = vld [vmem:[%s1 + $0xc0] sm:$0xff]
      %v6389 = vld [vmem:[%s1 + $0xc8] sm:$0xff]
      %v6390 = vld [vmem:[%s1 + $0xd0] sm:$0xff]
      %v6391 = vld [vmem:[%s1 + $0xd8] sm:$0xff]
      %6393 = vset.pattern.permute.xlu0 0
      %6394 = vperm.xlu0 %6393, %v6388
      %v6395 = vpop.permute.xlu0 %6394
      %6397 = vset.pattern.permute.xlu0 0
      %6398 = vperm.xlu0 %6397, %v6389
      %v6399 = vpop.permute.xlu0 %6398
      %6401 = vset.pattern.permute.xlu0 0
      %6402 = vperm.xlu0 %6401, %v6390
      %v6403 = vpop.permute.xlu0 %6402
      %6405 = vset.pattern.permute.xlu0 0
      %6406 = vperm.xlu0 %6405, %v6391
      %v6407 = vpop.permute.xlu0 %6406
      %v6408 = vrot.slane %v6395, 4
      %v6409 = vrot.slane %v6399, 4
      %v6410 = vsel %vm1133, %v6408, %v6409
      %v6411 = vrot.slane %v6403, 4
      %v6412 = vsel %vm1133, %v6409, %v6411
      %v6413 = vrot.slane %v6407, 4
      %v6414 = vsel %vm1133, %v6411, %v6413
      %v6420 = vmul.f32 %v6383, %v6408
      %v6421 = vmul.f32 %v6384, %v6410
      %v6422 = vmul.f32 %v6385, %v6412
      %v6423 = vmul.f32 %v6386, %v6414
      %v6424 = vmul.f32 %v6387, %v6413
      %v6430 = vrot.slane %v6420, 2
      %v6431 = vrot.slane %v6421, 2
      %v6432 = vsel %vm1156, %v6430, %v6431
      %v6433 = vrot.slane %v6422, 2
      %v6434 = vsel %vm1156, %v6431, %v6433
      %v6435 = vrot.slane %v6423, 2
      %v6436 = vsel %vm1156, %v6433, %v6435
      %v6437 = vrot.slane %v6424, 2
      %v6438 = vsel %vm1156, %v6435, %v6437
      %v6444 = vadd.f32 %v6378, %v6432
      %v6445 = vadd.f32 %v6379, %v6434
      %v6446 = vadd.f32 %v6380, %v6436
      %v6447 = vadd.f32 %v6381, %v6438
      %v6448 = vadd.f32 %v6382, %v6437
      %v6449 = vld [vmem:[#allocation2 + $0x80] sm:$0xe0]
      %v6450 = vld [vmem:[#allocation2 + $0xc8] sm:$0xff]
      %v6451 = vld [vmem:[#allocation2 + $0x110] sm:$0xff]
      %v6452 = vld [vmem:[#allocation2 + $0x158] sm:$0xff]
      %v6453 = vld [vmem:[#allocation2 + $0x1a0] sm:$0x1f]
      %v6454 = vld [vmem:[%s1 + $0xe0] sm:$0xff]
      %v6455 = vld [vmem:[%s1 + $0xe8] sm:$0xff]
      %v6456 = vld [vmem:[%s1 + $0xf0] sm:$0xff]
      %v6457 = vld [vmem:[%s1 + $0xf8] sm:$0xff]
      %6459 = vset.pattern.permute.xlu0 0
      %6460 = vperm.xlu0 %6459, %v6454
      %v6461 = vpop.permute.xlu0 %6460
      %6463 = vset.pattern.permute.xlu0 0
      %6464 = vperm.xlu0 %6463, %v6455
      %v6465 = vpop.permute.xlu0 %6464
      %6467 = vset.pattern.permute.xlu0 0
      %6468 = vperm.xlu0 %6467, %v6456
      %v6469 = vpop.permute.xlu0 %6468
      %6471 = vset.pattern.permute.xlu0 0
      %6472 = vperm.xlu0 %6471, %v6457
      %v6473 = vpop.permute.xlu0 %6472
      %v6474 = vrot.slane %v6461, 3
      %v6475 = vrot.slane %v6465, 3
      %v6476 = vsel %vm1453, %v6474, %v6475
      %v6477 = vrot.slane %v6469, 3
      %v6478 = vsel %vm1453, %v6475, %v6477
      %v6479 = vrot.slane %v6473, 3
      %v6480 = vsel %vm1453, %v6477, %v6479
      %v6486 = vmul.f32 %v6449, %v6474
      %v6487 = vmul.f32 %v6450, %v6476
      %v6488 = vmul.f32 %v6451, %v6478
      %v6489 = vmul.f32 %v6452, %v6480
      %v6490 = vmul.f32 %v6453, %v6479
      %v6496 = vrot.slane %v6486, 3
      %v6497 = vrot.slane %v6487, 3
      %v6498 = vsel %vm1453, %v6496, %v6497
      %v6499 = vrot.slane %v6488, 3
      %v6500 = vsel %vm1453, %v6497, %v6499
      %v6501 = vrot.slane %v6489, 3
      %v6502 = vsel %vm1453, %v6499, %v6501
      %v6503 = vrot.slane %v6490, 3
      %v6504 = vsel %vm1453, %v6501, %v6503
      %v6510 = vadd.f32 %v6444, %v6498
      %v6511 = vadd.f32 %v6445, %v6500
      %v6512 = vadd.f32 %v6446, %v6502
      %v6513 = vadd.f32 %v6447, %v6504
      %v6514 = vadd.f32 %v6448, %v6503
      %v6515 = vld [vmem:[#allocation2 + $0x88] sm:$0xc0]
      %v6516 = vld [vmem:[#allocation2 + $0xd0] sm:$0xff]
      %v6517 = vld [vmem:[#allocation2 + $0x118] sm:$0xff]
      %v6518 = vld [vmem:[#allocation2 + $0x160] sm:$0xff]
      %v6519 = vld [vmem:[#allocation2 + $0x1a8] sm:$0x3f]
      %v6520 = vld [vmem:[%s1 + $0x100] sm:$0xff]
      %v6521 = vld [vmem:[%s1 + $0x108] sm:$0xff]
      %v6522 = vld [vmem:[%s1 + $0x110] sm:$0xff]
      %v6523 = vld [vmem:[%s1 + $0x118] sm:$0xff]
      %6525 = vset.pattern.permute.xlu0 0
      %6526 = vperm.xlu0 %6525, %v6520
      %v6527 = vpop.permute.xlu0 %6526
      %6529 = vset.pattern.permute.xlu0 0
      %6530 = vperm.xlu0 %6529, %v6521
      %v6531 = vpop.permute.xlu0 %6530
      %6533 = vset.pattern.permute.xlu0 0
      %6534 = vperm.xlu0 %6533, %v6522
      %v6535 = vpop.permute.xlu0 %6534
      %6537 = vset.pattern.permute.xlu0 0
      %6538 = vperm.xlu0 %6537, %v6523
      %v6539 = vpop.permute.xlu0 %6538
      %v6540 = vrot.slane %v6527, 2
      %v6541 = vrot.slane %v6531, 2
      %v6542 = vsel %vm1156, %v6540, %v6541
      %v6543 = vrot.slane %v6535, 2
      %v6544 = vsel %vm1156, %v6541, %v6543
      %v6545 = vrot.slane %v6539, 2
      %v6546 = vsel %vm1156, %v6543, %v6545
      %v6552 = vmul.f32 %v6515, %v6540
      %v6553 = vmul.f32 %v6516, %v6542
      %v6554 = vmul.f32 %v6517, %v6544
      %v6555 = vmul.f32 %v6518, %v6546
      %v6556 = vmul.f32 %v6519, %v6545
      %v6562 = vrot.slane %v6552, 4
      %v6563 = vrot.slane %v6553, 4
      %v6564 = vsel %vm1133, %v6562, %v6563
      %v6565 = vrot.slane %v6554, 4
      %v6566 = vsel %vm1133, %v6563, %v6565
      %v6567 = vrot.slane %v6555, 4
      %v6568 = vsel %vm1133, %v6565, %v6567
      %v6569 = vrot.slane %v6556, 4
      %v6570 = vsel %vm1133, %v6567, %v6569
      %v6576 = vadd.f32 %v6510, %v6564
      %v6577 = vadd.f32 %v6511, %v6566
      %v6578 = vadd.f32 %v6512, %v6568
      %v6579 = vadd.f32 %v6513, %v6570
      %v6580 = vadd.f32 %v6514, %v6569
      %s6581 = scalar_lea.vmem %s3, 4
      %v6582 = vld [vmem:[%s6581] sm:$0x1]
      %v6584 = vperm.slane %v6582, 0
      %v6586 = vadd.f32 %v6576, %v6584
      %v6587 = vadd.f32 %v6577, %v6584
      %v6588 = vadd.f32 %v6578, %v6584
      %v6589 = vadd.f32 %v6579, %v6584
      %v6590 = vadd.f32 %v6580, %v6584
      %vm6591 = vcmp.ge.f32.partialorder %v6586, 0.0
      %vm6592 = vcmp.ge.f32.partialorder %v6587, 0.0
      %vm6593 = vcmp.ge.f32.partialorder %v6588, 0.0
      %vm6594 = vcmp.ge.f32.partialorder %v6589, 0.0
      %vm6595 = vcmp.ge.f32.partialorder %v6590, 0.0
      %v6596 = vmul.f32 %v6586, 0.01
      %v6597 = vmul.f32 %v6587, 0.01
      %v6598 = vmul.f32 %v6588, 0.01
      %v6599 = vmul.f32 %v6589, 0.01
      %v6600 = vmul.f32 %v6590, 0.01
      %v6601 = vsel %vm6591, %v6586, %v6596
      %v6602 = vsel %vm6592, %v6587, %v6597
      %v6603 = vsel %vm6593, %v6588, %v6598
      %v6604 = vsel %vm6594, %v6589, %v6599
      %v6605 = vsel %vm6595, %v6590, %v6600
      %v6606 = vpack.c.bf16 %v6602, %v6601
      %v6607 = vpack.c.bf16 %v6604, %v6603
      %v6608 = vpack.c.bf16 %v6605, %v6605
      %s6609 = scalar_lea.vmem %s2, 2880
      %v6610 = vld [vmem:[%s6609] sm:$0xff]
      %v6611 = vld [vmem:[%s6609 + $0x8] sm:$0xff]
      %v6612 = vld [vmem:[%s6609 + $0x10] sm:$0xff]
      %v6613 = vld [vmem:[%s6609 + $0x18] sm:$0xff]
      %v6614 = vld [vmem:[%s6609 + $0x20] sm:$0xf]
      %v6615 = vld [vmem:[%s6609 + $0x24] sm:$0xff]
      %v6616 = vld [vmem:[%s6609 + $0x2c] sm:$0xff]
      %v6617 = vld [vmem:[%s6609 + $0x34] sm:$0xff]
      %v6618 = vld [vmem:[%s6609 + $0x3c] sm:$0xff]
      %v6619 = vld [vmem:[%s6609 + $0x44] sm:$0xf]
      %v6620 = vld [vmem:[%s6609 + $0x48] sm:$0xff]
      %v6621 = vld [vmem:[%s6609 + $0x50] sm:$0xff]
      %v6622 = vld [vmem:[%s6609 + $0x58] sm:$0xff]
      %v6623 = vld [vmem:[%s6609 + $0x60] sm:$0xff]
      %v6624 = vld [vmem:[%s6609 + $0x68] sm:$0xf]
      %v6625 = vld [vmem:[%s6609 + $0x6c] sm:$0xff]
      %v6626 = vld [vmem:[%s6609 + $0x74] sm:$0xff]
      %v6627 = vld [vmem:[%s6609 + $0x7c] sm:$0xff]
      %v6628 = vld [vmem:[%s6609 + $0x84] sm:$0xff]
      %v6629 = vld [vmem:[%s6609 + $0x8c] sm:$0xf]
      %v6630 = vld [vmem:[%s6609 + $0x90] sm:$0xff]
      %v6631 = vld [vmem:[%s6609 + $0x98] sm:$0xff]
      %v6632 = vld [vmem:[%s6609 + $0xa0] sm:$0xff]
      %v6633 = vld [vmem:[%s6609 + $0xa8] sm:$0xff]
      %v6634 = vld [vmem:[%s6609 + $0xb0] sm:$0xf]
      %v6635 = vld [vmem:[%s6609 + $0xb4] sm:$0xff]
      %v6636 = vld [vmem:[%s6609 + $0xbc] sm:$0xff]
      %v6637 = vld [vmem:[%s6609 + $0xc4] sm:$0xff]
      %v6638 = vld [vmem:[%s6609 + $0xcc] sm:$0xff]
      %v6639 = vld [vmem:[%s6609 + $0xd4] sm:$0xf]
      %v6640 = vld [vmem:[%s6609 + $0xd8] sm:$0xff]
      %v6641 = vld [vmem:[%s6609 + $0xe0] sm:$0xff]
      %v6642 = vld [vmem:[%s6609 + $0xe8] sm:$0xff]
      %v6643 = vld [vmem:[%s6609 + $0xf0] sm:$0xff]
      %v6644 = vld [vmem:[%s6609 + $0xf8] sm:$0xf]
      %v6645 = vld [vmem:[%s6609 + $0xfc] sm:$0xff]
      %v6646 = vld [vmem:[%s6609 + $0x104] sm:$0xff]
      %v6647 = vld [vmem:[%s6609 + $0x10c] sm:$0xff]
      %v6648 = vld [vmem:[%s6609 + $0x114] sm:$0xff]
      %v6649 = vld [vmem:[%s6609 + $0x11c] sm:$0xf]
      %v6650 = vld [vmem:[%s6609 + $0x120] sm:$0xff]
      %v6651 = vld [vmem:[%s6609 + $0x128] sm:$0xff]
      %v6652 = vld [vmem:[%s6609 + $0x130] sm:$0xff]
      %v6653 = vld [vmem:[%s6609 + $0x138] sm:$0xff]
      %v6654 = vld [vmem:[%s6609 + $0x140] sm:$0xf]
      %v6655 = vld [vmem:[%s6609 + $0x144] sm:$0xff]
      %v6656 = vld [vmem:[%s6609 + $0x14c] sm:$0xff]
      %v6657 = vld [vmem:[%s6609 + $0x154] sm:$0xff]
      %v6658 = vld [vmem:[%s6609 + $0x15c] sm:$0xff]
      %v6659 = vld [vmem:[%s6609 + $0x164] sm:$0xf]
      %v6660 = vld [vmem:[%s6609 + $0x168] sm:$0xff]
      %v6661 = vld [vmem:[%s6609 + $0x170] sm:$0xff]
      %v6662 = vld [vmem:[%s6609 + $0x178] sm:$0xff]
      %v6663 = vld [vmem:[%s6609 + $0x180] sm:$0xff]
      %v6664 = vld [vmem:[%s6609 + $0x188] sm:$0xf]
      %v6665 = vld [vmem:[%s6609 + $0x18c] sm:$0xff]
      %v6666 = vld [vmem:[%s6609 + $0x194] sm:$0xff]
      %v6667 = vld [vmem:[%s6609 + $0x19c] sm:$0xff]
      %v6668 = vld [vmem:[%s6609 + $0x1a4] sm:$0xff]
      %v6669 = vld [vmem:[%s6609 + $0x1ac] sm:$0xf]
      %v6670 = vld [vmem:[%s6609 + $0x1b0] sm:$0xff]
      %v6671 = vld [vmem:[%s6609 + $0x1b8] sm:$0xff]
      %v6672 = vld [vmem:[%s6609 + $0x1c0] sm:$0xff]
      %v6673 = vld [vmem:[%s6609 + $0x1c8] sm:$0xff]
      %v6674 = vld [vmem:[%s6609 + $0x1d0] sm:$0xf]
      %v6675 = vld [vmem:[%s6609 + $0x1d4] sm:$0xff]
      %v6676 = vld [vmem:[%s6609 + $0x1dc] sm:$0xff]
      %v6677 = vld [vmem:[%s6609 + $0x1e4] sm:$0xff]
      %v6678 = vld [vmem:[%s6609 + $0x1ec] sm:$0xff]
      %v6679 = vld [vmem:[%s6609 + $0x1f4] sm:$0xf]
      %v6680 = vld [vmem:[%s6609 + $0x1f8] sm:$0xff]
      %v6681 = vld [vmem:[%s6609 + $0x200] sm:$0xff]
      %v6682 = vld [vmem:[%s6609 + $0x208] sm:$0xff]
      %v6683 = vld [vmem:[%s6609 + $0x210] sm:$0xff]
      %v6684 = vld [vmem:[%s6609 + $0x218] sm:$0xf]
      %v6685 = vld [vmem:[%s6609 + $0x21c] sm:$0xff]
      %v6686 = vld [vmem:[%s6609 + $0x224] sm:$0xff]
      %v6687 = vld [vmem:[%s6609 + $0x22c] sm:$0xff]
      %v6688 = vld [vmem:[%s6609 + $0x234] sm:$0xff]
      %v6689 = vld [vmem:[%s6609 + $0x23c] sm:$0xf]
      %v6693 = vrot.slane %v6606, 1
      %v6694 = vrot.slane %v6607, 1
      %v6695 = vsel %vm1672, %v6693, %v6694
      %v6696 = vrot.slane %v6608, 1
      %v6697 = vsel %vm1672, %v6694, %v6696
      %v6780 = vunpack.c.l.b16 %v6610
      %v6781 = vunpack.c.h.b16 %v6610
      %v6782 = vunpack.c.l.b16 %v6611
      %v6783 = vunpack.c.h.b16 %v6611
      %v6784 = vunpack.c.l.b16 %v6612
      %v6785 = vunpack.c.h.b16 %v6612
      %v6786 = vunpack.c.l.b16 %v6613
      %v6787 = vunpack.c.h.b16 %v6613
      %v6788 = vunpack.c.l.b16 %v6614
      %v6789 = vunpack.c.l.b16 %v6615
      %v6790 = vunpack.c.h.b16 %v6615
      %v6791 = vunpack.c.l.b16 %v6616
      %v6792 = vunpack.c.h.b16 %v6616
      %v6793 = vunpack.c.l.b16 %v6617
      %v6794 = vunpack.c.h.b16 %v6617
      %v6795 = vunpack.c.l.b16 %v6618
      %v6796 = vunpack.c.h.b16 %v6618
      %v6797 = vunpack.c.l.b16 %v6619
      %v6798 = vunpack.c.l.b16 %v6620
      %v6799 = vunpack.c.h.b16 %v6620
      %v6800 = vunpack.c.l.b16 %v6621
      %v6801 = vunpack.c.h.b16 %v6621
      %v6802 = vunpack.c.l.b16 %v6622
      %v6803 = vunpack.c.h.b16 %v6622
      %v6804 = vunpack.c.l.b16 %v6623
      %v6805 = vunpack.c.h.b16 %v6623
      %v6806 = vunpack.c.l.b16 %v6624
      %v6807 = vunpack.c.l.b16 %v6625
      %v6808 = vunpack.c.h.b16 %v6625
      %v6809 = vunpack.c.l.b16 %v6626
      %v6810 = vunpack.c.h.b16 %v6626
      %v6811 = vunpack.c.l.b16 %v6627
      %v6812 = vunpack.c.h.b16 %v6627
      %v6813 = vunpack.c.l.b16 %v6628
      %v6814 = vunpack.c.h.b16 %v6628
      %v6815 = vunpack.c.l.b16 %v6629
      %v6816 = vunpack.c.l.b16 %v6630
      %v6817 = vunpack.c.h.b16 %v6630
      %v6818 = vunpack.c.l.b16 %v6631
      %v6819 = vunpack.c.h.b16 %v6631
      %v6820 = vunpack.c.l.b16 %v6632
      %v6821 = vunpack.c.h.b16 %v6632
      %v6822 = vunpack.c.l.b16 %v6633
      %v6823 = vunpack.c.h.b16 %v6633
      %v6824 = vunpack.c.l.b16 %v6634
      %v6825 = vunpack.c.l.b16 %v6635
      %v6826 = vunpack.c.h.b16 %v6635
      %v6827 = vunpack.c.l.b16 %v6636
      %v6828 = vunpack.c.h.b16 %v6636
      %v6829 = vunpack.c.l.b16 %v6637
      %v6830 = vunpack.c.h.b16 %v6637
      %v6831 = vunpack.c.l.b16 %v6638
      %v6832 = vunpack.c.h.b16 %v6638
      %v6833 = vunpack.c.l.b16 %v6639
      %v6834 = vunpack.c.l.b16 %v6640
      %v6835 = vunpack.c.h.b16 %v6640
      %v6836 = vunpack.c.l.b16 %v6641
      %v6837 = vunpack.c.h.b16 %v6641
      %v6838 = vunpack.c.l.b16 %v6642
      %v6839 = vunpack.c.h.b16 %v6642
      %v6840 = vunpack.c.l.b16 %v6643
      %v6841 = vunpack.c.h.b16 %v6643
      %v6842 = vunpack.c.l.b16 %v6644
      %v6843 = vunpack.c.l.b16 %v6645
      %v6844 = vunpack.c.h.b16 %v6645
      %v6845 = vunpack.c.l.b16 %v6646
      %v6846 = vunpack.c.h.b16 %v6646
      %v6847 = vunpack.c.l.b16 %v6647
      %v6848 = vunpack.c.h.b16 %v6647
      %v6849 = vunpack.c.l.b16 %v6648
      %v6850 = vunpack.c.h.b16 %v6648
      %v6851 = vunpack.c.l.b16 %v6649
      %v6852 = vunpack.c.l.b16 %v6650
      %v6853 = vunpack.c.h.b16 %v6650
      %v6854 = vunpack.c.l.b16 %v6651
      %v6855 = vunpack.c.h.b16 %v6651
      %v6856 = vunpack.c.l.b16 %v6652
      %v6857 = vunpack.c.h.b16 %v6652
      %v6858 = vunpack.c.l.b16 %v6653
      %v6859 = vunpack.c.h.b16 %v6653
      %v6860 = vunpack.c.l.b16 %v6654
      %v6861 = vunpack.c.l.b16 %v6655
      %v6862 = vunpack.c.h.b16 %v6655
      %v6863 = vunpack.c.l.b16 %v6656
      %v6864 = vunpack.c.h.b16 %v6656
      %v6865 = vunpack.c.l.b16 %v6657
      %v6866 = vunpack.c.h.b16 %v6657
      %v6867 = vunpack.c.l.b16 %v6658
      %v6868 = vunpack.c.h.b16 %v6658
      %v6869 = vunpack.c.l.b16 %v6659
      %v6870 = vunpack.c.l.b16 %v6660
      %v6871 = vunpack.c.h.b16 %v6660
      %v6872 = vunpack.c.l.b16 %v6661
      %v6873 = vunpack.c.h.b16 %v6661
      %v6874 = vunpack.c.l.b16 %v6662
      %v6875 = vunpack.c.h.b16 %v6662
      %v6876 = vunpack.c.l.b16 %v6663
      %v6877 = vunpack.c.h.b16 %v6663
      %v6878 = vunpack.c.l.b16 %v6664
      %v6879 = vunpack.c.l.b16 %v6665
      %v6880 = vunpack.c.h.b16 %v6665
      %v6881 = vunpack.c.l.b16 %v6666
      %v6882 = vunpack.c.h.b16 %v6666
      %v6883 = vunpack.c.l.b16 %v6667
      %v6884 = vunpack.c.h.b16 %v6667
      %v6885 = vunpack.c.l.b16 %v6668
      %v6886 = vunpack.c.h.b16 %v6668
      %v6887 = vunpack.c.l.b16 %v6669
      %v6888 = vunpack.c.l.b16 %v6670
      %v6889 = vunpack.c.h.b16 %v6670
      %v6890 = vunpack.c.l.b16 %v6671
      %v6891 = vunpack.c.h.b16 %v6671
      %v6892 = vunpack.c.l.b16 %v6672
      %v6893 = vunpack.c.h.b16 %v6672
      %v6894 = vunpack.c.l.b16 %v6673
      %v6895 = vunpack.c.h.b16 %v6673
      %v6896 = vunpack.c.l.b16 %v6674
      %v6897 = vunpack.c.l.b16 %v6675
      %v6898 = vunpack.c.h.b16 %v6675
      %v6899 = vunpack.c.l.b16 %v6676
      %v6900 = vunpack.c.h.b16 %v6676
      %v6901 = vunpack.c.l.b16 %v6677
      %v6902 = vunpack.c.h.b16 %v6677
      %v6903 = vunpack.c.l.b16 %v6678
      %v6904 = vunpack.c.h.b16 %v6678
      %v6905 = vunpack.c.l.b16 %v6679
      %v6906 = vunpack.c.l.b16 %v6680
      %v6907 = vunpack.c.h.b16 %v6680
      %v6908 = vunpack.c.l.b16 %v6681
      %v6909 = vunpack.c.h.b16 %v6681
      %v6910 = vunpack.c.l.b16 %v6682
      %v6911 = vunpack.c.h.b16 %v6682
      %v6912 = vunpack.c.l.b16 %v6683
      %v6913 = vunpack.c.h.b16 %v6683
      %v6914 = vunpack.c.l.b16 %v6684
      %v6915 = vunpack.c.l.b16 %v6685
      %v6916 = vunpack.c.h.b16 %v6685
      %v6917 = vunpack.c.l.b16 %v6686
      %v6918 = vunpack.c.h.b16 %v6686
      %v6919 = vunpack.c.l.b16 %v6687
      %v6920 = vunpack.c.h.b16 %v6687
      %v6921 = vunpack.c.l.b16 %v6688
      %v6922 = vunpack.c.h.b16 %v6688
      %v6923 = vunpack.c.l.b16 %v6689
      %v6924 = vpack.c.b16 %v6789, %v6780
      %v6925 = vpack.c.b16 %v6790, %v6781
      %v6926 = vpack.c.b16 %v6791, %v6782
      %v6927 = vpack.c.b16 %v6792, %v6783
      %v6928 = vpack.c.b16 %v6793, %v6784
      %v6929 = vpack.c.b16 %v6794, %v6785
      %v6930 = vpack.c.b16 %v6795, %v6786
      %v6931 = vpack.c.b16 %v6796, %v6787
      %v6932 = vpack.c.b16 %v6797, %v6788
      %v6933 = vpack.c.b16 %v6807, %v6798
      %v6934 = vpack.c.b16 %v6808, %v6799
      %v6935 = vpack.c.b16 %v6809, %v6800
      %v6936 = vpack.c.b16 %v6810, %v6801
      %v6937 = vpack.c.b16 %v6811, %v6802
      %v6938 = vpack.c.b16 %v6812, %v6803
      %v6939 = vpack.c.b16 %v6813, %v6804
      %v6940 = vpack.c.b16 %v6814, %v6805
      %v6941 = vpack.c.b16 %v6815, %v6806
      %v6942 = vpack.c.b16 %v6825, %v6816
      %v6943 = vpack.c.b16 %v6826, %v6817
      %v6944 = vpack.c.b16 %v6827, %v6818
      %v6945 = vpack.c.b16 %v6828, %v6819
      %v6946 = vpack.c.b16 %v6829, %v6820
      %v6947 = vpack.c.b16 %v6830, %v6821
      %v6948 = vpack.c.b16 %v6831, %v6822
      %v6949 = vpack.c.b16 %v6832, %v6823
      %v6950 = vpack.c.b16 %v6833, %v6824
      %v6951 = vpack.c.b16 %v6843, %v6834
      %v6952 = vpack.c.b16 %v6844, %v6835
      %v6953 = vpack.c.b16 %v6845, %v6836
      %v6954 = vpack.c.b16 %v6846, %v6837
      %v6955 = vpack.c.b16 %v6847, %v6838
      %v6956 = vpack.c.b16 %v6848, %v6839
      %v6957 = vpack.c.b16 %v6849, %v6840
      %v6958 = vpack.c.b16 %v6850, %v6841
      %v6959 = vpack.c.b16 %v6851, %v6842
      %v6960 = vpack.c.b16 %v6861, %v6852
      %v6961 = vpack.c.b16 %v6862, %v6853
      %v6962 = vpack.c.b16 %v6863, %v6854
      %v6963 = vpack.c.b16 %v6864, %v6855
      %v6964 = vpack.c.b16 %v6865, %v6856
      %v6965 = vpack.c.b16 %v6866, %v6857
      %v6966 = vpack.c.b16 %v6867, %v6858
      %v6967 = vpack.c.b16 %v6868, %v6859
      %v6968 = vpack.c.b16 %v6869, %v6860
      %v6969 = vpack.c.b16 %v6879, %v6870
      %v6970 = vpack.c.b16 %v6880, %v6871
      %v6971 = vpack.c.b16 %v6881, %v6872
      %v6972 = vpack.c.b16 %v6882, %v6873
      %v6973 = vpack.c.b16 %v6883, %v6874
      %v6974 = vpack.c.b16 %v6884, %v6875
      %v6975 = vpack.c.b16 %v6885, %v6876
      %v6976 = vpack.c.b16 %v6886, %v6877
      %v6977 = vpack.c.b16 %v6887, %v6878
      %v6978 = vpack.c.b16 %v6897, %v6888
      %v6979 = vpack.c.b16 %v6898, %v6889
      %v6980 = vpack.c.b16 %v6899, %v6890
      %v6981 = vpack.c.b16 %v6900, %v6891
      %v6982 = vpack.c.b16 %v6901, %v6892
      %v6983 = vpack.c.b16 %v6902, %v6893
      %v6984 = vpack.c.b16 %v6903, %v6894
      %v6985 = vpack.c.b16 %v6904, %v6895
      %v6986 = vpack.c.b16 %v6905, %v6896
      %v6987 = vpack.c.b16 %v6915, %v6906
      %v6988 = vpack.c.b16 %v6916, %v6907
      %v6989 = vpack.c.b16 %v6917, %v6908
      %v6990 = vpack.c.b16 %v6918, %v6909
      %v6991 = vpack.c.b16 %v6919, %v6910
      %v6992 = vpack.c.b16 %v6920, %v6911
      %v6993 = vpack.c.b16 %v6921, %v6912
      %v6994 = vpack.c.b16 %v6922, %v6913
      %v6995 = vpack.c.b16 %v6923, %v6914
      %7068 = vmatpush.bf16.msra.mxu0 %v6987
      %7069 = vmatpush.bf16.msra.mxu0 %v6978
      %7070 = vmatpush.bf16.msra.mxu0 %v6969
      %7071 = vmatpush.bf16.msra.mxu0 %v6960
      %7072 = vmatpush.bf16.msra.mxu0 %v6951
      %7073 = vmatpush.bf16.msra.mxu0 %v6942
      %7074 = vmatpush.bf16.msra.mxu0 %v6933
      %7075 = vmatpush.bf16.msra.mxu0 %v6924
      %7076 = vmatmul.bf16.gmra.mxu0 %v6695
      %v7077 = vpop.f32.mrf.mxu0
      %v7078 = vadd.f32 0.0, %v7077
      %v7079 = vpop.f32.mrf.mxu0
      %v7080 = vadd.f32 0.0, %v7079
      %7081 = vmatmul.bf16.gmra.mxu0 %v6697
      %v7082 = vpop.f32.mrf.mxu0
      %v7083 = vadd.f32 0.0, %v7082
      %v7084 = vpop.f32.mrf.mxu0
      %v7085 = vadd.f32 0.0, %v7084
      %7086 = vdwg.mxu0
      %7087 = vmatpush.bf16.msra.mxu0 %v6988
      %7088 = vmatpush.bf16.msra.mxu0 %v6979
      %7089 = vmatpush.bf16.msra.mxu0 %v6970
      %7090 = vmatpush.bf16.msra.mxu0 %v6961
      %7091 = vmatpush.bf16.msra.mxu0 %v6952
      %7092 = vmatpush.bf16.msra.mxu0 %v6943
      %7093 = vmatpush.bf16.msra.mxu0 %v6934
      %7094 = vmatpush.bf16.msra.mxu0 %v6925
      %7095 = vmatmul.bf16.gmra.mxu0 %v6695
      %v7096 = vpop.f32.mrf.mxu0
      %v7097 = vadd.f32 0.0, %v7096
      %v7098 = vpop.f32.mrf.mxu0
      %v7099 = vadd.f32 0.0, %v7098
      %7100 = vmatmul.bf16.gmra.mxu0 %v6697
      %v7101 = vpop.f32.mrf.mxu0
      %v7102 = vadd.f32 0.0, %v7101
      %v7103 = vpop.f32.mrf.mxu0
      %v7104 = vadd.f32 0.0, %v7103
      %7105 = vdwg.mxu0
      %7106 = vmatpush.bf16.msra.mxu0 %v6989
      %7107 = vmatpush.bf16.msra.mxu0 %v6980
      %7108 = vmatpush.bf16.msra.mxu0 %v6971
      %7109 = vmatpush.bf16.msra.mxu0 %v6962
      %7110 = vmatpush.bf16.msra.mxu0 %v6953
      %7111 = vmatpush.bf16.msra.mxu0 %v6944
      %7112 = vmatpush.bf16.msra.mxu0 %v6935
      %7113 = vmatpush.bf16.msra.mxu0 %v6926
      %7114 = vmatmul.bf16.gmra.mxu0 %v6695
      %v7115 = vpop.f32.mrf.mxu0
      %v7116 = vadd.f32 0.0, %v7115
      %v7117 = vpop.f32.mrf.mxu0
      %v7118 = vadd.f32 0.0, %v7117
      %7119 = vmatmul.bf16.gmra.mxu0 %v6697
      %v7120 = vpop.f32.mrf.mxu0
      %v7121 = vadd.f32 0.0, %v7120
      %v7122 = vpop.f32.mrf.mxu0
      %v7123 = vadd.f32 0.0, %v7122
      %7124 = vdwg.mxu0
      %7125 = vmatpush.bf16.msra.mxu0 %v6990
      %7126 = vmatpush.bf16.msra.mxu0 %v6981
      %7127 = vmatpush.bf16.msra.mxu0 %v6972
      %7128 = vmatpush.bf16.msra.mxu0 %v6963
      %7129 = vmatpush.bf16.msra.mxu0 %v6954
      %7130 = vmatpush.bf16.msra.mxu0 %v6945
      %7131 = vmatpush.bf16.msra.mxu0 %v6936
      %7132 = vmatpush.bf16.msra.mxu0 %v6927
      %7133 = vmatmul.bf16.gmra.mxu0 %v6695
      %v7134 = vpop.f32.mrf.mxu0
      %v7135 = vadd.f32 0.0, %v7134
      %v7136 = vpop.f32.mrf.mxu0
      %v7137 = vadd.f32 0.0, %v7136
      %7138 = vmatmul.bf16.gmra.mxu0 %v6697
      %v7139 = vpop.f32.mrf.mxu0
      %v7140 = vadd.f32 0.0, %v7139
      %v7141 = vpop.f32.mrf.mxu0
      %v7142 = vadd.f32 0.0, %v7141
      %7143 = vdwg.mxu0
      %7144 = vmatpush.bf16.msra.mxu0 %v6991
      %7145 = vmatpush.bf16.msra.mxu0 %v6982
      %7146 = vmatpush.bf16.msra.mxu0 %v6973
      %7147 = vmatpush.bf16.msra.mxu0 %v6964
      %7148 = vmatpush.bf16.msra.mxu0 %v6955
      %7149 = vmatpush.bf16.msra.mxu0 %v6946
      %7150 = vmatpush.bf16.msra.mxu0 %v6937
      %7151 = vmatpush.bf16.msra.mxu0 %v6928
      %7152 = vmatmul.bf16.gmra.mxu0 %v6695
      %v7153 = vpop.f32.mrf.mxu0
      %v7154 = vadd.f32 0.0, %v7153
      %v7155 = vpop.f32.mrf.mxu0
      %v7156 = vadd.f32 0.0, %v7155
      %7157 = vmatmul.bf16.gmra.mxu0 %v6697
      %v7158 = vpop.f32.mrf.mxu0
      %v7159 = vadd.f32 0.0, %v7158
      %v7160 = vpop.f32.mrf.mxu0
      %v7161 = vadd.f32 0.0, %v7160
      %7162 = vdwg.mxu0
      %7163 = vmatpush.bf16.msra.mxu0 %v6992
      %7164 = vmatpush.bf16.msra.mxu0 %v6983
      %7165 = vmatpush.bf16.msra.mxu0 %v6974
      %7166 = vmatpush.bf16.msra.mxu0 %v6965
      %7167 = vmatpush.bf16.msra.mxu0 %v6956
      %7168 = vmatpush.bf16.msra.mxu0 %v6947
      %7169 = vmatpush.bf16.msra.mxu0 %v6938
      %7170 = vmatpush.bf16.msra.mxu0 %v6929
      %7171 = vmatmul.bf16.gmra.mxu0 %v6695
      %v7172 = vpop.f32.mrf.mxu0
      %v7173 = vadd.f32 0.0, %v7172
      %v7174 = vpop.f32.mrf.mxu0
      %v7175 = vadd.f32 0.0, %v7174
      %7176 = vmatmul.bf16.gmra.mxu0 %v6697
      %v7177 = vpop.f32.mrf.mxu0
      %v7178 = vadd.f32 0.0, %v7177
      %v7179 = vpop.f32.mrf.mxu0
      %v7180 = vadd.f32 0.0, %v7179
      %7181 = vdwg.mxu0
      %7182 = vmatpush.bf16.msra.mxu0 %v6993
      %7183 = vmatpush.bf16.msra.mxu0 %v6984
      %7184 = vmatpush.bf16.msra.mxu0 %v6975
      %7185 = vmatpush.bf16.msra.mxu0 %v6966
      %7186 = vmatpush.bf16.msra.mxu0 %v6957
      %7187 = vmatpush.bf16.msra.mxu0 %v6948
      %7188 = vmatpush.bf16.msra.mxu0 %v6939
      %7189 = vmatpush.bf16.msra.mxu0 %v6930
      %7190 = vmatmul.bf16.gmra.mxu0 %v6695
      %v7191 = vpop.f32.mrf.mxu0
      %v7192 = vadd.f32 0.0, %v7191
      %v7193 = vpop.f32.mrf.mxu0
      %v7194 = vadd.f32 0.0, %v7193
      %7195 = vmatmul.bf16.gmra.mxu0 %v6697
      %v7196 = vpop.f32.mrf.mxu0
      %v7197 = vadd.f32 0.0, %v7196
      %v7198 = vpop.f32.mrf.mxu0
      %v7199 = vadd.f32 0.0, %v7198
      %7200 = vdwg.mxu0
      %7201 = vmatpush.bf16.msra.mxu0 %v6994
      %7202 = vmatpush.bf16.msra.mxu0 %v6985
      %7203 = vmatpush.bf16.msra.mxu0 %v6976
      %7204 = vmatpush.bf16.msra.mxu0 %v6967
      %7205 = vmatpush.bf16.msra.mxu0 %v6958
      %7206 = vmatpush.bf16.msra.mxu0 %v6949
      %7207 = vmatpush.bf16.msra.mxu0 %v6940
      %7208 = vmatpush.bf16.msra.mxu0 %v6931
      %7209 = vmatmul.bf16.gmra.mxu0 %v6695
      %v7210 = vpop.f32.mrf.mxu0
      %v7211 = vadd.f32 0.0, %v7210
      %v7212 = vpop.f32.mrf.mxu0
      %v7213 = vadd.f32 0.0, %v7212
      %7214 = vmatmul.bf16.gmra.mxu0 %v6697
      %v7215 = vpop.f32.mrf.mxu0
      %v7216 = vadd.f32 0.0, %v7215
      %v7217 = vpop.f32.mrf.mxu0
      %v7218 = vadd.f32 0.0, %v7217
      %7219 = vdwg.mxu0
      %7220 = vmatpush.bf16.msra.mxu0 %v6995
      %7221 = vmatpush.bf16.msra.mxu0 %v6986
      %7222 = vmatpush.bf16.msra.mxu0 %v6977
      %7223 = vmatpush.bf16.msra.mxu0 %v6968
      %7224 = vmatpush.bf16.msra.mxu0 %v6959
      %7225 = vmatpush.bf16.msra.mxu0 %v6950
      %7226 = vmatpush.bf16.msra.mxu0 %v6941
      %7227 = vmatpush.bf16.msra.mxu0 %v6932
      %7228 = vmatmul.bf16.gmra.mxu0 %v6695
      %v7229 = vpop.f32.mrf.mxu0
      %v7230 = vadd.f32 0.0, %v7229
      %v7231 = vpop.f32.mrf.mxu0
      %v7232 = vadd.f32 0.0, %v7231
      %7233 = vmatmul.bf16.gmra.mxu0 %v6697
      %v7234 = vpop.f32.mrf.mxu0
      %v7235 = vadd.f32 0.0, %v7234
      %v7236 = vpop.f32.mrf.mxu0
      %v7237 = vadd.f32 0.0, %v7236
      %7238 = vdwg.mxu0
      %7239 = vst [vmem:[#allocation2 + $0x48] sm:$0xff] %v7078
      %7240 = vst [vmem:[#allocation2 + $0x50] sm:$0xff] %v7097
      %7241 = vst [vmem:[#allocation2 + $0x58] sm:$0xff] %v7116
      %7242 = vst [vmem:[#allocation2 + $0x60] sm:$0xff] %v7135
      %7243 = vst [vmem:[#allocation2 + $0x68] sm:$0xff] %v7154
      %7244 = vst [vmem:[#allocation2 + $0x70] sm:$0xff] %v7173
      %7245 = vst [vmem:[#allocation2 + $0x78] sm:$0xff] %v7192
      %7246 = vst [vmem:[#allocation2 + $0x80] sm:$0xff] %v7211
      %7247 = vst [vmem:[#allocation2 + $0x88] sm:$0xff] %v7230
      %7248 = vst [vmem:[#allocation2 + $0x90] sm:$0xff] %v7080
      %7249 = vst [vmem:[#allocation2 + $0x98] sm:$0xff] %v7099
      %7250 = vst [vmem:[#allocation2 + $0xa0] sm:$0xff] %v7118
      %7251 = vst [vmem:[#allocation2 + $0xa8] sm:$0xff] %v7137
      %7252 = vst [vmem:[#allocation2 + $0xb0] sm:$0xff] %v7156
      %7253 = vst [vmem:[#allocation2 + $0xb8] sm:$0xff] %v7175
      %7254 = vst [vmem:[#allocation2 + $0xc0] sm:$0xff] %v7194
      %7255 = vst [vmem:[#allocation2 + $0xc8] sm:$0xff] %v7213
      %7256 = vst [vmem:[#allocation2 + $0xd0] sm:$0xff] %v7232
      %7257 = vst [vmem:[#allocation2 + $0xd8] sm:$0xff] %v7083
      %7258 = vst [vmem:[#allocation2 + $0xe0] sm:$0xff] %v7102
      %7259 = vst [vmem:[#allocation2 + $0xe8] sm:$0xff] %v7121
      %7260 = vst [vmem:[#allocation2 + $0xf0] sm:$0xff] %v7140
      %7261 = vst [vmem:[#allocation2 + $0xf8] sm:$0xff] %v7159
      %7262 = vst [vmem:[#allocation2 + $0x100] sm:$0xff] %v7178
      %7263 = vst [vmem:[#allocation2 + $0x108] sm:$0xff] %v7197
      %7264 = vst [vmem:[#allocation2 + $0x110] sm:$0xff] %v7216
      %7265 = vst [vmem:[#allocation2 + $0x118] sm:$0xff] %v7235
      %7266 = vst [vmem:[#allocation2 + $0x120] sm:$0xff] %v7085
      %7267 = vst [vmem:[#allocation2 + $0x128] sm:$0xff] %v7104
      %7268 = vst [vmem:[#allocation2 + $0x130] sm:$0xff] %v7123
      %7269 = vst [vmem:[#allocation2 + $0x138] sm:$0xff] %v7142
      %7270 = vst [vmem:[#allocation2 + $0x140] sm:$0xff] %v7161
      %7271 = vst [vmem:[#allocation2 + $0x148] sm:$0xff] %v7180
      %7272 = vst [vmem:[#allocation2 + $0x150] sm:$0xff] %v7199
      %7273 = vst [vmem:[#allocation2 + $0x158] sm:$0xff] %v7218
      %7274 = vst [vmem:[#allocation2 + $0x160] sm:$0xff] %v7237
      %v7275 = vld [vmem:[#allocation2] sm:$0xfc]
      %v7276 = vld [vmem:[#allocation2 + $0x48] sm:$0xff]
      %v7277 = vld [vmem:[#allocation2 + $0x90] sm:$0xff]
      %v7278 = vld [vmem:[#allocation2 + $0xd8] sm:$0xff]
      %v7279 = vld [vmem:[#allocation2 + $0x120] sm:$0x3]
      %v7280 = vld [vmem:[%s1] sm:$0xff]
      %v7281 = vld [vmem:[%s1 + $0x8] sm:$0xff]
      %v7282 = vld [vmem:[%s1 + $0x10] sm:$0xff]
      %v7283 = vld [vmem:[%s1 + $0x18] sm:$0xff]
      %7285 = vset.pattern.permute.xlu0 0
      %7286 = vperm.xlu0 %7285, %v7280
      %v7287 = vpop.permute.xlu0 %7286
      %7289 = vset.pattern.permute.xlu0 0
      %7290 = vperm.xlu0 %7289, %v7281
      %v7291 = vpop.permute.xlu0 %7290
      %7293 = vset.pattern.permute.xlu0 0
      %7294 = vperm.xlu0 %7293, %v7282
      %v7295 = vpop.permute.xlu0 %7294
      %7297 = vset.pattern.permute.xlu0 0
      %7298 = vperm.xlu0 %7297, %v7283
      %v7299 = vpop.permute.xlu0 %7298
      %v7300 = vrot.slane %v7287, 6
      %v7301 = vrot.slane %v7291, 6
      %v7302 = vsel %vm1017, %v7300, %v7301
      %v7303 = vrot.slane %v7295, 6
      %v7304 = vsel %vm1017, %v7301, %v7303
      %v7305 = vrot.slane %v7299, 6
      %v7306 = vsel %vm1017, %v7303, %v7305
      %v7312 = vmul.f32 %v7275, %v7300
      %v7313 = vmul.f32 %v7276, %v7302
      %v7314 = vmul.f32 %v7277, %v7304
      %v7315 = vmul.f32 %v7278, %v7306
      %v7316 = vmul.f32 %v7279, %v7305
      %v7317 = vadd.f32 %v7312, 0.0
      %v7318 = vadd.f32 %v7313, 0.0
      %v7319 = vadd.f32 %v7314, 0.0
      %v7320 = vadd.f32 %v7315, 0.0
      %v7321 = vadd.f32 %v7316, 0.0
      %v7322 = vld [vmem:[#allocation2 + $0x8] sm:$0xf8]
      %v7323 = vld [vmem:[#allocation2 + $0x50] sm:$0xff]
      %v7324 = vld [vmem:[#allocation2 + $0x98] sm:$0xff]
      %v7325 = vld [vmem:[#allocation2 + $0xe0] sm:$0xff]
      %v7326 = vld [vmem:[#allocation2 + $0x128] sm:$0x7]
      %v7327 = vld [vmem:[%s1 + $0x20] sm:$0xff]
      %v7328 = vld [vmem:[%s1 + $0x28] sm:$0xff]
      %v7329 = vld [vmem:[%s1 + $0x30] sm:$0xff]
      %v7330 = vld [vmem:[%s1 + $0x38] sm:$0xff]
      %7332 = vset.pattern.permute.xlu0 0
      %7333 = vperm.xlu0 %7332, %v7327
      %v7334 = vpop.permute.xlu0 %7333
      %7336 = vset.pattern.permute.xlu0 0
      %7337 = vperm.xlu0 %7336, %v7328
      %v7338 = vpop.permute.xlu0 %7337
      %7340 = vset.pattern.permute.xlu0 0
      %7341 = vperm.xlu0 %7340, %v7329
      %v7342 = vpop.permute.xlu0 %7341
      %7344 = vset.pattern.permute.xlu0 0
      %7345 = vperm.xlu0 %7344, %v7330
      %v7346 = vpop.permute.xlu0 %7345
      %v7347 = vrot.slane %v7334, 5
      %v7348 = vrot.slane %v7338, 5
      %v7349 = vsel %vm1065, %v7347, %v7348
      %v7350 = vrot.slane %v7342, 5
      %v7351 = vsel %vm1065, %v7348, %v7350
      %v7352 = vrot.slane %v7346, 5
      %v7353 = vsel %vm1065, %v7350, %v7352
      %v7359 = vmul.f32 %v7322, %v7347
      %v7360 = vmul.f32 %v7323, %v7349
      %v7361 = vmul.f32 %v7324, %v7351
      %v7362 = vmul.f32 %v7325, %v7353
      %v7363 = vmul.f32 %v7326, %v7352
      %v7369 = vrot.slane %v7359, 1
      %v7370 = vrot.slane %v7360, 1
      %v7371 = vsel %vm1088, %v7369, %v7370
      %v7372 = vrot.slane %v7361, 1
      %v7373 = vsel %vm1088, %v7370, %v7372
      %v7374 = vrot.slane %v7362, 1
      %v7375 = vsel %vm1088, %v7372, %v7374
      %v7376 = vrot.slane %v7363, 1
      %v7377 = vsel %vm1088, %v7374, %v7376
      %v7383 = vadd.f32 %v7317, %v7371
      %v7384 = vadd.f32 %v7318, %v7373
      %v7385 = vadd.f32 %v7319, %v7375
      %v7386 = vadd.f32 %v7320, %v7377
      %v7387 = vadd.f32 %v7321, %v7376
      %v7388 = vld [vmem:[#allocation2 + $0x10] sm:$0xf0]
      %v7389 = vld [vmem:[#allocation2 + $0x58] sm:$0xff]
      %v7390 = vld [vmem:[#allocation2 + $0xa0] sm:$0xff]
      %v7391 = vld [vmem:[#allocation2 + $0xe8] sm:$0xff]
      %v7392 = vld [vmem:[#allocation2 + $0x130] sm:$0xf]
      %v7393 = vld [vmem:[%s1 + $0x40] sm:$0xff]
      %v7394 = vld [vmem:[%s1 + $0x48] sm:$0xff]
      %v7395 = vld [vmem:[%s1 + $0x50] sm:$0xff]
      %v7396 = vld [vmem:[%s1 + $0x58] sm:$0xff]
      %7398 = vset.pattern.permute.xlu0 0
      %7399 = vperm.xlu0 %7398, %v7393
      %v7400 = vpop.permute.xlu0 %7399
      %7402 = vset.pattern.permute.xlu0 0
      %7403 = vperm.xlu0 %7402, %v7394
      %v7404 = vpop.permute.xlu0 %7403
      %7406 = vset.pattern.permute.xlu0 0
      %7407 = vperm.xlu0 %7406, %v7395
      %v7408 = vpop.permute.xlu0 %7407
      %7410 = vset.pattern.permute.xlu0 0
      %7411 = vperm.xlu0 %7410, %v7396
      %v7412 = vpop.permute.xlu0 %7411
      %v7413 = vrot.slane %v7400, 4
      %v7414 = vrot.slane %v7404, 4
      %v7415 = vsel %vm1133, %v7413, %v7414
      %v7416 = vrot.slane %v7408, 4
      %v7417 = vsel %vm1133, %v7414, %v7416
      %v7418 = vrot.slane %v7412, 4
      %v7419 = vsel %vm1133, %v7416, %v7418
      %v7425 = vmul.f32 %v7388, %v7413
      %v7426 = vmul.f32 %v7389, %v7415
      %v7427 = vmul.f32 %v7390, %v7417
      %v7428 = vmul.f32 %v7391, %v7419
      %v7429 = vmul.f32 %v7392, %v7418
      %v7435 = vrot.slane %v7425, 2
      %v7436 = vrot.slane %v7426, 2
      %v7437 = vsel %vm1156, %v7435, %v7436
      %v7438 = vrot.slane %v7427, 2
      %v7439 = vsel %vm1156, %v7436, %v7438
      %v7440 = vrot.slane %v7428, 2
      %v7441 = vsel %vm1156, %v7438, %v7440
      %v7442 = vrot.slane %v7429, 2
      %v7443 = vsel %vm1156, %v7440, %v7442
      %v7449 = vadd.f32 %v7383, %v7437
      %v7450 = vadd.f32 %v7384, %v7439
      %v7451 = vadd.f32 %v7385, %v7441
      %v7452 = vadd.f32 %v7386, %v7443
      %v7453 = vadd.f32 %v7387, %v7442
      %v7454 = vld [vmem:[#allocation2 + $0x18] sm:$0x80]
      %v7455 = vld [vmem:[#allocation2 + $0x60] sm:$0xff]
      %v7456 = vld [vmem:[#allocation2 + $0xa8] sm:$0xff]
      %v7457 = vld [vmem:[#allocation2 + $0xf0] sm:$0xff]
      %v7458 = vld [vmem:[#allocation2 + $0x138] sm:$0x7f]
      %v7459 = vld [vmem:[%s1 + $0x60] sm:$0xff]
      %v7460 = vld [vmem:[%s1 + $0x68] sm:$0xff]
      %v7461 = vld [vmem:[%s1 + $0x70] sm:$0xff]
      %v7462 = vld [vmem:[%s1 + $0x78] sm:$0xff]
      %7464 = vset.pattern.permute.xlu0 0
      %7465 = vperm.xlu0 %7464, %v7459
      %v7466 = vpop.permute.xlu0 %7465
      %7468 = vset.pattern.permute.xlu0 0
      %7469 = vperm.xlu0 %7468, %v7460
      %v7470 = vpop.permute.xlu0 %7469
      %7472 = vset.pattern.permute.xlu0 0
      %7473 = vperm.xlu0 %7472, %v7461
      %v7474 = vpop.permute.xlu0 %7473
      %7476 = vset.pattern.permute.xlu0 0
      %7477 = vperm.xlu0 %7476, %v7462
      %v7478 = vpop.permute.xlu0 %7477
      %v7479 = vrot.slane %v7466, 1
      %v7480 = vrot.slane %v7470, 1
      %v7481 = vsel %vm1088, %v7479, %v7480
      %v7482 = vrot.slane %v7474, 1
      %v7483 = vsel %vm1088, %v7480, %v7482
      %v7484 = vrot.slane %v7478, 1
      %v7485 = vsel %vm1088, %v7482, %v7484
      %v7491 = vmul.f32 %v7454, %v7479
      %v7492 = vmul.f32 %v7455, %v7481
      %v7493 = vmul.f32 %v7456, %v7483
      %v7494 = vmul.f32 %v7457, %v7485
      %v7495 = vmul.f32 %v7458, %v7484
      %v7501 = vrot.slane %v7491, 5
      %v7502 = vrot.slane %v7492, 5
      %v7503 = vsel %vm1065, %v7501, %v7502
      %v7504 = vrot.slane %v7493, 5
      %v7505 = vsel %vm1065, %v7502, %v7504
      %v7506 = vrot.slane %v7494, 5
      %v7507 = vsel %vm1065, %v7504, %v7506
      %v7508 = vrot.slane %v7495, 5
      %v7509 = vsel %vm1065, %v7506, %v7508
      %v7515 = vadd.f32 %v7449, %v7503
      %v7516 = vadd.f32 %v7450, %v7505
      %v7517 = vadd.f32 %v7451, %v7507
      %v7518 = vadd.f32 %v7452, %v7509
      %v7519 = vadd.f32 %v7453, %v7508
      %v7520 = vld [vmem:[#allocation2 + $0x68] sm:$0xff]
      %v7521 = vld [vmem:[#allocation2 + $0xb0] sm:$0xff]
      %v7522 = vld [vmem:[#allocation2 + $0xf8] sm:$0xff]
      %v7523 = vld [vmem:[#allocation2 + $0x140] sm:$0xff]
      %v7524 = vld [vmem:[%s1 + $0x80] sm:$0xff]
      %v7525 = vld [vmem:[%s1 + $0x88] sm:$0xff]
      %v7526 = vld [vmem:[%s1 + $0x90] sm:$0xff]
      %v7527 = vld [vmem:[%s1 + $0x98] sm:$0xff]
      %7529 = vset.pattern.permute.xlu0 0
      %7530 = vperm.xlu0 %7529, %v7524
      %v7531 = vpop.permute.xlu0 %7530
      %7534 = vset.pattern.permute.xlu0 0
      %7535 = vperm.xlu0 %7534, %v7525
      %v7536 = vpop.permute.xlu0 %7535
      %7539 = vset.pattern.permute.xlu0 0
      %7540 = vperm.xlu0 %7539, %v7526
      %v7541 = vpop.permute.xlu0 %7540
      %7544 = vset.pattern.permute.xlu0 0
      %7545 = vperm.xlu0 %7544, %v7527
      %v7546 = vpop.permute.xlu0 %7545
      %v7548 = vmul.f32 %v7520, %v7531
      %v7549 = vmul.f32 %v7521, %v7536
      %v7550 = vmul.f32 %v7522, %v7541
      %v7551 = vmul.f32 %v7523, %v7546
      %v7556 = vrot.slane %v7548, 6
      %v7557 = vrot.slane %v7549, 6
      %v7558 = vsel %vm1017, %v7556, %v7557
      %v7559 = vrot.slane %v7550, 6
      %v7560 = vsel %vm1017, %v7557, %v7559
      %v7561 = vrot.slane %v7551, 6
      %v7562 = vsel %vm1017, %v7559, %v7561
      %v7568 = vadd.f32 %v7515, %v7556
      %v7569 = vadd.f32 %v7516, %v7558
      %v7570 = vadd.f32 %v7517, %v7560
      %v7571 = vadd.f32 %v7518, %v7562
      %v7572 = vadd.f32 %v7519, %v7561
      %v7573 = vld [vmem:[#allocation2 + $0x70] sm:$0xfe]
      %v7574 = vld [vmem:[#allocation2 + $0xb8] sm:$0xff]
      %v7575 = vld [vmem:[#allocation2 + $0x100] sm:$0xff]
      %v7576 = vld [vmem:[#allocation2 + $0x148] sm:$0xff]
      %v7577 = vld [vmem:[#allocation2 + $0x190] sm:$0x1]
      %v7578 = vld [vmem:[%s1 + $0xa0] sm:$0xff]
      %v7579 = vld [vmem:[%s1 + $0xa8] sm:$0xff]
      %v7580 = vld [vmem:[%s1 + $0xb0] sm:$0xff]
      %v7581 = vld [vmem:[%s1 + $0xb8] sm:$0xff]
      %7583 = vset.pattern.permute.xlu0 0
      %7584 = vperm.xlu0 %7583, %v7578
      %v7585 = vpop.permute.xlu0 %7584
      %7587 = vset.pattern.permute.xlu0 0
      %7588 = vperm.xlu0 %7587, %v7579
      %v7589 = vpop.permute.xlu0 %7588
      %7591 = vset.pattern.permute.xlu0 0
      %7592 = vperm.xlu0 %7591, %v7580
      %v7593 = vpop.permute.xlu0 %7592
      %7595 = vset.pattern.permute.xlu0 0
      %7596 = vperm.xlu0 %7595, %v7581
      %v7597 = vpop.permute.xlu0 %7596
      %v7598 = vrot.slane %v7585, 7
      %v7599 = vrot.slane %v7589, 7
      %v7600 = vsel %vm1320, %v7598, %v7599
      %v7601 = vrot.slane %v7593, 7
      %v7602 = vsel %vm1320, %v7599, %v7601
      %v7603 = vrot.slane %v7597, 7
      %v7604 = vsel %vm1320, %v7601, %v7603
      %v7610 = vmul.f32 %v7573, %v7598
      %v7611 = vmul.f32 %v7574, %v7600
      %v7612 = vmul.f32 %v7575, %v7602
      %v7613 = vmul.f32 %v7576, %v7604
      %v7614 = vmul.f32 %v7577, %v7603
      %v7620 = vrot.slane %v7610, 7
      %v7621 = vrot.slane %v7611, 7
      %v7622 = vsel %vm1320, %v7620, %v7621
      %v7623 = vrot.slane %v7612, 7
      %v7624 = vsel %vm1320, %v7621, %v7623
      %v7625 = vrot.slane %v7613, 7
      %v7626 = vsel %vm1320, %v7623, %v7625
      %v7627 = vrot.slane %v7614, 7
      %v7628 = vsel %vm1320, %v7625, %v7627
      %v7634 = vadd.f32 %v7568, %v7620
      %v7635 = vadd.f32 %v7569, %v7622
      %v7636 = vadd.f32 %v7570, %v7624
      %v7637 = vadd.f32 %v7571, %v7626
      %v7638 = vadd.f32 %v7572, %v7628
      %v7639 = vld [vmem:[#allocation2 + $0x78] sm:$0xf0]
      %v7640 = vld [vmem:[#allocation2 + $0xc0] sm:$0xff]
      %v7641 = vld [vmem:[#allocation2 + $0x108] sm:$0xff]
      %v7642 = vld [vmem:[#allocation2 + $0x150] sm:$0xff]
      %v7643 = vld [vmem:[#allocation2 + $0x198] sm:$0xf]
      %v7644 = vld [vmem:[%s1 + $0xc0] sm:$0xff]
      %v7645 = vld [vmem:[%s1 + $0xc8] sm:$0xff]
      %v7646 = vld [vmem:[%s1 + $0xd0] sm:$0xff]
      %v7647 = vld [vmem:[%s1 + $0xd8] sm:$0xff]
      %7649 = vset.pattern.permute.xlu0 0
      %7650 = vperm.xlu0 %7649, %v7644
      %v7651 = vpop.permute.xlu0 %7650
      %7653 = vset.pattern.permute.xlu0 0
      %7654 = vperm.xlu0 %7653, %v7645
      %v7655 = vpop.permute.xlu0 %7654
      %7657 = vset.pattern.permute.xlu0 0
      %7658 = vperm.xlu0 %7657, %v7646
      %v7659 = vpop.permute.xlu0 %7658
      %7661 = vset.pattern.permute.xlu0 0
      %7662 = vperm.xlu0 %7661, %v7647
      %v7663 = vpop.permute.xlu0 %7662
      %v7664 = vrot.slane %v7651, 4
      %v7665 = vrot.slane %v7655, 4
      %v7666 = vsel %vm1133, %v7664, %v7665
      %v7667 = vrot.slane %v7659, 4
      %v7668 = vsel %vm1133, %v7665, %v7667
      %v7669 = vrot.slane %v7663, 4
      %v7670 = vsel %vm1133, %v7667, %v7669
      %v7676 = vmul.f32 %v7639, %v7664
      %v7677 = vmul.f32 %v7640, %v7666
      %v7678 = vmul.f32 %v7641, %v7668
      %v7679 = vmul.f32 %v7642, %v7670
      %v7680 = vmul.f32 %v7643, %v7669
      %v7686 = vrot.slane %v7676, 2
      %v7687 = vrot.slane %v7677, 2
      %v7688 = vsel %vm1156, %v7686, %v7687
      %v7689 = vrot.slane %v7678, 2
      %v7690 = vsel %vm1156, %v7687, %v7689
      %v7691 = vrot.slane %v7679, 2
      %v7692 = vsel %vm1156, %v7689, %v7691
      %v7693 = vrot.slane %v7680, 2
      %v7694 = vsel %vm1156, %v7691, %v7693
      %v7700 = vadd.f32 %v7634, %v7688
      %v7701 = vadd.f32 %v7635, %v7690
      %v7702 = vadd.f32 %v7636, %v7692
      %v7703 = vadd.f32 %v7637, %v7694
      %v7704 = vadd.f32 %v7638, %v7693
      %v7705 = vld [vmem:[#allocation2 + $0x80] sm:$0xe0]
      %v7706 = vld [vmem:[#allocation2 + $0xc8] sm:$0xff]
      %v7707 = vld [vmem:[#allocation2 + $0x110] sm:$0xff]
      %v7708 = vld [vmem:[#allocation2 + $0x158] sm:$0xff]
      %v7709 = vld [vmem:[#allocation2 + $0x1a0] sm:$0x1f]
      %v7710 = vld [vmem:[%s1 + $0xe0] sm:$0xff]
      %v7711 = vld [vmem:[%s1 + $0xe8] sm:$0xff]
      %v7712 = vld [vmem:[%s1 + $0xf0] sm:$0xff]
      %v7713 = vld [vmem:[%s1 + $0xf8] sm:$0xff]
      %7715 = vset.pattern.permute.xlu0 0
      %7716 = vperm.xlu0 %7715, %v7710
      %v7717 = vpop.permute.xlu0 %7716
      %7719 = vset.pattern.permute.xlu0 0
      %7720 = vperm.xlu0 %7719, %v7711
      %v7721 = vpop.permute.xlu0 %7720
      %7723 = vset.pattern.permute.xlu0 0
      %7724 = vperm.xlu0 %7723, %v7712
      %v7725 = vpop.permute.xlu0 %7724
      %7727 = vset.pattern.permute.xlu0 0
      %7728 = vperm.xlu0 %7727, %v7713
      %v7729 = vpop.permute.xlu0 %7728
      %v7730 = vrot.slane %v7717, 3
      %v7731 = vrot.slane %v7721, 3
      %v7732 = vsel %vm1453, %v7730, %v7731
      %v7733 = vrot.slane %v7725, 3
      %v7734 = vsel %vm1453, %v7731, %v7733
      %v7735 = vrot.slane %v7729, 3
      %v7736 = vsel %vm1453, %v7733, %v7735
      %v7742 = vmul.f32 %v7705, %v7730
      %v7743 = vmul.f32 %v7706, %v7732
      %v7744 = vmul.f32 %v7707, %v7734
      %v7745 = vmul.f32 %v7708, %v7736
      %v7746 = vmul.f32 %v7709, %v7735
      %v7752 = vrot.slane %v7742, 3
      %v7753 = vrot.slane %v7743, 3
      %v7754 = vsel %vm1453, %v7752, %v7753
      %v7755 = vrot.slane %v7744, 3
      %v7756 = vsel %vm1453, %v7753, %v7755
      %v7757 = vrot.slane %v7745, 3
      %v7758 = vsel %vm1453, %v7755, %v7757
      %v7759 = vrot.slane %v7746, 3
      %v7760 = vsel %vm1453, %v7757, %v7759
      %v7766 = vadd.f32 %v7700, %v7754
      %v7767 = vadd.f32 %v7701, %v7756
      %v7768 = vadd.f32 %v7702, %v7758
      %v7769 = vadd.f32 %v7703, %v7760
      %v7770 = vadd.f32 %v7704, %v7759
      %v7771 = vld [vmem:[#allocation2 + $0x88] sm:$0xc0]
      %v7772 = vld [vmem:[#allocation2 + $0xd0] sm:$0xff]
      %v7773 = vld [vmem:[#allocation2 + $0x118] sm:$0xff]
      %v7774 = vld [vmem:[#allocation2 + $0x160] sm:$0xff]
      %v7775 = vld [vmem:[#allocation2 + $0x1a8] sm:$0x3f]
      %v7776 = vld [vmem:[%s1 + $0x100] sm:$0xff]
      %v7777 = vld [vmem:[%s1 + $0x108] sm:$0xff]
      %v7778 = vld [vmem:[%s1 + $0x110] sm:$0xff]
      %v7779 = vld [vmem:[%s1 + $0x118] sm:$0xff]
      %7781 = vset.pattern.permute.xlu0 0
      %7782 = vperm.xlu0 %7781, %v7776
      %v7783 = vpop.permute.xlu0 %7782
      %7785 = vset.pattern.permute.xlu0 0
      %7786 = vperm.xlu0 %7785, %v7777
      %v7787 = vpop.permute.xlu0 %7786
      %7789 = vset.pattern.permute.xlu0 0
      %7790 = vperm.xlu0 %7789, %v7778
      %v7791 = vpop.permute.xlu0 %7790
      %7793 = vset.pattern.permute.xlu0 0
      %7794 = vperm.xlu0 %7793, %v7779
      %v7795 = vpop.permute.xlu0 %7794
      %v7796 = vrot.slane %v7783, 2
      %v7797 = vrot.slane %v7787, 2
      %v7798 = vsel %vm1156, %v7796, %v7797
      %v7799 = vrot.slane %v7791, 2
      %v7800 = vsel %vm1156, %v7797, %v7799
      %v7801 = vrot.slane %v7795, 2
      %v7802 = vsel %vm1156, %v7799, %v7801
      %v7808 = vmul.f32 %v7771, %v7796
      %v7809 = vmul.f32 %v7772, %v7798
      %v7810 = vmul.f32 %v7773, %v7800
      %v7811 = vmul.f32 %v7774, %v7802
      %v7812 = vmul.f32 %v7775, %v7801
      %v7818 = vrot.slane %v7808, 4
      %v7819 = vrot.slane %v7809, 4
      %v7820 = vsel %vm1133, %v7818, %v7819
      %v7821 = vrot.slane %v7810, 4
      %v7822 = vsel %vm1133, %v7819, %v7821
      %v7823 = vrot.slane %v7811, 4
      %v7824 = vsel %vm1133, %v7821, %v7823
      %v7825 = vrot.slane %v7812, 4
      %v7826 = vsel %vm1133, %v7823, %v7825
      %v7832 = vadd.f32 %v7766, %v7820
      %v7833 = vadd.f32 %v7767, %v7822
      %v7834 = vadd.f32 %v7768, %v7824
      %v7835 = vadd.f32 %v7769, %v7826
      %v7836 = vadd.f32 %v7770, %v7825
      %s7837 = scalar_lea.vmem %s3, 5
      %v7838 = vld [vmem:[%s7837] sm:$0x1]
      %v7840 = vperm.slane %v7838, 0
      %v7842 = vadd.f32 %v7832, %v7840
      %v7843 = vadd.f32 %v7833, %v7840
      %v7844 = vadd.f32 %v7834, %v7840
      %v7845 = vadd.f32 %v7835, %v7840
      %v7846 = vadd.f32 %v7836, %v7840
      %v7847 = vadd.f32 %v7842, %v5345
      %v7848 = vadd.f32 %v7843, %v5346
      %v7849 = vadd.f32 %v7844, %v5347
      %v7850 = vadd.f32 %v7845, %v5348
      %v7851 = vadd.f32 %v7846, %v5349
      %v7852 = vld [vmem:[%s4] sm:$0xff]
      %v7853 = vld [vmem:[%s4 + $0x8] sm:$0xff]
      %v7854 = vld [vmem:[%s4 + $0x10] sm:$0xff]
      %v7855 = vld [vmem:[%s4 + $0x18] sm:$0xff]
      %v7856 = vld [vmem:[%s4 + $0x20] sm:$0xff]
      %v7857 = vld [vmem:[%s4 + $0x28] sm:$0xff]
      %v7858 = vld [vmem:[%s4 + $0x30] sm:$0xff]
      %v7859 = vld [vmem:[%s4 + $0x38] sm:$0xff]
      %v7860 = vld [vmem:[%s4 + $0x40] sm:$0xff]
      %v7861 = vld [vmem:[%s4 + $0x48] sm:$0xff]
      %v7862 = vld [vmem:[%s4 + $0x50] sm:$0xff]
      %v7863 = vld [vmem:[%s4 + $0x58] sm:$0xff]
      %v7864 = vld [vmem:[%s4 + $0x60] sm:$0xff]
      %v7865 = vld [vmem:[%s4 + $0x68] sm:$0xff]
      %v7866 = vld [vmem:[%s4 + $0x70] sm:$0xff]
      %v7867 = vld [vmem:[%s4 + $0x78] sm:$0xff]
      %v7868 = vld [vmem:[%s4 + $0x80] sm:$0xff]
      %v7869 = vld [vmem:[%s4 + $0x88] sm:$0xff]
      %v7870 = vld [vmem:[%s4 + $0x90] sm:$0xff]
      %v7871 = vld [vmem:[%s4 + $0x98] sm:$0xff]
      %v7872 = vld [vmem:[%s4 + $0xa0] sm:$0xff]
      %v7873 = vld [vmem:[%s4 + $0xa8] sm:$0xff]
      %v7874 = vld [vmem:[%s4 + $0xb0] sm:$0xff]
      %v7875 = vld [vmem:[%s4 + $0xb8] sm:$0xff]
      %v7876 = vld [vmem:[%s4 + $0xc0] sm:$0xff]
      %v7882 = vrot.slane %v7847, 2
      %v7883 = vrot.slane %v7848, 2
      %v7884 = vsel %vm1156, %v7882, %v7883
      %v7885 = vrot.slane %v7849, 2
      %v7886 = vsel %vm1156, %v7883, %v7885
      %v7887 = vrot.slane %v7850, 2
      %v7888 = vsel %vm1156, %v7885, %v7887
      %v7889 = vrot.slane %v7851, 2
      %v7890 = vsel %vm1156, %v7887, %v7889
      %vm7895 = vcmask 261120
      %v7897 = vsel %vm7895, %v7852, 0
      %v7900 = vsel %vm7895, %v7853, 0
      %v7903 = vsel %vm7895, %v7854, 0
      %v7906 = vsel %vm7895, %v7855, 0
      %v7909 = vsel %vm7895, %v7856, 0
      %v7912 = vsel %vm7895, %v7857, 0
      %v7915 = vsel %vm7895, %v7858, 0
      %v7918 = vsel %vm7895, %v7859, 0
      %v7921 = vsel %vm7895, %v7860, 0
      %v7924 = vsel %vm7895, %v7861, 0
      %v7927 = vsel %vm7895, %v7862, 0
      %v7930 = vsel %vm7895, %v7863, 0
      %v7933 = vsel %vm7895, %v7864, 0
      %v7936 = vsel %vm7895, %v7865, 0
      %v7939 = vsel %vm7895, %v7866, 0
      %v7942 = vsel %vm7895, %v7867, 0
      %v7945 = vsel %vm7895, %v7868, 0
      %v7948 = vsel %vm7895, %v7869, 0
      %v7951 = vsel %vm7895, %v7870, 0
      %v7954 = vsel %vm7895, %v7871, 0
      %v7957 = vsel %vm7895, %v7872, 0
      %v7960 = vsel %vm7895, %v7873, 0
      %v7963 = vsel %vm7895, %v7874, 0
      %v7966 = vsel %vm7895, %v7875, 0
      %v7969 = vsel %vm7895, %v7876, 0
      %7971 = vmatpush.msra.mxu0 0.0
      %7972 = vmatpush.msra.mxu0 0.0
      %7973 = vmatpush.msra.mxu0 0.0
      %7974 = vmatpush.msra.mxu0 0.0
      %7975 = vmatpush.msra.mxu0 0.0
      %7976 = vmatpush.msra.mxu0 0.0
      %7977 = vmatpush.msra.mxu0 0.0
      %7978 = vmatpush.msra.mxu0 0.0
      %7979 = vmatpush.msra.mxu0 0.0
      %7980 = vmatpush.msra.mxu0 0.0
      %7981 = vmatpush.msra.mxu0 0.0
      %7982 = vmatpush.msra.mxu0 0.0
      %7983 = vmatpush.msra.mxu0 %v7890
      %7984 = vmatpush.msra.mxu0 %v7888
      %7985 = vmatpush.msra.mxu0 %v7886
      %7986 = vmatpush.msra.mxu0 %v7884
      %7987 = vmatmul.f32.gmra.mxu0 %v7897
      %v7988 = vpop.f32.mrf.mxu0
      %v7989 = vadd.f32 0.0, %v7988
      %7990 = vmatmul.f32.gmra.mxu0 %v7900
      %v7991 = vpop.f32.mrf.mxu0
      %v7992 = vadd.f32 0.0, %v7991
      %7993 = vmatmul.f32.gmra.mxu0 %v7903
      %v7994 = vpop.f32.mrf.mxu0
      %v7995 = vadd.f32 0.0, %v7994
      %7996 = vmatmul.f32.gmra.mxu0 %v7906
      %v7997 = vpop.f32.mrf.mxu0
      %v7998 = vadd.f32 0.0, %v7997
      %7999 = vmatmul.f32.gmra.mxu0 %v7909
      %v8000 = vpop.f32.mrf.mxu0
      %v8001 = vadd.f32 0.0, %v8000
      %8002 = vmatmul.f32.gmra.mxu0 %v7912
      %v8003 = vpop.f32.mrf.mxu0
      %v8004 = vadd.f32 0.0, %v8003
      %8005 = vmatmul.f32.gmra.mxu0 %v7915
      %v8006 = vpop.f32.mrf.mxu0
      %v8007 = vadd.f32 0.0, %v8006
      %8008 = vmatmul.f32.gmra.mxu0 %v7918
      %v8009 = vpop.f32.mrf.mxu0
      %v8010 = vadd.f32 0.0, %v8009
      %8011 = vmatmul.f32.gmra.mxu0 %v7921
      %v8012 = vpop.f32.mrf.mxu0
      %v8013 = vadd.f32 0.0, %v8012
      %8014 = vmatmul.f32.gmra.mxu0 %v7924
      %v8015 = vpop.f32.mrf.mxu0
      %v8016 = vadd.f32 0.0, %v8015
      %8017 = vmatmul.f32.gmra.mxu0 %v7927
      %v8018 = vpop.f32.mrf.mxu0
      %v8019 = vadd.f32 0.0, %v8018
      %8020 = vmatmul.f32.gmra.mxu0 %v7930
      %v8021 = vpop.f32.mrf.mxu0
      %v8022 = vadd.f32 0.0, %v8021
      %8023 = vmatmul.f32.gmra.mxu0 %v7933
      %v8024 = vpop.f32.mrf.mxu0
      %v8025 = vadd.f32 0.0, %v8024
      %8026 = vmatmul.f32.gmra.mxu0 %v7936
      %v8027 = vpop.f32.mrf.mxu0
      %v8028 = vadd.f32 0.0, %v8027
      %8029 = vmatmul.f32.gmra.mxu0 %v7939
      %v8030 = vpop.f32.mrf.mxu0
      %v8031 = vadd.f32 0.0, %v8030
      %8032 = vmatmul.f32.gmra.mxu0 %v7942
      %v8033 = vpop.f32.mrf.mxu0
      %v8034 = vadd.f32 0.0, %v8033
      %8035 = vmatmul.f32.gmra.mxu0 %v7945
      %v8036 = vpop.f32.mrf.mxu0
      %v8037 = vadd.f32 0.0, %v8036
      %8038 = vmatmul.f32.gmra.mxu0 %v7948
      %v8039 = vpop.f32.mrf.mxu0
      %v8040 = vadd.f32 0.0, %v8039
      %8041 = vmatmul.f32.gmra.mxu0 %v7951
      %v8042 = vpop.f32.mrf.mxu0
      %v8043 = vadd.f32 0.0, %v8042
      %8044 = vmatmul.f32.gmra.mxu0 %v7954
      %v8045 = vpop.f32.mrf.mxu0
      %v8046 = vadd.f32 0.0, %v8045
      %8047 = vmatmul.f32.gmra.mxu0 %v7957
      %v8048 = vpop.f32.mrf.mxu0
      %v8049 = vadd.f32 0.0, %v8048
      %8050 = vmatmul.f32.gmra.mxu0 %v7960
      %v8051 = vpop.f32.mrf.mxu0
      %v8052 = vadd.f32 0.0, %v8051
      %8053 = vmatmul.f32.gmra.mxu0 %v7963
      %v8054 = vpop.f32.mrf.mxu0
      %v8055 = vadd.f32 0.0, %v8054
      %8056 = vmatmul.f32.gmra.mxu0 %v7966
      %v8057 = vpop.f32.mrf.mxu0
      %v8058 = vadd.f32 0.0, %v8057
      %8059 = vmatmul.f32.gmra.mxu0 %v7969
      %v8060 = vpop.f32.mrf.mxu0
      %v8061 = vadd.f32 0.0, %v8060
      %8062 = vdwg.mxu0
      %v8063 = vld [vmem:[%s5] sm:$0xff]
      %v8064 = vld [vmem:[%s5 + $0x8] sm:$0xff]
      %v8065 = vld [vmem:[%s5 + $0x10] sm:$0xff]
      %v8066 = vld [vmem:[%s5 + $0x18] sm:$0xff]
      %v8067 = vld [vmem:[%s5 + $0x20] sm:$0xff]
      %v8068 = vld [vmem:[%s5 + $0x28] sm:$0xff]
      %v8069 = vld [vmem:[%s5 + $0x30] sm:$0xff]
      %v8070 = vld [vmem:[%s5 + $0x38] sm:$0xff]
      %v8071 = vld [vmem:[%s5 + $0x40] sm:$0xff]
      %v8072 = vld [vmem:[%s5 + $0x48] sm:$0xff]
      %v8073 = vld [vmem:[%s5 + $0x50] sm:$0xff]
      %v8074 = vld [vmem:[%s5 + $0x58] sm:$0xff]
      %v8075 = vld [vmem:[%s5 + $0x60] sm:$0xff]
      %v8076 = vld [vmem:[%s5 + $0x68] sm:$0xff]
      %v8077 = vld [vmem:[%s5 + $0x70] sm:$0xff]
      %v8078 = vld [vmem:[%s5 + $0x78] sm:$0xff]
      %s8079 = scalar_lea.vmem %s5, 128
      %v8080 = vld [vmem:[%s8079] sm:$0xff]
      %v8081 = vld [vmem:[%s8079 + $0x8] sm:$0xff]
      %v8082 = vld [vmem:[%s8079 + $0x10] sm:$0xff]
      %v8083 = vld [vmem:[%s8079 + $0x18] sm:$0xff]
      %v8084 = vld [vmem:[%s8079 + $0x20] sm:$0xff]
      %v8085 = vld [vmem:[%s8079 + $0x28] sm:$0xff]
      %v8086 = vld [vmem:[%s8079 + $0x30] sm:$0xff]
      %v8087 = vld [vmem:[%s8079 + $0x38] sm:$0xff]
      %v8088 = vld [vmem:[%s8079 + $0x40] sm:$0xff]
      %v8089 = vld [vmem:[%s8079 + $0x48] sm:$0xff]
      %v8090 = vld [vmem:[%s8079 + $0x50] sm:$0xff]
      %v8091 = vld [vmem:[%s8079 + $0x58] sm:$0xff]
      %v8092 = vld [vmem:[%s8079 + $0x60] sm:$0xff]
      %v8093 = vld [vmem:[%s8079 + $0x68] sm:$0xff]
      %v8094 = vld [vmem:[%s8079 + $0x70] sm:$0xff]
      %v8095 = vld [vmem:[%s8079 + $0x78] sm:$0xff]
      %8096 = vmatpush.msra.mxu0 %v8095
      %8097 = vmatpush.msra.mxu0 %v8094
      %8098 = vmatpush.msra.mxu0 %v8093
      %8099 = vmatpush.msra.mxu0 %v8092
      %8100 = vmatpush.msra.mxu0 %v8091
      %8101 = vmatpush.msra.mxu0 %v8090
      %8102 = vmatpush.msra.mxu0 %v8089
      %8103 = vmatpush.msra.mxu0 %v8088
      %8104 = vmatpush.msra.mxu0 %v8087
      %8105 = vmatpush.msra.mxu0 %v8086
      %8106 = vmatpush.msra.mxu0 %v8085
      %8107 = vmatpush.msra.mxu0 %v8084
      %8108 = vmatpush.msra.mxu0 %v8083
      %8109 = vmatpush.msra.mxu0 %v8082
      %8110 = vmatpush.msra.mxu0 %v8081
      %8111 = vmatpush.msra.mxu0 %v8080
      %8112 = vmatmul.f32.gmra.mxu0 %v7992
      %v8113 = vpop.f32.mrf.mxu0
      %v8114 = vadd.f32 0.0, %v8113
      %8115 = vdwg.mxu0
      %8116 = vmatpush.msra.mxu0 %v8078
      %8117 = vmatpush.msra.mxu0 %v8077
      %8118 = vmatpush.msra.mxu0 %v8076
      %8119 = vmatpush.msra.mxu0 %v8075
      %8120 = vmatpush.msra.mxu0 %v8074
      %8121 = vmatpush.msra.mxu0 %v8073
      %8122 = vmatpush.msra.mxu0 %v8072
      %8123 = vmatpush.msra.mxu0 %v8071
      %8124 = vmatpush.msra.mxu0 %v8070
      %8125 = vmatpush.msra.mxu0 %v8069
      %8126 = vmatpush.msra.mxu0 %v8068
      %8127 = vmatpush.msra.mxu0 %v8067
      %8128 = vmatpush.msra.mxu0 %v8066
      %8129 = vmatpush.msra.mxu0 %v8065
      %8130 = vmatpush.msra.mxu0 %v8064
      %8131 = vmatpush.msra.mxu0 %v8063
      %8132 = vmatmul.f32.gmra.mxu0 %v7989
      %v8133 = vpop.f32.mrf.mxu0
      %v8134 = vadd.f32 %v8114, %v8133
      %8135 = vdwg.mxu0
      %s8136 = scalar_lea.vmem %s5, 256
      %v8137 = vld [vmem:[%s8136] sm:$0xff]
      %v8138 = vld [vmem:[%s8136 + $0x8] sm:$0xff]
      %v8139 = vld [vmem:[%s8136 + $0x10] sm:$0xff]
      %v8140 = vld [vmem:[%s8136 + $0x18] sm:$0xff]
      %v8141 = vld [vmem:[%s8136 + $0x20] sm:$0xff]
      %v8142 = vld [vmem:[%s8136 + $0x28] sm:$0xff]
      %v8143 = vld [vmem:[%s8136 + $0x30] sm:$0xff]
      %v8144 = vld [vmem:[%s8136 + $0x38] sm:$0xff]
      %v8145 = vld [vmem:[%s8136 + $0x40] sm:$0xff]
      %v8146 = vld [vmem:[%s8136 + $0x48] sm:$0xff]
      %v8147 = vld [vmem:[%s8136 + $0x50] sm:$0xff]
      %v8148 = vld [vmem:[%s8136 + $0x58] sm:$0xff]
      %v8149 = vld [vmem:[%s8136 + $0x60] sm:$0xff]
      %v8150 = vld [vmem:[%s8136 + $0x68] sm:$0xff]
      %v8151 = vld [vmem:[%s8136 + $0x70] sm:$0xff]
      %v8152 = vld [vmem:[%s8136 + $0x78] sm:$0xff]
      %8153 = vmatpush.msra.mxu0 %v8152
      %8154 = vmatpush.msra.mxu0 %v8151
      %8155 = vmatpush.msra.mxu0 %v8150
      %8156 = vmatpush.msra.mxu0 %v8149
      %8157 = vmatpush.msra.mxu0 %v8148
      %8158 = vmatpush.msra.mxu0 %v8147
      %8159 = vmatpush.msra.mxu0 %v8146
      %8160 = vmatpush.msra.mxu0 %v8145
      %8161 = vmatpush.msra.mxu0 %v8144
      %8162 = vmatpush.msra.mxu0 %v8143
      %8163 = vmatpush.msra.mxu0 %v8142
      %8164 = vmatpush.msra.mxu0 %v8141
      %8165 = vmatpush.msra.mxu0 %v8140
      %8166 = vmatpush.msra.mxu0 %v8139
      %8167 = vmatpush.msra.mxu0 %v8138
      %8168 = vmatpush.msra.mxu0 %v8137
      %8169 = vmatmul.f32.gmra.mxu0 %v7995
      %v8170 = vpop.f32.mrf.mxu0
      %v8171 = vadd.f32 0.0, %v8170
      %8172 = vdwg.mxu0
      %v8173 = vadd.f32 %v8134, %v8171
      %s8174 = scalar_lea.vmem %s5, 384
      %v8175 = vld [vmem:[%s8174] sm:$0xff]
      %v8176 = vld [vmem:[%s8174 + $0x8] sm:$0xff]
      %v8177 = vld [vmem:[%s8174 + $0x10] sm:$0xff]
      %v8178 = vld [vmem:[%s8174 + $0x18] sm:$0xff]
      %v8179 = vld [vmem:[%s8174 + $0x20] sm:$0xff]
      %v8180 = vld [vmem:[%s8174 + $0x28] sm:$0xff]
      %v8181 = vld [vmem:[%s8174 + $0x30] sm:$0xff]
      %v8182 = vld [vmem:[%s8174 + $0x38] sm:$0xff]
      %v8183 = vld [vmem:[%s8174 + $0x40] sm:$0xff]
      %v8184 = vld [vmem:[%s8174 + $0x48] sm:$0xff]
      %v8185 = vld [vmem:[%s8174 + $0x50] sm:$0xff]
      %v8186 = vld [vmem:[%s8174 + $0x58] sm:$0xff]
      %v8187 = vld [vmem:[%s8174 + $0x60] sm:$0xff]
      %v8188 = vld [vmem:[%s8174 + $0x68] sm:$0xff]
      %v8189 = vld [vmem:[%s8174 + $0x70] sm:$0xff]
      %v8190 = vld [vmem:[%s8174 + $0x78] sm:$0xff]
      %8191 = vmatpush.msra.mxu0 %v8190
      %8192 = vmatpush.msra.mxu0 %v8189
      %8193 = vmatpush.msra.mxu0 %v8188
      %8194 = vmatpush.msra.mxu0 %v8187
      %8195 = vmatpush.msra.mxu0 %v8186
      %8196 = vmatpush.msra.mxu0 %v8185
      %8197 = vmatpush.msra.mxu0 %v8184
      %8198 = vmatpush.msra.mxu0 %v8183
      %8199 = vmatpush.msra.mxu0 %v8182
      %8200 = vmatpush.msra.mxu0 %v8181
      %8201 = vmatpush.msra.mxu0 %v8180
      %8202 = vmatpush.msra.mxu0 %v8179
      %8203 = vmatpush.msra.mxu0 %v8178
      %8204 = vmatpush.msra.mxu0 %v8177
      %8205 = vmatpush.msra.mxu0 %v8176
      %8206 = vmatpush.msra.mxu0 %v8175
      %8207 = vmatmul.f32.gmra.mxu0 %v7998
      %v8208 = vpop.f32.mrf.mxu0
      %v8209 = vadd.f32 0.0, %v8208
      %8210 = vdwg.mxu0
      %v8211 = vadd.f32 %v8173, %v8209
      %s8212 = scalar_lea.vmem %s5, 512
      %v8213 = vld [vmem:[%s8212] sm:$0xff]
      %v8214 = vld [vmem:[%s8212 + $0x8] sm:$0xff]
      %v8215 = vld [vmem:[%s8212 + $0x10] sm:$0xff]
      %v8216 = vld [vmem:[%s8212 + $0x18] sm:$0xff]
      %v8217 = vld [vmem:[%s8212 + $0x20] sm:$0xff]
      %v8218 = vld [vmem:[%s8212 + $0x28] sm:$0xff]
      %v8219 = vld [vmem:[%s8212 + $0x30] sm:$0xff]
      %v8220 = vld [vmem:[%s8212 + $0x38] sm:$0xff]
      %v8221 = vld [vmem:[%s8212 + $0x40] sm:$0xff]
      %v8222 = vld [vmem:[%s8212 + $0x48] sm:$0xff]
      %v8223 = vld [vmem:[%s8212 + $0x50] sm:$0xff]
      %v8224 = vld [vmem:[%s8212 + $0x58] sm:$0xff]
      %v8225 = vld [vmem:[%s8212 + $0x60] sm:$0xff]
      %v8226 = vld [vmem:[%s8212 + $0x68] sm:$0xff]
      %v8227 = vld [vmem:[%s8212 + $0x70] sm:$0xff]
      %v8228 = vld [vmem:[%s8212 + $0x78] sm:$0xff]
      %8229 = vmatpush.msra.mxu0 %v8228
      %8230 = vmatpush.msra.mxu0 %v8227
      %8231 = vmatpush.msra.mxu0 %v8226
      %8232 = vmatpush.msra.mxu0 %v8225
      %8233 = vmatpush.msra.mxu0 %v8224
      %8234 = vmatpush.msra.mxu0 %v8223
      %8235 = vmatpush.msra.mxu0 %v8222
      %8236 = vmatpush.msra.mxu0 %v8221
      %8237 = vmatpush.msra.mxu0 %v8220
      %8238 = vmatpush.msra.mxu0 %v8219
      %8239 = vmatpush.msra.mxu0 %v8218
      %8240 = vmatpush.msra.mxu0 %v8217
      %8241 = vmatpush.msra.mxu0 %v8216
      %8242 = vmatpush.msra.mxu0 %v8215
      %8243 = vmatpush.msra.mxu0 %v8214
      %8244 = vmatpush.msra.mxu0 %v8213
      %8245 = vmatmul.f32.gmra.mxu0 %v8001
      %v8246 = vpop.f32.mrf.mxu0
      %v8247 = vadd.f32 0.0, %v8246
      %8248 = vdwg.mxu0
      %v8249 = vadd.f32 %v8211, %v8247
      %s8250 = scalar_lea.vmem %s5, 640
      %v8251 = vld [vmem:[%s8250] sm:$0xff]
      %v8252 = vld [vmem:[%s8250 + $0x8] sm:$0xff]
      %v8253 = vld [vmem:[%s8250 + $0x10] sm:$0xff]
      %v8254 = vld [vmem:[%s8250 + $0x18] sm:$0xff]
      %v8255 = vld [vmem:[%s8250 + $0x20] sm:$0xff]
      %v8256 = vld [vmem:[%s8250 + $0x28] sm:$0xff]
      %v8257 = vld [vmem:[%s8250 + $0x30] sm:$0xff]
      %v8258 = vld [vmem:[%s8250 + $0x38] sm:$0xff]
      %v8259 = vld [vmem:[%s8250 + $0x40] sm:$0xff]
      %v8260 = vld [vmem:[%s8250 + $0x48] sm:$0xff]
      %v8261 = vld [vmem:[%s8250 + $0x50] sm:$0xff]
      %v8262 = vld [vmem:[%s8250 + $0x58] sm:$0xff]
      %v8263 = vld [vmem:[%s8250 + $0x60] sm:$0xff]
      %v8264 = vld [vmem:[%s8250 + $0x68] sm:$0xff]
      %v8265 = vld [vmem:[%s8250 + $0x70] sm:$0xff]
      %v8266 = vld [vmem:[%s8250 + $0x78] sm:$0xff]
      %8267 = vmatpush.msra.mxu0 %v8266
      %8268 = vmatpush.msra.mxu0 %v8265
      %8269 = vmatpush.msra.mxu0 %v8264
      %8270 = vmatpush.msra.mxu0 %v8263
      %8271 = vmatpush.msra.mxu0 %v8262
      %8272 = vmatpush.msra.mxu0 %v8261
      %8273 = vmatpush.msra.mxu0 %v8260
      %8274 = vmatpush.msra.mxu0 %v8259
      %8275 = vmatpush.msra.mxu0 %v8258
      %8276 = vmatpush.msra.mxu0 %v8257
      %8277 = vmatpush.msra.mxu0 %v8256
      %8278 = vmatpush.msra.mxu0 %v8255
      %8279 = vmatpush.msra.mxu0 %v8254
      %8280 = vmatpush.msra.mxu0 %v8253
      %8281 = vmatpush.msra.mxu0 %v8252
      %8282 = vmatpush.msra.mxu0 %v8251
      %8283 = vmatmul.f32.gmra.mxu0 %v8004
      %v8284 = vpop.f32.mrf.mxu0
      %v8285 = vadd.f32 0.0, %v8284
      %8286 = vdwg.mxu0
      %v8287 = vadd.f32 %v8249, %v8285
      %s8288 = scalar_lea.vmem %s5, 768
      %v8289 = vld [vmem:[%s8288] sm:$0xff]
      %v8290 = vld [vmem:[%s8288 + $0x8] sm:$0xff]
      %v8291 = vld [vmem:[%s8288 + $0x10] sm:$0xff]
      %v8292 = vld [vmem:[%s8288 + $0x18] sm:$0xff]
      %v8293 = vld [vmem:[%s8288 + $0x20] sm:$0xff]
      %v8294 = vld [vmem:[%s8288 + $0x28] sm:$0xff]
      %v8295 = vld [vmem:[%s8288 + $0x30] sm:$0xff]
      %v8296 = vld [vmem:[%s8288 + $0x38] sm:$0xff]
      %v8297 = vld [vmem:[%s8288 + $0x40] sm:$0xff]
      %v8298 = vld [vmem:[%s8288 + $0x48] sm:$0xff]
      %v8299 = vld [vmem:[%s8288 + $0x50] sm:$0xff]
      %v8300 = vld [vmem:[%s8288 + $0x58] sm:$0xff]
      %v8301 = vld [vmem:[%s8288 + $0x60] sm:$0xff]
      %v8302 = vld [vmem:[%s8288 + $0x68] sm:$0xff]
      %v8303 = vld [vmem:[%s8288 + $0x70] sm:$0xff]
      %v8304 = vld [vmem:[%s8288 + $0x78] sm:$0xff]
      %8305 = vmatpush.msra.mxu0 %v8304
      %8306 = vmatpush.msra.mxu0 %v8303
      %8307 = vmatpush.msra.mxu0 %v8302
      %8308 = vmatpush.msra.mxu0 %v8301
      %8309 = vmatpush.msra.mxu0 %v8300
      %8310 = vmatpush.msra.mxu0 %v8299
      %8311 = vmatpush.msra.mxu0 %v8298
      %8312 = vmatpush.msra.mxu0 %v8297
      %8313 = vmatpush.msra.mxu0 %v8296
      %8314 = vmatpush.msra.mxu0 %v8295
      %8315 = vmatpush.msra.mxu0 %v8294
      %8316 = vmatpush.msra.mxu0 %v8293
      %8317 = vmatpush.msra.mxu0 %v8292
      %8318 = vmatpush.msra.mxu0 %v8291
      %8319 = vmatpush.msra.mxu0 %v8290
      %8320 = vmatpush.msra.mxu0 %v8289
      %8321 = vmatmul.f32.gmra.mxu0 %v8007
      %v8322 = vpop.f32.mrf.mxu0
      %v8323 = vadd.f32 0.0, %v8322
      %8324 = vdwg.mxu0
      %v8325 = vadd.f32 %v8287, %v8323
      %s8326 = scalar_lea.vmem %s5, 896
      %v8327 = vld [vmem:[%s8326] sm:$0xff]
      %v8328 = vld [vmem:[%s8326 + $0x8] sm:$0xff]
      %v8329 = vld [vmem:[%s8326 + $0x10] sm:$0xff]
      %v8330 = vld [vmem:[%s8326 + $0x18] sm:$0xff]
      %v8331 = vld [vmem:[%s8326 + $0x20] sm:$0xff]
      %v8332 = vld [vmem:[%s8326 + $0x28] sm:$0xff]
      %v8333 = vld [vmem:[%s8326 + $0x30] sm:$0xff]
      %v8334 = vld [vmem:[%s8326 + $0x38] sm:$0xff]
      %v8335 = vld [vmem:[%s8326 + $0x40] sm:$0xff]
      %v8336 = vld [vmem:[%s8326 + $0x48] sm:$0xff]
      %v8337 = vld [vmem:[%s8326 + $0x50] sm:$0xff]
      %v8338 = vld [vmem:[%s8326 + $0x58] sm:$0xff]
      %v8339 = vld [vmem:[%s8326 + $0x60] sm:$0xff]
      %v8340 = vld [vmem:[%s8326 + $0x68] sm:$0xff]
      %v8341 = vld [vmem:[%s8326 + $0x70] sm:$0xff]
      %v8342 = vld [vmem:[%s8326 + $0x78] sm:$0xff]
      %8343 = vmatpush.msra.mxu0 %v8342
      %8344 = vmatpush.msra.mxu0 %v8341
      %8345 = vmatpush.msra.mxu0 %v8340
      %8346 = vmatpush.msra.mxu0 %v8339
      %8347 = vmatpush.msra.mxu0 %v8338
      %8348 = vmatpush.msra.mxu0 %v8337
      %8349 = vmatpush.msra.mxu0 %v8336
      %8350 = vmatpush.msra.mxu0 %v8335
      %8351 = vmatpush.msra.mxu0 %v8334
      %8352 = vmatpush.msra.mxu0 %v8333
      %8353 = vmatpush.msra.mxu0 %v8332
      %8354 = vmatpush.msra.mxu0 %v8331
      %8355 = vmatpush.msra.mxu0 %v8330
      %8356 = vmatpush.msra.mxu0 %v8329
      %8357 = vmatpush.msra.mxu0 %v8328
      %8358 = vmatpush.msra.mxu0 %v8327
      %8359 = vmatmul.f32.gmra.mxu0 %v8010
      %v8360 = vpop.f32.mrf.mxu0
      %v8361 = vadd.f32 0.0, %v8360
      %8362 = vdwg.mxu0
      %v8363 = vadd.f32 %v8325, %v8361
      %s8364 = scalar_lea.vmem %s5, 1024
      %v8365 = vld [vmem:[%s8364] sm:$0xff]
      %v8366 = vld [vmem:[%s8364 + $0x8] sm:$0xff]
      %v8367 = vld [vmem:[%s8364 + $0x10] sm:$0xff]
      %v8368 = vld [vmem:[%s8364 + $0x18] sm:$0xff]
      %v8369 = vld [vmem:[%s8364 + $0x20] sm:$0xff]
      %v8370 = vld [vmem:[%s8364 + $0x28] sm:$0xff]
      %v8371 = vld [vmem:[%s8364 + $0x30] sm:$0xff]
      %v8372 = vld [vmem:[%s8364 + $0x38] sm:$0xff]
      %v8373 = vld [vmem:[%s8364 + $0x40] sm:$0xff]
      %v8374 = vld [vmem:[%s8364 + $0x48] sm:$0xff]
      %v8375 = vld [vmem:[%s8364 + $0x50] sm:$0xff]
      %v8376 = vld [vmem:[%s8364 + $0x58] sm:$0xff]
      %v8377 = vld [vmem:[%s8364 + $0x60] sm:$0xff]
      %v8378 = vld [vmem:[%s8364 + $0x68] sm:$0xff]
      %v8379 = vld [vmem:[%s8364 + $0x70] sm:$0xff]
      %v8380 = vld [vmem:[%s8364 + $0x78] sm:$0xff]
      %8381 = vmatpush.msra.mxu0 %v8380
      %8382 = vmatpush.msra.mxu0 %v8379
      %8383 = vmatpush.msra.mxu0 %v8378
      %8384 = vmatpush.msra.mxu0 %v8377
      %8385 = vmatpush.msra.mxu0 %v8376
      %8386 = vmatpush.msra.mxu0 %v8375
      %8387 = vmatpush.msra.mxu0 %v8374
      %8388 = vmatpush.msra.mxu0 %v8373
      %8389 = vmatpush.msra.mxu0 %v8372
      %8390 = vmatpush.msra.mxu0 %v8371
      %8391 = vmatpush.msra.mxu0 %v8370
      %8392 = vmatpush.msra.mxu0 %v8369
      %8393 = vmatpush.msra.mxu0 %v8368
      %8394 = vmatpush.msra.mxu0 %v8367
      %8395 = vmatpush.msra.mxu0 %v8366
      %8396 = vmatpush.msra.mxu0 %v8365
      %8397 = vmatmul.f32.gmra.mxu0 %v8013
      %v8398 = vpop.f32.mrf.mxu0
      %v8399 = vadd.f32 0.0, %v8398
      %8400 = vdwg.mxu0
      %v8401 = vadd.f32 %v8363, %v8399
      %s8402 = scalar_lea.vmem %s5, 1152
      %v8403 = vld [vmem:[%s8402] sm:$0xff]
      %v8404 = vld [vmem:[%s8402 + $0x8] sm:$0xff]
      %v8405 = vld [vmem:[%s8402 + $0x10] sm:$0xff]
      %v8406 = vld [vmem:[%s8402 + $0x18] sm:$0xff]
      %v8407 = vld [vmem:[%s8402 + $0x20] sm:$0xff]
      %v8408 = vld [vmem:[%s8402 + $0x28] sm:$0xff]
      %v8409 = vld [vmem:[%s8402 + $0x30] sm:$0xff]
      %v8410 = vld [vmem:[%s8402 + $0x38] sm:$0xff]
      %v8411 = vld [vmem:[%s8402 + $0x40] sm:$0xff]
      %v8412 = vld [vmem:[%s8402 + $0x48] sm:$0xff]
      %v8413 = vld [vmem:[%s8402 + $0x50] sm:$0xff]
      %v8414 = vld [vmem:[%s8402 + $0x58] sm:$0xff]
      %v8415 = vld [vmem:[%s8402 + $0x60] sm:$0xff]
      %v8416 = vld [vmem:[%s8402 + $0x68] sm:$0xff]
      %v8417 = vld [vmem:[%s8402 + $0x70] sm:$0xff]
      %v8418 = vld [vmem:[%s8402 + $0x78] sm:$0xff]
      %8419 = vmatpush.msra.mxu0 %v8418
      %8420 = vmatpush.msra.mxu0 %v8417
      %8421 = vmatpush.msra.mxu0 %v8416
      %8422 = vmatpush.msra.mxu0 %v8415
      %8423 = vmatpush.msra.mxu0 %v8414
      %8424 = vmatpush.msra.mxu0 %v8413
      %8425 = vmatpush.msra.mxu0 %v8412
      %8426 = vmatpush.msra.mxu0 %v8411
      %8427 = vmatpush.msra.mxu0 %v8410
      %8428 = vmatpush.msra.mxu0 %v8409
      %8429 = vmatpush.msra.mxu0 %v8408
      %8430 = vmatpush.msra.mxu0 %v8407
      %8431 = vmatpush.msra.mxu0 %v8406
      %8432 = vmatpush.msra.mxu0 %v8405
      %8433 = vmatpush.msra.mxu0 %v8404
      %8434 = vmatpush.msra.mxu0 %v8403
      %8435 = vmatmul.f32.gmra.mxu0 %v8016
      %v8436 = vpop.f32.mrf.mxu0
      %v8437 = vadd.f32 0.0, %v8436
      %8438 = vdwg.mxu0
      %v8439 = vadd.f32 %v8401, %v8437
      %s8440 = scalar_lea.vmem %s5, 1280
      %v8441 = vld [vmem:[%s8440] sm:$0xff]
      %v8442 = vld [vmem:[%s8440 + $0x8] sm:$0xff]
      %v8443 = vld [vmem:[%s8440 + $0x10] sm:$0xff]
      %v8444 = vld [vmem:[%s8440 + $0x18] sm:$0xff]
      %v8445 = vld [vmem:[%s8440 + $0x20] sm:$0xff]
      %v8446 = vld [vmem:[%s8440 + $0x28] sm:$0xff]
      %v8447 = vld [vmem:[%s8440 + $0x30] sm:$0xff]
      %v8448 = vld [vmem:[%s8440 + $0x38] sm:$0xff]
      %v8449 = vld [vmem:[%s8440 + $0x40] sm:$0xff]
      %v8450 = vld [vmem:[%s8440 + $0x48] sm:$0xff]
      %v8451 = vld [vmem:[%s8440 + $0x50] sm:$0xff]
      %v8452 = vld [vmem:[%s8440 + $0x58] sm:$0xff]
      %v8453 = vld [vmem:[%s8440 + $0x60] sm:$0xff]
      %v8454 = vld [vmem:[%s8440 + $0x68] sm:$0xff]
      %v8455 = vld [vmem:[%s8440 + $0x70] sm:$0xff]
      %v8456 = vld [vmem:[%s8440 + $0x78] sm:$0xff]
      %8457 = vmatpush.msra.mxu0 %v8456
      %8458 = vmatpush.msra.mxu0 %v8455
      %8459 = vmatpush.msra.mxu0 %v8454
      %8460 = vmatpush.msra.mxu0 %v8453
      %8461 = vmatpush.msra.mxu0 %v8452
      %8462 = vmatpush.msra.mxu0 %v8451
      %8463 = vmatpush.msra.mxu0 %v8450
      %8464 = vmatpush.msra.mxu0 %v8449
      %8465 = vmatpush.msra.mxu0 %v8448
      %8466 = vmatpush.msra.mxu0 %v8447
      %8467 = vmatpush.msra.mxu0 %v8446
      %8468 = vmatpush.msra.mxu0 %v8445
      %8469 = vmatpush.msra.mxu0 %v8444
      %8470 = vmatpush.msra.mxu0 %v8443
      %8471 = vmatpush.msra.mxu0 %v8442
      %8472 = vmatpush.msra.mxu0 %v8441
      %8473 = vmatmul.f32.gmra.mxu0 %v8019
      %v8474 = vpop.f32.mrf.mxu0
      %v8475 = vadd.f32 0.0, %v8474
      %8476 = vdwg.mxu0
      %v8477 = vadd.f32 %v8439, %v8475
      %s8478 = scalar_lea.vmem %s5, 1408
      %v8479 = vld [vmem:[%s8478] sm:$0xff]
      %v8480 = vld [vmem:[%s8478 + $0x8] sm:$0xff]
      %v8481 = vld [vmem:[%s8478 + $0x10] sm:$0xff]
      %v8482 = vld [vmem:[%s8478 + $0x18] sm:$0xff]
      %v8483 = vld [vmem:[%s8478 + $0x20] sm:$0xff]
      %v8484 = vld [vmem:[%s8478 + $0x28] sm:$0xff]
      %v8485 = vld [vmem:[%s8478 + $0x30] sm:$0xff]
      %v8486 = vld [vmem:[%s8478 + $0x38] sm:$0xff]
      %v8487 = vld [vmem:[%s8478 + $0x40] sm:$0xff]
      %v8488 = vld [vmem:[%s8478 + $0x48] sm:$0xff]
      %v8489 = vld [vmem:[%s8478 + $0x50] sm:$0xff]
      %v8490 = vld [vmem:[%s8478 + $0x58] sm:$0xff]
      %v8491 = vld [vmem:[%s8478 + $0x60] sm:$0xff]
      %v8492 = vld [vmem:[%s8478 + $0x68] sm:$0xff]
      %v8493 = vld [vmem:[%s8478 + $0x70] sm:$0xff]
      %v8494 = vld [vmem:[%s8478 + $0x78] sm:$0xff]
      %8495 = vmatpush.msra.mxu0 %v8494
      %8496 = vmatpush.msra.mxu0 %v8493
      %8497 = vmatpush.msra.mxu0 %v8492
      %8498 = vmatpush.msra.mxu0 %v8491
      %8499 = vmatpush.msra.mxu0 %v8490
      %8500 = vmatpush.msra.mxu0 %v8489
      %8501 = vmatpush.msra.mxu0 %v8488
      %8502 = vmatpush.msra.mxu0 %v8487
      %8503 = vmatpush.msra.mxu0 %v8486
      %8504 = vmatpush.msra.mxu0 %v8485
      %8505 = vmatpush.msra.mxu0 %v8484
      %8506 = vmatpush.msra.mxu0 %v8483
      %8507 = vmatpush.msra.mxu0 %v8482
      %8508 = vmatpush.msra.mxu0 %v8481
      %8509 = vmatpush.msra.mxu0 %v8480
      %8510 = vmatpush.msra.mxu0 %v8479
      %8511 = vmatmul.f32.gmra.mxu0 %v8022
      %v8512 = vpop.f32.mrf.mxu0
      %v8513 = vadd.f32 0.0, %v8512
      %8514 = vdwg.mxu0
      %v8515 = vadd.f32 %v8477, %v8513
      %s8516 = scalar_lea.vmem %s5, 1536
      %v8517 = vld [vmem:[%s8516] sm:$0xff]
      %v8518 = vld [vmem:[%s8516 + $0x8] sm:$0xff]
      %v8519 = vld [vmem:[%s8516 + $0x10] sm:$0xff]
      %v8520 = vld [vmem:[%s8516 + $0x18] sm:$0xff]
      %v8521 = vld [vmem:[%s8516 + $0x20] sm:$0xff]
      %v8522 = vld [vmem:[%s8516 + $0x28] sm:$0xff]
      %v8523 = vld [vmem:[%s8516 + $0x30] sm:$0xff]
      %v8524 = vld [vmem:[%s8516 + $0x38] sm:$0xff]
      %v8525 = vld [vmem:[%s8516 + $0x40] sm:$0xff]
      %v8526 = vld [vmem:[%s8516 + $0x48] sm:$0xff]
      %v8527 = vld [vmem:[%s8516 + $0x50] sm:$0xff]
      %v8528 = vld [vmem:[%s8516 + $0x58] sm:$0xff]
      %v8529 = vld [vmem:[%s8516 + $0x60] sm:$0xff]
      %v8530 = vld [vmem:[%s8516 + $0x68] sm:$0xff]
      %v8531 = vld [vmem:[%s8516 + $0x70] sm:$0xff]
      %v8532 = vld [vmem:[%s8516 + $0x78] sm:$0xff]
      %8533 = vmatpush.msra.mxu0 %v8532
      %8534 = vmatpush.msra.mxu0 %v8531
      %8535 = vmatpush.msra.mxu0 %v8530
      %8536 = vmatpush.msra.mxu0 %v8529
      %8537 = vmatpush.msra.mxu0 %v8528
      %8538 = vmatpush.msra.mxu0 %v8527
      %8539 = vmatpush.msra.mxu0 %v8526
      %8540 = vmatpush.msra.mxu0 %v8525
      %8541 = vmatpush.msra.mxu0 %v8524
      %8542 = vmatpush.msra.mxu0 %v8523
      %8543 = vmatpush.msra.mxu0 %v8522
      %8544 = vmatpush.msra.mxu0 %v8521
      %8545 = vmatpush.msra.mxu0 %v8520
      %8546 = vmatpush.msra.mxu0 %v8519
      %8547 = vmatpush.msra.mxu0 %v8518
      %8548 = vmatpush.msra.mxu0 %v8517
      %8549 = vmatmul.f32.gmra.mxu0 %v8025
      %v8550 = vpop.f32.mrf.mxu0
      %v8551 = vadd.f32 0.0, %v8550
      %8552 = vdwg.mxu0
      %v8553 = vadd.f32 %v8515, %v8551
      %s8554 = scalar_lea.vmem %s5, 1664
      %v8555 = vld [vmem:[%s8554] sm:$0xff]
      %v8556 = vld [vmem:[%s8554 + $0x8] sm:$0xff]
      %v8557 = vld [vmem:[%s8554 + $0x10] sm:$0xff]
      %v8558 = vld [vmem:[%s8554 + $0x18] sm:$0xff]
      %v8559 = vld [vmem:[%s8554 + $0x20] sm:$0xff]
      %v8560 = vld [vmem:[%s8554 + $0x28] sm:$0xff]
      %v8561 = vld [vmem:[%s8554 + $0x30] sm:$0xff]
      %v8562 = vld [vmem:[%s8554 + $0x38] sm:$0xff]
      %v8563 = vld [vmem:[%s8554 + $0x40] sm:$0xff]
      %v8564 = vld [vmem:[%s8554 + $0x48] sm:$0xff]
      %v8565 = vld [vmem:[%s8554 + $0x50] sm:$0xff]
      %v8566 = vld [vmem:[%s8554 + $0x58] sm:$0xff]
      %v8567 = vld [vmem:[%s8554 + $0x60] sm:$0xff]
      %v8568 = vld [vmem:[%s8554 + $0x68] sm:$0xff]
      %v8569 = vld [vmem:[%s8554 + $0x70] sm:$0xff]
      %v8570 = vld [vmem:[%s8554 + $0x78] sm:$0xff]
      %8571 = vmatpush.msra.mxu0 %v8570
      %8572 = vmatpush.msra.mxu0 %v8569
      %8573 = vmatpush.msra.mxu0 %v8568
      %8574 = vmatpush.msra.mxu0 %v8567
      %8575 = vmatpush.msra.mxu0 %v8566
      %8576 = vmatpush.msra.mxu0 %v8565
      %8577 = vmatpush.msra.mxu0 %v8564
      %8578 = vmatpush.msra.mxu0 %v8563
      %8579 = vmatpush.msra.mxu0 %v8562
      %8580 = vmatpush.msra.mxu0 %v8561
      %8581 = vmatpush.msra.mxu0 %v8560
      %8582 = vmatpush.msra.mxu0 %v8559
      %8583 = vmatpush.msra.mxu0 %v8558
      %8584 = vmatpush.msra.mxu0 %v8557
      %8585 = vmatpush.msra.mxu0 %v8556
      %8586 = vmatpush.msra.mxu0 %v8555
      %8587 = vmatmul.f32.gmra.mxu0 %v8028
      %v8588 = vpop.f32.mrf.mxu0
      %v8589 = vadd.f32 0.0, %v8588
      %8590 = vdwg.mxu0
      %v8591 = vadd.f32 %v8553, %v8589
      %s8592 = scalar_lea.vmem %s5, 1792
      %v8593 = vld [vmem:[%s8592] sm:$0xff]
      %v8594 = vld [vmem:[%s8592 + $0x8] sm:$0xff]
      %v8595 = vld [vmem:[%s8592 + $0x10] sm:$0xff]
      %v8596 = vld [vmem:[%s8592 + $0x18] sm:$0xff]
      %v8597 = vld [vmem:[%s8592 + $0x20] sm:$0xff]
      %v8598 = vld [vmem:[%s8592 + $0x28] sm:$0xff]
      %v8599 = vld [vmem:[%s8592 + $0x30] sm:$0xff]
      %v8600 = vld [vmem:[%s8592 + $0x38] sm:$0xff]
      %v8601 = vld [vmem:[%s8592 + $0x40] sm:$0xff]
      %v8602 = vld [vmem:[%s8592 + $0x48] sm:$0xff]
      %v8603 = vld [vmem:[%s8592 + $0x50] sm:$0xff]
      %v8604 = vld [vmem:[%s8592 + $0x58] sm:$0xff]
      %v8605 = vld [vmem:[%s8592 + $0x60] sm:$0xff]
      %v8606 = vld [vmem:[%s8592 + $0x68] sm:$0xff]
      %v8607 = vld [vmem:[%s8592 + $0x70] sm:$0xff]
      %v8608 = vld [vmem:[%s8592 + $0x78] sm:$0xff]
      %8609 = vmatpush.msra.mxu0 %v8608
      %8610 = vmatpush.msra.mxu0 %v8607
      %8611 = vmatpush.msra.mxu0 %v8606
      %8612 = vmatpush.msra.mxu0 %v8605
      %8613 = vmatpush.msra.mxu0 %v8604
      %8614 = vmatpush.msra.mxu0 %v8603
      %8615 = vmatpush.msra.mxu0 %v8602
      %8616 = vmatpush.msra.mxu0 %v8601
      %8617 = vmatpush.msra.mxu0 %v8600
      %8618 = vmatpush.msra.mxu0 %v8599
      %8619 = vmatpush.msra.mxu0 %v8598
      %8620 = vmatpush.msra.mxu0 %v8597
      %8621 = vmatpush.msra.mxu0 %v8596
      %8622 = vmatpush.msra.mxu0 %v8595
      %8623 = vmatpush.msra.mxu0 %v8594
      %8624 = vmatpush.msra.mxu0 %v8593
      %8625 = vmatmul.f32.gmra.mxu0 %v8031
      %v8626 = vpop.f32.mrf.mxu0
      %v8627 = vadd.f32 0.0, %v8626
      %8628 = vdwg.mxu0
      %v8629 = vadd.f32 %v8591, %v8627
      %s8630 = scalar_lea.vmem %s5, 1920
      %v8631 = vld [vmem:[%s8630] sm:$0xff]
      %v8632 = vld [vmem:[%s8630 + $0x8] sm:$0xff]
      %v8633 = vld [vmem:[%s8630 + $0x10] sm:$0xff]
      %v8634 = vld [vmem:[%s8630 + $0x18] sm:$0xff]
      %v8635 = vld [vmem:[%s8630 + $0x20] sm:$0xff]
      %v8636 = vld [vmem:[%s8630 + $0x28] sm:$0xff]
      %v8637 = vld [vmem:[%s8630 + $0x30] sm:$0xff]
      %v8638 = vld [vmem:[%s8630 + $0x38] sm:$0xff]
      %v8639 = vld [vmem:[%s8630 + $0x40] sm:$0xff]
      %v8640 = vld [vmem:[%s8630 + $0x48] sm:$0xff]
      %v8641 = vld [vmem:[%s8630 + $0x50] sm:$0xff]
      %v8642 = vld [vmem:[%s8630 + $0x58] sm:$0xff]
      %v8643 = vld [vmem:[%s8630 + $0x60] sm:$0xff]
      %v8644 = vld [vmem:[%s8630 + $0x68] sm:$0xff]
      %v8645 = vld [vmem:[%s8630 + $0x70] sm:$0xff]
      %v8646 = vld [vmem:[%s8630 + $0x78] sm:$0xff]
      %8647 = vmatpush.msra.mxu0 %v8646
      %8648 = vmatpush.msra.mxu0 %v8645
      %8649 = vmatpush.msra.mxu0 %v8644
      %8650 = vmatpush.msra.mxu0 %v8643
      %8651 = vmatpush.msra.mxu0 %v8642
      %8652 = vmatpush.msra.mxu0 %v8641
      %8653 = vmatpush.msra.mxu0 %v8640
      %8654 = vmatpush.msra.mxu0 %v8639
      %8655 = vmatpush.msra.mxu0 %v8638
      %8656 = vmatpush.msra.mxu0 %v8637
      %8657 = vmatpush.msra.mxu0 %v8636
      %8658 = vmatpush.msra.mxu0 %v8635
      %8659 = vmatpush.msra.mxu0 %v8634
      %8660 = vmatpush.msra.mxu0 %v8633
      %8661 = vmatpush.msra.mxu0 %v8632
      %8662 = vmatpush.msra.mxu0 %v8631
      %8663 = vmatmul.f32.gmra.mxu0 %v8034
      %v8664 = vpop.f32.mrf.mxu0
      %v8665 = vadd.f32 0.0, %v8664
      %8666 = vdwg.mxu0
      %v8667 = vadd.f32 %v8629, %v8665
      %s8668 = scalar_lea.vmem %s5, 2048
      %v8669 = vld [vmem:[%s8668] sm:$0xff]
      %v8670 = vld [vmem:[%s8668 + $0x8] sm:$0xff]
      %v8671 = vld [vmem:[%s8668 + $0x10] sm:$0xff]
      %v8672 = vld [vmem:[%s8668 + $0x18] sm:$0xff]
      %v8673 = vld [vmem:[%s8668 + $0x20] sm:$0xff]
      %v8674 = vld [vmem:[%s8668 + $0x28] sm:$0xff]
      %v8675 = vld [vmem:[%s8668 + $0x30] sm:$0xff]
      %v8676 = vld [vmem:[%s8668 + $0x38] sm:$0xff]
      %v8677 = vld [vmem:[%s8668 + $0x40] sm:$0xff]
      %v8678 = vld [vmem:[%s8668 + $0x48] sm:$0xff]
      %v8679 = vld [vmem:[%s8668 + $0x50] sm:$0xff]
      %v8680 = vld [vmem:[%s8668 + $0x58] sm:$0xff]
      %v8681 = vld [vmem:[%s8668 + $0x60] sm:$0xff]
      %v8682 = vld [vmem:[%s8668 + $0x68] sm:$0xff]
      %v8683 = vld [vmem:[%s8668 + $0x70] sm:$0xff]
      %v8684 = vld [vmem:[%s8668 + $0x78] sm:$0xff]
      %8685 = vmatpush.msra.mxu0 %v8684
      %8686 = vmatpush.msra.mxu0 %v8683
      %8687 = vmatpush.msra.mxu0 %v8682
      %8688 = vmatpush.msra.mxu0 %v8681
      %8689 = vmatpush.msra.mxu0 %v8680
      %8690 = vmatpush.msra.mxu0 %v8679
      %8691 = vmatpush.msra.mxu0 %v8678
      %8692 = vmatpush.msra.mxu0 %v8677
      %8693 = vmatpush.msra.mxu0 %v8676
      %8694 = vmatpush.msra.mxu0 %v8675
      %8695 = vmatpush.msra.mxu0 %v8674
      %8696 = vmatpush.msra.mxu0 %v8673
      %8697 = vmatpush.msra.mxu0 %v8672
      %8698 = vmatpush.msra.mxu0 %v8671
      %8699 = vmatpush.msra.mxu0 %v8670
      %8700 = vmatpush.msra.mxu0 %v8669
      %8701 = vmatmul.f32.gmra.mxu0 %v8037
      %v8702 = vpop.f32.mrf.mxu0
      %v8703 = vadd.f32 0.0, %v8702
      %8704 = vdwg.mxu0
      %v8705 = vadd.f32 %v8667, %v8703
      %s8706 = scalar_lea.vmem %s5, 2176
      %v8707 = vld [vmem:[%s8706] sm:$0xff]
      %v8708 = vld [vmem:[%s8706 + $0x8] sm:$0xff]
      %v8709 = vld [vmem:[%s8706 + $0x10] sm:$0xff]
      %v8710 = vld [vmem:[%s8706 + $0x18] sm:$0xff]
      %v8711 = vld [vmem:[%s8706 + $0x20] sm:$0xff]
      %v8712 = vld [vmem:[%s8706 + $0x28] sm:$0xff]
      %v8713 = vld [vmem:[%s8706 + $0x30] sm:$0xff]
      %v8714 = vld [vmem:[%s8706 + $0x38] sm:$0xff]
      %v8715 = vld [vmem:[%s8706 + $0x40] sm:$0xff]
      %v8716 = vld [vmem:[%s8706 + $0x48] sm:$0xff]
      %v8717 = vld [vmem:[%s8706 + $0x50] sm:$0xff]
      %v8718 = vld [vmem:[%s8706 + $0x58] sm:$0xff]
      %v8719 = vld [vmem:[%s8706 + $0x60] sm:$0xff]
      %v8720 = vld [vmem:[%s8706 + $0x68] sm:$0xff]
      %v8721 = vld [vmem:[%s8706 + $0x70] sm:$0xff]
      %v8722 = vld [vmem:[%s8706 + $0x78] sm:$0xff]
      %8723 = vmatpush.msra.mxu0 %v8722
      %8724 = vmatpush.msra.mxu0 %v8721
      %8725 = vmatpush.msra.mxu0 %v8720
      %8726 = vmatpush.msra.mxu0 %v8719
      %8727 = vmatpush.msra.mxu0 %v8718
      %8728 = vmatpush.msra.mxu0 %v8717
      %8729 = vmatpush.msra.mxu0 %v8716
      %8730 = vmatpush.msra.mxu0 %v8715
      %8731 = vmatpush.msra.mxu0 %v8714
      %8732 = vmatpush.msra.mxu0 %v8713
      %8733 = vmatpush.msra.mxu0 %v8712
      %8734 = vmatpush.msra.mxu0 %v8711
      %8735 = vmatpush.msra.mxu0 %v8710
      %8736 = vmatpush.msra.mxu0 %v8709
      %8737 = vmatpush.msra.mxu0 %v8708
      %8738 = vmatpush.msra.mxu0 %v8707
      %8739 = vmatmul.f32.gmra.mxu0 %v8040
      %v8740 = vpop.f32.mrf.mxu0
      %v8741 = vadd.f32 0.0, %v8740
      %8742 = vdwg.mxu0
      %v8743 = vadd.f32 %v8705, %v8741
      %s8744 = scalar_lea.vmem %s5, 2304
      %v8745 = vld [vmem:[%s8744] sm:$0xff]
      %v8746 = vld [vmem:[%s8744 + $0x8] sm:$0xff]
      %v8747 = vld [vmem:[%s8744 + $0x10] sm:$0xff]
      %v8748 = vld [vmem:[%s8744 + $0x18] sm:$0xff]
      %v8749 = vld [vmem:[%s8744 + $0x20] sm:$0xff]
      %v8750 = vld [vmem:[%s8744 + $0x28] sm:$0xff]
      %v8751 = vld [vmem:[%s8744 + $0x30] sm:$0xff]
      %v8752 = vld [vmem:[%s8744 + $0x38] sm:$0xff]
      %v8753 = vld [vmem:[%s8744 + $0x40] sm:$0xff]
      %v8754 = vld [vmem:[%s8744 + $0x48] sm:$0xff]
      %v8755 = vld [vmem:[%s8744 + $0x50] sm:$0xff]
      %v8756 = vld [vmem:[%s8744 + $0x58] sm:$0xff]
      %v8757 = vld [vmem:[%s8744 + $0x60] sm:$0xff]
      %v8758 = vld [vmem:[%s8744 + $0x68] sm:$0xff]
      %v8759 = vld [vmem:[%s8744 + $0x70] sm:$0xff]
      %v8760 = vld [vmem:[%s8744 + $0x78] sm:$0xff]
      %8761 = vmatpush.msra.mxu0 %v8760
      %8762 = vmatpush.msra.mxu0 %v8759
      %8763 = vmatpush.msra.mxu0 %v8758
      %8764 = vmatpush.msra.mxu0 %v8757
      %8765 = vmatpush.msra.mxu0 %v8756
      %8766 = vmatpush.msra.mxu0 %v8755
      %8767 = vmatpush.msra.mxu0 %v8754
      %8768 = vmatpush.msra.mxu0 %v8753
      %8769 = vmatpush.msra.mxu0 %v8752
      %8770 = vmatpush.msra.mxu0 %v8751
      %8771 = vmatpush.msra.mxu0 %v8750
      %8772 = vmatpush.msra.mxu0 %v8749
      %8773 = vmatpush.msra.mxu0 %v8748
      %8774 = vmatpush.msra.mxu0 %v8747
      %8775 = vmatpush.msra.mxu0 %v8746
      %8776 = vmatpush.msra.mxu0 %v8745
      %8777 = vmatmul.f32.gmra.mxu0 %v8043
      %v8778 = vpop.f32.mrf.mxu0
      %v8779 = vadd.f32 0.0, %v8778
      %8780 = vdwg.mxu0
      %v8781 = vadd.f32 %v8743, %v8779
      %s8782 = scalar_lea.vmem %s5, 2432
      %v8783 = vld [vmem:[%s8782] sm:$0xff]
      %v8784 = vld [vmem:[%s8782 + $0x8] sm:$0xff]
      %v8785 = vld [vmem:[%s8782 + $0x10] sm:$0xff]
      %v8786 = vld [vmem:[%s8782 + $0x18] sm:$0xff]
      %v8787 = vld [vmem:[%s8782 + $0x20] sm:$0xff]
      %v8788 = vld [vmem:[%s8782 + $0x28] sm:$0xff]
      %v8789 = vld [vmem:[%s8782 + $0x30] sm:$0xff]
      %v8790 = vld [vmem:[%s8782 + $0x38] sm:$0xff]
      %v8791 = vld [vmem:[%s8782 + $0x40] sm:$0xff]
      %v8792 = vld [vmem:[%s8782 + $0x48] sm:$0xff]
      %v8793 = vld [vmem:[%s8782 + $0x50] sm:$0xff]
      %v8794 = vld [vmem:[%s8782 + $0x58] sm:$0xff]
      %v8795 = vld [vmem:[%s8782 + $0x60] sm:$0xff]
      %v8796 = vld [vmem:[%s8782 + $0x68] sm:$0xff]
      %v8797 = vld [vmem:[%s8782 + $0x70] sm:$0xff]
      %v8798 = vld [vmem:[%s8782 + $0x78] sm:$0xff]
      %8799 = vmatpush.msra.mxu0 %v8798
      %8800 = vmatpush.msra.mxu0 %v8797
      %8801 = vmatpush.msra.mxu0 %v8796
      %8802 = vmatpush.msra.mxu0 %v8795
      %8803 = vmatpush.msra.mxu0 %v8794
      %8804 = vmatpush.msra.mxu0 %v8793
      %8805 = vmatpush.msra.mxu0 %v8792
      %8806 = vmatpush.msra.mxu0 %v8791
      %8807 = vmatpush.msra.mxu0 %v8790
      %8808 = vmatpush.msra.mxu0 %v8789
      %8809 = vmatpush.msra.mxu0 %v8788
      %8810 = vmatpush.msra.mxu0 %v8787
      %8811 = vmatpush.msra.mxu0 %v8786
      %8812 = vmatpush.msra.mxu0 %v8785
      %8813 = vmatpush.msra.mxu0 %v8784
      %8814 = vmatpush.msra.mxu0 %v8783
      %8815 = vmatmul.f32.gmra.mxu0 %v8046
      %v8816 = vpop.f32.mrf.mxu0
      %v8817 = vadd.f32 0.0, %v8816
      %8818 = vdwg.mxu0
      %v8819 = vadd.f32 %v8781, %v8817
      %s8820 = scalar_lea.vmem %s5, 2560
      %v8821 = vld [vmem:[%s8820] sm:$0xff]
      %v8822 = vld [vmem:[%s8820 + $0x8] sm:$0xff]
      %v8823 = vld [vmem:[%s8820 + $0x10] sm:$0xff]
      %v8824 = vld [vmem:[%s8820 + $0x18] sm:$0xff]
      %v8825 = vld [vmem:[%s8820 + $0x20] sm:$0xff]
      %v8826 = vld [vmem:[%s8820 + $0x28] sm:$0xff]
      %v8827 = vld [vmem:[%s8820 + $0x30] sm:$0xff]
      %v8828 = vld [vmem:[%s8820 + $0x38] sm:$0xff]
      %v8829 = vld [vmem:[%s8820 + $0x40] sm:$0xff]
      %v8830 = vld [vmem:[%s8820 + $0x48] sm:$0xff]
      %v8831 = vld [vmem:[%s8820 + $0x50] sm:$0xff]
      %v8832 = vld [vmem:[%s8820 + $0x58] sm:$0xff]
      %v8833 = vld [vmem:[%s8820 + $0x60] sm:$0xff]
      %v8834 = vld [vmem:[%s8820 + $0x68] sm:$0xff]
      %v8835 = vld [vmem:[%s8820 + $0x70] sm:$0xff]
      %v8836 = vld [vmem:[%s8820 + $0x78] sm:$0xff]
      %8837 = vmatpush.msra.mxu0 %v8836
      %8838 = vmatpush.msra.mxu0 %v8835
      %8839 = vmatpush.msra.mxu0 %v8834
      %8840 = vmatpush.msra.mxu0 %v8833
      %8841 = vmatpush.msra.mxu0 %v8832
      %8842 = vmatpush.msra.mxu0 %v8831
      %8843 = vmatpush.msra.mxu0 %v8830
      %8844 = vmatpush.msra.mxu0 %v8829
      %8845 = vmatpush.msra.mxu0 %v8828
      %8846 = vmatpush.msra.mxu0 %v8827
      %8847 = vmatpush.msra.mxu0 %v8826
      %8848 = vmatpush.msra.mxu0 %v8825
      %8849 = vmatpush.msra.mxu0 %v8824
      %8850 = vmatpush.msra.mxu0 %v8823
      %8851 = vmatpush.msra.mxu0 %v8822
      %8852 = vmatpush.msra.mxu0 %v8821
      %8853 = vmatmul.f32.gmra.mxu0 %v8049
      %v8854 = vpop.f32.mrf.mxu0
      %v8855 = vadd.f32 0.0, %v8854
      %8856 = vdwg.mxu0
      %v8857 = vadd.f32 %v8819, %v8855
      %s8858 = scalar_lea.vmem %s5, 2688
      %v8859 = vld [vmem:[%s8858] sm:$0xff]
      %v8860 = vld [vmem:[%s8858 + $0x8] sm:$0xff]
      %v8861 = vld [vmem:[%s8858 + $0x10] sm:$0xff]
      %v8862 = vld [vmem:[%s8858 + $0x18] sm:$0xff]
      %v8863 = vld [vmem:[%s8858 + $0x20] sm:$0xff]
      %v8864 = vld [vmem:[%s8858 + $0x28] sm:$0xff]
      %v8865 = vld [vmem:[%s8858 + $0x30] sm:$0xff]
      %v8866 = vld [vmem:[%s8858 + $0x38] sm:$0xff]
      %v8867 = vld [vmem:[%s8858 + $0x40] sm:$0xff]
      %v8868 = vld [vmem:[%s8858 + $0x48] sm:$0xff]
      %v8869 = vld [vmem:[%s8858 + $0x50] sm:$0xff]
      %v8870 = vld [vmem:[%s8858 + $0x58] sm:$0xff]
      %v8871 = vld [vmem:[%s8858 + $0x60] sm:$0xff]
      %v8872 = vld [vmem:[%s8858 + $0x68] sm:$0xff]
      %v8873 = vld [vmem:[%s8858 + $0x70] sm:$0xff]
      %v8874 = vld [vmem:[%s8858 + $0x78] sm:$0xff]
      %8875 = vmatpush.msra.mxu0 %v8874
      %8876 = vmatpush.msra.mxu0 %v8873
      %8877 = vmatpush.msra.mxu0 %v8872
      %8878 = vmatpush.msra.mxu0 %v8871
      %8879 = vmatpush.msra.mxu0 %v8870
      %8880 = vmatpush.msra.mxu0 %v8869
      %8881 = vmatpush.msra.mxu0 %v8868
      %8882 = vmatpush.msra.mxu0 %v8867
      %8883 = vmatpush.msra.mxu0 %v8866
      %8884 = vmatpush.msra.mxu0 %v8865
      %8885 = vmatpush.msra.mxu0 %v8864
      %8886 = vmatpush.msra.mxu0 %v8863
      %8887 = vmatpush.msra.mxu0 %v8862
      %8888 = vmatpush.msra.mxu0 %v8861
      %8889 = vmatpush.msra.mxu0 %v8860
      %8890 = vmatpush.msra.mxu0 %v8859
      %8891 = vmatmul.f32.gmra.mxu0 %v8052
      %v8892 = vpop.f32.mrf.mxu0
      %v8893 = vadd.f32 0.0, %v8892
      %8894 = vdwg.mxu0
      %v8895 = vadd.f32 %v8857, %v8893
      %s8896 = scalar_lea.vmem %s5, 2816
      %v8897 = vld [vmem:[%s8896] sm:$0xff]
      %v8898 = vld [vmem:[%s8896 + $0x8] sm:$0xff]
      %v8899 = vld [vmem:[%s8896 + $0x10] sm:$0xff]
      %v8900 = vld [vmem:[%s8896 + $0x18] sm:$0xff]
      %v8901 = vld [vmem:[%s8896 + $0x20] sm:$0xff]
      %v8902 = vld [vmem:[%s8896 + $0x28] sm:$0xff]
      %v8903 = vld [vmem:[%s8896 + $0x30] sm:$0xff]
      %v8904 = vld [vmem:[%s8896 + $0x38] sm:$0xff]
      %v8905 = vld [vmem:[%s8896 + $0x40] sm:$0xff]
      %v8906 = vld [vmem:[%s8896 + $0x48] sm:$0xff]
      %v8907 = vld [vmem:[%s8896 + $0x50] sm:$0xff]
      %v8908 = vld [vmem:[%s8896 + $0x58] sm:$0xff]
      %v8909 = vld [vmem:[%s8896 + $0x60] sm:$0xff]
      %v8910 = vld [vmem:[%s8896 + $0x68] sm:$0xff]
      %v8911 = vld [vmem:[%s8896 + $0x70] sm:$0xff]
      %v8912 = vld [vmem:[%s8896 + $0x78] sm:$0xff]
      %8913 = vmatpush.msra.mxu0 %v8912
      %8914 = vmatpush.msra.mxu0 %v8911
      %8915 = vmatpush.msra.mxu0 %v8910
      %8916 = vmatpush.msra.mxu0 %v8909
      %8917 = vmatpush.msra.mxu0 %v8908
      %8918 = vmatpush.msra.mxu0 %v8907
      %8919 = vmatpush.msra.mxu0 %v8906
      %8920 = vmatpush.msra.mxu0 %v8905
      %8921 = vmatpush.msra.mxu0 %v8904
      %8922 = vmatpush.msra.mxu0 %v8903
      %8923 = vmatpush.msra.mxu0 %v8902
      %8924 = vmatpush.msra.mxu0 %v8901
      %8925 = vmatpush.msra.mxu0 %v8900
      %8926 = vmatpush.msra.mxu0 %v8899
      %8927 = vmatpush.msra.mxu0 %v8898
      %8928 = vmatpush.msra.mxu0 %v8897
      %8929 = vmatmul.f32.gmra.mxu0 %v8055
      %v8930 = vpop.f32.mrf.mxu0
      %v8931 = vadd.f32 0.0, %v8930
      %8932 = vdwg.mxu0
      %v8933 = vadd.f32 %v8895, %v8931
      %s8934 = scalar_lea.vmem %s5, 2944
      %v8935 = vld [vmem:[%s8934] sm:$0xff]
      %v8936 = vld [vmem:[%s8934 + $0x8] sm:$0xff]
      %v8937 = vld [vmem:[%s8934 + $0x10] sm:$0xff]
      %v8938 = vld [vmem:[%s8934 + $0x18] sm:$0xff]
      %v8939 = vld [vmem:[%s8934 + $0x20] sm:$0xff]
      %v8940 = vld [vmem:[%s8934 + $0x28] sm:$0xff]
      %v8941 = vld [vmem:[%s8934 + $0x30] sm:$0xff]
      %v8942 = vld [vmem:[%s8934 + $0x38] sm:$0xff]
      %v8943 = vld [vmem:[%s8934 + $0x40] sm:$0xff]
      %v8944 = vld [vmem:[%s8934 + $0x48] sm:$0xff]
      %v8945 = vld [vmem:[%s8934 + $0x50] sm:$0xff]
      %v8946 = vld [vmem:[%s8934 + $0x58] sm:$0xff]
      %v8947 = vld [vmem:[%s8934 + $0x60] sm:$0xff]
      %v8948 = vld [vmem:[%s8934 + $0x68] sm:$0xff]
      %v8949 = vld [vmem:[%s8934 + $0x70] sm:$0xff]
      %v8950 = vld [vmem:[%s8934 + $0x78] sm:$0xff]
      %8951 = vmatpush.msra.mxu0 %v8950
      %8952 = vmatpush.msra.mxu0 %v8949
      %8953 = vmatpush.msra.mxu0 %v8948
      %8954 = vmatpush.msra.mxu0 %v8947
      %8955 = vmatpush.msra.mxu0 %v8946
      %8956 = vmatpush.msra.mxu0 %v8945
      %8957 = vmatpush.msra.mxu0 %v8944
      %8958 = vmatpush.msra.mxu0 %v8943
      %8959 = vmatpush.msra.mxu0 %v8942
      %8960 = vmatpush.msra.mxu0 %v8941
      %8961 = vmatpush.msra.mxu0 %v8940
      %8962 = vmatpush.msra.mxu0 %v8939
      %8963 = vmatpush.msra.mxu0 %v8938
      %8964 = vmatpush.msra.mxu0 %v8937
      %8965 = vmatpush.msra.mxu0 %v8936
      %8966 = vmatpush.msra.mxu0 %v8935
      %8967 = vmatmul.f32.gmra.mxu0 %v8058
      %v8968 = vpop.f32.mrf.mxu0
      %v8969 = vadd.f32 0.0, %v8968
      %8970 = vdwg.mxu0
      %v8971 = vadd.f32 %v8933, %v8969
      %s8972 = scalar_lea.vmem %s5, 3072
      %v8973 = vld [vmem:[%s8972] sm:$0xff]
      %v8974 = vld [vmem:[%s8972 + $0x8] sm:$0xff]
      %v8975 = vld [vmem:[%s8972 + $0x10] sm:$0xff]
      %v8976 = vld [vmem:[%s8972 + $0x18] sm:$0xff]
      %v8977 = vld [vmem:[%s8972 + $0x20] sm:$0xff]
      %v8978 = vld [vmem:[%s8972 + $0x28] sm:$0xff]
      %v8979 = vld [vmem:[%s8972 + $0x30] sm:$0xff]
      %v8980 = vld [vmem:[%s8972 + $0x38] sm:$0xff]
      %v8981 = vld [vmem:[%s8972 + $0x40] sm:$0xff]
      %v8982 = vld [vmem:[%s8972 + $0x48] sm:$0xff]
      %v8983 = vld [vmem:[%s8972 + $0x50] sm:$0xff]
      %v8984 = vld [vmem:[%s8972 + $0x58] sm:$0xff]
      %v8985 = vld [vmem:[%s8972 + $0x60] sm:$0xff]
      %v8986 = vld [vmem:[%s8972 + $0x68] sm:$0xff]
      %v8987 = vld [vmem:[%s8972 + $0x70] sm:$0xff]
      %v8988 = vld [vmem:[%s8972 + $0x78] sm:$0xff]
      %8989 = vmatpush.msra.mxu0 %v8988
      %8990 = vmatpush.msra.mxu0 %v8987
      %8991 = vmatpush.msra.mxu0 %v8986
      %8992 = vmatpush.msra.mxu0 %v8985
      %8993 = vmatpush.msra.mxu0 %v8984
      %8994 = vmatpush.msra.mxu0 %v8983
      %8995 = vmatpush.msra.mxu0 %v8982
      %8996 = vmatpush.msra.mxu0 %v8981
      %8997 = vmatpush.msra.mxu0 %v8980
      %8998 = vmatpush.msra.mxu0 %v8979
      %8999 = vmatpush.msra.mxu0 %v8978
      %9000 = vmatpush.msra.mxu0 %v8977
      %9001 = vmatpush.msra.mxu0 %v8976
      %9002 = vmatpush.msra.mxu0 %v8975
      %9003 = vmatpush.msra.mxu0 %v8974
      %9004 = vmatpush.msra.mxu0 %v8973
      %9005 = vmatmul.f32.gmra.mxu0 %v8061
      %v9006 = vpop.f32.mrf.mxu0
      %v9007 = vadd.f32 0.0, %v9006
      %9008 = vdwg.mxu0
      %v9009 = vadd.f32 %v8971, %v9007
      %v9010 = vld [vmem:[%s6] sm:$0x1]
      %v9012 = vperm.slane %v9010, 0
      %v9014 = vadd.f32 %v9009, %v9012
      %v9015 = vcvt.f32.s32.ties.to.even %v9014
      %9016 = vst [vmem:[%s276] sm:$0xff] %v9015
      %p9017 = scmp.lt.s32.totalorder %s18, 1
      %s9018 = scalar_select %p9017, %s18, 1
      %s9019 = smul.addr %s9018, 8
      %s9020 = scalar_lea.vmem %s7, %s9019
      // Predicated region
      $region49: #{encoder_forward.5} parent=47 // pred_check
        %p9021 = pneg %p188
      $region50: #{encoder_forward.5} parent=47 // pred_check_branch
        %9023 = sbr.rel (%p9021) target = $region52
      $region51: #{encoder_forward.5} parent=47 // pred_region
        _
      $region52: #{encoder_forward.5} parent=47 // pred_fallthru
        _
    $region48: #{encoder_forward.5} parent=5 // pred_fallthru
      _
    %p9024 = scmp.le.s32.totalorder 2, %s13
    // Predicated region
    $region53: #{encoder_forward.5} parent=5 // pred_check
      %p9025 = pneg %p9024
    $region54: #{encoder_forward.5} parent=5 // pred_check_branch
      %9027 = sbr.rel (%p9025) target = $region56
    $region55: #{encoder_forward.5} parent=5 // pred_region
      %s9028 = ssub.s32 %s13, 2
      // Predicated region
      $region57: #{encoder_forward.5} parent=55 // pred_check
        %p9029 = pneg %p194
      $region58: #{encoder_forward.5} parent=55 // pred_check_branch
        %9031 = sbr.rel (%p9029) target = $region60
      $region59: #{encoder_forward.5} parent=55 // pred_region
        %p9032 = scmp.lt.s32.totalorder %s19, 1
        %s9033 = scalar_select %p9032, %s19, 1
        %s9034 = smul.addr %s9033, 8
        %s9035 = scalar_lea.vmem %s7, %s9034
      $region60: #{encoder_forward.5} parent=55 // pred_fallthru
        _
    $region56: #{encoder_forward.5} parent=5 // pred_fallthru
      _
  $region6: #{encoder_forward.5} parent=0 // loop_footer
    %s17 = sadd.s32 1, %s13
  $region7: #{encoder_forward.5} parent=0 // loop_footer_branch
    %12 = sbr.rel target = $region3
  $region8: #{encoder_forward.5} parent=0 // loop_exit
    _

</llo_original>
